<compile_context>
chip_gen: v5e
topology: v5e:2x2
jax: 0.10.0
libtpu: 0.0.40
codegen_flags: <defaults>
</compile_context>

<pallas_src>
import math

import jax
import jax.numpy as jnp
from jax.experimental import pallas as pl
from jax.experimental.pallas import tpu as pltpu

# Full-f32 matmuls in the pure-JAX reference so it is comparable to the
# in-kernel f32 MXU path.
jax.config.update("jax_default_matmul_precision", "highest")

# ---- Model hyper-parameters (PyTorch module defaults) ----
POS_DIM = 1
SIG_DIM = 8
IN_DIM = POS_DIM + SIG_DIM          # 9
HIDDEN = 64
HEADS = 4
HEAD_DIM = HIDDEN // HEADS          # 16
FF_HIDDEN = 4 * HIDDEN              # 256
NUM_LAYERS = 2
OUT_DIM = 2
LN_EPS = 1e-5
LEAKY_SLOPE = 0.3

# Kernel-side input padding of the 9-wide features (9 -> 16, exact because the
# matching emb_w1 rows are zero).
IN_PAD = 16


def _layer_norm(x, gamma, beta):
    mu = jnp.mean(x, axis=-1, keepdims=True)
    xc = x - mu
    var = jnp.mean(xc * xc, axis=-1, keepdims=True)
    return xc * jax.lax.rsqrt(var + LN_EPS) * gamma + beta


def _fast_recip(x):
    # EUP approximate reciprocal + one Newton step: co-issues off the VALU and
    # is ~f32-exact (error ~1e-7 relative).
    r = pl.reciprocal(x, approx=True)
    return r * (2.0 - x * r)


def _model_kernel(x_ref,
                  ew1_ref, ebs_ref, ew2_ref,
                  wqkv_ref, bqkv_ref, wo_ref, vecs_ref,
                  wf1_ref, bf1_ref, wf2_ref,
                  owb_ref,
                  o_ref):
    tile_b, n = x_ref.shape[0], x_ref.shape[1]
    m = tile_b * n

    # Flatten the tile_b antenna sets into one [m, .] row block so every dense
    # GEMM below sees m MXU rows.
    x = x_ref[...].reshape(m, IN_PAD)                                # [m, 16]
    ebs = ebs_ref[...]                                               # [2, H]

    # ---- Embedding MLP: Linear -> ReLU -> Linear ----
    h = jnp.dot(x, ew1_ref[...], preferred_element_type=jnp.float32) + ebs[0:1]
    h = jnp.maximum(h, 0.0)
    h = jnp.dot(h, ew2_ref[...], preferred_element_type=jnp.float32) + ebs[1:2]

    scale = 1.0 / math.sqrt(HEAD_DIM)

    for l in range(NUM_LAYERS):                                      # static unroll
        vecs = vecs_ref[l]                                           # [6, H]
        ln1_g, ln1_b = vecs[0:1], vecs[1:2]
        bo = vecs[2:3]
        ln2_g, ln2_b = vecs[3:4], vecs[4:5]
        bf2 = vecs[5:6]
        wo_l = wo_ref[l]                                             # [HEADS, dh, H]

        # -- SAB part 1: LayerNorm -> fused-QKV self-attention -> residual --
        xn = _layer_norm(h, ln1_g, ln1_b)
        qkv = jnp.dot(xn, wqkv_ref[l],
                      preferred_element_type=jnp.float32) + bqkv_ref[l]  # [m, 3H]

        attn = jnp.zeros((m, HIDDEN), jnp.float32)
        for hd in range(HEADS):                                      # static unroll
            lo = hd * HEAD_DIM
            per_set = []
            for si in range(tile_b):                                 # static unroll
                r0 = si * n
                qh = qkv[r0:r0 + n, lo:lo + HEAD_DIM]
                kh = qkv[r0:r0 + n, HIDDEN + lo:HIDDEN + lo + HEAD_DIM]
                vh = qkv[r0:r0 + n, 2 * HIDDEN + lo:2 * HIDDEN + lo + HEAD_DIM]
                sc = jax.lax.dot_general(                            # qh @ kh^T
                    qh, kh, (((1,), (1,)), ((), ())),
                    preferred_element_type=jnp.float32) * scale      # [n, n]
                mx = jnp.max(sc, axis=-1, keepdims=True)
                p = jnp.exp(sc - mx)
                p = p * _fast_recip(jnp.sum(p, axis=-1, keepdims=True))
                per_set.append(jnp.dot(p, vh, preferred_element_type=jnp.float32))
            # Row-stack this head's outputs across the tile's sets (aligned,
            # n % 8 == 0) so the Wo partial matmul sees all m rows.
            oh = per_set[0] if tile_b == 1 else jnp.concatenate(per_set, axis=0)
            # concat_heads(o) @ Wo == sum_h  o_h @ Wo[h*dh:(h+1)*dh, :]
            attn = attn + jnp.dot(oh, wo_l[hd], preferred_element_type=jnp.float32)
        h = h + attn + bo

        # -- SAB part 2: LayerNorm -> FFN (LeakyReLU 0.3) -> residual --
        xn = _layer_norm(h, ln2_g, ln2_b)
        f = jnp.dot(xn, wf1_ref[l], preferred_element_type=jnp.float32) + bf1_ref[l]
        f = jnp.where(f > 0, f, LEAKY_SLOPE * f)
        f = jnp.dot(f, wf2_ref[l], preferred_element_type=jnp.float32) + bf2
        h = h + f

    # ---- Output head (unpadded [m, OUT_DIM] result, masked 2-lane store) ----
    owb = owb_ref[...]                                               # [H+1, 2]
    out = jnp.dot(h, owb[:HIDDEN], preferred_element_type=jnp.float32) + owb[HIDDEN:]
    o_ref[...] = out.reshape(tile_b, n, OUT_DIM).astype(o_ref.dtype)


# ---------------- one-time weight packing (hoisted out of the forward) ----------------

def prepare_params(params):
    """Pack the per-layer parameter dict into the 12 kernel operands.

    Call ONCE; reuse the result for every forward (no per-call stack/pad ops).
    """
    layers = params["layers"]
    return {
        "ew1": jnp.pad(params["emb_w1"], ((0, IN_PAD - IN_DIM), (0, 0))),       # [16, H]
        "ebs": jnp.stack([params["emb_b1"], params["emb_b2"]], axis=0),          # [2, H]
        "ew2": params["emb_w2"],                                                 # [H, H]
        "wqkv": jnp.stack(
            [jnp.concatenate([l["wq"], l["wk"], l["wv"]], axis=1) for l in layers]),   # [L, H, 3H]
        "bqkv": jnp.stack(
            [jnp.concatenate([l["bq"], l["bk"], l["bv"]])[None, :] for l in layers]),  # [L, 1, 3H]
        "wo": jnp.stack(
            [l["wo"].reshape(HEADS, HEAD_DIM, HIDDEN) for l in layers]),         # [L, HEADS, dh, H]
        "vecs": jnp.stack(
            [jnp.stack([l["ln1_g"], l["ln1_b"], l["bo"],
                        l["ln2_g"], l["ln2_b"], l["bf2"]], axis=0)
             for l in layers]),                                                  # [L, 6, H]
        "wf1": jnp.stack([l["wf1"] for l in layers]),                            # [L, H, F]
        "bf1": jnp.stack([l["bf1"][None, :] for l in layers]),                   # [L, 1, F]
        "wf2": jnp.stack([l["wf2"] for l in layers]),                            # [L, F, H]
        "owb": jnp.concatenate([params["out_w"], params["out_b"][None, :]], axis=0),   # [H+1, 2]
    }


def _pick_tile_b(batch, n, target_rows=128):
    """Largest divisor of `batch` with tile_b*n <= target_rows, keeping >= 2
    grid programs whenever batch >= 2 (v7x has two TensorCores per chip)."""
    best = 1
    for t in range(1, batch + 1):
        if batch % t != 0 or t * n > target_rows:
            continue
        if batch // t >= 2 or batch == 1:
            best = t
    return best


@jax.jit
def set_channel_estimation_forward(positions, signals, packed):
    """positions [B, n, POS_DIM], signals [B, n, SIG_DIM] -> [B, n, OUT_DIM]."""
    B, n, _ = positions.shape
    tile_b = _pick_tile_b(B, n)
    L, H, F = NUM_LAYERS, HIDDEN, FF_HIDDEN

    # Per-call input prep: one tiny fused concat + 9->16 lane pad (exact since
    # emb_w1 rows 9..15 are zero).  Everything else is pre-packed.
    x = jnp.concatenate([positions, signals], axis=-1).astype(jnp.float32)
    x = jnp.pad(x, ((0, 0), (0, 0), (0, IN_PAD - IN_DIM)))

    def const2(shape):
        return pl.BlockSpec(shape, lambda b: (0, 0))

    def const3(shape):
        return pl.BlockSpec(shape, lambda b: (0, 0, 0))

    def const4(shape):
        return pl.BlockSpec(shape, lambda b: (0, 0, 0, 0))

    grid_spec = pl.GridSpec(
        grid=(B // tile_b,),
        in_specs=[
            pl.BlockSpec((tile_b, n, IN_PAD), lambda b: (b, 0, 0)),
            const2((IN_PAD, H)), const2((2, H)), const2((H, H)),
            const3((L, H, 3 * H)), const3((L, 1, 3 * H)),
            const4((L, HEADS, HEAD_DIM, H)), const3((L, 6, H)),
            const3((L, H, F)), const3((L, 1, F)), const3((L, F, H)),
            const2((H + 1, OUT_DIM)),
        ],
        out_specs=pl.BlockSpec((tile_b, n, OUT_DIM), lambda b: (b, 0, 0)),
    )

    return pl.pallas_call(
        _model_kernel,
        out_shape=jax.ShapeDtypeStruct((B, n, OUT_DIM), jnp.float32),
        grid_spec=grid_spec,
        compiler_params=pltpu.CompilerParams(
            dimension_semantics=("parallel",)),
    )(x,
      packed["ew1"], packed["ebs"], packed["ew2"],
      packed["wqkv"], packed["bqkv"], packed["wo"], packed["vecs"],
      packed["wf1"], packed["bf1"], packed["wf2"],
      packed["owb"])


# ---------------- parameter init + pure-JAX reference ----------------

def init_params(key):
    kit = iter(jax.random.split(key, 80))

    def linear(fan_in, fan_out):
        bound = 1.0 / (fan_in ** 0.5)
        w = jax.random.uniform(next(kit), (fan_in, fan_out),
                               minval=-bound, maxval=bound, dtype=jnp.float32)
        b = jax.random.uniform(next(kit), (fan_out,),
                               minval=-bound, maxval=bound, dtype=jnp.float32)
        return w, b

    def ln(dim):
        g = 1.0 + 0.1 * jax.random.uniform(next(kit), (dim,), minval=-1.0,
                                           maxval=1.0, dtype=jnp.float32)
        b = 0.1 * jax.random.uniform(next(kit), (dim,), minval=-1.0,
                                     maxval=1.0, dtype=jnp.float32)
        return g, b

    params = {}
    params["emb_w1"], params["emb_b1"] = linear(IN_DIM, HIDDEN)
    params["emb_w2"], params["emb_b2"] = linear(HIDDEN, HIDDEN)
    layers = []
    for _ in range(NUM_LAYERS):
        lyr = {}
        lyr["ln1_g"], lyr["ln1_b"] = ln(HIDDEN)
        lyr["wq"], lyr["bq"] = linear(HIDDEN, HIDDEN)
        lyr["wk"], lyr["bk"] = linear(HIDDEN, HIDDEN)
        lyr["wv"], lyr["bv"] = linear(HIDDEN, HIDDEN)
        lyr["wo"], lyr["bo"] = linear(HIDDEN, HIDDEN)
        lyr["ln2_g"], lyr["ln2_b"] = ln(HIDDEN)
        lyr["wf1"], lyr["bf1"] = linear(HIDDEN, FF_HIDDEN)
        lyr["wf2"], lyr["bf2"] = linear(FF_HIDDEN, HIDDEN)
        layers.append(lyr)
    params["layers"] = layers
    params["out_w"], params["out_b"] = linear(HIDDEN, OUT_DIM)
    return params


def _ln_ref(x, g, b):
    mu = jnp.mean(x, axis=-1, keepdims=True)
    xc = x - mu
    var = jnp.mean(xc * xc, axis=-1, keepdims=True)
    return xc * jax.lax.rsqrt(var + LN_EPS) * g + b


def reference_forward(positions, signals, params):
    x = jnp.concatenate([positions, signals], axis=-1)
    h = jnp.maximum(x @ params["emb_w1"] + params["emb_b1"], 0.0)
    h = h @ params["emb_w2"] + params["emb_b2"]
    for lyr in params["layers"]:
        xn = _ln_ref(h, lyr["ln1_g"], lyr["ln1_b"])
        q = xn @ lyr["wq"] + lyr["bq"]
        k = xn @ lyr["wk"] + lyr["bk"]
        v = xn @ lyr["wv"] + lyr["bv"]
        B, n, D = q.shape

        def split(t):
            return t.reshape(B, n, HEADS, HEAD_DIM).transpose(0, 2, 1, 3)

        qh, kh, vh = split(q), split(k), split(v)
        s = jnp.einsum("bhqd,bhkd->bhqk", qh, kh) / (HEAD_DIM ** 0.5)
        a = jax.nn.softmax(s, axis=-1)
        o = jnp.einsum("bhqk,bhkd->bhqd", a, vh)
        o = o.transpose(0, 2, 1, 3).reshape(B, n, D)
        o = o @ lyr["wo"] + lyr["bo"]
        h = h + o
        xn = _ln_ref(h, lyr["ln2_g"], lyr["ln2_b"])
        f = xn @ lyr["wf1"] + lyr["bf1"]
        f = jnp.where(f > 0, f, LEAKY_SLOPE * f)
        f = f @ lyr["wf2"] + lyr["bf2"]
        h = h + f
    return h @ params["out_w"] + params["out_b"]


if __name__ == "__main__":
    key = jax.random.PRNGKey(0)
    kp, kpos, ksig = jax.random.split(key, 3)

    batch, n_antennas = 2, 16
    params = init_params(kp)
    packed = prepare_params(params)   # one-time weight packing, hoisted out of the forward

    positions = jax.random.normal(kpos, (batch, n_antennas, POS_DIM), dtype=jnp.float32)
    signals = jax.random.normal(ksig, (batch, n_antennas, SIG_DIM), dtype=jnp.float32)

    out = set_channel_estimation_forward(positions, signals, packed)
    out = jax.block_until_ready(out)

    ref = reference_forward(positions, signals, params)

    assert out.shape == (batch, n_antennas, OUT_DIM), out.shape
    assert bool(jnp.all(jnp.isfinite(out)))
    max_err = float(jnp.max(jnp.abs(out - ref)))
    assert jnp.allclose(out, ref, atol=1e-3, rtol=1e-3), max_err

    print("KERNEL_OK")
</pallas_src>

<mosaic_0001>
module attributes {stable_mosaic.version = 11 : i64} {
  func.func @_model_kernel(%arg0: i32, %arg1: memref<1x16x16xf32, #tpu.memory_space<vmem>>, %arg2: memref<16x64xf32, #tpu.memory_space<vmem>>, %arg3: memref<2x64xf32, #tpu.memory_space<vmem>>, %arg4: memref<64x64xf32, #tpu.memory_space<vmem>>, %arg5: memref<2x64x192xf32, #tpu.memory_space<vmem>>, %arg6: memref<2x1x192xf32, #tpu.memory_space<vmem>>, %arg7: memref<2x4x16x64xf32, #tpu.memory_space<vmem>>, %arg8: memref<2x6x64xf32, #tpu.memory_space<vmem>>, %arg9: memref<2x64x256xf32, #tpu.memory_space<vmem>>, %arg10: memref<2x1x256xf32, #tpu.memory_space<vmem>>, %arg11: memref<2x256x64xf32, #tpu.memory_space<vmem>>, %arg12: memref<65x2xf32, #tpu.memory_space<vmem>>, %arg13: memref<1x16x2xf32, #tpu.memory_space<vmem>>) attributes {dimension_semantics = [#tpu.dimension_semantics<parallel>], iteration_bounds = array<i64: 2>, scalar_prefetch = 0 : i64, scratch_operands = 0 : i64, tpu.core_type = #tpu.core_type<tc>, window_params = [{transform_indices = @transform_0, window_bounds = array<i64: 1, 16, 16>}, {pipeline_mode = #tpu.pipeline_mode<synchronous>, transform_indices = @transform_1, window_bounds = array<i64: 16, 64>}, {pipeline_mode = #tpu.pipeline_mode<synchronous>, transform_indices = @transform_2, window_bounds = array<i64: 2, 64>}, {pipeline_mode = #tpu.pipeline_mode<synchronous>, transform_indices = @transform_3, window_bounds = array<i64: 64, 64>}, {pipeline_mode = #tpu.pipeline_mode<synchronous>, transform_indices = @transform_4, window_bounds = array<i64: 2, 64, 192>}, {pipeline_mode = #tpu.pipeline_mode<synchronous>, transform_indices = @transform_5, window_bounds = array<i64: 2, 1, 192>}, {pipeline_mode = #tpu.pipeline_mode<synchronous>, transform_indices = @transform_6, window_bounds = array<i64: 2, 4, 16, 64>}, {pipeline_mode = #tpu.pipeline_mode<synchronous>, transform_indices = @transform_7, window_bounds = array<i64: 2, 6, 64>}, {pipeline_mode = #tpu.pipeline_mode<synchronous>, transform_indices = @transform_8, window_bounds = array<i64: 2, 64, 256>}, {pipeline_mode = #tpu.pipeline_mode<synchronous>, transform_indices = @transform_9, window_bounds = array<i64: 2, 1, 256>}, {pipeline_mode = #tpu.pipeline_mode<synchronous>, transform_indices = @transform_10, window_bounds = array<i64: 2, 256, 64>}, {pipeline_mode = #tpu.pipeline_mode<synchronous>, transform_indices = @transform_11, window_bounds = array<i64: 65, 2>}, {transform_indices = @transform_12, window_bounds = array<i64: 1, 16, 2>}]} {
    %c0 = arith.constant 0 : index
    %c0_0 = arith.constant 0 : index
    %c0_1 = arith.constant 0 : index
    %0 = vector.load %arg1[%c0, %c0_0, %c0_1] : memref<1x16x16xf32, #tpu.memory_space<vmem>>, vector<1x16x16xf32>
    %1 = vector.shape_cast %0 : vector<1x16x16xf32> to vector<16x16xf32>
    %c0_2 = arith.constant 0 : index
    %c0_3 = arith.constant 0 : index
    %2 = vector.load %arg3[%c0_2, %c0_3] : memref<2x64xf32, #tpu.memory_space<vmem>>, vector<2x64xf32>
    %c0_4 = arith.constant 0 : index
    %c0_5 = arith.constant 0 : index
    %3 = vector.load %arg2[%c0_4, %c0_5] : memref<16x64xf32, #tpu.memory_space<vmem>>, vector<16x64xf32>
    %cst = arith.constant dense<0.000000e+00> : vector<16x64xf32>
    %4 = tpu.matmul %1, %3, %cst {dimension_numbers = #tpu.dot_dimension_numbers<[1], [0], [0], [1], [0, 0, 1, 1], [], []>, precision = #tpu.contract_precision<fp32>} : vector<16x16xf32>, vector<16x64xf32>, vector<16x64xf32> -> vector<16x64xf32>
    %5 = vector.extract_strided_slice %2 {offsets = [0, 0], sizes = [1, 64], strides = [1, 1]} : vector<2x64xf32> to vector<1x64xf32>
    %6 = vector.broadcast %5 : vector<1x64xf32> to vector<16x64xf32>
    %7 = arith.addf %4, %6 : vector<16x64xf32>
    %cst_6 = arith.constant 0.000000e+00 : f32
    %8 = vector.broadcast %cst_6 : f32 to vector<16x64xf32>
    %9 = arith.maximumf %7, %8 : vector<16x64xf32>
    %c0_7 = arith.constant 0 : index
    %c0_8 = arith.constant 0 : index
    %10 = vector.load %arg4[%c0_7, %c0_8] : memref<64x64xf32, #tpu.memory_space<vmem>>, vector<64x64xf32>
    %cst_9 = arith.constant dense<0.000000e+00> : vector<16x64xf32>
    %11 = tpu.matmul %9, %10, %cst_9 {dimension_numbers = #tpu.dot_dimension_numbers<[1], [0], [0], [1], [0, 0, 1, 1], [], []>, precision = #tpu.contract_precision<fp32>} : vector<16x64xf32>, vector<64x64xf32>, vector<16x64xf32> -> vector<16x64xf32>
    %12 = vector.extract_strided_slice %2 {offsets = [1, 0], sizes = [1, 64], strides = [1, 1]} : vector<2x64xf32> to vector<1x64xf32>
    %13 = vector.broadcast %12 : vector<1x64xf32> to vector<16x64xf32>
    %14 = arith.addf %11, %13 : vector<16x64xf32>
    %c0_10 = arith.constant 0 : index
    %c0_11 = arith.constant 0 : index
    %c0_12 = arith.constant 0 : index
    %15 = vector.load %arg8[%c0_10, %c0_11, %c0_12] : memref<2x6x64xf32, #tpu.memory_space<vmem>>, vector<1x6x64xf32>
    %16 = vector.shape_cast %15 : vector<1x6x64xf32> to vector<6x64xf32>
    %17 = vector.extract_strided_slice %16 {offsets = [0, 0], sizes = [1, 64], strides = [1, 1]} : vector<6x64xf32> to vector<1x64xf32>
    %18 = vector.extract_strided_slice %16 {offsets = [1, 0], sizes = [1, 64], strides = [1, 1]} : vector<6x64xf32> to vector<1x64xf32>
    %19 = vector.extract_strided_slice %16 {offsets = [2, 0], sizes = [1, 64], strides = [1, 1]} : vector<6x64xf32> to vector<1x64xf32>
    %20 = vector.extract_strided_slice %16 {offsets = [3, 0], sizes = [1, 64], strides = [1, 1]} : vector<6x64xf32> to vector<1x64xf32>
    %21 = vector.extract_strided_slice %16 {offsets = [4, 0], sizes = [1, 64], strides = [1, 1]} : vector<6x64xf32> to vector<1x64xf32>
    %22 = vector.extract_strided_slice %16 {offsets = [5, 0], sizes = [1, 64], strides = [1, 1]} : vector<6x64xf32> to vector<1x64xf32>
    %c0_13 = arith.constant 0 : index
    %c0_14 = arith.constant 0 : index
    %c0_15 = arith.constant 0 : index
    %c0_16 = arith.constant 0 : index
    %23 = vector.load %arg7[%c0_13, %c0_14, %c0_15, %c0_16] : memref<2x4x16x64xf32, #tpu.memory_space<vmem>>, vector<1x4x16x64xf32>
    %24 = vector.shape_cast %23 : vector<1x4x16x64xf32> to vector<4x16x64xf32>
    %cst_17 = arith.constant dense<0.000000e+00> : vector<16xf32>
    %25 = vector.multi_reduction <add>, %14, %cst_17 [1] : vector<16x64xf32> to vector<16xf32>
    %26 = vector.shape_cast %25 : vector<16xf32> to vector<16x1xf32>
    %cst_18 = arith.constant 6.400000e+01 : f32
    %27 = vector.broadcast %cst_18 : f32 to vector<16x1xf32>
    %28 = arith.divf %26, %27 : vector<16x1xf32>
    %29 = vector.broadcast %28 : vector<16x1xf32> to vector<16x64xf32>
    %30 = arith.subf %14, %29 : vector<16x64xf32>
    %31 = arith.mulf %30, %30 : vector<16x64xf32>
    %cst_19 = arith.constant dense<0.000000e+00> : vector<16xf32>
    %32 = vector.multi_reduction <add>, %31, %cst_19 [1] : vector<16x64xf32> to vector<16xf32>
    %33 = vector.shape_cast %32 : vector<16xf32> to vector<16x1xf32>
    %cst_20 = arith.constant 6.400000e+01 : f32
    %34 = vector.broadcast %cst_20 : f32 to vector<16x1xf32>
    %35 = arith.divf %33, %34 : vector<16x1xf32>
    %cst_21 = arith.constant 9.99999974E-6 : f32
    %36 = vector.broadcast %cst_21 : f32 to vector<16x1xf32>
    %37 = arith.addf %35, %36 : vector<16x1xf32>
    %38 = math.rsqrt %37 : vector<16x1xf32>
    %39 = vector.broadcast %38 : vector<16x1xf32> to vector<16x64xf32>
    %40 = arith.mulf %30, %39 : vector<16x64xf32>
    %41 = vector.broadcast %17 : vector<1x64xf32> to vector<16x64xf32>
    %42 = arith.mulf %40, %41 : vector<16x64xf32>
    %43 = vector.broadcast %18 : vector<1x64xf32> to vector<16x64xf32>
    %44 = arith.addf %42, %43 : vector<16x64xf32>
    %c0_22 = arith.constant 0 : index
    %c0_23 = arith.constant 0 : index
    %c0_24 = arith.constant 0 : index
    %45 = vector.load %arg5[%c0_22, %c0_23, %c0_24] : memref<2x64x192xf32, #tpu.memory_space<vmem>>, vector<1x64x192xf32>
    %46 = vector.shape_cast %45 : vector<1x64x192xf32> to vector<64x192xf32>
    %cst_25 = arith.constant dense<0.000000e+00> : vector<16x192xf32>
    %47 = tpu.matmul %44, %46, %cst_25 {dimension_numbers = #tpu.dot_dimension_numbers<[1], [0], [0], [1], [0, 0, 1, 1], [], []>, precision = #tpu.contract_precision<fp32>} : vector<16x64xf32>, vector<64x192xf32>, vector<16x192xf32> -> vector<16x192xf32>
    %c0_26 = arith.constant 0 : index
    %c0_27 = arith.constant 0 : index
    %c0_28 = arith.constant 0 : index
    %48 = vector.load %arg6[%c0_26, %c0_27, %c0_28] : memref<2x1x192xf32, #tpu.memory_space<vmem>>, vector<1x1x192xf32>
    %49 = vector.shape_cast %48 : vector<1x1x192xf32> to vector<1x192xf32>
    %50 = vector.broadcast %49 : vector<1x192xf32> to vector<16x192xf32>
    %51 = arith.addf %47, %50 : vector<16x192xf32>
    %cst_29 = arith.constant 0.000000e+00 : f32
    %52 = vector.broadcast %cst_29 : f32 to vector<16x64xf32>
    %53 = vector.extract_strided_slice %51 {offsets = [0, 0], sizes = [16, 16], strides = [1, 1]} : vector<16x192xf32> to vector<16x16xf32>
    %54 = vector.extract_strided_slice %51 {offsets = [0, 64], sizes = [16, 16], strides = [1, 1]} : vector<16x192xf32> to vector<16x16xf32>
    %55 = vector.extract_strided_slice %51 {offsets = [0, 128], sizes = [16, 16], strides = [1, 1]} : vector<16x192xf32> to vector<16x16xf32>
    %cst_30 = arith.constant dense<0.000000e+00> : vector<16x16xf32>
    %56 = tpu.matmul %53, %54, %cst_30 {dimension_numbers = #tpu.dot_dimension_numbers<[1], [1], [0], [0], [0, 0, 1, 0], [], []>, precision = #tpu.contract_precision<fp32>} : vector<16x16xf32>, vector<16x16xf32>, vector<16x16xf32> -> vector<16x16xf32>
    %cst_31 = arith.constant 2.500000e-01 : f32
    %57 = vector.broadcast %cst_31 : f32 to vector<16x16xf32>
    %58 = arith.mulf %56, %57 : vector<16x16xf32>
    %cst_32 = arith.constant dense<0xFF800000> : vector<16xf32>
    %59 = vector.multi_reduction <maximumf>, %58, %cst_32 [1] : vector<16x16xf32> to vector<16xf32>
    %60 = vector.shape_cast %59 : vector<16xf32> to vector<16x1xf32>
    %61 = vector.broadcast %60 : vector<16x1xf32> to vector<16x16xf32>
    %62 = arith.subf %58, %61 : vector<16x16xf32>
    %63 = math.exp %62 : vector<16x16xf32>
    %cst_33 = arith.constant dense<0.000000e+00> : vector<16xf32>
    %64 = vector.multi_reduction <add>, %63, %cst_33 [1] : vector<16x16xf32> to vector<16xf32>
    %65 = vector.shape_cast %64 : vector<16xf32> to vector<16x1xf32>
    %66 = tpu.reciprocal %65 {approx = true} : vector<16x1xf32> -> vector<16x1xf32>
    %67 = arith.mulf %65, %66 : vector<16x1xf32>
    %cst_34 = arith.constant 2.000000e+00 : f32
    %68 = vector.broadcast %cst_34 : f32 to vector<16x1xf32>
    %69 = arith.subf %68, %67 : vector<16x1xf32>
    %70 = arith.mulf %66, %69 : vector<16x1xf32>
    %71 = vector.broadcast %70 : vector<16x1xf32> to vector<16x16xf32>
    %72 = arith.mulf %63, %71 : vector<16x16xf32>
    %cst_35 = arith.constant dense<0.000000e+00> : vector<16x16xf32>
    %73 = tpu.matmul %72, %55, %cst_35 {dimension_numbers = #tpu.dot_dimension_numbers<[1], [0], [0], [1], [0, 0, 1, 1], [], []>, precision = #tpu.contract_precision<fp32>} : vector<16x16xf32>, vector<16x16xf32>, vector<16x16xf32> -> vector<16x16xf32>
    %74 = vector.extract_strided_slice %24 {offsets = [0, 0, 0], sizes = [1, 16, 64], strides = [1, 1, 1]} : vector<4x16x64xf32> to vector<1x16x64xf32>
    %75 = vector.shape_cast %74 : vector<1x16x64xf32> to vector<16x64xf32>
    %cst_36 = arith.constant dense<0.000000e+00> : vector<16x64xf32>
    %76 = tpu.matmul %73, %75, %cst_36 {dimension_numbers = #tpu.dot_dimension_numbers<[1], [0], [0], [1], [0, 0, 1, 1], [], []>, precision = #tpu.contract_precision<fp32>} : vector<16x16xf32>, vector<16x64xf32>, vector<16x64xf32> -> vector<16x64xf32>
    %77 = arith.addf %52, %76 : vector<16x64xf32>
    %78 = vector.extract_strided_slice %51 {offsets = [0, 16], sizes = [16, 16], strides = [1, 1]} : vector<16x192xf32> to vector<16x16xf32>
    %79 = vector.extract_strided_slice %51 {offsets = [0, 80], sizes = [16, 16], strides = [1, 1]} : vector<16x192xf32> to vector<16x16xf32>
    %80 = vector.extract_strided_slice %51 {offsets = [0, 144], sizes = [16, 16], strides = [1, 1]} : vector<16x192xf32> to vector<16x16xf32>
    %cst_37 = arith.constant dense<0.000000e+00> : vector<16x16xf32>
    %81 = tpu.matmul %78, %79, %cst_37 {dimension_numbers = #tpu.dot_dimension_numbers<[1], [1], [0], [0], [0, 0, 1, 0], [], []>, precision = #tpu.contract_precision<fp32>} : vector<16x16xf32>, vector<16x16xf32>, vector<16x16xf32> -> vector<16x16xf32>
    %cst_38 = arith.constant 2.500000e-01 : f32
    %82 = vector.broadcast %cst_38 : f32 to vector<16x16xf32>
    %83 = arith.mulf %81, %82 : vector<16x16xf32>
    %cst_39 = arith.constant dense<0xFF800000> : vector<16xf32>
    %84 = vector.multi_reduction <maximumf>, %83, %cst_39 [1] : vector<16x16xf32> to vector<16xf32>
    %85 = vector.shape_cast %84 : vector<16xf32> to vector<16x1xf32>
    %86 = vector.broadcast %85 : vector<16x1xf32> to vector<16x16xf32>
    %87 = arith.subf %83, %86 : vector<16x16xf32>
    %88 = math.exp %87 : vector<16x16xf32>
    %cst_40 = arith.constant dense<0.000000e+00> : vector<16xf32>
    %89 = vector.multi_reduction <add>, %88, %cst_40 [1] : vector<16x16xf32> to vector<16xf32>
    %90 = vector.shape_cast %89 : vector<16xf32> to vector<16x1xf32>
    %91 = tpu.reciprocal %90 {approx = true} : vector<16x1xf32> -> vector<16x1xf32>
    %92 = arith.mulf %90, %91 : vector<16x1xf32>
    %cst_41 = arith.constant 2.000000e+00 : f32
    %93 = vector.broadcast %cst_41 : f32 to vector<16x1xf32>
    %94 = arith.subf %93, %92 : vector<16x1xf32>
    %95 = arith.mulf %91, %94 : vector<16x1xf32>
    %96 = vector.broadcast %95 : vector<16x1xf32> to vector<16x16xf32>
    %97 = arith.mulf %88, %96 : vector<16x16xf32>
    %cst_42 = arith.constant dense<0.000000e+00> : vector<16x16xf32>
    %98 = tpu.matmul %97, %80, %cst_42 {dimension_numbers = #tpu.dot_dimension_numbers<[1], [0], [0], [1], [0, 0, 1, 1], [], []>, precision = #tpu.contract_precision<fp32>} : vector<16x16xf32>, vector<16x16xf32>, vector<16x16xf32> -> vector<16x16xf32>
    %99 = vector.extract_strided_slice %24 {offsets = [1, 0, 0], sizes = [1, 16, 64], strides = [1, 1, 1]} : vector<4x16x64xf32> to vector<1x16x64xf32>
    %100 = vector.shape_cast %99 : vector<1x16x64xf32> to vector<16x64xf32>
    %cst_43 = arith.constant dense<0.000000e+00> : vector<16x64xf32>
    %101 = tpu.matmul %98, %100, %cst_43 {dimension_numbers = #tpu.dot_dimension_numbers<[1], [0], [0], [1], [0, 0, 1, 1], [], []>, precision = #tpu.contract_precision<fp32>} : vector<16x16xf32>, vector<16x64xf32>, vector<16x64xf32> -> vector<16x64xf32>
    %102 = arith.addf %77, %101 : vector<16x64xf32>
    %103 = vector.extract_strided_slice %51 {offsets = [0, 32], sizes = [16, 16], strides = [1, 1]} : vector<16x192xf32> to vector<16x16xf32>
    %104 = vector.extract_strided_slice %51 {offsets = [0, 96], sizes = [16, 16], strides = [1, 1]} : vector<16x192xf32> to vector<16x16xf32>
    %105 = vector.extract_strided_slice %51 {offsets = [0, 160], sizes = [16, 16], strides = [1, 1]} : vector<16x192xf32> to vector<16x16xf32>
    %cst_44 = arith.constant dense<0.000000e+00> : vector<16x16xf32>
    %106 = tpu.matmul %103, %104, %cst_44 {dimension_numbers = #tpu.dot_dimension_numbers<[1], [1], [0], [0], [0, 0, 1, 0], [], []>, precision = #tpu.contract_precision<fp32>} : vector<16x16xf32>, vector<16x16xf32>, vector<16x16xf32> -> vector<16x16xf32>
    %cst_45 = arith.constant 2.500000e-01 : f32
    %107 = vector.broadcast %cst_45 : f32 to vector<16x16xf32>
    %108 = arith.mulf %106, %107 : vector<16x16xf32>
    %cst_46 = arith.constant dense<0xFF800000> : vector<16xf32>
    %109 = vector.multi_reduction <maximumf>, %108, %cst_46 [1] : vector<16x16xf32> to vector<16xf32>
    %110 = vector.shape_cast %109 : vector<16xf32> to vector<16x1xf32>
    %111 = vector.broadcast %110 : vector<16x1xf32> to vector<16x16xf32>
    %112 = arith.subf %108, %111 : vector<16x16xf32>
    %113 = math.exp %112 : vector<16x16xf32>
    %cst_47 = arith.constant dense<0.000000e+00> : vector<16xf32>
    %114 = vector.multi_reduction <add>, %113, %cst_47 [1] : vector<16x16xf32> to vector<16xf32>
    %115 = vector.shape_cast %114 : vector<16xf32> to vector<16x1xf32>
    %116 = tpu.reciprocal %115 {approx = true} : vector<16x1xf32> -> vector<16x1xf32>
    %117 = arith.mulf %115, %116 : vector<16x1xf32>
    %cst_48 = arith.constant 2.000000e+00 : f32
    %118 = vector.broadcast %cst_48 : f32 to vector<16x1xf32>
    %119 = arith.subf %118, %117 : vector<16x1xf32>
    %120 = arith.mulf %116, %119 : vector<16x1xf32>
    %121 = vector.broadcast %120 : vector<16x1xf32> to vector<16x16xf32>
    %122 = arith.mulf %113, %121 : vector<16x16xf32>
    %cst_49 = arith.constant dense<0.000000e+00> : vector<16x16xf32>
    %123 = tpu.matmul %122, %105, %cst_49 {dimension_numbers = #tpu.dot_dimension_numbers<[1], [0], [0], [1], [0, 0, 1, 1], [], []>, precision = #tpu.contract_precision<fp32>} : vector<16x16xf32>, vector<16x16xf32>, vector<16x16xf32> -> vector<16x16xf32>
    %124 = vector.extract_strided_slice %24 {offsets = [2, 0, 0], sizes = [1, 16, 64], strides = [1, 1, 1]} : vector<4x16x64xf32> to vector<1x16x64xf32>
    %125 = vector.shape_cast %124 : vector<1x16x64xf32> to vector<16x64xf32>
    %cst_50 = arith.constant dense<0.000000e+00> : vector<16x64xf32>
    %126 = tpu.matmul %123, %125, %cst_50 {dimension_numbers = #tpu.dot_dimension_numbers<[1], [0], [0], [1], [0, 0, 1, 1], [], []>, precision = #tpu.contract_precision<fp32>} : vector<16x16xf32>, vector<16x64xf32>, vector<16x64xf32> -> vector<16x64xf32>
    %127 = arith.addf %102, %126 : vector<16x64xf32>
    %128 = vector.extract_strided_slice %51 {offsets = [0, 48], sizes = [16, 16], strides = [1, 1]} : vector<16x192xf32> to vector<16x16xf32>
    %129 = vector.extract_strided_slice %51 {offsets = [0, 112], sizes = [16, 16], strides = [1, 1]} : vector<16x192xf32> to vector<16x16xf32>
    %130 = vector.extract_strided_slice %51 {offsets = [0, 176], sizes = [16, 16], strides = [1, 1]} : vector<16x192xf32> to vector<16x16xf32>
    %cst_51 = arith.constant dense<0.000000e+00> : vector<16x16xf32>
    %131 = tpu.matmul %128, %129, %cst_51 {dimension_numbers = #tpu.dot_dimension_numbers<[1], [1], [0], [0], [0, 0, 1, 0], [], []>, precision = #tpu.contract_precision<fp32>} : vector<16x16xf32>, vector<16x16xf32>, vector<16x16xf32> -> vector<16x16xf32>
    %cst_52 = arith.constant 2.500000e-01 : f32
    %132 = vector.broadcast %cst_52 : f32 to vector<16x16xf32>
    %133 = arith.mulf %131, %132 : vector<16x16xf32>
    %cst_53 = arith.constant dense<0xFF800000> : vector<16xf32>
    %134 = vector.multi_reduction <maximumf>, %133, %cst_53 [1] : vector<16x16xf32> to vector<16xf32>
    %135 = vector.shape_cast %134 : vector<16xf32> to vector<16x1xf32>
    %136 = vector.broadcast %135 : vector<16x1xf32> to vector<16x16xf32>
    %137 = arith.subf %133, %136 : vector<16x16xf32>
    %138 = math.exp %137 : vector<16x16xf32>
    %cst_54 = arith.constant dense<0.000000e+00> : vector<16xf32>
    %139 = vector.multi_reduction <add>, %138, %cst_54 [1] : vector<16x16xf32> to vector<16xf32>
    %140 = vector.shape_cast %139 : vector<16xf32> to vector<16x1xf32>
    %141 = tpu.reciprocal %140 {approx = true} : vector<16x1xf32> -> vector<16x1xf32>
    %142 = arith.mulf %140, %141 : vector<16x1xf32>
    %cst_55 = arith.constant 2.000000e+00 : f32
    %143 = vector.broadcast %cst_55 : f32 to vector<16x1xf32>
    %144 = arith.subf %143, %142 : vector<16x1xf32>
    %145 = arith.mulf %141, %144 : vector<16x1xf32>
    %146 = vector.broadcast %145 : vector<16x1xf32> to vector<16x16xf32>
    %147 = arith.mulf %138, %146 : vector<16x16xf32>
    %cst_56 = arith.constant dense<0.000000e+00> : vector<16x16xf32>
    %148 = tpu.matmul %147, %130, %cst_56 {dimension_numbers = #tpu.dot_dimension_numbers<[1], [0], [0], [1], [0, 0, 1, 1], [], []>, precision = #tpu.contract_precision<fp32>} : vector<16x16xf32>, vector<16x16xf32>, vector<16x16xf32> -> vector<16x16xf32>
    %149 = vector.extract_strided_slice %24 {offsets = [3, 0, 0], sizes = [1, 16, 64], strides = [1, 1, 1]} : vector<4x16x64xf32> to vector<1x16x64xf32>
    %150 = vector.shape_cast %149 : vector<1x16x64xf32> to vector<16x64xf32>
    %cst_57 = arith.constant dense<0.000000e+00> : vector<16x64xf32>
    %151 = tpu.matmul %148, %150, %cst_57 {dimension_numbers = #tpu.dot_dimension_numbers<[1], [0], [0], [1], [0, 0, 1, 1], [], []>, precision = #tpu.contract_precision<fp32>} : vector<16x16xf32>, vector<16x64xf32>, vector<16x64xf32> -> vector<16x64xf32>
    %152 = arith.addf %127, %151 : vector<16x64xf32>
    %153 = arith.addf %14, %152 : vector<16x64xf32>
    %154 = vector.broadcast %19 : vector<1x64xf32> to vector<16x64xf32>
    %155 = arith.addf %153, %154 : vector<16x64xf32>
    %cst_58 = arith.constant dense<0.000000e+00> : vector<16xf32>
    %156 = vector.multi_reduction <add>, %155, %cst_58 [1] : vector<16x64xf32> to vector<16xf32>
    %157 = vector.shape_cast %156 : vector<16xf32> to vector<16x1xf32>
    %cst_59 = arith.constant 6.400000e+01 : f32
    %158 = vector.broadcast %cst_59 : f32 to vector<16x1xf32>
    %159 = arith.divf %157, %158 : vector<16x1xf32>
    %160 = vector.broadcast %159 : vector<16x1xf32> to vector<16x64xf32>
    %161 = arith.subf %155, %160 : vector<16x64xf32>
    %162 = arith.mulf %161, %161 : vector<16x64xf32>
    %cst_60 = arith.constant dense<0.000000e+00> : vector<16xf32>
    %163 = vector.multi_reduction <add>, %162, %cst_60 [1] : vector<16x64xf32> to vector<16xf32>
    %164 = vector.shape_cast %163 : vector<16xf32> to vector<16x1xf32>
    %cst_61 = arith.constant 6.400000e+01 : f32
    %165 = vector.broadcast %cst_61 : f32 to vector<16x1xf32>
    %166 = arith.divf %164, %165 : vector<16x1xf32>
    %cst_62 = arith.constant 9.99999974E-6 : f32
    %167 = vector.broadcast %cst_62 : f32 to vector<16x1xf32>
    %168 = arith.addf %166, %167 : vector<16x1xf32>
    %169 = math.rsqrt %168 : vector<16x1xf32>
    %170 = vector.broadcast %169 : vector<16x1xf32> to vector<16x64xf32>
    %171 = arith.mulf %161, %170 : vector<16x64xf32>
    %172 = vector.broadcast %20 : vector<1x64xf32> to vector<16x64xf32>
    %173 = arith.mulf %171, %172 : vector<16x64xf32>
    %174 = vector.broadcast %21 : vector<1x64xf32> to vector<16x64xf32>
    %175 = arith.addf %173, %174 : vector<16x64xf32>
    %c0_63 = arith.constant 0 : index
    %c0_64 = arith.constant 0 : index
    %c0_65 = arith.constant 0 : index
    %176 = vector.load %arg9[%c0_63, %c0_64, %c0_65] : memref<2x64x256xf32, #tpu.memory_space<vmem>>, vector<1x64x256xf32>
    %177 = vector.shape_cast %176 : vector<1x64x256xf32> to vector<64x256xf32>
    %cst_66 = arith.constant dense<0.000000e+00> : vector<16x256xf32>
    %178 = tpu.matmul %175, %177, %cst_66 {dimension_numbers = #tpu.dot_dimension_numbers<[1], [0], [0], [1], [0, 0, 1, 1], [], []>, precision = #tpu.contract_precision<fp32>} : vector<16x64xf32>, vector<64x256xf32>, vector<16x256xf32> -> vector<16x256xf32>
    %c0_67 = arith.constant 0 : index
    %c0_68 = arith.constant 0 : index
    %c0_69 = arith.constant 0 : index
    %179 = vector.load %arg10[%c0_67, %c0_68, %c0_69] : memref<2x1x256xf32, #tpu.memory_space<vmem>>, vector<1x1x256xf32>
    %180 = vector.shape_cast %179 : vector<1x1x256xf32> to vector<1x256xf32>
    %181 = vector.broadcast %180 : vector<1x256xf32> to vector<16x256xf32>
    %182 = arith.addf %178, %181 : vector<16x256xf32>
    %cst_70 = arith.constant 0.000000e+00 : f32
    %183 = vector.broadcast %cst_70 : f32 to vector<16x256xf32>
    %184 = arith.cmpf ogt, %182, %183 : vector<16x256xf32>
    %cst_71 = arith.constant 3.000000e-01 : f32
    %185 = vector.broadcast %cst_71 : f32 to vector<16x256xf32>
    %186 = arith.mulf %185, %182 : vector<16x256xf32>
    %187 = arith.select %184, %182, %186 : vector<16x256xi1>, vector<16x256xf32>
    %c0_72 = arith.constant 0 : index
    %c0_73 = arith.constant 0 : index
    %c0_74 = arith.constant 0 : index
    %188 = vector.load %arg11[%c0_72, %c0_73, %c0_74] : memref<2x256x64xf32, #tpu.memory_space<vmem>>, vector<1x256x64xf32>
    %189 = vector.shape_cast %188 : vector<1x256x64xf32> to vector<256x64xf32>
    %cst_75 = arith.constant dense<0.000000e+00> : vector<16x64xf32>
    %190 = tpu.matmul %187, %189, %cst_75 {dimension_numbers = #tpu.dot_dimension_numbers<[1], [0], [0], [1], [0, 0, 1, 1], [], []>, precision = #tpu.contract_precision<fp32>} : vector<16x256xf32>, vector<256x64xf32>, vector<16x64xf32> -> vector<16x64xf32>
    %191 = vector.broadcast %22 : vector<1x64xf32> to vector<16x64xf32>
    %192 = arith.addf %190, %191 : vector<16x64xf32>
    %193 = arith.addf %155, %192 : vector<16x64xf32>
    %c1 = arith.constant 1 : index
    %c0_76 = arith.constant 0 : index
    %c0_77 = arith.constant 0 : index
    %194 = vector.load %arg8[%c1, %c0_76, %c0_77] : memref<2x6x64xf32, #tpu.memory_space<vmem>>, vector<1x6x64xf32>
    %195 = vector.shape_cast %194 : vector<1x6x64xf32> to vector<6x64xf32>
    %196 = vector.extract_strided_slice %195 {offsets = [0, 0], sizes = [1, 64], strides = [1, 1]} : vector<6x64xf32> to vector<1x64xf32>
    %197 = vector.extract_strided_slice %195 {offsets = [1, 0], sizes = [1, 64], strides = [1, 1]} : vector<6x64xf32> to vector<1x64xf32>
    %198 = vector.extract_strided_slice %195 {offsets = [2, 0], sizes = [1, 64], strides = [1, 1]} : vector<6x64xf32> to vector<1x64xf32>
    %199 = vector.extract_strided_slice %195 {offsets = [3, 0], sizes = [1, 64], strides = [1, 1]} : vector<6x64xf32> to vector<1x64xf32>
    %200 = vector.extract_strided_slice %195 {offsets = [4, 0], sizes = [1, 64], strides = [1, 1]} : vector<6x64xf32> to vector<1x64xf32>
    %201 = vector.extract_strided_slice %195 {offsets = [5, 0], sizes = [1, 64], strides = [1, 1]} : vector<6x64xf32> to vector<1x64xf32>
    %c1_78 = arith.constant 1 : index
    %c0_79 = arith.constant 0 : index
    %c0_80 = arith.constant 0 : index
    %c0_81 = arith.constant 0 : index
    %202 = vector.load %arg7[%c1_78, %c0_79, %c0_80, %c0_81] : memref<2x4x16x64xf32, #tpu.memory_space<vmem>>, vector<1x4x16x64xf32>
    %203 = vector.shape_cast %202 : vector<1x4x16x64xf32> to vector<4x16x64xf32>
    %cst_82 = arith.constant dense<0.000000e+00> : vector<16xf32>
    %204 = vector.multi_reduction <add>, %193, %cst_82 [1] : vector<16x64xf32> to vector<16xf32>
    %205 = vector.shape_cast %204 : vector<16xf32> to vector<16x1xf32>
    %cst_83 = arith.constant 6.400000e+01 : f32
    %206 = vector.broadcast %cst_83 : f32 to vector<16x1xf32>
    %207 = arith.divf %205, %206 : vector<16x1xf32>
    %208 = vector.broadcast %207 : vector<16x1xf32> to vector<16x64xf32>
    %209 = arith.subf %193, %208 : vector<16x64xf32>
    %210 = arith.mulf %209, %209 : vector<16x64xf32>
    %cst_84 = arith.constant dense<0.000000e+00> : vector<16xf32>
    %211 = vector.multi_reduction <add>, %210, %cst_84 [1] : vector<16x64xf32> to vector<16xf32>
    %212 = vector.shape_cast %211 : vector<16xf32> to vector<16x1xf32>
    %cst_85 = arith.constant 6.400000e+01 : f32
    %213 = vector.broadcast %cst_85 : f32 to vector<16x1xf32>
    %214 = arith.divf %212, %213 : vector<16x1xf32>
    %cst_86 = arith.constant 9.99999974E-6 : f32
    %215 = vector.broadcast %cst_86 : f32 to vector<16x1xf32>
    %216 = arith.addf %214, %215 : vector<16x1xf32>
    %217 = math.rsqrt %216 : vector<16x1xf32>
    %218 = vector.broadcast %217 : vector<16x1xf32> to vector<16x64xf32>
    %219 = arith.mulf %209, %218 : vector<16x64xf32>
    %220 = vector.broadcast %196 : vector<1x64xf32> to vector<16x64xf32>
    %221 = arith.mulf %219, %220 : vector<16x64xf32>
    %222 = vector.broadcast %197 : vector<1x64xf32> to vector<16x64xf32>
    %223 = arith.addf %221, %222 : vector<16x64xf32>
    %c1_87 = arith.constant 1 : index
    %c0_88 = arith.constant 0 : index
    %c0_89 = arith.constant 0 : index
    %224 = vector.load %arg5[%c1_87, %c0_88, %c0_89] : memref<2x64x192xf32, #tpu.memory_space<vmem>>, vector<1x64x192xf32>
    %225 = vector.shape_cast %224 : vector<1x64x192xf32> to vector<64x192xf32>
    %cst_90 = arith.constant dense<0.000000e+00> : vector<16x192xf32>
    %226 = tpu.matmul %223, %225, %cst_90 {dimension_numbers = #tpu.dot_dimension_numbers<[1], [0], [0], [1], [0, 0, 1, 1], [], []>, precision = #tpu.contract_precision<fp32>} : vector<16x64xf32>, vector<64x192xf32>, vector<16x192xf32> -> vector<16x192xf32>
    %c1_91 = arith.constant 1 : index
    %c0_92 = arith.constant 0 : index
    %c0_93 = arith.constant 0 : index
    %227 = vector.load %arg6[%c1_91, %c0_92, %c0_93] : memref<2x1x192xf32, #tpu.memory_space<vmem>>, vector<1x1x192xf32>
    %228 = vector.shape_cast %227 : vector<1x1x192xf32> to vector<1x192xf32>
    %229 = vector.broadcast %228 : vector<1x192xf32> to vector<16x192xf32>
    %230 = arith.addf %226, %229 : vector<16x192xf32>
    %cst_94 = arith.constant 0.000000e+00 : f32
    %231 = vector.broadcast %cst_94 : f32 to vector<16x64xf32>
    %232 = vector.extract_strided_slice %230 {offsets = [0, 0], sizes = [16, 16], strides = [1, 1]} : vector<16x192xf32> to vector<16x16xf32>
    %233 = vector.extract_strided_slice %230 {offsets = [0, 64], sizes = [16, 16], strides = [1, 1]} : vector<16x192xf32> to vector<16x16xf32>
    %234 = vector.extract_strided_slice %230 {offsets = [0, 128], sizes = [16, 16], strides = [1, 1]} : vector<16x192xf32> to vector<16x16xf32>
    %cst_95 = arith.constant dense<0.000000e+00> : vector<16x16xf32>
    %235 = tpu.matmul %232, %233, %cst_95 {dimension_numbers = #tpu.dot_dimension_numbers<[1], [1], [0], [0], [0, 0, 1, 0], [], []>, precision = #tpu.contract_precision<fp32>} : vector<16x16xf32>, vector<16x16xf32>, vector<16x16xf32> -> vector<16x16xf32>
    %cst_96 = arith.constant 2.500000e-01 : f32
    %236 = vector.broadcast %cst_96 : f32 to vector<16x16xf32>
    %237 = arith.mulf %235, %236 : vector<16x16xf32>
    %cst_97 = arith.constant dense<0xFF800000> : vector<16xf32>
    %238 = vector.multi_reduction <maximumf>, %237, %cst_97 [1] : vector<16x16xf32> to vector<16xf32>
    %239 = vector.shape_cast %238 : vector<16xf32> to vector<16x1xf32>
    %240 = vector.broadcast %239 : vector<16x1xf32> to vector<16x16xf32>
    %241 = arith.subf %237, %240 : vector<16x16xf32>
    %242 = math.exp %241 : vector<16x16xf32>
    %cst_98 = arith.constant dense<0.000000e+00> : vector<16xf32>
    %243 = vector.multi_reduction <add>, %242, %cst_98 [1] : vector<16x16xf32> to vector<16xf32>
    %244 = vector.shape_cast %243 : vector<16xf32> to vector<16x1xf32>
    %245 = tpu.reciprocal %244 {approx = true} : vector<16x1xf32> -> vector<16x1xf32>
    %246 = arith.mulf %244, %245 : vector<16x1xf32>
    %cst_99 = arith.constant 2.000000e+00 : f32
    %247 = vector.broadcast %cst_99 : f32 to vector<16x1xf32>
    %248 = arith.subf %247, %246 : vector<16x1xf32>
    %249 = arith.mulf %245, %248 : vector<16x1xf32>
    %250 = vector.broadcast %249 : vector<16x1xf32> to vector<16x16xf32>
    %251 = arith.mulf %242, %250 : vector<16x16xf32>
    %cst_100 = arith.constant dense<0.000000e+00> : vector<16x16xf32>
    %252 = tpu.matmul %251, %234, %cst_100 {dimension_numbers = #tpu.dot_dimension_numbers<[1], [0], [0], [1], [0, 0, 1, 1], [], []>, precision = #tpu.contract_precision<fp32>} : vector<16x16xf32>, vector<16x16xf32>, vector<16x16xf32> -> vector<16x16xf32>
    %253 = vector.extract_strided_slice %203 {offsets = [0, 0, 0], sizes = [1, 16, 64], strides = [1, 1, 1]} : vector<4x16x64xf32> to vector<1x16x64xf32>
    %254 = vector.shape_cast %253 : vector<1x16x64xf32> to vector<16x64xf32>
    %cst_101 = arith.constant dense<0.000000e+00> : vector<16x64xf32>
    %255 = tpu.matmul %252, %254, %cst_101 {dimension_numbers = #tpu.dot_dimension_numbers<[1], [0], [0], [1], [0, 0, 1, 1], [], []>, precision = #tpu.contract_precision<fp32>} : vector<16x16xf32>, vector<16x64xf32>, vector<16x64xf32> -> vector<16x64xf32>
    %256 = arith.addf %231, %255 : vector<16x64xf32>
    %257 = vector.extract_strided_slice %230 {offsets = [0, 16], sizes = [16, 16], strides = [1, 1]} : vector<16x192xf32> to vector<16x16xf32>
    %258 = vector.extract_strided_slice %230 {offsets = [0, 80], sizes = [16, 16], strides = [1, 1]} : vector<16x192xf32> to vector<16x16xf32>
    %259 = vector.extract_strided_slice %230 {offsets = [0, 144], sizes = [16, 16], strides = [1, 1]} : vector<16x192xf32> to vector<16x16xf32>
    %cst_102 = arith.constant dense<0.000000e+00> : vector<16x16xf32>
    %260 = tpu.matmul %257, %258, %cst_102 {dimension_numbers = #tpu.dot_dimension_numbers<[1], [1], [0], [0], [0, 0, 1, 0], [], []>, precision = #tpu.contract_precision<fp32>} : vector<16x16xf32>, vector<16x16xf32>, vector<16x16xf32> -> vector<16x16xf32>
    %cst_103 = arith.constant 2.500000e-01 : f32
    %261 = vector.broadcast %cst_103 : f32 to vector<16x16xf32>
    %262 = arith.mulf %260, %261 : vector<16x16xf32>
    %cst_104 = arith.constant dense<0xFF800000> : vector<16xf32>
    %263 = vector.multi_reduction <maximumf>, %262, %cst_104 [1] : vector<16x16xf32> to vector<16xf32>
    %264 = vector.shape_cast %263 : vector<16xf32> to vector<16x1xf32>
    %265 = vector.broadcast %264 : vector<16x1xf32> to vector<16x16xf32>
    %266 = arith.subf %262, %265 : vector<16x16xf32>
    %267 = math.exp %266 : vector<16x16xf32>
    %cst_105 = arith.constant dense<0.000000e+00> : vector<16xf32>
    %268 = vector.multi_reduction <add>, %267, %cst_105 [1] : vector<16x16xf32> to vector<16xf32>
    %269 = vector.shape_cast %268 : vector<16xf32> to vector<16x1xf32>
    %270 = tpu.reciprocal %269 {approx = true} : vector<16x1xf32> -> vector<16x1xf32>
    %271 = arith.mulf %269, %270 : vector<16x1xf32>
    %cst_106 = arith.constant 2.000000e+00 : f32
    %272 = vector.broadcast %cst_106 : f32 to vector<16x1xf32>
    %273 = arith.subf %272, %271 : vector<16x1xf32>
    %274 = arith.mulf %270, %273 : vector<16x1xf32>
    %275 = vector.broadcast %274 : vector<16x1xf32> to vector<16x16xf32>
    %276 = arith.mulf %267, %275 : vector<16x16xf32>
    %cst_107 = arith.constant dense<0.000000e+00> : vector<16x16xf32>
    %277 = tpu.matmul %276, %259, %cst_107 {dimension_numbers = #tpu.dot_dimension_numbers<[1], [0], [0], [1], [0, 0, 1, 1], [], []>, precision = #tpu.contract_precision<fp32>} : vector<16x16xf32>, vector<16x16xf32>, vector<16x16xf32> -> vector<16x16xf32>
    %278 = vector.extract_strided_slice %203 {offsets = [1, 0, 0], sizes = [1, 16, 64], strides = [1, 1, 1]} : vector<4x16x64xf32> to vector<1x16x64xf32>
    %279 = vector.shape_cast %278 : vector<1x16x64xf32> to vector<16x64xf32>
    %cst_108 = arith.constant dense<0.000000e+00> : vector<16x64xf32>
    %280 = tpu.matmul %277, %279, %cst_108 {dimension_numbers = #tpu.dot_dimension_numbers<[1], [0], [0], [1], [0, 0, 1, 1], [], []>, precision = #tpu.contract_precision<fp32>} : vector<16x16xf32>, vector<16x64xf32>, vector<16x64xf32> -> vector<16x64xf32>
    %281 = arith.addf %256, %280 : vector<16x64xf32>
    %282 = vector.extract_strided_slice %230 {offsets = [0, 32], sizes = [16, 16], strides = [1, 1]} : vector<16x192xf32> to vector<16x16xf32>
    %283 = vector.extract_strided_slice %230 {offsets = [0, 96], sizes = [16, 16], strides = [1, 1]} : vector<16x192xf32> to vector<16x16xf32>
    %284 = vector.extract_strided_slice %230 {offsets = [0, 160], sizes = [16, 16], strides = [1, 1]} : vector<16x192xf32> to vector<16x16xf32>
    %cst_109 = arith.constant dense<0.000000e+00> : vector<16x16xf32>
    %285 = tpu.matmul %282, %283, %cst_109 {dimension_numbers = #tpu.dot_dimension_numbers<[1], [1], [0], [0], [0, 0, 1, 0], [], []>, precision = #tpu.contract_precision<fp32>} : vector<16x16xf32>, vector<16x16xf32>, vector<16x16xf32> -> vector<16x16xf32>
    %cst_110 = arith.constant 2.500000e-01 : f32
    %286 = vector.broadcast %cst_110 : f32 to vector<16x16xf32>
    %287 = arith.mulf %285, %286 : vector<16x16xf32>
    %cst_111 = arith.constant dense<0xFF800000> : vector<16xf32>
    %288 = vector.multi_reduction <maximumf>, %287, %cst_111 [1] : vector<16x16xf32> to vector<16xf32>
    %289 = vector.shape_cast %288 : vector<16xf32> to vector<16x1xf32>
    %290 = vector.broadcast %289 : vector<16x1xf32> to vector<16x16xf32>
    %291 = arith.subf %287, %290 : vector<16x16xf32>
    %292 = math.exp %291 : vector<16x16xf32>
    %cst_112 = arith.constant dense<0.000000e+00> : vector<16xf32>
    %293 = vector.multi_reduction <add>, %292, %cst_112 [1] : vector<16x16xf32> to vector<16xf32>
    %294 = vector.shape_cast %293 : vector<16xf32> to vector<16x1xf32>
    %295 = tpu.reciprocal %294 {approx = true} : vector<16x1xf32> -> vector<16x1xf32>
    %296 = arith.mulf %294, %295 : vector<16x1xf32>
    %cst_113 = arith.constant 2.000000e+00 : f32
    %297 = vector.broadcast %cst_113 : f32 to vector<16x1xf32>
    %298 = arith.subf %297, %296 : vector<16x1xf32>
    %299 = arith.mulf %295, %298 : vector<16x1xf32>
    %300 = vector.broadcast %299 : vector<16x1xf32> to vector<16x16xf32>
    %301 = arith.mulf %292, %300 : vector<16x16xf32>
    %cst_114 = arith.constant dense<0.000000e+00> : vector<16x16xf32>
    %302 = tpu.matmul %301, %284, %cst_114 {dimension_numbers = #tpu.dot_dimension_numbers<[1], [0], [0], [1], [0, 0, 1, 1], [], []>, precision = #tpu.contract_precision<fp32>} : vector<16x16xf32>, vector<16x16xf32>, vector<16x16xf32> -> vector<16x16xf32>
    %303 = vector.extract_strided_slice %203 {offsets = [2, 0, 0], sizes = [1, 16, 64], strides = [1, 1, 1]} : vector<4x16x64xf32> to vector<1x16x64xf32>
    %304 = vector.shape_cast %303 : vector<1x16x64xf32> to vector<16x64xf32>
    %cst_115 = arith.constant dense<0.000000e+00> : vector<16x64xf32>
    %305 = tpu.matmul %302, %304, %cst_115 {dimension_numbers = #tpu.dot_dimension_numbers<[1], [0], [0], [1], [0, 0, 1, 1], [], []>, precision = #tpu.contract_precision<fp32>} : vector<16x16xf32>, vector<16x64xf32>, vector<16x64xf32> -> vector<16x64xf32>
    %306 = arith.addf %281, %305 : vector<16x64xf32>
    %307 = vector.extract_strided_slice %230 {offsets = [0, 48], sizes = [16, 16], strides = [1, 1]} : vector<16x192xf32> to vector<16x16xf32>
    %308 = vector.extract_strided_slice %230 {offsets = [0, 112], sizes = [16, 16], strides = [1, 1]} : vector<16x192xf32> to vector<16x16xf32>
    %309 = vector.extract_strided_slice %230 {offsets = [0, 176], sizes = [16, 16], strides = [1, 1]} : vector<16x192xf32> to vector<16x16xf32>
    %cst_116 = arith.constant dense<0.000000e+00> : vector<16x16xf32>
    %310 = tpu.matmul %307, %308, %cst_116 {dimension_numbers = #tpu.dot_dimension_numbers<[1], [1], [0], [0], [0, 0, 1, 0], [], []>, precision = #tpu.contract_precision<fp32>} : vector<16x16xf32>, vector<16x16xf32>, vector<16x16xf32> -> vector<16x16xf32>
    %cst_117 = arith.constant 2.500000e-01 : f32
    %311 = vector.broadcast %cst_117 : f32 to vector<16x16xf32>
    %312 = arith.mulf %310, %311 : vector<16x16xf32>
    %cst_118 = arith.constant dense<0xFF800000> : vector<16xf32>
    %313 = vector.multi_reduction <maximumf>, %312, %cst_118 [1] : vector<16x16xf32> to vector<16xf32>
    %314 = vector.shape_cast %313 : vector<16xf32> to vector<16x1xf32>
    %315 = vector.broadcast %314 : vector<16x1xf32> to vector<16x16xf32>
    %316 = arith.subf %312, %315 : vector<16x16xf32>
    %317 = math.exp %316 : vector<16x16xf32>
    %cst_119 = arith.constant dense<0.000000e+00> : vector<16xf32>
    %318 = vector.multi_reduction <add>, %317, %cst_119 [1] : vector<16x16xf32> to vector<16xf32>
    %319 = vector.shape_cast %318 : vector<16xf32> to vector<16x1xf32>
    %320 = tpu.reciprocal %319 {approx = true} : vector<16x1xf32> -> vector<16x1xf32>
    %321 = arith.mulf %319, %320 : vector<16x1xf32>
    %cst_120 = arith.constant 2.000000e+00 : f32
    %322 = vector.broadcast %cst_120 : f32 to vector<16x1xf32>
    %323 = arith.subf %322, %321 : vector<16x1xf32>
    %324 = arith.mulf %320, %323 : vector<16x1xf32>
    %325 = vector.broadcast %324 : vector<16x1xf32> to vector<16x16xf32>
    %326 = arith.mulf %317, %325 : vector<16x16xf32>
    %cst_121 = arith.constant dense<0.000000e+00> : vector<16x16xf32>
    %327 = tpu.matmul %326, %309, %cst_121 {dimension_numbers = #tpu.dot_dimension_numbers<[1], [0], [0], [1], [0, 0, 1, 1], [], []>, precision = #tpu.contract_precision<fp32>} : vector<16x16xf32>, vector<16x16xf32>, vector<16x16xf32> -> vector<16x16xf32>
    %328 = vector.extract_strided_slice %203 {offsets = [3, 0, 0], sizes = [1, 16, 64], strides = [1, 1, 1]} : vector<4x16x64xf32> to vector<1x16x64xf32>
    %329 = vector.shape_cast %328 : vector<1x16x64xf32> to vector<16x64xf32>
    %cst_122 = arith.constant dense<0.000000e+00> : vector<16x64xf32>
    %330 = tpu.matmul %327, %329, %cst_122 {dimension_numbers = #tpu.dot_dimension_numbers<[1], [0], [0], [1], [0, 0, 1, 1], [], []>, precision = #tpu.contract_precision<fp32>} : vector<16x16xf32>, vector<16x64xf32>, vector<16x64xf32> -> vector<16x64xf32>
    %331 = arith.addf %306, %330 : vector<16x64xf32>
    %332 = arith.addf %193, %331 : vector<16x64xf32>
    %333 = vector.broadcast %198 : vector<1x64xf32> to vector<16x64xf32>
    %334 = arith.addf %332, %333 : vector<16x64xf32>
    %cst_123 = arith.constant dense<0.000000e+00> : vector<16xf32>
    %335 = vector.multi_reduction <add>, %334, %cst_123 [1] : vector<16x64xf32> to vector<16xf32>
    %336 = vector.shape_cast %335 : vector<16xf32> to vector<16x1xf32>
    %cst_124 = arith.constant 6.400000e+01 : f32
    %337 = vector.broadcast %cst_124 : f32 to vector<16x1xf32>
    %338 = arith.divf %336, %337 : vector<16x1xf32>
    %339 = vector.broadcast %338 : vector<16x1xf32> to vector<16x64xf32>
    %340 = arith.subf %334, %339 : vector<16x64xf32>
    %341 = arith.mulf %340, %340 : vector<16x64xf32>
    %cst_125 = arith.constant dense<0.000000e+00> : vector<16xf32>
    %342 = vector.multi_reduction <add>, %341, %cst_125 [1] : vector<16x64xf32> to vector<16xf32>
    %343 = vector.shape_cast %342 : vector<16xf32> to vector<16x1xf32>
    %cst_126 = arith.constant 6.400000e+01 : f32
    %344 = vector.broadcast %cst_126 : f32 to vector<16x1xf32>
    %345 = arith.divf %343, %344 : vector<16x1xf32>
    %cst_127 = arith.constant 9.99999974E-6 : f32
    %346 = vector.broadcast %cst_127 : f32 to vector<16x1xf32>
    %347 = arith.addf %345, %346 : vector<16x1xf32>
    %348 = math.rsqrt %347 : vector<16x1xf32>
    %349 = vector.broadcast %348 : vector<16x1xf32> to vector<16x64xf32>
    %350 = arith.mulf %340, %349 : vector<16x64xf32>
    %351 = vector.broadcast %199 : vector<1x64xf32> to vector<16x64xf32>
    %352 = arith.mulf %350, %351 : vector<16x64xf32>
    %353 = vector.broadcast %200 : vector<1x64xf32> to vector<16x64xf32>
    %354 = arith.addf %352, %353 : vector<16x64xf32>
    %c1_128 = arith.constant 1 : index
    %c0_129 = arith.constant 0 : index
    %c0_130 = arith.constant 0 : index
    %355 = vector.load %arg9[%c1_128, %c0_129, %c0_130] : memref<2x64x256xf32, #tpu.memory_space<vmem>>, vector<1x64x256xf32>
    %356 = vector.shape_cast %355 : vector<1x64x256xf32> to vector<64x256xf32>
    %cst_131 = arith.constant dense<0.000000e+00> : vector<16x256xf32>
    %357 = tpu.matmul %354, %356, %cst_131 {dimension_numbers = #tpu.dot_dimension_numbers<[1], [0], [0], [1], [0, 0, 1, 1], [], []>, precision = #tpu.contract_precision<fp32>} : vector<16x64xf32>, vector<64x256xf32>, vector<16x256xf32> -> vector<16x256xf32>
    %c1_132 = arith.constant 1 : index
    %c0_133 = arith.constant 0 : index
    %c0_134 = arith.constant 0 : index
    %358 = vector.load %arg10[%c1_132, %c0_133, %c0_134] : memref<2x1x256xf32, #tpu.memory_space<vmem>>, vector<1x1x256xf32>
    %359 = vector.shape_cast %358 : vector<1x1x256xf32> to vector<1x256xf32>
    %360 = vector.broadcast %359 : vector<1x256xf32> to vector<16x256xf32>
    %361 = arith.addf %357, %360 : vector<16x256xf32>
    %cst_135 = arith.constant 0.000000e+00 : f32
    %362 = vector.broadcast %cst_135 : f32 to vector<16x256xf32>
    %363 = arith.cmpf ogt, %361, %362 : vector<16x256xf32>
    %cst_136 = arith.constant 3.000000e-01 : f32
    %364 = vector.broadcast %cst_136 : f32 to vector<16x256xf32>
    %365 = arith.mulf %364, %361 : vector<16x256xf32>
    %366 = arith.select %363, %361, %365 : vector<16x256xi1>, vector<16x256xf32>
    %c1_137 = arith.constant 1 : index
    %c0_138 = arith.constant 0 : index
    %c0_139 = arith.constant 0 : index
    %367 = vector.load %arg11[%c1_137, %c0_138, %c0_139] : memref<2x256x64xf32, #tpu.memory_space<vmem>>, vector<1x256x64xf32>
    %368 = vector.shape_cast %367 : vector<1x256x64xf32> to vector<256x64xf32>
    %cst_140 = arith.constant dense<0.000000e+00> : vector<16x64xf32>
    %369 = tpu.matmul %366, %368, %cst_140 {dimension_numbers = #tpu.dot_dimension_numbers<[1], [0], [0], [1], [0, 0, 1, 1], [], []>, precision = #tpu.contract_precision<fp32>} : vector<16x256xf32>, vector<256x64xf32>, vector<16x64xf32> -> vector<16x64xf32>
    %370 = vector.broadcast %201 : vector<1x64xf32> to vector<16x64xf32>
    %371 = arith.addf %369, %370 : vector<16x64xf32>
    %372 = arith.addf %334, %371 : vector<16x64xf32>
    %c0_141 = arith.constant 0 : index
    %c0_142 = arith.constant 0 : index
    %373 = vector.load %arg12[%c0_141, %c0_142] : memref<65x2xf32, #tpu.memory_space<vmem>>, vector<65x2xf32>
    %374 = vector.extract_strided_slice %373 {offsets = [0, 0], sizes = [64, 2], strides = [1, 1]} : vector<65x2xf32> to vector<64x2xf32>
    %cst_143 = arith.constant dense<0.000000e+00> : vector<16x2xf32>
    %375 = tpu.matmul %372, %374, %cst_143 {dimension_numbers = #tpu.dot_dimension_numbers<[1], [0], [0], [1], [0, 0, 1, 1], [], []>, precision = #tpu.contract_precision<fp32>} : vector<16x64xf32>, vector<64x2xf32>, vector<16x2xf32> -> vector<16x2xf32>
    %376 = vector.extract_strided_slice %373 {offsets = [64, 0], sizes = [1, 2], strides = [1, 1]} : vector<65x2xf32> to vector<1x2xf32>
    %377 = vector.broadcast %376 : vector<1x2xf32> to vector<16x2xf32>
    %378 = arith.addf %375, %377 : vector<16x2xf32>
    %379 = vector.shape_cast %378 : vector<16x2xf32> to vector<1x16x2xf32>
    %c0_144 = arith.constant 0 : index
    %c0_145 = arith.constant 0 : index
    %c0_146 = arith.constant 0 : index
    %380 = vector.load %arg13[%c0_144, %c0_145, %c0_146] : memref<1x16x2xf32, #tpu.memory_space<vmem>>, vector<1x16x2xf32>
    tpu.vector_store %arg13[%c0_144, %c0_145, %c0_146], %379 {strides = array<i32>} : memref<1x16x2xf32, #tpu.memory_space<vmem>>, vector<1x16x2xf32>,
    return
  }
  func.func @transform_0(%arg0: i32) -> (i32, i32, i32) {
    %c0_i32 = arith.constant 0 : i32
    %c0_i32_0 = arith.constant 0 : i32
    %c0_i32_1 = arith.constant 0 : i32
    return %arg0, %c0_i32, %c0_i32_0 : i32, i32, i32
  }
  func.func @transform_1(%arg0: i32) -> (i32, i32) {
    %c0_i32 = arith.constant 0 : i32
    %c0_i32_0 = arith.constant 0 : i32
    %c0_i32_1 = arith.constant 0 : i32
    return %c0_i32, %c0_i32_0 : i32, i32
  }
  func.func @transform_2(%arg0: i32) -> (i32, i32) {
    %c0_i32 = arith.constant 0 : i32
    %c0_i32_0 = arith.constant 0 : i32
    %c0_i32_1 = arith.constant 0 : i32
    return %c0_i32, %c0_i32_0 : i32, i32
  }
  func.func @transform_3(%arg0: i32) -> (i32, i32) {
    %c0_i32 = arith.constant 0 : i32
    %c0_i32_0 = arith.constant 0 : i32
    %c0_i32_1 = arith.constant 0 : i32
    return %c0_i32, %c0_i32_0 : i32, i32
  }
  func.func @transform_4(%arg0: i32) -> (i32, i32, i32) {
    %c0_i32 = arith.constant 0 : i32
    %c0_i32_0 = arith.constant 0 : i32
    %c0_i32_1 = arith.constant 0 : i32
    %c0_i32_2 = arith.constant 0 : i32
    return %c0_i32, %c0_i32_0, %c0_i32_1 : i32, i32, i32
  }
  func.func @transform_5(%arg0: i32) -> (i32, i32, i32) {
    %c0_i32 = arith.constant 0 : i32
    %c0_i32_0 = arith.constant 0 : i32
    %c0_i32_1 = arith.constant 0 : i32
    %c0_i32_2 = arith.constant 0 : i32
    return %c0_i32, %c0_i32_0, %c0_i32_1 : i32, i32, i32
  }
  func.func @transform_6(%arg0: i32) -> (i32, i32, i32, i32) {
    %c0_i32 = arith.constant 0 : i32
    %c0_i32_0 = arith.constant 0 : i32
    %c0_i32_1 = arith.constant 0 : i32
    %c0_i32_2 = arith.constant 0 : i32
    %c0_i32_3 = arith.constant 0 : i32
    return %c0_i32, %c0_i32_0, %c0_i32_1, %c0_i32_2 : i32, i32, i32, i32
  }
  func.func @transform_7(%arg0: i32) -> (i32, i32, i32) {
    %c0_i32 = arith.constant 0 : i32
    %c0_i32_0 = arith.constant 0 : i32
    %c0_i32_1 = arith.constant 0 : i32
    %c0_i32_2 = arith.constant 0 : i32
    return %c0_i32, %c0_i32_0, %c0_i32_1 : i32, i32, i32
  }
  func.func @transform_8(%arg0: i32) -> (i32, i32, i32) {
    %c0_i32 = arith.constant 0 : i32
    %c0_i32_0 = arith.constant 0 : i32
    %c0_i32_1 = arith.constant 0 : i32
    %c0_i32_2 = arith.constant 0 : i32
    return %c0_i32, %c0_i32_0, %c0_i32_1 : i32, i32, i32
  }
  func.func @transform_9(%arg0: i32) -> (i32, i32, i32) {
    %c0_i32 = arith.constant 0 : i32
    %c0_i32_0 = arith.constant 0 : i32
    %c0_i32_1 = arith.constant 0 : i32
    %c0_i32_2 = arith.constant 0 : i32
    return %c0_i32, %c0_i32_0, %c0_i32_1 : i32, i32, i32
  }
  func.func @transform_10(%arg0: i32) -> (i32, i32, i32) {
    %c0_i32 = arith.constant 0 : i32
    %c0_i32_0 = arith.constant 0 : i32
    %c0_i32_1 = arith.constant 0 : i32
    %c0_i32_2 = arith.constant 0 : i32
    return %c0_i32, %c0_i32_0, %c0_i32_1 : i32, i32, i32
  }
  func.func @transform_11(%arg0: i32) -> (i32, i32) {
    %c0_i32 = arith.constant 0 : i32
    %c0_i32_0 = arith.constant 0 : i32
    %c0_i32_1 = arith.constant 0 : i32
    return %c0_i32, %c0_i32_0 : i32, i32
  }
  func.func @transform_12(%arg0: i32) -> (i32, i32, i32) {
    %c0_i32 = arith.constant 0 : i32
    %c0_i32_0 = arith.constant 0 : i32
    %c0_i32_1 = arith.constant 0 : i32
    return %arg0, %c0_i32, %c0_i32_0 : i32, i32, i32
  }
}

</mosaic_0001>

<llo_original>
// kernel: set_channel_estimation_forward.1
$region0: #{set_channel_estimation_forward.1}
  #allocation0 [shape = 'u32[]', space=smem, size = 0x4, offset = 0x4, fixed_abs, tag = 'smem constant byte address 0x4 - core index']
  #allocation1 [shape = 'u32[72,128]{1,0:T(1,128)}', space=vmem, size = 0x9000, scoped, tag = 'internal scratch']
  %s0 = inlined_call_operand.vmem [shape: f32[2,16,16], index: 0, kind: input, shape index: {}]
  %s1 = inlined_call_operand.vmem [shape: f32[16,64], index: 1, kind: input, shape index: {}]
  %s2 = inlined_call_operand.vmem [shape: f32[2,64], index: 2, kind: input, shape index: {}]
  %s3 = inlined_call_operand.vmem [shape: f32[64,64], index: 3, kind: input, shape index: {}]
  %s4 = inlined_call_operand.vmem [shape: f32[2,64,192], index: 4, kind: input, shape index: {}]
  %s5 = inlined_call_operand.vmem [shape: f32[2,1,192], index: 5, kind: input, shape index: {}]
  %s6 = inlined_call_operand.vmem [shape: f32[2,4,16,64], index: 6, kind: input, shape index: {}]
  %s7 = inlined_call_operand.vmem [shape: f32[2,6,64], index: 7, kind: input, shape index: {}]
  %s8 = inlined_call_operand.vmem [shape: f32[2,64,256], index: 8, kind: input, shape index: {}]
  %s9 = inlined_call_operand.vmem [shape: f32[2,1,256], index: 9, kind: input, shape index: {}]
  %s10 = inlined_call_operand.vmem [shape: f32[2,256,64], index: 10, kind: input, shape index: {}]
  %s11 = inlined_call_operand.vmem [shape: f32[65,2], index: 11, kind: input, shape index: {}]
  %s12 = inlined_call_operand.vmem [shape: f32[2,16,2], index: 12, kind: output, shape index: {}]
  %s13 = sld [smem:[#allocation0]]
  $region81: #{set_channel_estimation_forward.1} parent=0
    _
  %s15 = ssub.s32 1, %s13
  %s16 = scalar_select 0, %s15, %s13
  loop: start=0, step=1, limit=4
  $region2: #{set_channel_estimation_forward.1} parent=0 // loop_pre_header
    _
  $region3: #{set_channel_estimation_forward.1} parent=0 // loop_header
    %s18 = sphi 0, %s22
    %p19 = scmp.ge.s32.totalorder %s18, 4
    %s28 = sphi 0, %s30
    %s31 = sphi 0, %s28
    %s32 = sphi 0, %s31
    %s48 = sphi 0, %s32
    %s52 = sphi 0, %s52
    %s54 = sphi 0, %s52
    %s55 = sphi 0, %s54
    %s69 = sphi 0, %s55
    %s73 = sphi 0, %s73
    %s75 = sphi 0, %s73
    %s76 = sphi 0, %s75
    %s90 = sphi 0, %s76
    %s94 = sphi 0, %s94
    %s96 = sphi 0, %s94
    %s97 = sphi 0, %s96
    %s111 = sphi 0, %s97
    %s115 = sphi 0, %s115
    %s117 = sphi 0, %s115
    %s118 = sphi 0, %s117
    %s132 = sphi 0, %s118
    %s136 = sphi 0, %s136
    %s138 = sphi 0, %s136
    %s139 = sphi 0, %s138
    %s153 = sphi 0, %s139
    %s157 = sphi 0, %s157
    %s159 = sphi 0, %s157
    %s160 = sphi 0, %s159
    %s174 = sphi 0, %s160
    %s178 = sphi 0, %s178
    %s180 = sphi 0, %s178
    %s181 = sphi 0, %s180
    %s195 = sphi 0, %s181
    %s199 = sphi 0, %s199
    %s201 = sphi 0, %s199
    %s202 = sphi 0, %s201
    %s216 = sphi 0, %s202
    %s220 = sphi 0, %s220
    %s222 = sphi 0, %s220
    %s223 = sphi 0, %s222
    %s237 = sphi 0, %s223
    %s241 = sphi 0, %s241
    %s243 = sphi 0, %s241
    %s244 = sphi 0, %s243
    %s258 = sphi 0, %s244
    %s262 = sphi 0, %s262
    %s264 = sphi 0, %s262
    %s265 = sphi 0, %s264
    %s279 = sphi 0, %s265
    %s285 = sphi 0, %s287
    %s288 = sphi 0, %s285
    %s289 = sphi 0, %s288
    %s305 = sphi 0, %s289
  $region4: #{set_channel_estimation_forward.1} parent=0 // loop_header_branch
    %21 = sbr.rel (%p19) target = $region8
  $region5: #{set_channel_estimation_forward.1} parent=0 // loop_body
    %s23 = ssub.s32 %s18, 1
    %s24 = ssub.s32 %s18, 2
    %s25 = sadd.s32 %s18, 1
    %s26 = ssub.s32 %s18, %s25
    %p27 = scmp.eq.s32.totalorder %s26, 0
    %s29 = sadd.s32 %s28, 1
    %s30 = scalar_select %p27, %s28, %s29
    %p33 = pneg %p27
    %p34 = scmp.eq.s32.totalorder %s18, 1
    %p35 = por %p33, %p34
    %p36 = scmp.ne.s32.totalorder %s28, %s31
    %p37 = scmp.eq.s32.totalorder %s18, 0
    %p38 = por %p36, %p37
    %p39 = scmp.ne.s32.totalorder %s28, %s31
    %p40 = scmp.eq.s32.totalorder %s23, 1
    %p41 = por %p39, %p40
    %p42 = scmp.ne.s32.totalorder %s31, %s32
    %p43 = scmp.eq.s32.totalorder %s23, 0
    %p44 = por %p42, %p43
    %p45 = scmp.ne.s32.totalorder %s31, %s32
    %p46 = scmp.eq.s32.totalorder %s24, 1
    %p47 = por %p45, %p46
    %p49 = scmp.ne.s32.totalorder %s32, %s48
    %p50 = scmp.eq.s32.totalorder %s24, 0
    %p51 = por %p49, %p50
    %s53 = sadd.s32 %s52, 1
    %p56 = scmp.eq.s32.totalorder %s18, 1
    %p57 = scmp.ne.s32.totalorder %s52, %s54
    %p58 = scmp.eq.s32.totalorder %s18, 0
    %p59 = por %p57, %p58
    %p60 = scmp.ne.s32.totalorder %s52, %s54
    %p61 = scmp.eq.s32.totalorder %s23, 1
    %p62 = por %p60, %p61
    %p63 = scmp.ne.s32.totalorder %s54, %s55
    %p64 = scmp.eq.s32.totalorder %s23, 0
    %p65 = por %p63, %p64
    %p66 = scmp.ne.s32.totalorder %s54, %s55
    %p67 = scmp.eq.s32.totalorder %s24, 1
    %p68 = por %p66, %p67
    %p70 = scmp.ne.s32.totalorder %s55, %s69
    %p71 = scmp.eq.s32.totalorder %s24, 0
    %p72 = por %p70, %p71
    %s74 = sadd.s32 %s73, 1
    %p77 = scmp.eq.s32.totalorder %s18, 1
    %p78 = scmp.ne.s32.totalorder %s73, %s75
    %p79 = scmp.eq.s32.totalorder %s18, 0
    %p80 = por %p78, %p79
    %p81 = scmp.ne.s32.totalorder %s73, %s75
    %p82 = scmp.eq.s32.totalorder %s23, 1
    %p83 = por %p81, %p82
    %p84 = scmp.ne.s32.totalorder %s75, %s76
    %p85 = scmp.eq.s32.totalorder %s23, 0
    %p86 = por %p84, %p85
    %p87 = scmp.ne.s32.totalorder %s75, %s76
    %p88 = scmp.eq.s32.totalorder %s24, 1
    %p89 = por %p87, %p88
    %p91 = scmp.ne.s32.totalorder %s76, %s90
    %p92 = scmp.eq.s32.totalorder %s24, 0
    %p93 = por %p91, %p92
    %s95 = sadd.s32 %s94, 1
    %p98 = scmp.eq.s32.totalorder %s18, 1
    %p99 = scmp.ne.s32.totalorder %s94, %s96
    %p100 = scmp.eq.s32.totalorder %s18, 0
    %p101 = por %p99, %p100
    %p102 = scmp.ne.s32.totalorder %s94, %s96
    %p103 = scmp.eq.s32.totalorder %s23, 1
    %p104 = por %p102, %p103
    %p105 = scmp.ne.s32.totalorder %s96, %s97
    %p106 = scmp.eq.s32.totalorder %s23, 0
    %p107 = por %p105, %p106
    %p108 = scmp.ne.s32.totalorder %s96, %s97
    %p109 = scmp.eq.s32.totalorder %s24, 1
    %p110 = por %p108, %p109
    %p112 = scmp.ne.s32.totalorder %s97, %s111
    %p113 = scmp.eq.s32.totalorder %s24, 0
    %p114 = por %p112, %p113
    %s116 = sadd.s32 %s115, 1
    %p119 = scmp.eq.s32.totalorder %s18, 1
    %p120 = scmp.ne.s32.totalorder %s115, %s117
    %p121 = scmp.eq.s32.totalorder %s18, 0
    %p122 = por %p120, %p121
    %p123 = scmp.ne.s32.totalorder %s115, %s117
    %p124 = scmp.eq.s32.totalorder %s23, 1
    %p125 = por %p123, %p124
    %p126 = scmp.ne.s32.totalorder %s117, %s118
    %p127 = scmp.eq.s32.totalorder %s23, 0
    %p128 = por %p126, %p127
    %p129 = scmp.ne.s32.totalorder %s117, %s118
    %p130 = scmp.eq.s32.totalorder %s24, 1
    %p131 = por %p129, %p130
    %p133 = scmp.ne.s32.totalorder %s118, %s132
    %p134 = scmp.eq.s32.totalorder %s24, 0
    %p135 = por %p133, %p134
    %s137 = sadd.s32 %s136, 1
    %p140 = scmp.eq.s32.totalorder %s18, 1
    %p141 = scmp.ne.s32.totalorder %s136, %s138
    %p142 = scmp.eq.s32.totalorder %s18, 0
    %p143 = por %p141, %p142
    %p144 = scmp.ne.s32.totalorder %s136, %s138
    %p145 = scmp.eq.s32.totalorder %s23, 1
    %p146 = por %p144, %p145
    %p147 = scmp.ne.s32.totalorder %s138, %s139
    %p148 = scmp.eq.s32.totalorder %s23, 0
    %p149 = por %p147, %p148
    %p150 = scmp.ne.s32.totalorder %s138, %s139
    %p151 = scmp.eq.s32.totalorder %s24, 1
    %p152 = por %p150, %p151
    %p154 = scmp.ne.s32.totalorder %s139, %s153
    %p155 = scmp.eq.s32.totalorder %s24, 0
    %p156 = por %p154, %p155
    %s158 = sadd.s32 %s157, 1
    %p161 = scmp.eq.s32.totalorder %s18, 1
    %p162 = scmp.ne.s32.totalorder %s157, %s159
    %p163 = scmp.eq.s32.totalorder %s18, 0
    %p164 = por %p162, %p163
    %p165 = scmp.ne.s32.totalorder %s157, %s159
    %p166 = scmp.eq.s32.totalorder %s23, 1
    %p167 = por %p165, %p166
    %p168 = scmp.ne.s32.totalorder %s159, %s160
    %p169 = scmp.eq.s32.totalorder %s23, 0
    %p170 = por %p168, %p169
    %p171 = scmp.ne.s32.totalorder %s159, %s160
    %p172 = scmp.eq.s32.totalorder %s24, 1
    %p173 = por %p171, %p172
    %p175 = scmp.ne.s32.totalorder %s160, %s174
    %p176 = scmp.eq.s32.totalorder %s24, 0
    %p177 = por %p175, %p176
    %s179 = sadd.s32 %s178, 1
    %p182 = scmp.eq.s32.totalorder %s18, 1
    %p183 = scmp.ne.s32.totalorder %s178, %s180
    %p184 = scmp.eq.s32.totalorder %s18, 0
    %p185 = por %p183, %p184
    %p186 = scmp.ne.s32.totalorder %s178, %s180
    %p187 = scmp.eq.s32.totalorder %s23, 1
    %p188 = por %p186, %p187
    %p189 = scmp.ne.s32.totalorder %s180, %s181
    %p190 = scmp.eq.s32.totalorder %s23, 0
    %p191 = por %p189, %p190
    %p192 = scmp.ne.s32.totalorder %s180, %s181
    %p193 = scmp.eq.s32.totalorder %s24, 1
    %p194 = por %p192, %p193
    %p196 = scmp.ne.s32.totalorder %s181, %s195
    %p197 = scmp.eq.s32.totalorder %s24, 0
    %p198 = por %p196, %p197
    %s200 = sadd.s32 %s199, 1
    %p203 = scmp.eq.s32.totalorder %s18, 1
    %p204 = scmp.ne.s32.totalorder %s199, %s201
    %p205 = scmp.eq.s32.totalorder %s18, 0
    %p206 = por %p204, %p205
    %p207 = scmp.ne.s32.totalorder %s199, %s201
    %p208 = scmp.eq.s32.totalorder %s23, 1
    %p209 = por %p207, %p208
    %p210 = scmp.ne.s32.totalorder %s201, %s202
    %p211 = scmp.eq.s32.totalorder %s23, 0
    %p212 = por %p210, %p211
    %p213 = scmp.ne.s32.totalorder %s201, %s202
    %p214 = scmp.eq.s32.totalorder %s24, 1
    %p215 = por %p213, %p214
    %p217 = scmp.ne.s32.totalorder %s202, %s216
    %p218 = scmp.eq.s32.totalorder %s24, 0
    %p219 = por %p217, %p218
    %s221 = sadd.s32 %s220, 1
    %p224 = scmp.eq.s32.totalorder %s18, 1
    %p225 = scmp.ne.s32.totalorder %s220, %s222
    %p226 = scmp.eq.s32.totalorder %s18, 0
    %p227 = por %p225, %p226
    %p228 = scmp.ne.s32.totalorder %s220, %s222
    %p229 = scmp.eq.s32.totalorder %s23, 1
    %p230 = por %p228, %p229
    %p231 = scmp.ne.s32.totalorder %s222, %s223
    %p232 = scmp.eq.s32.totalorder %s23, 0
    %p233 = por %p231, %p232
    %p234 = scmp.ne.s32.totalorder %s222, %s223
    %p235 = scmp.eq.s32.totalorder %s24, 1
    %p236 = por %p234, %p235
    %p238 = scmp.ne.s32.totalorder %s223, %s237
    %p239 = scmp.eq.s32.totalorder %s24, 0
    %p240 = por %p238, %p239
    %s242 = sadd.s32 %s241, 1
    %p245 = scmp.eq.s32.totalorder %s18, 1
    %p246 = scmp.ne.s32.totalorder %s241, %s243
    %p247 = scmp.eq.s32.totalorder %s18, 0
    %p248 = por %p246, %p247
    %p249 = scmp.ne.s32.totalorder %s241, %s243
    %p250 = scmp.eq.s32.totalorder %s23, 1
    %p251 = por %p249, %p250
    %p252 = scmp.ne.s32.totalorder %s243, %s244
    %p253 = scmp.eq.s32.totalorder %s23, 0
    %p254 = por %p252, %p253
    %p255 = scmp.ne.s32.totalorder %s243, %s244
    %p256 = scmp.eq.s32.totalorder %s24, 1
    %p257 = por %p255, %p256
    %p259 = scmp.ne.s32.totalorder %s244, %s258
    %p260 = scmp.eq.s32.totalorder %s24, 0
    %p261 = por %p259, %p260
    %s263 = sadd.s32 %s262, 1
    %p266 = scmp.eq.s32.totalorder %s18, 1
    %p267 = scmp.ne.s32.totalorder %s262, %s264
    %p268 = scmp.eq.s32.totalorder %s18, 0
    %p269 = por %p267, %p268
    %p270 = scmp.ne.s32.totalorder %s262, %s264
    %p271 = scmp.eq.s32.totalorder %s23, 1
    %p272 = por %p270, %p271
    %p273 = scmp.ne.s32.totalorder %s264, %s265
    %p274 = scmp.eq.s32.totalorder %s23, 0
    %p275 = por %p273, %p274
    %p276 = scmp.ne.s32.totalorder %s264, %s265
    %p277 = scmp.eq.s32.totalorder %s24, 1
    %p278 = por %p276, %p277
    %p280 = scmp.ne.s32.totalorder %s265, %s279
    %p281 = scmp.eq.s32.totalorder %s24, 0
    %p282 = por %p280, %p281
    %s283 = ssub.s32 %s18, %s25
    %p284 = scmp.eq.s32.totalorder %s283, 0
    %s286 = sadd.s32 %s285, 1
    %s287 = scalar_select %p284, %s285, %s286
    %p290 = pneg %p284
    %p291 = scmp.eq.s32.totalorder %s18, 1
    %p292 = por %p290, %p291
    %p293 = scmp.ne.s32.totalorder %s285, %s288
    %p294 = scmp.eq.s32.totalorder %s18, 0
    %p295 = por %p293, %p294
    %p296 = scmp.ne.s32.totalorder %s285, %s288
    %p297 = scmp.eq.s32.totalorder %s23, 1
    %p298 = por %p296, %p297
    %p299 = scmp.ne.s32.totalorder %s288, %s289
    %p300 = scmp.eq.s32.totalorder %s23, 0
    %p301 = por %p299, %p300
    %p302 = scmp.ne.s32.totalorder %s288, %s289
    %p303 = scmp.eq.s32.totalorder %s24, 1
    %p304 = por %p302, %p303
    %p306 = scmp.ne.s32.totalorder %s289, %s305
    %p307 = scmp.eq.s32.totalorder %s24, 0
    %p308 = por %p306, %p307
    %p309 = scmp.le.s32.totalorder 1, %s18
    %p310 = scmp.lt.s32.totalorder %s18, 3
    %p311 = pnand %p309, %p310
    %p312 = pneg %p311
    // Predicated region
    $region9: #{set_channel_estimation_forward.1} parent=5 // pred_check
      _
    $region10: #{set_channel_estimation_forward.1} parent=5 // pred_check_branch
      %314 = sbr.rel (%p311) target = $region12
    $region11: #{set_channel_estimation_forward.1} parent=5 // pred_region
      %s315 = ssub.s32 %s18, 1
      // Predicated region
      $region13: #{set_channel_estimation_forward.1} parent=11 // pred_check
        %p316 = pneg %p65
      $region14: #{set_channel_estimation_forward.1} parent=11 // pred_check_branch
        %318 = sbr.rel (%p316) target = $region16
      $region15: #{set_channel_estimation_forward.1} parent=11 // pred_region
        _
      $region16: #{set_channel_estimation_forward.1} parent=11 // pred_fallthru
        _
      // Predicated region
      $region17: #{set_channel_estimation_forward.1} parent=11 // pred_check
        %p319 = pneg %p86
      $region18: #{set_channel_estimation_forward.1} parent=11 // pred_check_branch
        %321 = sbr.rel (%p319) target = $region20
      $region19: #{set_channel_estimation_forward.1} parent=11 // pred_region
        _
      $region20: #{set_channel_estimation_forward.1} parent=11 // pred_fallthru
        _
      // Predicated region
      $region21: #{set_channel_estimation_forward.1} parent=11 // pred_check
        %p322 = pneg %p107
      $region22: #{set_channel_estimation_forward.1} parent=11 // pred_check_branch
        %324 = sbr.rel (%p322) target = $region24
      $region23: #{set_channel_estimation_forward.1} parent=11 // pred_region
        _
      $region24: #{set_channel_estimation_forward.1} parent=11 // pred_fallthru
        _
      // Predicated region
      $region25: #{set_channel_estimation_forward.1} parent=11 // pred_check
        %p325 = pneg %p128
      $region26: #{set_channel_estimation_forward.1} parent=11 // pred_check_branch
        %327 = sbr.rel (%p325) target = $region28
      $region27: #{set_channel_estimation_forward.1} parent=11 // pred_region
        _
      $region28: #{set_channel_estimation_forward.1} parent=11 // pred_fallthru
        _
      // Predicated region
      $region29: #{set_channel_estimation_forward.1} parent=11 // pred_check
        %p328 = pneg %p149
      $region30: #{set_channel_estimation_forward.1} parent=11 // pred_check_branch
        %330 = sbr.rel (%p328) target = $region32
      $region31: #{set_channel_estimation_forward.1} parent=11 // pred_region
        _
      $region32: #{set_channel_estimation_forward.1} parent=11 // pred_fallthru
        _
      // Predicated region
      $region33: #{set_channel_estimation_forward.1} parent=11 // pred_check
        %p331 = pneg %p170
      $region34: #{set_channel_estimation_forward.1} parent=11 // pred_check_branch
        %333 = sbr.rel (%p331) target = $region36
      $region35: #{set_channel_estimation_forward.1} parent=11 // pred_region
        _
      $region36: #{set_channel_estimation_forward.1} parent=11 // pred_fallthru
        _
      // Predicated region
      $region37: #{set_channel_estimation_forward.1} parent=11 // pred_check
        %p334 = pneg %p191
      $region38: #{set_channel_estimation_forward.1} parent=11 // pred_check_branch
        %336 = sbr.rel (%p334) target = $region40
      $region39: #{set_channel_estimation_forward.1} parent=11 // pred_region
        _
      $region40: #{set_channel_estimation_forward.1} parent=11 // pred_fallthru
        _
      // Predicated region
      $region41: #{set_channel_estimation_forward.1} parent=11 // pred_check
        %p337 = pneg %p212
      $region42: #{set_channel_estimation_forward.1} parent=11 // pred_check_branch
        %339 = sbr.rel (%p337) target = $region44
      $region43: #{set_channel_estimation_forward.1} parent=11 // pred_region
        _
      $region44: #{set_channel_estimation_forward.1} parent=11 // pred_fallthru
        _
      // Predicated region
      $region45: #{set_channel_estimation_forward.1} parent=11 // pred_check
        %p340 = pneg %p233
      $region46: #{set_channel_estimation_forward.1} parent=11 // pred_check_branch
        %342 = sbr.rel (%p340) target = $region48
      $region47: #{set_channel_estimation_forward.1} parent=11 // pred_region
        _
      $region48: #{set_channel_estimation_forward.1} parent=11 // pred_fallthru
        _
      // Predicated region
      $region49: #{set_channel_estimation_forward.1} parent=11 // pred_check
        %p343 = pneg %p254
      $region50: #{set_channel_estimation_forward.1} parent=11 // pred_check_branch
        %345 = sbr.rel (%p343) target = $region52
      $region51: #{set_channel_estimation_forward.1} parent=11 // pred_region
        _
      $region52: #{set_channel_estimation_forward.1} parent=11 // pred_fallthru
        _
      // Predicated region
      $region53: #{set_channel_estimation_forward.1} parent=11 // pred_check
        %p346 = pneg %p275
      $region54: #{set_channel_estimation_forward.1} parent=11 // pred_check_branch
        %348 = sbr.rel (%p346) target = $region56
      $region55: #{set_channel_estimation_forward.1} parent=11 // pred_region
        _
      $region56: #{set_channel_estimation_forward.1} parent=11 // pred_fallthru
        _
    $region12: #{set_channel_estimation_forward.1} parent=5 // pred_fallthru
      _
    %p349 = scmp.lt.s32.totalorder %s18, 2
    // Predicated region
    $region57: #{set_channel_estimation_forward.1} parent=5 // pred_check
      %p350 = pneg %p349
    $region58: #{set_channel_estimation_forward.1} parent=5 // pred_check_branch
      %352 = sbr.rel (%p350) target = $region60
    $region59: #{set_channel_estimation_forward.1} parent=5 // pred_region
      // Predicated region
      $region61: #{set_channel_estimation_forward.1} parent=59 // pred_check
        %p353 = pneg %p38
      $region62: #{set_channel_estimation_forward.1} parent=59 // pred_check_branch
        %355 = sbr.rel (%p353) target = $region64
      $region63: #{set_channel_estimation_forward.1} parent=59 // pred_region
        %p356 = scmp.lt.s32.totalorder %s18, 1
        %s357 = scalar_select %p356, %s18, 1
        %s358 = smul.addr %s357, 2
        %s359 = smul.addr %s358, 8
        %s360 = scalar_lea.vmem %s0, %s359
      $region64: #{set_channel_estimation_forward.1} parent=59 // pred_fallthru
        _
    $region60: #{set_channel_estimation_forward.1} parent=5 // pred_fallthru
      _
    %p361 = scmp.le.s32.totalorder 1, %s18
    %p362 = scmp.lt.s32.totalorder %s18, 3
    %p363 = pnand %p361, %p362
    %p364 = pneg %p363
    // Predicated region
    $region65: #{set_channel_estimation_forward.1} parent=5 // pred_check
      _
    $region66: #{set_channel_estimation_forward.1} parent=5 // pred_check_branch
      %366 = sbr.rel (%p363) target = $region68
    $region67: #{set_channel_estimation_forward.1} parent=5 // pred_region
      %s367 = ssub.s32 %s18, 1
      %p368 = scmp.lt.s32.totalorder %s23, 1
      %s369 = scalar_select %p368, %s23, 1
      %s370 = smul.addr %s369, 2
      %s371 = smul.addr %s370, 8
      %s372 = scalar_lea.vmem %s0, %s371
      %p373 = pneg %p44
      %p374 = pneg %p41
      %p375 = pneg %p65
      %p376 = pneg %p62
      %p377 = pneg %p86
      %p378 = pneg %p83
      %p379 = pneg %p107
      %p380 = pneg %p104
      %p381 = pneg %p128
      %p382 = pneg %p125
      %p383 = pneg %p149
      %p384 = pneg %p146
      %p385 = pneg %p170
      %p386 = pneg %p167
      %p387 = pneg %p191
      %p388 = pneg %p188
      %p389 = pneg %p212
      %p390 = pneg %p209
      %p391 = pneg %p233
      %p392 = pneg %p230
      %p393 = pneg %p254
      %p394 = pneg %p251
      %p395 = pneg %p275
      %p396 = pneg %p272
      %p397 = pneg %p301
      %p398 = pneg %p298
      %p399 = scmp.lt.s32.totalorder %s23, 1
      %s400 = scalar_select %p399, %s23, 1
      %s401 = smul.addr %s400, 2
      %s402 = smul.addr %s401, 8
      %s403 = scalar_lea.vmem %s12, %s402
      %p404 = scmp.lt.s32.totalorder %s23, 1
      %s405 = scalar_select %p404, %s23, 1
      %s406 = smul.addr %s405, 2
      %s407 = smul.addr %s406, 8
      %s408 = scalar_lea.vmem %s0, %s407
      %p409 = scmp.lt.s32.totalorder %s23, 1
      %s410 = scalar_select %p409, %s23, 1
      %s411 = smul.addr %s410, 2
      %s412 = smul.addr %s411, 8
      %s413 = scalar_lea.vmem %s12, %s412
      %v414 = vld [vmem:[%s408] sm:$0xff]
      %v415 = vld [vmem:[%s408 + $0x8] sm:$0xff]
      %v416 = vld [vmem:[%s2] sm:$0x3]
      %v417 = vld [vmem:[%s1] sm:$0xff]
      %v418 = vld [vmem:[%s1 + $0x8] sm:$0xff]
      %v419 = vperm.slane %v416, 0
      %vm420 = vcmask 130048
      %v422 = vsel %vm420, %v414, 0
      %v425 = vsel %vm420, %v415, 0
      %427 = vmatpush.msra.mxu0 0.0
      %428 = vmatpush.msra.mxu0 0.0
      %429 = vmatpush.msra.mxu0 0.0
      %430 = vmatpush.msra.mxu0 0.0
      %431 = vmatpush.msra.mxu0 0.0
      %432 = vmatpush.msra.mxu0 0.0
      %433 = vmatpush.msra.mxu0 0.0
      %434 = vmatpush.msra.mxu0 0.0
      %435 = vmatpush.msra.mxu0 0.0
      %436 = vmatpush.msra.mxu0 0.0
      %437 = vmatpush.msra.mxu0 0.0
      %438 = vmatpush.msra.mxu0 0.0
      %439 = vmatpush.msra.mxu0 0.0
      %440 = vmatpush.msra.mxu0 0.0
      %v441 = vand.u32 %v418, 4294901760
      %442 = vmatpush.msra.mxu0 %v441
      %v443 = vand.u32 %v417, 4294901760
      %444 = vmatpush.msra.mxu0 %v443
      %v445 = vand.u32 %v422, 4294901760
      %v446 = vsub.f32 %v422, %v445
      %v447 = vand.u32 %v446, 4294901760
      %v448 = vsub.f32 %v446, %v447
      %v449 = vand.u32 %v448, 4294901760
      %450 = vmatmul.f32.gmra.mxu0 %v449
      %v451 = vpop.f32.mrf.mxu0
      %v452 = vadd.f32 %v419, %v451
      %v453 = vand.u32 %v425, 4294901760
      %v454 = vsub.f32 %v425, %v453
      %v455 = vand.u32 %v454, 4294901760
      %v456 = vsub.f32 %v454, %v455
      %v457 = vand.u32 %v456, 4294901760
      %458 = vmatmul.f32.gmra.mxu0 %v457
      %v459 = vpop.f32.mrf.mxu0
      %v460 = vadd.f32 %v419, %v459
      %461 = vdwg.mxu0
      %462 = vmatpush.msra.mxu0 0.0
      %463 = vmatpush.msra.mxu0 0.0
      %464 = vmatpush.msra.mxu0 0.0
      %465 = vmatpush.msra.mxu0 0.0
      %466 = vmatpush.msra.mxu0 0.0
      %467 = vmatpush.msra.mxu0 0.0
      %468 = vmatpush.msra.mxu0 0.0
      %469 = vmatpush.msra.mxu0 0.0
      %470 = vmatpush.msra.mxu0 0.0
      %471 = vmatpush.msra.mxu0 0.0
      %472 = vmatpush.msra.mxu0 0.0
      %473 = vmatpush.msra.mxu0 0.0
      %474 = vmatpush.msra.mxu0 0.0
      %475 = vmatpush.msra.mxu0 0.0
      %v476 = vand.u32 %v418, 4294901760
      %v477 = vsub.f32 %v418, %v476
      %v478 = vand.u32 %v477, 4294901760
      %v479 = vsub.f32 %v477, %v478
      %v480 = vand.u32 %v479, 4294901760
      %481 = vmatpush.msra.mxu0 %v480
      %v482 = vand.u32 %v417, 4294901760
      %v483 = vsub.f32 %v417, %v482
      %v484 = vand.u32 %v483, 4294901760
      %v485 = vsub.f32 %v483, %v484
      %v486 = vand.u32 %v485, 4294901760
      %487 = vmatpush.msra.mxu0 %v486
      %v488 = vand.u32 %v422, 4294901760
      %489 = vmatmul.f32.gmra.mxu0 %v488
      %v490 = vpop.f32.mrf.mxu0
      %v491 = vadd.f32 %v452, %v490
      %v492 = vand.u32 %v425, 4294901760
      %493 = vmatmul.f32.gmra.mxu0 %v492
      %v494 = vpop.f32.mrf.mxu0
      %v495 = vadd.f32 %v460, %v494
      %496 = vdwg.mxu0
      %497 = vmatpush.msra.mxu0 0.0
      %498 = vmatpush.msra.mxu0 0.0
      %499 = vmatpush.msra.mxu0 0.0
      %500 = vmatpush.msra.mxu0 0.0
      %501 = vmatpush.msra.mxu0 0.0
      %502 = vmatpush.msra.mxu0 0.0
      %503 = vmatpush.msra.mxu0 0.0
      %504 = vmatpush.msra.mxu0 0.0
      %505 = vmatpush.msra.mxu0 0.0
      %506 = vmatpush.msra.mxu0 0.0
      %507 = vmatpush.msra.mxu0 0.0
      %508 = vmatpush.msra.mxu0 0.0
      %509 = vmatpush.msra.mxu0 0.0
      %510 = vmatpush.msra.mxu0 0.0
      %v511 = vand.u32 %v418, 4294901760
      %v512 = vsub.f32 %v418, %v511
      %513 = vmatpush.msra.mxu0 %v512
      %v514 = vand.u32 %v417, 4294901760
      %v515 = vsub.f32 %v417, %v514
      %516 = vmatpush.msra.mxu0 %v515
      %v517 = vand.u32 %v422, 4294901760
      %v518 = vsub.f32 %v422, %v517
      %519 = vmatmul.f32.gmra.mxu0 %v518
      %v520 = vpop.f32.mrf.mxu0
      %v521 = vadd.f32 %v491, %v520
      %v522 = vand.u32 %v425, 4294901760
      %v523 = vsub.f32 %v425, %v522
      %524 = vmatmul.f32.gmra.mxu0 %v523
      %v525 = vpop.f32.mrf.mxu0
      %v526 = vadd.f32 %v495, %v525
      %527 = vdwg.mxu0
      %528 = vmatpush.msra.mxu0 0.0
      %529 = vmatpush.msra.mxu0 0.0
      %530 = vmatpush.msra.mxu0 0.0
      %531 = vmatpush.msra.mxu0 0.0
      %532 = vmatpush.msra.mxu0 0.0
      %533 = vmatpush.msra.mxu0 0.0
      %534 = vmatpush.msra.mxu0 0.0
      %535 = vmatpush.msra.mxu0 0.0
      %536 = vmatpush.msra.mxu0 0.0
      %537 = vmatpush.msra.mxu0 0.0
      %538 = vmatpush.msra.mxu0 0.0
      %539 = vmatpush.msra.mxu0 0.0
      %540 = vmatpush.msra.mxu0 0.0
      %541 = vmatpush.msra.mxu0 0.0
      %v542 = vand.u32 %v418, 4294901760
      %543 = vmatpush.msra.mxu0 %v542
      %v544 = vand.u32 %v417, 4294901760
      %545 = vmatpush.msra.mxu0 %v544
      %v546 = vand.u32 %v422, 4294901760
      %v547 = vsub.f32 %v422, %v546
      %v548 = vand.u32 %v547, 4294901760
      %549 = vmatmul.f32.gmra.mxu0 %v548
      %v550 = vpop.f32.mrf.mxu0
      %v551 = vadd.f32 %v521, %v550
      %v552 = vand.u32 %v425, 4294901760
      %v553 = vsub.f32 %v425, %v552
      %v554 = vand.u32 %v553, 4294901760
      %555 = vmatmul.f32.gmra.mxu0 %v554
      %v556 = vpop.f32.mrf.mxu0
      %v557 = vadd.f32 %v526, %v556
      %558 = vdwg.mxu0
      %559 = vmatpush.msra.mxu0 0.0
      %560 = vmatpush.msra.mxu0 0.0
      %561 = vmatpush.msra.mxu0 0.0
      %562 = vmatpush.msra.mxu0 0.0
      %563 = vmatpush.msra.mxu0 0.0
      %564 = vmatpush.msra.mxu0 0.0
      %565 = vmatpush.msra.mxu0 0.0
      %566 = vmatpush.msra.mxu0 0.0
      %567 = vmatpush.msra.mxu0 0.0
      %568 = vmatpush.msra.mxu0 0.0
      %569 = vmatpush.msra.mxu0 0.0
      %570 = vmatpush.msra.mxu0 0.0
      %571 = vmatpush.msra.mxu0 0.0
      %572 = vmatpush.msra.mxu0 0.0
      %v573 = vand.u32 %v418, 4294901760
      %v574 = vsub.f32 %v418, %v573
      %v575 = vand.u32 %v574, 4294901760
      %576 = vmatpush.msra.mxu0 %v575
      %v577 = vand.u32 %v417, 4294901760
      %v578 = vsub.f32 %v417, %v577
      %v579 = vand.u32 %v578, 4294901760
      %580 = vmatpush.msra.mxu0 %v579
      %v581 = vand.u32 %v422, 4294901760
      %582 = vmatmul.f32.gmra.mxu0 %v581
      %v583 = vpop.f32.mrf.mxu0
      %v584 = vadd.f32 %v551, %v583
      %v585 = vand.u32 %v425, 4294901760
      %586 = vmatmul.f32.gmra.mxu0 %v585
      %v587 = vpop.f32.mrf.mxu0
      %v588 = vadd.f32 %v557, %v587
      %589 = vdwg.mxu0
      %590 = vmatpush.msra.mxu0 0.0
      %591 = vmatpush.msra.mxu0 0.0
      %592 = vmatpush.msra.mxu0 0.0
      %593 = vmatpush.msra.mxu0 0.0
      %594 = vmatpush.msra.mxu0 0.0
      %595 = vmatpush.msra.mxu0 0.0
      %596 = vmatpush.msra.mxu0 0.0
      %597 = vmatpush.msra.mxu0 0.0
      %598 = vmatpush.msra.mxu0 0.0
      %599 = vmatpush.msra.mxu0 0.0
      %600 = vmatpush.msra.mxu0 0.0
      %601 = vmatpush.msra.mxu0 0.0
      %602 = vmatpush.msra.mxu0 0.0
      %603 = vmatpush.msra.mxu0 0.0
      %v604 = vand.u32 %v418, 4294901760
      %605 = vmatpush.msra.mxu0 %v604
      %v606 = vand.u32 %v417, 4294901760
      %607 = vmatpush.msra.mxu0 %v606
      %v608 = vand.u32 %v422, 4294901760
      %609 = vmatmul.f32.gmra.mxu0 %v608
      %v610 = vpop.f32.mrf.mxu0
      %v611 = vadd.f32 %v584, %v610
      %v612 = vand.u32 %v425, 4294901760
      %613 = vmatmul.f32.gmra.mxu0 %v612
      %v614 = vpop.f32.mrf.mxu0
      %v615 = vadd.f32 %v588, %v614
      %616 = vdwg.mxu0
      %v617 = vmax.f32 %v611, 0.0
      %v618 = vmax.f32 %v615, 0.0
      %v619 = vld [vmem:[%s3] sm:$0xff]
      %v620 = vld [vmem:[%s3 + $0x8] sm:$0xff]
      %v621 = vld [vmem:[%s3 + $0x10] sm:$0xff]
      %v622 = vld [vmem:[%s3 + $0x18] sm:$0xff]
      %v623 = vld [vmem:[%s3 + $0x20] sm:$0xff]
      %v624 = vld [vmem:[%s3 + $0x28] sm:$0xff]
      %v625 = vld [vmem:[%s3 + $0x30] sm:$0xff]
      %v626 = vld [vmem:[%s3 + $0x38] sm:$0xff]
      %v627 = vperm.slane %v416, 1
      %vm628 = vcmask 523264
      %v630 = vsel %vm628, %v617, 0
      %v633 = vsel %vm628, %v618, 0
      %635 = vmatpush.msra.mxu0 0.0
      %636 = vmatpush.msra.mxu0 0.0
      %637 = vmatpush.msra.mxu0 0.0
      %638 = vmatpush.msra.mxu0 0.0
      %639 = vmatpush.msra.mxu0 0.0
      %640 = vmatpush.msra.mxu0 0.0
      %641 = vmatpush.msra.mxu0 0.0
      %642 = vmatpush.msra.mxu0 0.0
      %v643 = vand.u32 %v626, 4294901760
      %644 = vmatpush.msra.mxu0 %v643
      %v645 = vand.u32 %v625, 4294901760
      %646 = vmatpush.msra.mxu0 %v645
      %v647 = vand.u32 %v624, 4294901760
      %648 = vmatpush.msra.mxu0 %v647
      %v649 = vand.u32 %v623, 4294901760
      %650 = vmatpush.msra.mxu0 %v649
      %v651 = vand.u32 %v622, 4294901760
      %652 = vmatpush.msra.mxu0 %v651
      %v653 = vand.u32 %v621, 4294901760
      %654 = vmatpush.msra.mxu0 %v653
      %v655 = vand.u32 %v620, 4294901760
      %656 = vmatpush.msra.mxu0 %v655
      %v657 = vand.u32 %v619, 4294901760
      %658 = vmatpush.msra.mxu0 %v657
      %v659 = vand.u32 %v630, 4294901760
      %v660 = vsub.f32 %v630, %v659
      %v661 = vand.u32 %v660, 4294901760
      %v662 = vsub.f32 %v660, %v661
      %v663 = vand.u32 %v662, 4294901760
      %664 = vmatmul.f32.gmra.mxu0 %v663
      %v665 = vpop.f32.mrf.mxu0
      %v666 = vadd.f32 %v627, %v665
      %v667 = vand.u32 %v633, 4294901760
      %v668 = vsub.f32 %v633, %v667
      %v669 = vand.u32 %v668, 4294901760
      %v670 = vsub.f32 %v668, %v669
      %v671 = vand.u32 %v670, 4294901760
      %672 = vmatmul.f32.gmra.mxu0 %v671
      %v673 = vpop.f32.mrf.mxu0
      %v674 = vadd.f32 %v627, %v673
      %675 = vdwg.mxu0
      %676 = vmatpush.msra.mxu0 0.0
      %677 = vmatpush.msra.mxu0 0.0
      %678 = vmatpush.msra.mxu0 0.0
      %679 = vmatpush.msra.mxu0 0.0
      %680 = vmatpush.msra.mxu0 0.0
      %681 = vmatpush.msra.mxu0 0.0
      %682 = vmatpush.msra.mxu0 0.0
      %683 = vmatpush.msra.mxu0 0.0
      %v684 = vand.u32 %v626, 4294901760
      %v685 = vsub.f32 %v626, %v684
      %v686 = vand.u32 %v685, 4294901760
      %v687 = vsub.f32 %v685, %v686
      %v688 = vand.u32 %v687, 4294901760
      %689 = vmatpush.msra.mxu0 %v688
      %v690 = vand.u32 %v625, 4294901760
      %v691 = vsub.f32 %v625, %v690
      %v692 = vand.u32 %v691, 4294901760
      %v693 = vsub.f32 %v691, %v692
      %v694 = vand.u32 %v693, 4294901760
      %695 = vmatpush.msra.mxu0 %v694
      %v696 = vand.u32 %v624, 4294901760
      %v697 = vsub.f32 %v624, %v696
      %v698 = vand.u32 %v697, 4294901760
      %v699 = vsub.f32 %v697, %v698
      %v700 = vand.u32 %v699, 4294901760
      %701 = vmatpush.msra.mxu0 %v700
      %v702 = vand.u32 %v623, 4294901760
      %v703 = vsub.f32 %v623, %v702
      %v704 = vand.u32 %v703, 4294901760
      %v705 = vsub.f32 %v703, %v704
      %v706 = vand.u32 %v705, 4294901760
      %707 = vmatpush.msra.mxu0 %v706
      %v708 = vand.u32 %v622, 4294901760
      %v709 = vsub.f32 %v622, %v708
      %v710 = vand.u32 %v709, 4294901760
      %v711 = vsub.f32 %v709, %v710
      %v712 = vand.u32 %v711, 4294901760
      %713 = vmatpush.msra.mxu0 %v712
      %v714 = vand.u32 %v621, 4294901760
      %v715 = vsub.f32 %v621, %v714
      %v716 = vand.u32 %v715, 4294901760
      %v717 = vsub.f32 %v715, %v716
      %v718 = vand.u32 %v717, 4294901760
      %719 = vmatpush.msra.mxu0 %v718
      %v720 = vand.u32 %v620, 4294901760
      %v721 = vsub.f32 %v620, %v720
      %v722 = vand.u32 %v721, 4294901760
      %v723 = vsub.f32 %v721, %v722
      %v724 = vand.u32 %v723, 4294901760
      %725 = vmatpush.msra.mxu0 %v724
      %v726 = vand.u32 %v619, 4294901760
      %v727 = vsub.f32 %v619, %v726
      %v728 = vand.u32 %v727, 4294901760
      %v729 = vsub.f32 %v727, %v728
      %v730 = vand.u32 %v729, 4294901760
      %731 = vmatpush.msra.mxu0 %v730
      %v732 = vand.u32 %v630, 4294901760
      %733 = vmatmul.f32.gmra.mxu0 %v732
      %v734 = vpop.f32.mrf.mxu0
      %v735 = vadd.f32 %v666, %v734
      %v736 = vand.u32 %v633, 4294901760
      %737 = vmatmul.f32.gmra.mxu0 %v736
      %v738 = vpop.f32.mrf.mxu0
      %v739 = vadd.f32 %v674, %v738
      %740 = vdwg.mxu0
      %741 = vmatpush.msra.mxu0 0.0
      %742 = vmatpush.msra.mxu0 0.0
      %743 = vmatpush.msra.mxu0 0.0
      %744 = vmatpush.msra.mxu0 0.0
      %745 = vmatpush.msra.mxu0 0.0
      %746 = vmatpush.msra.mxu0 0.0
      %747 = vmatpush.msra.mxu0 0.0
      %748 = vmatpush.msra.mxu0 0.0
      %v749 = vand.u32 %v626, 4294901760
      %v750 = vsub.f32 %v626, %v749
      %751 = vmatpush.msra.mxu0 %v750
      %v752 = vand.u32 %v625, 4294901760
      %v753 = vsub.f32 %v625, %v752
      %754 = vmatpush.msra.mxu0 %v753
      %v755 = vand.u32 %v624, 4294901760
      %v756 = vsub.f32 %v624, %v755
      %757 = vmatpush.msra.mxu0 %v756
      %v758 = vand.u32 %v623, 4294901760
      %v759 = vsub.f32 %v623, %v758
      %760 = vmatpush.msra.mxu0 %v759
      %v761 = vand.u32 %v622, 4294901760
      %v762 = vsub.f32 %v622, %v761
      %763 = vmatpush.msra.mxu0 %v762
      %v764 = vand.u32 %v621, 4294901760
      %v765 = vsub.f32 %v621, %v764
      %766 = vmatpush.msra.mxu0 %v765
      %v767 = vand.u32 %v620, 4294901760
      %v768 = vsub.f32 %v620, %v767
      %769 = vmatpush.msra.mxu0 %v768
      %v770 = vand.u32 %v619, 4294901760
      %v771 = vsub.f32 %v619, %v770
      %772 = vmatpush.msra.mxu0 %v771
      %v773 = vand.u32 %v630, 4294901760
      %v774 = vsub.f32 %v630, %v773
      %775 = vmatmul.f32.gmra.mxu0 %v774
      %v776 = vpop.f32.mrf.mxu0
      %v777 = vadd.f32 %v735, %v776
      %v778 = vand.u32 %v633, 4294901760
      %v779 = vsub.f32 %v633, %v778
      %780 = vmatmul.f32.gmra.mxu0 %v779
      %v781 = vpop.f32.mrf.mxu0
      %v782 = vadd.f32 %v739, %v781
      %783 = vdwg.mxu0
      %784 = vmatpush.msra.mxu0 0.0
      %785 = vmatpush.msra.mxu0 0.0
      %786 = vmatpush.msra.mxu0 0.0
      %787 = vmatpush.msra.mxu0 0.0
      %788 = vmatpush.msra.mxu0 0.0
      %789 = vmatpush.msra.mxu0 0.0
      %790 = vmatpush.msra.mxu0 0.0
      %791 = vmatpush.msra.mxu0 0.0
      %v792 = vand.u32 %v626, 4294901760
      %793 = vmatpush.msra.mxu0 %v792
      %v794 = vand.u32 %v625, 4294901760
      %795 = vmatpush.msra.mxu0 %v794
      %v796 = vand.u32 %v624, 4294901760
      %797 = vmatpush.msra.mxu0 %v796
      %v798 = vand.u32 %v623, 4294901760
      %799 = vmatpush.msra.mxu0 %v798
      %v800 = vand.u32 %v622, 4294901760
      %801 = vmatpush.msra.mxu0 %v800
      %v802 = vand.u32 %v621, 4294901760
      %803 = vmatpush.msra.mxu0 %v802
      %v804 = vand.u32 %v620, 4294901760
      %805 = vmatpush.msra.mxu0 %v804
      %v806 = vand.u32 %v619, 4294901760
      %807 = vmatpush.msra.mxu0 %v806
      %v808 = vand.u32 %v630, 4294901760
      %v809 = vsub.f32 %v630, %v808
      %v810 = vand.u32 %v809, 4294901760
      %811 = vmatmul.f32.gmra.mxu0 %v810
      %v812 = vpop.f32.mrf.mxu0
      %v813 = vadd.f32 %v777, %v812
      %v814 = vand.u32 %v633, 4294901760
      %v815 = vsub.f32 %v633, %v814
      %v816 = vand.u32 %v815, 4294901760
      %817 = vmatmul.f32.gmra.mxu0 %v816
      %v818 = vpop.f32.mrf.mxu0
      %v819 = vadd.f32 %v782, %v818
      %820 = vdwg.mxu0
      %821 = vmatpush.msra.mxu0 0.0
      %822 = vmatpush.msra.mxu0 0.0
      %823 = vmatpush.msra.mxu0 0.0
      %824 = vmatpush.msra.mxu0 0.0
      %825 = vmatpush.msra.mxu0 0.0
      %826 = vmatpush.msra.mxu0 0.0
      %827 = vmatpush.msra.mxu0 0.0
      %828 = vmatpush.msra.mxu0 0.0
      %v829 = vand.u32 %v626, 4294901760
      %v830 = vsub.f32 %v626, %v829
      %v831 = vand.u32 %v830, 4294901760
      %832 = vmatpush.msra.mxu0 %v831
      %v833 = vand.u32 %v625, 4294901760
      %v834 = vsub.f32 %v625, %v833
      %v835 = vand.u32 %v834, 4294901760
      %836 = vmatpush.msra.mxu0 %v835
      %v837 = vand.u32 %v624, 4294901760
      %v838 = vsub.f32 %v624, %v837
      %v839 = vand.u32 %v838, 4294901760
      %840 = vmatpush.msra.mxu0 %v839
      %v841 = vand.u32 %v623, 4294901760
      %v842 = vsub.f32 %v623, %v841
      %v843 = vand.u32 %v842, 4294901760
      %844 = vmatpush.msra.mxu0 %v843
      %v845 = vand.u32 %v622, 4294901760
      %v846 = vsub.f32 %v622, %v845
      %v847 = vand.u32 %v846, 4294901760
      %848 = vmatpush.msra.mxu0 %v847
      %v849 = vand.u32 %v621, 4294901760
      %v850 = vsub.f32 %v621, %v849
      %v851 = vand.u32 %v850, 4294901760
      %852 = vmatpush.msra.mxu0 %v851
      %v853 = vand.u32 %v620, 4294901760
      %v854 = vsub.f32 %v620, %v853
      %v855 = vand.u32 %v854, 4294901760
      %856 = vmatpush.msra.mxu0 %v855
      %v857 = vand.u32 %v619, 4294901760
      %v858 = vsub.f32 %v619, %v857
      %v859 = vand.u32 %v858, 4294901760
      %860 = vmatpush.msra.mxu0 %v859
      %v861 = vand.u32 %v630, 4294901760
      %862 = vmatmul.f32.gmra.mxu0 %v861
      %v863 = vpop.f32.mrf.mxu0
      %v864 = vadd.f32 %v813, %v863
      %v865 = vand.u32 %v633, 4294901760
      %866 = vmatmul.f32.gmra.mxu0 %v865
      %v867 = vpop.f32.mrf.mxu0
      %v868 = vadd.f32 %v819, %v867
      %869 = vdwg.mxu0
      %870 = vmatpush.msra.mxu0 0.0
      %871 = vmatpush.msra.mxu0 0.0
      %872 = vmatpush.msra.mxu0 0.0
      %873 = vmatpush.msra.mxu0 0.0
      %874 = vmatpush.msra.mxu0 0.0
      %875 = vmatpush.msra.mxu0 0.0
      %876 = vmatpush.msra.mxu0 0.0
      %877 = vmatpush.msra.mxu0 0.0
      %v878 = vand.u32 %v626, 4294901760
      %879 = vmatpush.msra.mxu0 %v878
      %v880 = vand.u32 %v625, 4294901760
      %881 = vmatpush.msra.mxu0 %v880
      %v882 = vand.u32 %v624, 4294901760
      %883 = vmatpush.msra.mxu0 %v882
      %v884 = vand.u32 %v623, 4294901760
      %885 = vmatpush.msra.mxu0 %v884
      %v886 = vand.u32 %v622, 4294901760
      %887 = vmatpush.msra.mxu0 %v886
      %v888 = vand.u32 %v621, 4294901760
      %889 = vmatpush.msra.mxu0 %v888
      %v890 = vand.u32 %v620, 4294901760
      %891 = vmatpush.msra.mxu0 %v890
      %v892 = vand.u32 %v619, 4294901760
      %893 = vmatpush.msra.mxu0 %v892
      %v894 = vand.u32 %v630, 4294901760
      %895 = vmatmul.f32.gmra.mxu0 %v894
      %v896 = vpop.f32.mrf.mxu0
      %v897 = vadd.f32 %v864, %v896
      %v898 = vand.u32 %v633, 4294901760
      %899 = vmatmul.f32.gmra.mxu0 %v898
      %v900 = vpop.f32.mrf.mxu0
      %v901 = vadd.f32 %v868, %v900
      %902 = vdwg.mxu0
      %v903 = vld [vmem:[%s7] sm:$0x3f]
      %v904 = vld [vmem:[%s6] sm:$0xff]
      %v905 = vld [vmem:[%s6 + $0x8] sm:$0xff]
      %v906 = vld [vmem:[%s6 + $0x10] sm:$0xff]
      %v907 = vld [vmem:[%s6 + $0x18] sm:$0xff]
      %v908 = vld [vmem:[%s6 + $0x20] sm:$0xff]
      %v909 = vld [vmem:[%s6 + $0x28] sm:$0xff]
      %v910 = vld [vmem:[%s6 + $0x30] sm:$0xff]
      %v911 = vld [vmem:[%s6 + $0x38] sm:$0xff]
      %v912 = vsel %vm628, %v897, 0.0
      %913 = vadd.xlane.f32.xlu0 %v912
      %v914 = vpop.xlane.xlu0 %913
      %v915 = vsel %vm628, %v901, 0.0
      %916 = vadd.xlane.f32.xlu0 %v915
      %v917 = vpop.xlane.xlu0 %916
      %v918 = vrcp.pop 64.0
      %v919 = vmul.f32 64.0, %v918
      %v920 = vsub.f32 1.0, %v919
      %v921 = vmul.f32 %v918, %v920
      %v922 = vadd.f32 %v918, %v921
      %vm923 = vweird.f32 %v918
      %v924 = vsel %vm923, %v918, %v922
      %v925 = vmul.f32 %v914, %v924
      %v926 = vmul.f32 %v917, %v924
      %v927 = vsub.f32 %v897, %v925
      %v928 = vsub.f32 %v901, %v926
      %v929 = vmul.f32 %v927, %v927
      %v930 = vmul.f32 %v928, %v928
      %v931 = vsel %vm628, %v929, 0.0
      %932 = vadd.xlane.f32.xlu0 %v931
      %v933 = vpop.xlane.xlu0 %932
      %v934 = vsel %vm628, %v930, 0.0
      %935 = vadd.xlane.f32.xlu0 %v934
      %v936 = vpop.xlane.xlu0 %935
      %v937 = vmul.f32 %v933, %v924
      %v938 = vmul.f32 %v936, %v924
      %v939 = vadd.f32 %v937, 1e-05
      %v940 = vadd.f32 %v938, 1e-05
      %v941 = vrsqrt.pop %v939
      %v942 = vmul.f32 %v941, %v939
      %v943 = vmul.f32 %v942, %v941
      %v944 = vmul.f32 0.5, %v943
      %v945 = vsub.f32 1.5, %v944
      %v946 = vmul.f32 %v941, %v945
      %vm947 = vweird.f32 %v939
      %vm948 = vweird.f32 %v941
      %vm949 = vmor %vm947, %vm948
      %v950 = vsel %vm949, %v941, %v946
      %v951 = vrsqrt.pop %v940
      %v952 = vmul.f32 %v951, %v940
      %v953 = vmul.f32 %v952, %v951
      %v954 = vmul.f32 0.5, %v953
      %v955 = vsub.f32 1.5, %v954
      %v956 = vmul.f32 %v951, %v955
      %vm957 = vweird.f32 %v940
      %vm958 = vweird.f32 %v951
      %vm959 = vmor %vm957, %vm958
      %v960 = vsel %vm959, %v951, %v956
      %v961 = vmul.f32 %v927, %v950
      %v962 = vmul.f32 %v928, %v960
      %v963 = vperm.slane %v903, 0
      %v964 = vmul.f32 %v961, %v963
      %v965 = vmul.f32 %v962, %v963
      %v966 = vperm.slane %v903, 1
      %v967 = vadd.f32 %v964, %v966
      %v968 = vadd.f32 %v965, %v966
      %v969 = vld [vmem:[%s4] sm:$0xff]
      %v970 = vld [vmem:[%s4 + $0x8] sm:$0xff]
      %v971 = vld [vmem:[%s4 + $0x10] sm:$0xff]
      %v972 = vld [vmem:[%s4 + $0x18] sm:$0xff]
      %v973 = vld [vmem:[%s4 + $0x20] sm:$0xff]
      %v974 = vld [vmem:[%s4 + $0x28] sm:$0xff]
      %v975 = vld [vmem:[%s4 + $0x30] sm:$0xff]
      %v976 = vld [vmem:[%s4 + $0x38] sm:$0xff]
      %v977 = vld [vmem:[%s4 + $0x40] sm:$0xff]
      %v978 = vld [vmem:[%s4 + $0x48] sm:$0xff]
      %v979 = vld [vmem:[%s4 + $0x50] sm:$0xff]
      %v980 = vld [vmem:[%s4 + $0x58] sm:$0xff]
      %v981 = vld [vmem:[%s4 + $0x60] sm:$0xff]
      %v982 = vld [vmem:[%s4 + $0x68] sm:$0xff]
      %v983 = vld [vmem:[%s4 + $0x70] sm:$0xff]
      %v984 = vld [vmem:[%s4 + $0x78] sm:$0xff]
      %v985 = vld [vmem:[%s5] sm:$0x3]
      %v987 = vperm.slane %v985, 0
      %v988 = vperm.slane %v985, 1
      %v992 = vsel %vm628, %v967, 0
      %v995 = vsel %vm628, %v968, 0
      %997 = vmatpush.msra.mxu0 0.0
      %998 = vmatpush.msra.mxu0 0.0
      %999 = vmatpush.msra.mxu0 0.0
      %1000 = vmatpush.msra.mxu0 0.0
      %1001 = vmatpush.msra.mxu0 0.0
      %1002 = vmatpush.msra.mxu0 0.0
      %1003 = vmatpush.msra.mxu0 0.0
      %1004 = vmatpush.msra.mxu0 0.0
      %v1005 = vand.u32 %v983, 4294901760
      %1006 = vmatpush.msra.mxu0 %v1005
      %v1007 = vand.u32 %v981, 4294901760
      %1008 = vmatpush.msra.mxu0 %v1007
      %v1009 = vand.u32 %v979, 4294901760
      %1010 = vmatpush.msra.mxu0 %v1009
      %v1011 = vand.u32 %v977, 4294901760
      %1012 = vmatpush.msra.mxu0 %v1011
      %v1013 = vand.u32 %v975, 4294901760
      %1014 = vmatpush.msra.mxu0 %v1013
      %v1015 = vand.u32 %v973, 4294901760
      %1016 = vmatpush.msra.mxu0 %v1015
      %v1017 = vand.u32 %v971, 4294901760
      %1018 = vmatpush.msra.mxu0 %v1017
      %v1019 = vand.u32 %v969, 4294901760
      %1020 = vmatpush.msra.mxu0 %v1019
      %v1021 = vand.u32 %v992, 4294901760
      %v1022 = vsub.f32 %v992, %v1021
      %v1023 = vand.u32 %v1022, 4294901760
      %v1024 = vsub.f32 %v1022, %v1023
      %v1025 = vand.u32 %v1024, 4294901760
      %1026 = vmatmul.f32.gmra.mxu0 %v1025
      %v1027 = vpop.f32.mrf.mxu0
      %v1028 = vadd.f32 %v987, %v1027
      %v1029 = vand.u32 %v995, 4294901760
      %v1030 = vsub.f32 %v995, %v1029
      %v1031 = vand.u32 %v1030, 4294901760
      %v1032 = vsub.f32 %v1030, %v1031
      %v1033 = vand.u32 %v1032, 4294901760
      %1034 = vmatmul.f32.gmra.mxu0 %v1033
      %v1035 = vpop.f32.mrf.mxu0
      %v1036 = vadd.f32 %v987, %v1035
      %1037 = vdwg.mxu0
      %1038 = vmatpush.msra.mxu0 0.0
      %1039 = vmatpush.msra.mxu0 0.0
      %1040 = vmatpush.msra.mxu0 0.0
      %1041 = vmatpush.msra.mxu0 0.0
      %1042 = vmatpush.msra.mxu0 0.0
      %1043 = vmatpush.msra.mxu0 0.0
      %1044 = vmatpush.msra.mxu0 0.0
      %1045 = vmatpush.msra.mxu0 0.0
      %v1046 = vand.u32 %v983, 4294901760
      %v1047 = vsub.f32 %v983, %v1046
      %v1048 = vand.u32 %v1047, 4294901760
      %v1049 = vsub.f32 %v1047, %v1048
      %v1050 = vand.u32 %v1049, 4294901760
      %1051 = vmatpush.msra.mxu0 %v1050
      %v1052 = vand.u32 %v981, 4294901760
      %v1053 = vsub.f32 %v981, %v1052
      %v1054 = vand.u32 %v1053, 4294901760
      %v1055 = vsub.f32 %v1053, %v1054
      %v1056 = vand.u32 %v1055, 4294901760
      %1057 = vmatpush.msra.mxu0 %v1056
      %v1058 = vand.u32 %v979, 4294901760
      %v1059 = vsub.f32 %v979, %v1058
      %v1060 = vand.u32 %v1059, 4294901760
      %v1061 = vsub.f32 %v1059, %v1060
      %v1062 = vand.u32 %v1061, 4294901760
      %1063 = vmatpush.msra.mxu0 %v1062
      %v1064 = vand.u32 %v977, 4294901760
      %v1065 = vsub.f32 %v977, %v1064
      %v1066 = vand.u32 %v1065, 4294901760
      %v1067 = vsub.f32 %v1065, %v1066
      %v1068 = vand.u32 %v1067, 4294901760
      %1069 = vmatpush.msra.mxu0 %v1068
      %v1070 = vand.u32 %v975, 4294901760
      %v1071 = vsub.f32 %v975, %v1070
      %v1072 = vand.u32 %v1071, 4294901760
      %v1073 = vsub.f32 %v1071, %v1072
      %v1074 = vand.u32 %v1073, 4294901760
      %1075 = vmatpush.msra.mxu0 %v1074
      %v1076 = vand.u32 %v973, 4294901760
      %v1077 = vsub.f32 %v973, %v1076
      %v1078 = vand.u32 %v1077, 4294901760
      %v1079 = vsub.f32 %v1077, %v1078
      %v1080 = vand.u32 %v1079, 4294901760
      %1081 = vmatpush.msra.mxu0 %v1080
      %v1082 = vand.u32 %v971, 4294901760
      %v1083 = vsub.f32 %v971, %v1082
      %v1084 = vand.u32 %v1083, 4294901760
      %v1085 = vsub.f32 %v1083, %v1084
      %v1086 = vand.u32 %v1085, 4294901760
      %1087 = vmatpush.msra.mxu0 %v1086
      %v1088 = vand.u32 %v969, 4294901760
      %v1089 = vsub.f32 %v969, %v1088
      %v1090 = vand.u32 %v1089, 4294901760
      %v1091 = vsub.f32 %v1089, %v1090
      %v1092 = vand.u32 %v1091, 4294901760
      %1093 = vmatpush.msra.mxu0 %v1092
      %v1094 = vand.u32 %v992, 4294901760
      %1095 = vmatmul.f32.gmra.mxu0 %v1094
      %v1096 = vpop.f32.mrf.mxu0
      %v1097 = vadd.f32 %v1028, %v1096
      %v1098 = vand.u32 %v995, 4294901760
      %1099 = vmatmul.f32.gmra.mxu0 %v1098
      %v1100 = vpop.f32.mrf.mxu0
      %v1101 = vadd.f32 %v1036, %v1100
      %1102 = vdwg.mxu0
      %1103 = vmatpush.msra.mxu0 0.0
      %1104 = vmatpush.msra.mxu0 0.0
      %1105 = vmatpush.msra.mxu0 0.0
      %1106 = vmatpush.msra.mxu0 0.0
      %1107 = vmatpush.msra.mxu0 0.0
      %1108 = vmatpush.msra.mxu0 0.0
      %1109 = vmatpush.msra.mxu0 0.0
      %1110 = vmatpush.msra.mxu0 0.0
      %v1111 = vand.u32 %v983, 4294901760
      %v1112 = vsub.f32 %v983, %v1111
      %1113 = vmatpush.msra.mxu0 %v1112
      %v1114 = vand.u32 %v981, 4294901760
      %v1115 = vsub.f32 %v981, %v1114
      %1116 = vmatpush.msra.mxu0 %v1115
      %v1117 = vand.u32 %v979, 4294901760
      %v1118 = vsub.f32 %v979, %v1117
      %1119 = vmatpush.msra.mxu0 %v1118
      %v1120 = vand.u32 %v977, 4294901760
      %v1121 = vsub.f32 %v977, %v1120
      %1122 = vmatpush.msra.mxu0 %v1121
      %v1123 = vand.u32 %v975, 4294901760
      %v1124 = vsub.f32 %v975, %v1123
      %1125 = vmatpush.msra.mxu0 %v1124
      %v1126 = vand.u32 %v973, 4294901760
      %v1127 = vsub.f32 %v973, %v1126
      %1128 = vmatpush.msra.mxu0 %v1127
      %v1129 = vand.u32 %v971, 4294901760
      %v1130 = vsub.f32 %v971, %v1129
      %1131 = vmatpush.msra.mxu0 %v1130
      %v1132 = vand.u32 %v969, 4294901760
      %v1133 = vsub.f32 %v969, %v1132
      %1134 = vmatpush.msra.mxu0 %v1133
      %v1135 = vand.u32 %v992, 4294901760
      %v1136 = vsub.f32 %v992, %v1135
      %1137 = vmatmul.f32.gmra.mxu0 %v1136
      %v1138 = vpop.f32.mrf.mxu0
      %v1139 = vadd.f32 %v1097, %v1138
      %v1140 = vand.u32 %v995, 4294901760
      %v1141 = vsub.f32 %v995, %v1140
      %1142 = vmatmul.f32.gmra.mxu0 %v1141
      %v1143 = vpop.f32.mrf.mxu0
      %v1144 = vadd.f32 %v1101, %v1143
      %1145 = vdwg.mxu0
      %1146 = vmatpush.msra.mxu0 0.0
      %1147 = vmatpush.msra.mxu0 0.0
      %1148 = vmatpush.msra.mxu0 0.0
      %1149 = vmatpush.msra.mxu0 0.0
      %1150 = vmatpush.msra.mxu0 0.0
      %1151 = vmatpush.msra.mxu0 0.0
      %1152 = vmatpush.msra.mxu0 0.0
      %1153 = vmatpush.msra.mxu0 0.0
      %v1154 = vand.u32 %v983, 4294901760
      %1155 = vmatpush.msra.mxu0 %v1154
      %v1156 = vand.u32 %v981, 4294901760
      %1157 = vmatpush.msra.mxu0 %v1156
      %v1158 = vand.u32 %v979, 4294901760
      %1159 = vmatpush.msra.mxu0 %v1158
      %v1160 = vand.u32 %v977, 4294901760
      %1161 = vmatpush.msra.mxu0 %v1160
      %v1162 = vand.u32 %v975, 4294901760
      %1163 = vmatpush.msra.mxu0 %v1162
      %v1164 = vand.u32 %v973, 4294901760
      %1165 = vmatpush.msra.mxu0 %v1164
      %v1166 = vand.u32 %v971, 4294901760
      %1167 = vmatpush.msra.mxu0 %v1166
      %v1168 = vand.u32 %v969, 4294901760
      %1169 = vmatpush.msra.mxu0 %v1168
      %v1170 = vand.u32 %v992, 4294901760
      %v1171 = vsub.f32 %v992, %v1170
      %v1172 = vand.u32 %v1171, 4294901760
      %1173 = vmatmul.f32.gmra.mxu0 %v1172
      %v1174 = vpop.f32.mrf.mxu0
      %v1175 = vadd.f32 %v1139, %v1174
      %v1176 = vand.u32 %v995, 4294901760
      %v1177 = vsub.f32 %v995, %v1176
      %v1178 = vand.u32 %v1177, 4294901760
      %1179 = vmatmul.f32.gmra.mxu0 %v1178
      %v1180 = vpop.f32.mrf.mxu0
      %v1181 = vadd.f32 %v1144, %v1180
      %1182 = vdwg.mxu0
      %1183 = vmatpush.msra.mxu0 0.0
      %1184 = vmatpush.msra.mxu0 0.0
      %1185 = vmatpush.msra.mxu0 0.0
      %1186 = vmatpush.msra.mxu0 0.0
      %1187 = vmatpush.msra.mxu0 0.0
      %1188 = vmatpush.msra.mxu0 0.0
      %1189 = vmatpush.msra.mxu0 0.0
      %1190 = vmatpush.msra.mxu0 0.0
      %v1191 = vand.u32 %v983, 4294901760
      %v1192 = vsub.f32 %v983, %v1191
      %v1193 = vand.u32 %v1192, 4294901760
      %1194 = vmatpush.msra.mxu0 %v1193
      %v1195 = vand.u32 %v981, 4294901760
      %v1196 = vsub.f32 %v981, %v1195
      %v1197 = vand.u32 %v1196, 4294901760
      %1198 = vmatpush.msra.mxu0 %v1197
      %v1199 = vand.u32 %v979, 4294901760
      %v1200 = vsub.f32 %v979, %v1199
      %v1201 = vand.u32 %v1200, 4294901760
      %1202 = vmatpush.msra.mxu0 %v1201
      %v1203 = vand.u32 %v977, 4294901760
      %v1204 = vsub.f32 %v977, %v1203
      %v1205 = vand.u32 %v1204, 4294901760
      %1206 = vmatpush.msra.mxu0 %v1205
      %v1207 = vand.u32 %v975, 4294901760
      %v1208 = vsub.f32 %v975, %v1207
      %v1209 = vand.u32 %v1208, 4294901760
      %1210 = vmatpush.msra.mxu0 %v1209
      %v1211 = vand.u32 %v973, 4294901760
      %v1212 = vsub.f32 %v973, %v1211
      %v1213 = vand.u32 %v1212, 4294901760
      %1214 = vmatpush.msra.mxu0 %v1213
      %v1215 = vand.u32 %v971, 4294901760
      %v1216 = vsub.f32 %v971, %v1215
      %v1217 = vand.u32 %v1216, 4294901760
      %1218 = vmatpush.msra.mxu0 %v1217
      %v1219 = vand.u32 %v969, 4294901760
      %v1220 = vsub.f32 %v969, %v1219
      %v1221 = vand.u32 %v1220, 4294901760
      %1222 = vmatpush.msra.mxu0 %v1221
      %v1223 = vand.u32 %v992, 4294901760
      %1224 = vmatmul.f32.gmra.mxu0 %v1223
      %v1225 = vpop.f32.mrf.mxu0
      %v1226 = vadd.f32 %v1175, %v1225
      %v1227 = vand.u32 %v995, 4294901760
      %1228 = vmatmul.f32.gmra.mxu0 %v1227
      %v1229 = vpop.f32.mrf.mxu0
      %v1230 = vadd.f32 %v1181, %v1229
      %1231 = vdwg.mxu0
      %1232 = vmatpush.msra.mxu0 0.0
      %1233 = vmatpush.msra.mxu0 0.0
      %1234 = vmatpush.msra.mxu0 0.0
      %1235 = vmatpush.msra.mxu0 0.0
      %1236 = vmatpush.msra.mxu0 0.0
      %1237 = vmatpush.msra.mxu0 0.0
      %1238 = vmatpush.msra.mxu0 0.0
      %1239 = vmatpush.msra.mxu0 0.0
      %v1240 = vand.u32 %v983, 4294901760
      %1241 = vmatpush.msra.mxu0 %v1240
      %v1242 = vand.u32 %v981, 4294901760
      %1243 = vmatpush.msra.mxu0 %v1242
      %v1244 = vand.u32 %v979, 4294901760
      %1245 = vmatpush.msra.mxu0 %v1244
      %v1246 = vand.u32 %v977, 4294901760
      %1247 = vmatpush.msra.mxu0 %v1246
      %v1248 = vand.u32 %v975, 4294901760
      %1249 = vmatpush.msra.mxu0 %v1248
      %v1250 = vand.u32 %v973, 4294901760
      %1251 = vmatpush.msra.mxu0 %v1250
      %v1252 = vand.u32 %v971, 4294901760
      %1253 = vmatpush.msra.mxu0 %v1252
      %v1254 = vand.u32 %v969, 4294901760
      %1255 = vmatpush.msra.mxu0 %v1254
      %v1256 = vand.u32 %v992, 4294901760
      %1257 = vmatmul.f32.gmra.mxu0 %v1256
      %v1258 = vpop.f32.mrf.mxu0
      %v1259 = vadd.f32 %v1226, %v1258
      %v1260 = vand.u32 %v995, 4294901760
      %1261 = vmatmul.f32.gmra.mxu0 %v1260
      %v1262 = vpop.f32.mrf.mxu0
      %v1263 = vadd.f32 %v1230, %v1262
      %1264 = vdwg.mxu0
      %1265 = vmatpush.msra.mxu0 0.0
      %1266 = vmatpush.msra.mxu0 0.0
      %1267 = vmatpush.msra.mxu0 0.0
      %1268 = vmatpush.msra.mxu0 0.0
      %1269 = vmatpush.msra.mxu0 0.0
      %1270 = vmatpush.msra.mxu0 0.0
      %1271 = vmatpush.msra.mxu0 0.0
      %1272 = vmatpush.msra.mxu0 0.0
      %v1273 = vand.u32 %v984, 4294901760
      %1274 = vmatpush.msra.mxu0 %v1273
      %v1275 = vand.u32 %v982, 4294901760
      %1276 = vmatpush.msra.mxu0 %v1275
      %v1277 = vand.u32 %v980, 4294901760
      %1278 = vmatpush.msra.mxu0 %v1277
      %v1279 = vand.u32 %v978, 4294901760
      %1280 = vmatpush.msra.mxu0 %v1279
      %v1281 = vand.u32 %v976, 4294901760
      %1282 = vmatpush.msra.mxu0 %v1281
      %v1283 = vand.u32 %v974, 4294901760
      %1284 = vmatpush.msra.mxu0 %v1283
      %v1285 = vand.u32 %v972, 4294901760
      %1286 = vmatpush.msra.mxu0 %v1285
      %v1287 = vand.u32 %v970, 4294901760
      %1288 = vmatpush.msra.mxu0 %v1287
      %v1289 = vand.u32 %v992, 4294901760
      %v1290 = vsub.f32 %v992, %v1289
      %v1291 = vand.u32 %v1290, 4294901760
      %v1292 = vsub.f32 %v1290, %v1291
      %v1293 = vand.u32 %v1292, 4294901760
      %1294 = vmatmul.f32.gmra.mxu0 %v1293
      %v1295 = vpop.f32.mrf.mxu0
      %v1296 = vadd.f32 %v988, %v1295
      %v1297 = vand.u32 %v995, 4294901760
      %v1298 = vsub.f32 %v995, %v1297
      %v1299 = vand.u32 %v1298, 4294901760
      %v1300 = vsub.f32 %v1298, %v1299
      %v1301 = vand.u32 %v1300, 4294901760
      %1302 = vmatmul.f32.gmra.mxu0 %v1301
      %v1303 = vpop.f32.mrf.mxu0
      %v1304 = vadd.f32 %v988, %v1303
      %1305 = vdwg.mxu0
      %1306 = vmatpush.msra.mxu0 0.0
      %1307 = vmatpush.msra.mxu0 0.0
      %1308 = vmatpush.msra.mxu0 0.0
      %1309 = vmatpush.msra.mxu0 0.0
      %1310 = vmatpush.msra.mxu0 0.0
      %1311 = vmatpush.msra.mxu0 0.0
      %1312 = vmatpush.msra.mxu0 0.0
      %1313 = vmatpush.msra.mxu0 0.0
      %v1314 = vand.u32 %v984, 4294901760
      %v1315 = vsub.f32 %v984, %v1314
      %v1316 = vand.u32 %v1315, 4294901760
      %v1317 = vsub.f32 %v1315, %v1316
      %v1318 = vand.u32 %v1317, 4294901760
      %1319 = vmatpush.msra.mxu0 %v1318
      %v1320 = vand.u32 %v982, 4294901760
      %v1321 = vsub.f32 %v982, %v1320
      %v1322 = vand.u32 %v1321, 4294901760
      %v1323 = vsub.f32 %v1321, %v1322
      %v1324 = vand.u32 %v1323, 4294901760
      %1325 = vmatpush.msra.mxu0 %v1324
      %v1326 = vand.u32 %v980, 4294901760
      %v1327 = vsub.f32 %v980, %v1326
      %v1328 = vand.u32 %v1327, 4294901760
      %v1329 = vsub.f32 %v1327, %v1328
      %v1330 = vand.u32 %v1329, 4294901760
      %1331 = vmatpush.msra.mxu0 %v1330
      %v1332 = vand.u32 %v978, 4294901760
      %v1333 = vsub.f32 %v978, %v1332
      %v1334 = vand.u32 %v1333, 4294901760
      %v1335 = vsub.f32 %v1333, %v1334
      %v1336 = vand.u32 %v1335, 4294901760
      %1337 = vmatpush.msra.mxu0 %v1336
      %v1338 = vand.u32 %v976, 4294901760
      %v1339 = vsub.f32 %v976, %v1338
      %v1340 = vand.u32 %v1339, 4294901760
      %v1341 = vsub.f32 %v1339, %v1340
      %v1342 = vand.u32 %v1341, 4294901760
      %1343 = vmatpush.msra.mxu0 %v1342
      %v1344 = vand.u32 %v974, 4294901760
      %v1345 = vsub.f32 %v974, %v1344
      %v1346 = vand.u32 %v1345, 4294901760
      %v1347 = vsub.f32 %v1345, %v1346
      %v1348 = vand.u32 %v1347, 4294901760
      %1349 = vmatpush.msra.mxu0 %v1348
      %v1350 = vand.u32 %v972, 4294901760
      %v1351 = vsub.f32 %v972, %v1350
      %v1352 = vand.u32 %v1351, 4294901760
      %v1353 = vsub.f32 %v1351, %v1352
      %v1354 = vand.u32 %v1353, 4294901760
      %1355 = vmatpush.msra.mxu0 %v1354
      %v1356 = vand.u32 %v970, 4294901760
      %v1357 = vsub.f32 %v970, %v1356
      %v1358 = vand.u32 %v1357, 4294901760
      %v1359 = vsub.f32 %v1357, %v1358
      %v1360 = vand.u32 %v1359, 4294901760
      %1361 = vmatpush.msra.mxu0 %v1360
      %v1362 = vand.u32 %v992, 4294901760
      %1363 = vmatmul.f32.gmra.mxu0 %v1362
      %v1364 = vpop.f32.mrf.mxu0
      %v1365 = vadd.f32 %v1296, %v1364
      %v1366 = vand.u32 %v995, 4294901760
      %1367 = vmatmul.f32.gmra.mxu0 %v1366
      %v1368 = vpop.f32.mrf.mxu0
      %v1369 = vadd.f32 %v1304, %v1368
      %1370 = vdwg.mxu0
      %1371 = vmatpush.msra.mxu0 0.0
      %1372 = vmatpush.msra.mxu0 0.0
      %1373 = vmatpush.msra.mxu0 0.0
      %1374 = vmatpush.msra.mxu0 0.0
      %1375 = vmatpush.msra.mxu0 0.0
      %1376 = vmatpush.msra.mxu0 0.0
      %1377 = vmatpush.msra.mxu0 0.0
      %1378 = vmatpush.msra.mxu0 0.0
      %v1379 = vand.u32 %v984, 4294901760
      %v1380 = vsub.f32 %v984, %v1379
      %1381 = vmatpush.msra.mxu0 %v1380
      %v1382 = vand.u32 %v982, 4294901760
      %v1383 = vsub.f32 %v982, %v1382
      %1384 = vmatpush.msra.mxu0 %v1383
      %v1385 = vand.u32 %v980, 4294901760
      %v1386 = vsub.f32 %v980, %v1385
      %1387 = vmatpush.msra.mxu0 %v1386
      %v1388 = vand.u32 %v978, 4294901760
      %v1389 = vsub.f32 %v978, %v1388
      %1390 = vmatpush.msra.mxu0 %v1389
      %v1391 = vand.u32 %v976, 4294901760
      %v1392 = vsub.f32 %v976, %v1391
      %1393 = vmatpush.msra.mxu0 %v1392
      %v1394 = vand.u32 %v974, 4294901760
      %v1395 = vsub.f32 %v974, %v1394
      %1396 = vmatpush.msra.mxu0 %v1395
      %v1397 = vand.u32 %v972, 4294901760
      %v1398 = vsub.f32 %v972, %v1397
      %1399 = vmatpush.msra.mxu0 %v1398
      %v1400 = vand.u32 %v970, 4294901760
      %v1401 = vsub.f32 %v970, %v1400
      %1402 = vmatpush.msra.mxu0 %v1401
      %v1403 = vand.u32 %v992, 4294901760
      %v1404 = vsub.f32 %v992, %v1403
      %1405 = vmatmul.f32.gmra.mxu0 %v1404
      %v1406 = vpop.f32.mrf.mxu0
      %v1407 = vadd.f32 %v1365, %v1406
      %v1408 = vand.u32 %v995, 4294901760
      %v1409 = vsub.f32 %v995, %v1408
      %1410 = vmatmul.f32.gmra.mxu0 %v1409
      %v1411 = vpop.f32.mrf.mxu0
      %v1412 = vadd.f32 %v1369, %v1411
      %1413 = vdwg.mxu0
      %1414 = vmatpush.msra.mxu0 0.0
      %1415 = vmatpush.msra.mxu0 0.0
      %1416 = vmatpush.msra.mxu0 0.0
      %1417 = vmatpush.msra.mxu0 0.0
      %1418 = vmatpush.msra.mxu0 0.0
      %1419 = vmatpush.msra.mxu0 0.0
      %1420 = vmatpush.msra.mxu0 0.0
      %1421 = vmatpush.msra.mxu0 0.0
      %v1422 = vand.u32 %v984, 4294901760
      %1423 = vmatpush.msra.mxu0 %v1422
      %v1424 = vand.u32 %v982, 4294901760
      %1425 = vmatpush.msra.mxu0 %v1424
      %v1426 = vand.u32 %v980, 4294901760
      %1427 = vmatpush.msra.mxu0 %v1426
      %v1428 = vand.u32 %v978, 4294901760
      %1429 = vmatpush.msra.mxu0 %v1428
      %v1430 = vand.u32 %v976, 4294901760
      %1431 = vmatpush.msra.mxu0 %v1430
      %v1432 = vand.u32 %v974, 4294901760
      %1433 = vmatpush.msra.mxu0 %v1432
      %v1434 = vand.u32 %v972, 4294901760
      %1435 = vmatpush.msra.mxu0 %v1434
      %v1436 = vand.u32 %v970, 4294901760
      %1437 = vmatpush.msra.mxu0 %v1436
      %v1438 = vand.u32 %v992, 4294901760
      %v1439 = vsub.f32 %v992, %v1438
      %v1440 = vand.u32 %v1439, 4294901760
      %1441 = vmatmul.f32.gmra.mxu0 %v1440
      %v1442 = vpop.f32.mrf.mxu0
      %v1443 = vadd.f32 %v1407, %v1442
      %v1444 = vand.u32 %v995, 4294901760
      %v1445 = vsub.f32 %v995, %v1444
      %v1446 = vand.u32 %v1445, 4294901760
      %1447 = vmatmul.f32.gmra.mxu0 %v1446
      %v1448 = vpop.f32.mrf.mxu0
      %v1449 = vadd.f32 %v1412, %v1448
      %1450 = vdwg.mxu0
      %1451 = vmatpush.msra.mxu0 0.0
      %1452 = vmatpush.msra.mxu0 0.0
      %1453 = vmatpush.msra.mxu0 0.0
      %1454 = vmatpush.msra.mxu0 0.0
      %1455 = vmatpush.msra.mxu0 0.0
      %1456 = vmatpush.msra.mxu0 0.0
      %1457 = vmatpush.msra.mxu0 0.0
      %1458 = vmatpush.msra.mxu0 0.0
      %v1459 = vand.u32 %v984, 4294901760
      %v1460 = vsub.f32 %v984, %v1459
      %v1461 = vand.u32 %v1460, 4294901760
      %1462 = vmatpush.msra.mxu0 %v1461
      %v1463 = vand.u32 %v982, 4294901760
      %v1464 = vsub.f32 %v982, %v1463
      %v1465 = vand.u32 %v1464, 4294901760
      %1466 = vmatpush.msra.mxu0 %v1465
      %v1467 = vand.u32 %v980, 4294901760
      %v1468 = vsub.f32 %v980, %v1467
      %v1469 = vand.u32 %v1468, 4294901760
      %1470 = vmatpush.msra.mxu0 %v1469
      %v1471 = vand.u32 %v978, 4294901760
      %v1472 = vsub.f32 %v978, %v1471
      %v1473 = vand.u32 %v1472, 4294901760
      %1474 = vmatpush.msra.mxu0 %v1473
      %v1475 = vand.u32 %v976, 4294901760
      %v1476 = vsub.f32 %v976, %v1475
      %v1477 = vand.u32 %v1476, 4294901760
      %1478 = vmatpush.msra.mxu0 %v1477
      %v1479 = vand.u32 %v974, 4294901760
      %v1480 = vsub.f32 %v974, %v1479
      %v1481 = vand.u32 %v1480, 4294901760
      %1482 = vmatpush.msra.mxu0 %v1481
      %v1483 = vand.u32 %v972, 4294901760
      %v1484 = vsub.f32 %v972, %v1483
      %v1485 = vand.u32 %v1484, 4294901760
      %1486 = vmatpush.msra.mxu0 %v1485
      %v1487 = vand.u32 %v970, 4294901760
      %v1488 = vsub.f32 %v970, %v1487
      %v1489 = vand.u32 %v1488, 4294901760
      %1490 = vmatpush.msra.mxu0 %v1489
      %v1491 = vand.u32 %v992, 4294901760
      %1492 = vmatmul.f32.gmra.mxu0 %v1491
      %v1493 = vpop.f32.mrf.mxu0
      %v1494 = vadd.f32 %v1443, %v1493
      %v1495 = vand.u32 %v995, 4294901760
      %1496 = vmatmul.f32.gmra.mxu0 %v1495
      %v1497 = vpop.f32.mrf.mxu0
      %v1498 = vadd.f32 %v1449, %v1497
      %1499 = vdwg.mxu0
      %1500 = vmatpush.msra.mxu0 0.0
      %1501 = vmatpush.msra.mxu0 0.0
      %1502 = vmatpush.msra.mxu0 0.0
      %1503 = vmatpush.msra.mxu0 0.0
      %1504 = vmatpush.msra.mxu0 0.0
      %1505 = vmatpush.msra.mxu0 0.0
      %1506 = vmatpush.msra.mxu0 0.0
      %1507 = vmatpush.msra.mxu0 0.0
      %v1508 = vand.u32 %v984, 4294901760
      %1509 = vmatpush.msra.mxu0 %v1508
      %v1510 = vand.u32 %v982, 4294901760
      %1511 = vmatpush.msra.mxu0 %v1510
      %v1512 = vand.u32 %v980, 4294901760
      %1513 = vmatpush.msra.mxu0 %v1512
      %v1514 = vand.u32 %v978, 4294901760
      %1515 = vmatpush.msra.mxu0 %v1514
      %v1516 = vand.u32 %v976, 4294901760
      %1517 = vmatpush.msra.mxu0 %v1516
      %v1518 = vand.u32 %v974, 4294901760
      %1519 = vmatpush.msra.mxu0 %v1518
      %v1520 = vand.u32 %v972, 4294901760
      %1521 = vmatpush.msra.mxu0 %v1520
      %v1522 = vand.u32 %v970, 4294901760
      %1523 = vmatpush.msra.mxu0 %v1522
      %v1524 = vand.u32 %v992, 4294901760
      %1525 = vmatmul.f32.gmra.mxu0 %v1524
      %v1526 = vpop.f32.mrf.mxu0
      %v1527 = vadd.f32 %v1494, %v1526
      %v1528 = vand.u32 %v995, 4294901760
      %1529 = vmatmul.f32.gmra.mxu0 %v1528
      %v1530 = vpop.f32.mrf.mxu0
      %v1531 = vadd.f32 %v1498, %v1530
      %1532 = vdwg.mxu0
      %1535 = vrot.lane.b32.xlu0 %v1259, 64
      %v1536 = vpop.permute.xlu0 %1535
      %1537 = vrot.lane.b32.xlu0 %v1263, 64
      %v1538 = vpop.permute.xlu0 %1537
      %v1539 = vsel %vm420, %v1259, 0
      %v1541 = vsel %vm420, %v1263, 0
      %v1543 = vsel %vm420, %v1536, 0
      %v1545 = vsel %vm420, %v1538, 0
      %1547 = vmatpush.xpose.msra.mxu0 0.0
      %1548 = vmatpush.xpose.msra.mxu0 0.0
      %1549 = vmatpush.xpose.msra.mxu0 0.0
      %1550 = vmatpush.xpose.msra.mxu0 0.0
      %1551 = vmatpush.xpose.msra.mxu0 0.0
      %1552 = vmatpush.xpose.msra.mxu0 0.0
      %1553 = vmatpush.xpose.msra.mxu0 0.0
      %1554 = vmatpush.xpose.msra.mxu0 0.0
      %1555 = vmatpush.xpose.msra.mxu0 0.0
      %1556 = vmatpush.xpose.msra.mxu0 0.0
      %1557 = vmatpush.xpose.msra.mxu0 0.0
      %1558 = vmatpush.xpose.msra.mxu0 0.0
      %1559 = vmatpush.xpose.msra.mxu0 0.0
      %1560 = vmatpush.xpose.msra.mxu0 0.0
      %v1561 = vand.u32 %v1545, 4294901760
      %1562 = vmatpush.xpose.msra.mxu0 %v1561
      %v1563 = vand.u32 %v1543, 4294901760
      %1564 = vmatpush.xpose.msra.mxu0 %v1563
      %v1565 = vand.u32 %v1539, 4294901760
      %v1566 = vsub.f32 %v1539, %v1565
      %v1567 = vand.u32 %v1566, 4294901760
      %v1568 = vsub.f32 %v1566, %v1567
      %v1569 = vand.u32 %v1568, 4294901760
      %1570 = vmatmul.f32.gmra.mxu0 %v1569
      %v1571 = vpop.f32.mrf.mxu0
      %v1572 = vadd.f32 0.0, %v1571
      %v1573 = vand.u32 %v1541, 4294901760
      %v1574 = vsub.f32 %v1541, %v1573
      %v1575 = vand.u32 %v1574, 4294901760
      %v1576 = vsub.f32 %v1574, %v1575
      %v1577 = vand.u32 %v1576, 4294901760
      %1578 = vmatmul.f32.gmra.mxu0 %v1577
      %v1579 = vpop.f32.mrf.mxu0
      %v1580 = vadd.f32 0.0, %v1579
      %1581 = vdwg.mxu0
      %1582 = vmatpush.xpose.msra.mxu0 0.0
      %1583 = vmatpush.xpose.msra.mxu0 0.0
      %1584 = vmatpush.xpose.msra.mxu0 0.0
      %1585 = vmatpush.xpose.msra.mxu0 0.0
      %1586 = vmatpush.xpose.msra.mxu0 0.0
      %1587 = vmatpush.xpose.msra.mxu0 0.0
      %1588 = vmatpush.xpose.msra.mxu0 0.0
      %1589 = vmatpush.xpose.msra.mxu0 0.0
      %1590 = vmatpush.xpose.msra.mxu0 0.0
      %1591 = vmatpush.xpose.msra.mxu0 0.0
      %1592 = vmatpush.xpose.msra.mxu0 0.0
      %1593 = vmatpush.xpose.msra.mxu0 0.0
      %1594 = vmatpush.xpose.msra.mxu0 0.0
      %1595 = vmatpush.xpose.msra.mxu0 0.0
      %v1596 = vand.u32 %v1545, 4294901760
      %v1597 = vsub.f32 %v1545, %v1596
      %v1598 = vand.u32 %v1597, 4294901760
      %v1599 = vsub.f32 %v1597, %v1598
      %v1600 = vand.u32 %v1599, 4294901760
      %1601 = vmatpush.xpose.msra.mxu0 %v1600
      %v1602 = vand.u32 %v1543, 4294901760
      %v1603 = vsub.f32 %v1543, %v1602
      %v1604 = vand.u32 %v1603, 4294901760
      %v1605 = vsub.f32 %v1603, %v1604
      %v1606 = vand.u32 %v1605, 4294901760
      %1607 = vmatpush.xpose.msra.mxu0 %v1606
      %v1608 = vand.u32 %v1539, 4294901760
      %1609 = vmatmul.f32.gmra.mxu0 %v1608
      %v1610 = vpop.f32.mrf.mxu0
      %v1611 = vadd.f32 %v1572, %v1610
      %v1612 = vand.u32 %v1541, 4294901760
      %1613 = vmatmul.f32.gmra.mxu0 %v1612
      %v1614 = vpop.f32.mrf.mxu0
      %v1615 = vadd.f32 %v1580, %v1614
      %1616 = vdwg.mxu0
      %1617 = vmatpush.xpose.msra.mxu0 0.0
      %1618 = vmatpush.xpose.msra.mxu0 0.0
      %1619 = vmatpush.xpose.msra.mxu0 0.0
      %1620 = vmatpush.xpose.msra.mxu0 0.0
      %1621 = vmatpush.xpose.msra.mxu0 0.0
      %1622 = vmatpush.xpose.msra.mxu0 0.0
      %1623 = vmatpush.xpose.msra.mxu0 0.0
      %1624 = vmatpush.xpose.msra.mxu0 0.0
      %1625 = vmatpush.xpose.msra.mxu0 0.0
      %1626 = vmatpush.xpose.msra.mxu0 0.0
      %1627 = vmatpush.xpose.msra.mxu0 0.0
      %1628 = vmatpush.xpose.msra.mxu0 0.0
      %1629 = vmatpush.xpose.msra.mxu0 0.0
      %1630 = vmatpush.xpose.msra.mxu0 0.0
      %v1631 = vand.u32 %v1545, 4294901760
      %v1632 = vsub.f32 %v1545, %v1631
      %1633 = vmatpush.xpose.msra.mxu0 %v1632
      %v1634 = vand.u32 %v1543, 4294901760
      %v1635 = vsub.f32 %v1543, %v1634
      %1636 = vmatpush.xpose.msra.mxu0 %v1635
      %v1637 = vand.u32 %v1539, 4294901760
      %v1638 = vsub.f32 %v1539, %v1637
      %1639 = vmatmul.f32.gmra.mxu0 %v1638
      %v1640 = vpop.f32.mrf.mxu0
      %v1641 = vadd.f32 %v1611, %v1640
      %v1642 = vand.u32 %v1541, 4294901760
      %v1643 = vsub.f32 %v1541, %v1642
      %1644 = vmatmul.f32.gmra.mxu0 %v1643
      %v1645 = vpop.f32.mrf.mxu0
      %v1646 = vadd.f32 %v1615, %v1645
      %1647 = vdwg.mxu0
      %1648 = vmatpush.xpose.msra.mxu0 0.0
      %1649 = vmatpush.xpose.msra.mxu0 0.0
      %1650 = vmatpush.xpose.msra.mxu0 0.0
      %1651 = vmatpush.xpose.msra.mxu0 0.0
      %1652 = vmatpush.xpose.msra.mxu0 0.0
      %1653 = vmatpush.xpose.msra.mxu0 0.0
      %1654 = vmatpush.xpose.msra.mxu0 0.0
      %1655 = vmatpush.xpose.msra.mxu0 0.0
      %1656 = vmatpush.xpose.msra.mxu0 0.0
      %1657 = vmatpush.xpose.msra.mxu0 0.0
      %1658 = vmatpush.xpose.msra.mxu0 0.0
      %1659 = vmatpush.xpose.msra.mxu0 0.0
      %1660 = vmatpush.xpose.msra.mxu0 0.0
      %1661 = vmatpush.xpose.msra.mxu0 0.0
      %v1662 = vand.u32 %v1545, 4294901760
      %1663 = vmatpush.xpose.msra.mxu0 %v1662
      %v1664 = vand.u32 %v1543, 4294901760
      %1665 = vmatpush.xpose.msra.mxu0 %v1664
      %v1666 = vand.u32 %v1539, 4294901760
      %v1667 = vsub.f32 %v1539, %v1666
      %v1668 = vand.u32 %v1667, 4294901760
      %1669 = vmatmul.f32.gmra.mxu0 %v1668
      %v1670 = vpop.f32.mrf.mxu0
      %v1671 = vadd.f32 %v1641, %v1670
      %v1672 = vand.u32 %v1541, 4294901760
      %v1673 = vsub.f32 %v1541, %v1672
      %v1674 = vand.u32 %v1673, 4294901760
      %1675 = vmatmul.f32.gmra.mxu0 %v1674
      %v1676 = vpop.f32.mrf.mxu0
      %v1677 = vadd.f32 %v1646, %v1676
      %1678 = vdwg.mxu0
      %1679 = vmatpush.xpose.msra.mxu0 0.0
      %1680 = vmatpush.xpose.msra.mxu0 0.0
      %1681 = vmatpush.xpose.msra.mxu0 0.0
      %1682 = vmatpush.xpose.msra.mxu0 0.0
      %1683 = vmatpush.xpose.msra.mxu0 0.0
      %1684 = vmatpush.xpose.msra.mxu0 0.0
      %1685 = vmatpush.xpose.msra.mxu0 0.0
      %1686 = vmatpush.xpose.msra.mxu0 0.0
      %1687 = vmatpush.xpose.msra.mxu0 0.0
      %1688 = vmatpush.xpose.msra.mxu0 0.0
      %1689 = vmatpush.xpose.msra.mxu0 0.0
      %1690 = vmatpush.xpose.msra.mxu0 0.0
      %1691 = vmatpush.xpose.msra.mxu0 0.0
      %1692 = vmatpush.xpose.msra.mxu0 0.0
      %v1693 = vand.u32 %v1545, 4294901760
      %v1694 = vsub.f32 %v1545, %v1693
      %v1695 = vand.u32 %v1694, 4294901760
      %1696 = vmatpush.xpose.msra.mxu0 %v1695
      %v1697 = vand.u32 %v1543, 4294901760
      %v1698 = vsub.f32 %v1543, %v1697
      %v1699 = vand.u32 %v1698, 4294901760
      %1700 = vmatpush.xpose.msra.mxu0 %v1699
      %v1701 = vand.u32 %v1539, 4294901760
      %1702 = vmatmul.f32.gmra.mxu0 %v1701
      %v1703 = vpop.f32.mrf.mxu0
      %v1704 = vadd.f32 %v1671, %v1703
      %v1705 = vand.u32 %v1541, 4294901760
      %1706 = vmatmul.f32.gmra.mxu0 %v1705
      %v1707 = vpop.f32.mrf.mxu0
      %v1708 = vadd.f32 %v1677, %v1707
      %1709 = vdwg.mxu0
      %1710 = vmatpush.xpose.msra.mxu0 0.0
      %1711 = vmatpush.xpose.msra.mxu0 0.0
      %1712 = vmatpush.xpose.msra.mxu0 0.0
      %1713 = vmatpush.xpose.msra.mxu0 0.0
      %1714 = vmatpush.xpose.msra.mxu0 0.0
      %1715 = vmatpush.xpose.msra.mxu0 0.0
      %1716 = vmatpush.xpose.msra.mxu0 0.0
      %1717 = vmatpush.xpose.msra.mxu0 0.0
      %1718 = vmatpush.xpose.msra.mxu0 0.0
      %1719 = vmatpush.xpose.msra.mxu0 0.0
      %1720 = vmatpush.xpose.msra.mxu0 0.0
      %1721 = vmatpush.xpose.msra.mxu0 0.0
      %1722 = vmatpush.xpose.msra.mxu0 0.0
      %1723 = vmatpush.xpose.msra.mxu0 0.0
      %v1724 = vand.u32 %v1545, 4294901760
      %1725 = vmatpush.xpose.msra.mxu0 %v1724
      %v1726 = vand.u32 %v1543, 4294901760
      %1727 = vmatpush.xpose.msra.mxu0 %v1726
      %v1728 = vand.u32 %v1539, 4294901760
      %1729 = vmatmul.f32.gmra.mxu0 %v1728
      %v1730 = vpop.f32.mrf.mxu0
      %v1731 = vadd.f32 %v1704, %v1730
      %v1732 = vand.u32 %v1541, 4294901760
      %1733 = vmatmul.f32.gmra.mxu0 %v1732
      %v1734 = vpop.f32.mrf.mxu0
      %v1735 = vadd.f32 %v1708, %v1734
      %1736 = vdwg.mxu0
      %v1737 = vmul.f32 %v1731, 0.25
      %v1738 = vmul.f32 %v1735, 0.25
      %v1739 = vsel %vm420, %v1737, -inf
      %1740 = vmax.xlane.f32.xlu0 %v1739
      %v1741 = vpop.xlane.xlu0 %1740
      %v1742 = vsel %vm420, %v1738, -inf
      %1743 = vmax.xlane.f32.xlu0 %v1742
      %v1744 = vpop.xlane.xlu0 %1743
      %v1745 = vsub.f32 %v1737, %v1741
      %v1746 = vsub.f32 %v1738, %v1744
      %v1747 = vmul.f32 %v1745, 1.442695
      %v1748 = vpow.pop %v1747
      %v1749 = vmul.f32 %v1746, 1.442695
      %v1750 = vpow.pop %v1749
      %v1751 = vsel %vm420, %v1748, 0.0
      %1752 = vadd.xlane.f32.xlu0 %v1751
      %v1753 = vpop.xlane.xlu0 %1752
      %v1754 = vsel %vm420, %v1750, 0.0
      %1755 = vadd.xlane.f32.xlu0 %v1754
      %v1756 = vpop.xlane.xlu0 %1755
      %v1757 = vrcp.pop %v1753
      %v1758 = vrcp.pop %v1756
      %v1759 = vmul.f32 %v1753, %v1757
      %v1760 = vmul.f32 %v1756, %v1758
      %v1761 = vsub.f32 2.0, %v1759
      %v1762 = vsub.f32 2.0, %v1760
      %v1763 = vmul.f32 %v1757, %v1761
      %v1764 = vmul.f32 %v1758, %v1762
      %v1765 = vmul.f32 %v1748, %v1763
      %v1766 = vmul.f32 %v1750, %v1764
      %v1768 = vsel %vm420, %v1765, 0
      %v1771 = vsel %vm420, %v1766, 0
      %1773 = vmatpush.msra.mxu0 0.0
      %1774 = vmatpush.msra.mxu0 0.0
      %1775 = vmatpush.msra.mxu0 0.0
      %1776 = vmatpush.msra.mxu0 0.0
      %1777 = vmatpush.msra.mxu0 0.0
      %1778 = vmatpush.msra.mxu0 0.0
      %1779 = vmatpush.msra.mxu0 0.0
      %1780 = vmatpush.msra.mxu0 0.0
      %1781 = vmatpush.msra.mxu0 0.0
      %1782 = vmatpush.msra.mxu0 0.0
      %1783 = vmatpush.msra.mxu0 0.0
      %1784 = vmatpush.msra.mxu0 0.0
      %1785 = vmatpush.msra.mxu0 0.0
      %1786 = vmatpush.msra.mxu0 0.0
      %v1787 = vand.u32 %v1531, 4294901760
      %1788 = vmatpush.msra.mxu0 %v1787
      %v1789 = vand.u32 %v1527, 4294901760
      %1790 = vmatpush.msra.mxu0 %v1789
      %v1791 = vand.u32 %v1768, 4294901760
      %v1792 = vsub.f32 %v1768, %v1791
      %v1793 = vand.u32 %v1792, 4294901760
      %v1794 = vsub.f32 %v1792, %v1793
      %v1795 = vand.u32 %v1794, 4294901760
      %1796 = vmatmul.f32.gmra.mxu0 %v1795
      %v1797 = vpop.f32.mrf.mxu0
      %v1798 = vadd.f32 0.0, %v1797
      %v1799 = vand.u32 %v1771, 4294901760
      %v1800 = vsub.f32 %v1771, %v1799
      %v1801 = vand.u32 %v1800, 4294901760
      %v1802 = vsub.f32 %v1800, %v1801
      %v1803 = vand.u32 %v1802, 4294901760
      %1804 = vmatmul.f32.gmra.mxu0 %v1803
      %v1805 = vpop.f32.mrf.mxu0
      %v1806 = vadd.f32 0.0, %v1805
      %1807 = vdwg.mxu0
      %1808 = vmatpush.msra.mxu0 0.0
      %1809 = vmatpush.msra.mxu0 0.0
      %1810 = vmatpush.msra.mxu0 0.0
      %1811 = vmatpush.msra.mxu0 0.0
      %1812 = vmatpush.msra.mxu0 0.0
      %1813 = vmatpush.msra.mxu0 0.0
      %1814 = vmatpush.msra.mxu0 0.0
      %1815 = vmatpush.msra.mxu0 0.0
      %1816 = vmatpush.msra.mxu0 0.0
      %1817 = vmatpush.msra.mxu0 0.0
      %1818 = vmatpush.msra.mxu0 0.0
      %1819 = vmatpush.msra.mxu0 0.0
      %1820 = vmatpush.msra.mxu0 0.0
      %1821 = vmatpush.msra.mxu0 0.0
      %v1822 = vand.u32 %v1531, 4294901760
      %v1823 = vsub.f32 %v1531, %v1822
      %v1824 = vand.u32 %v1823, 4294901760
      %v1825 = vsub.f32 %v1823, %v1824
      %v1826 = vand.u32 %v1825, 4294901760
      %1827 = vmatpush.msra.mxu0 %v1826
      %v1828 = vand.u32 %v1527, 4294901760
      %v1829 = vsub.f32 %v1527, %v1828
      %v1830 = vand.u32 %v1829, 4294901760
      %v1831 = vsub.f32 %v1829, %v1830
      %v1832 = vand.u32 %v1831, 4294901760
      %1833 = vmatpush.msra.mxu0 %v1832
      %v1834 = vand.u32 %v1768, 4294901760
      %1835 = vmatmul.f32.gmra.mxu0 %v1834
      %v1836 = vpop.f32.mrf.mxu0
      %v1837 = vadd.f32 %v1798, %v1836
      %v1838 = vand.u32 %v1771, 4294901760
      %1839 = vmatmul.f32.gmra.mxu0 %v1838
      %v1840 = vpop.f32.mrf.mxu0
      %v1841 = vadd.f32 %v1806, %v1840
      %1842 = vdwg.mxu0
      %1843 = vmatpush.msra.mxu0 0.0
      %1844 = vmatpush.msra.mxu0 0.0
      %1845 = vmatpush.msra.mxu0 0.0
      %1846 = vmatpush.msra.mxu0 0.0
      %1847 = vmatpush.msra.mxu0 0.0
      %1848 = vmatpush.msra.mxu0 0.0
      %1849 = vmatpush.msra.mxu0 0.0
      %1850 = vmatpush.msra.mxu0 0.0
      %1851 = vmatpush.msra.mxu0 0.0
      %1852 = vmatpush.msra.mxu0 0.0
      %1853 = vmatpush.msra.mxu0 0.0
      %1854 = vmatpush.msra.mxu0 0.0
      %1855 = vmatpush.msra.mxu0 0.0
      %1856 = vmatpush.msra.mxu0 0.0
      %v1857 = vand.u32 %v1531, 4294901760
      %v1858 = vsub.f32 %v1531, %v1857
      %1859 = vmatpush.msra.mxu0 %v1858
      %v1860 = vand.u32 %v1527, 4294901760
      %v1861 = vsub.f32 %v1527, %v1860
      %1862 = vmatpush.msra.mxu0 %v1861
      %v1863 = vand.u32 %v1768, 4294901760
      %v1864 = vsub.f32 %v1768, %v1863
      %1865 = vmatmul.f32.gmra.mxu0 %v1864
      %v1866 = vpop.f32.mrf.mxu0
      %v1867 = vadd.f32 %v1837, %v1866
      %v1868 = vand.u32 %v1771, 4294901760
      %v1869 = vsub.f32 %v1771, %v1868
      %1870 = vmatmul.f32.gmra.mxu0 %v1869
      %v1871 = vpop.f32.mrf.mxu0
      %v1872 = vadd.f32 %v1841, %v1871
      %1873 = vdwg.mxu0
      %1874 = vmatpush.msra.mxu0 0.0
      %1875 = vmatpush.msra.mxu0 0.0
      %1876 = vmatpush.msra.mxu0 0.0
      %1877 = vmatpush.msra.mxu0 0.0
      %1878 = vmatpush.msra.mxu0 0.0
      %1879 = vmatpush.msra.mxu0 0.0
      %1880 = vmatpush.msra.mxu0 0.0
      %1881 = vmatpush.msra.mxu0 0.0
      %1882 = vmatpush.msra.mxu0 0.0
      %1883 = vmatpush.msra.mxu0 0.0
      %1884 = vmatpush.msra.mxu0 0.0
      %1885 = vmatpush.msra.mxu0 0.0
      %1886 = vmatpush.msra.mxu0 0.0
      %1887 = vmatpush.msra.mxu0 0.0
      %v1888 = vand.u32 %v1531, 4294901760
      %1889 = vmatpush.msra.mxu0 %v1888
      %v1890 = vand.u32 %v1527, 4294901760
      %1891 = vmatpush.msra.mxu0 %v1890
      %v1892 = vand.u32 %v1768, 4294901760
      %v1893 = vsub.f32 %v1768, %v1892
      %v1894 = vand.u32 %v1893, 4294901760
      %1895 = vmatmul.f32.gmra.mxu0 %v1894
      %v1896 = vpop.f32.mrf.mxu0
      %v1897 = vadd.f32 %v1867, %v1896
      %v1898 = vand.u32 %v1771, 4294901760
      %v1899 = vsub.f32 %v1771, %v1898
      %v1900 = vand.u32 %v1899, 4294901760
      %1901 = vmatmul.f32.gmra.mxu0 %v1900
      %v1902 = vpop.f32.mrf.mxu0
      %v1903 = vadd.f32 %v1872, %v1902
      %1904 = vdwg.mxu0
      %1905 = vmatpush.msra.mxu0 0.0
      %1906 = vmatpush.msra.mxu0 0.0
      %1907 = vmatpush.msra.mxu0 0.0
      %1908 = vmatpush.msra.mxu0 0.0
      %1909 = vmatpush.msra.mxu0 0.0
      %1910 = vmatpush.msra.mxu0 0.0
      %1911 = vmatpush.msra.mxu0 0.0
      %1912 = vmatpush.msra.mxu0 0.0
      %1913 = vmatpush.msra.mxu0 0.0
      %1914 = vmatpush.msra.mxu0 0.0
      %1915 = vmatpush.msra.mxu0 0.0
      %1916 = vmatpush.msra.mxu0 0.0
      %1917 = vmatpush.msra.mxu0 0.0
      %1918 = vmatpush.msra.mxu0 0.0
      %v1919 = vand.u32 %v1531, 4294901760
      %v1920 = vsub.f32 %v1531, %v1919
      %v1921 = vand.u32 %v1920, 4294901760
      %1922 = vmatpush.msra.mxu0 %v1921
      %v1923 = vand.u32 %v1527, 4294901760
      %v1924 = vsub.f32 %v1527, %v1923
      %v1925 = vand.u32 %v1924, 4294901760
      %1926 = vmatpush.msra.mxu0 %v1925
      %v1927 = vand.u32 %v1768, 4294901760
      %1928 = vmatmul.f32.gmra.mxu0 %v1927
      %v1929 = vpop.f32.mrf.mxu0
      %v1930 = vadd.f32 %v1897, %v1929
      %v1931 = vand.u32 %v1771, 4294901760
      %1932 = vmatmul.f32.gmra.mxu0 %v1931
      %v1933 = vpop.f32.mrf.mxu0
      %v1934 = vadd.f32 %v1903, %v1933
      %1935 = vdwg.mxu0
      %1936 = vmatpush.msra.mxu0 0.0
      %1937 = vmatpush.msra.mxu0 0.0
      %1938 = vmatpush.msra.mxu0 0.0
      %1939 = vmatpush.msra.mxu0 0.0
      %1940 = vmatpush.msra.mxu0 0.0
      %1941 = vmatpush.msra.mxu0 0.0
      %1942 = vmatpush.msra.mxu0 0.0
      %1943 = vmatpush.msra.mxu0 0.0
      %1944 = vmatpush.msra.mxu0 0.0
      %1945 = vmatpush.msra.mxu0 0.0
      %1946 = vmatpush.msra.mxu0 0.0
      %1947 = vmatpush.msra.mxu0 0.0
      %1948 = vmatpush.msra.mxu0 0.0
      %1949 = vmatpush.msra.mxu0 0.0
      %v1950 = vand.u32 %v1531, 4294901760
      %1951 = vmatpush.msra.mxu0 %v1950
      %v1952 = vand.u32 %v1527, 4294901760
      %1953 = vmatpush.msra.mxu0 %v1952
      %v1954 = vand.u32 %v1768, 4294901760
      %1955 = vmatmul.f32.gmra.mxu0 %v1954
      %v1956 = vpop.f32.mrf.mxu0
      %v1957 = vadd.f32 %v1930, %v1956
      %v1958 = vand.u32 %v1771, 4294901760
      %1959 = vmatmul.f32.gmra.mxu0 %v1958
      %v1960 = vpop.f32.mrf.mxu0
      %v1961 = vadd.f32 %v1934, %v1960
      %1962 = vdwg.mxu0
      %1963 = vrot.lane.b32.xlu0 %v1259, 112
      %v1964 = vpop.permute.xlu0 %1963
      %1965 = vrot.lane.b32.xlu0 %v1263, 112
      %v1966 = vpop.permute.xlu0 %1965
      %1967 = vrot.lane.b32.xlu0 %v1259, 48
      %v1968 = vpop.permute.xlu0 %1967
      %1969 = vrot.lane.b32.xlu0 %v1263, 48
      %v1970 = vpop.permute.xlu0 %1969
      %v1971 = vsel %vm420, %v1964, 0
      %v1973 = vsel %vm420, %v1966, 0
      %v1975 = vsel %vm420, %v1968, 0
      %v1977 = vsel %vm420, %v1970, 0
      %1979 = vmatpush.xpose.msra.mxu0 0.0
      %1980 = vmatpush.xpose.msra.mxu0 0.0
      %1981 = vmatpush.xpose.msra.mxu0 0.0
      %1982 = vmatpush.xpose.msra.mxu0 0.0
      %1983 = vmatpush.xpose.msra.mxu0 0.0
      %1984 = vmatpush.xpose.msra.mxu0 0.0
      %1985 = vmatpush.xpose.msra.mxu0 0.0
      %1986 = vmatpush.xpose.msra.mxu0 0.0
      %1987 = vmatpush.xpose.msra.mxu0 0.0
      %1988 = vmatpush.xpose.msra.mxu0 0.0
      %1989 = vmatpush.xpose.msra.mxu0 0.0
      %1990 = vmatpush.xpose.msra.mxu0 0.0
      %1991 = vmatpush.xpose.msra.mxu0 0.0
      %1992 = vmatpush.xpose.msra.mxu0 0.0
      %v1993 = vand.u32 %v1977, 4294901760
      %1994 = vmatpush.xpose.msra.mxu0 %v1993
      %v1995 = vand.u32 %v1975, 4294901760
      %1996 = vmatpush.xpose.msra.mxu0 %v1995
      %v1997 = vand.u32 %v1971, 4294901760
      %v1998 = vsub.f32 %v1971, %v1997
      %v1999 = vand.u32 %v1998, 4294901760
      %v2000 = vsub.f32 %v1998, %v1999
      %v2001 = vand.u32 %v2000, 4294901760
      %2002 = vmatmul.f32.gmra.mxu0 %v2001
      %v2003 = vpop.f32.mrf.mxu0
      %v2004 = vadd.f32 0.0, %v2003
      %v2005 = vand.u32 %v1973, 4294901760
      %v2006 = vsub.f32 %v1973, %v2005
      %v2007 = vand.u32 %v2006, 4294901760
      %v2008 = vsub.f32 %v2006, %v2007
      %v2009 = vand.u32 %v2008, 4294901760
      %2010 = vmatmul.f32.gmra.mxu0 %v2009
      %v2011 = vpop.f32.mrf.mxu0
      %v2012 = vadd.f32 0.0, %v2011
      %2013 = vdwg.mxu0
      %2014 = vmatpush.xpose.msra.mxu0 0.0
      %2015 = vmatpush.xpose.msra.mxu0 0.0
      %2016 = vmatpush.xpose.msra.mxu0 0.0
      %2017 = vmatpush.xpose.msra.mxu0 0.0
      %2018 = vmatpush.xpose.msra.mxu0 0.0
      %2019 = vmatpush.xpose.msra.mxu0 0.0
      %2020 = vmatpush.xpose.msra.mxu0 0.0
      %2021 = vmatpush.xpose.msra.mxu0 0.0
      %2022 = vmatpush.xpose.msra.mxu0 0.0
      %2023 = vmatpush.xpose.msra.mxu0 0.0
      %2024 = vmatpush.xpose.msra.mxu0 0.0
      %2025 = vmatpush.xpose.msra.mxu0 0.0
      %2026 = vmatpush.xpose.msra.mxu0 0.0
      %2027 = vmatpush.xpose.msra.mxu0 0.0
      %v2028 = vand.u32 %v1977, 4294901760
      %v2029 = vsub.f32 %v1977, %v2028
      %v2030 = vand.u32 %v2029, 4294901760
      %v2031 = vsub.f32 %v2029, %v2030
      %v2032 = vand.u32 %v2031, 4294901760
      %2033 = vmatpush.xpose.msra.mxu0 %v2032
      %v2034 = vand.u32 %v1975, 4294901760
      %v2035 = vsub.f32 %v1975, %v2034
      %v2036 = vand.u32 %v2035, 4294901760
      %v2037 = vsub.f32 %v2035, %v2036
      %v2038 = vand.u32 %v2037, 4294901760
      %2039 = vmatpush.xpose.msra.mxu0 %v2038
      %v2040 = vand.u32 %v1971, 4294901760
      %2041 = vmatmul.f32.gmra.mxu0 %v2040
      %v2042 = vpop.f32.mrf.mxu0
      %v2043 = vadd.f32 %v2004, %v2042
      %v2044 = vand.u32 %v1973, 4294901760
      %2045 = vmatmul.f32.gmra.mxu0 %v2044
      %v2046 = vpop.f32.mrf.mxu0
      %v2047 = vadd.f32 %v2012, %v2046
      %2048 = vdwg.mxu0
      %2049 = vmatpush.xpose.msra.mxu0 0.0
      %2050 = vmatpush.xpose.msra.mxu0 0.0
      %2051 = vmatpush.xpose.msra.mxu0 0.0
      %2052 = vmatpush.xpose.msra.mxu0 0.0
      %2053 = vmatpush.xpose.msra.mxu0 0.0
      %2054 = vmatpush.xpose.msra.mxu0 0.0
      %2055 = vmatpush.xpose.msra.mxu0 0.0
      %2056 = vmatpush.xpose.msra.mxu0 0.0
      %2057 = vmatpush.xpose.msra.mxu0 0.0
      %2058 = vmatpush.xpose.msra.mxu0 0.0
      %2059 = vmatpush.xpose.msra.mxu0 0.0
      %2060 = vmatpush.xpose.msra.mxu0 0.0
      %2061 = vmatpush.xpose.msra.mxu0 0.0
      %2062 = vmatpush.xpose.msra.mxu0 0.0
      %v2063 = vand.u32 %v1977, 4294901760
      %v2064 = vsub.f32 %v1977, %v2063
      %2065 = vmatpush.xpose.msra.mxu0 %v2064
      %v2066 = vand.u32 %v1975, 4294901760
      %v2067 = vsub.f32 %v1975, %v2066
      %2068 = vmatpush.xpose.msra.mxu0 %v2067
      %v2069 = vand.u32 %v1971, 4294901760
      %v2070 = vsub.f32 %v1971, %v2069
      %2071 = vmatmul.f32.gmra.mxu0 %v2070
      %v2072 = vpop.f32.mrf.mxu0
      %v2073 = vadd.f32 %v2043, %v2072
      %v2074 = vand.u32 %v1973, 4294901760
      %v2075 = vsub.f32 %v1973, %v2074
      %2076 = vmatmul.f32.gmra.mxu0 %v2075
      %v2077 = vpop.f32.mrf.mxu0
      %v2078 = vadd.f32 %v2047, %v2077
      %2079 = vdwg.mxu0
      %2080 = vmatpush.xpose.msra.mxu0 0.0
      %2081 = vmatpush.xpose.msra.mxu0 0.0
      %2082 = vmatpush.xpose.msra.mxu0 0.0
      %2083 = vmatpush.xpose.msra.mxu0 0.0
      %2084 = vmatpush.xpose.msra.mxu0 0.0
      %2085 = vmatpush.xpose.msra.mxu0 0.0
      %2086 = vmatpush.xpose.msra.mxu0 0.0
      %2087 = vmatpush.xpose.msra.mxu0 0.0
      %2088 = vmatpush.xpose.msra.mxu0 0.0
      %2089 = vmatpush.xpose.msra.mxu0 0.0
      %2090 = vmatpush.xpose.msra.mxu0 0.0
      %2091 = vmatpush.xpose.msra.mxu0 0.0
      %2092 = vmatpush.xpose.msra.mxu0 0.0
      %2093 = vmatpush.xpose.msra.mxu0 0.0
      %v2094 = vand.u32 %v1977, 4294901760
      %2095 = vmatpush.xpose.msra.mxu0 %v2094
      %v2096 = vand.u32 %v1975, 4294901760
      %2097 = vmatpush.xpose.msra.mxu0 %v2096
      %v2098 = vand.u32 %v1971, 4294901760
      %v2099 = vsub.f32 %v1971, %v2098
      %v2100 = vand.u32 %v2099, 4294901760
      %2101 = vmatmul.f32.gmra.mxu0 %v2100
      %v2102 = vpop.f32.mrf.mxu0
      %v2103 = vadd.f32 %v2073, %v2102
      %v2104 = vand.u32 %v1973, 4294901760
      %v2105 = vsub.f32 %v1973, %v2104
      %v2106 = vand.u32 %v2105, 4294901760
      %2107 = vmatmul.f32.gmra.mxu0 %v2106
      %v2108 = vpop.f32.mrf.mxu0
      %v2109 = vadd.f32 %v2078, %v2108
      %2110 = vdwg.mxu0
      %2111 = vmatpush.xpose.msra.mxu0 0.0
      %2112 = vmatpush.xpose.msra.mxu0 0.0
      %2113 = vmatpush.xpose.msra.mxu0 0.0
      %2114 = vmatpush.xpose.msra.mxu0 0.0
      %2115 = vmatpush.xpose.msra.mxu0 0.0
      %2116 = vmatpush.xpose.msra.mxu0 0.0
      %2117 = vmatpush.xpose.msra.mxu0 0.0
      %2118 = vmatpush.xpose.msra.mxu0 0.0
      %2119 = vmatpush.xpose.msra.mxu0 0.0
      %2120 = vmatpush.xpose.msra.mxu0 0.0
      %2121 = vmatpush.xpose.msra.mxu0 0.0
      %2122 = vmatpush.xpose.msra.mxu0 0.0
      %2123 = vmatpush.xpose.msra.mxu0 0.0
      %2124 = vmatpush.xpose.msra.mxu0 0.0
      %v2125 = vand.u32 %v1977, 4294901760
      %v2126 = vsub.f32 %v1977, %v2125
      %v2127 = vand.u32 %v2126, 4294901760
      %2128 = vmatpush.xpose.msra.mxu0 %v2127
      %v2129 = vand.u32 %v1975, 4294901760
      %v2130 = vsub.f32 %v1975, %v2129
      %v2131 = vand.u32 %v2130, 4294901760
      %2132 = vmatpush.xpose.msra.mxu0 %v2131
      %v2133 = vand.u32 %v1971, 4294901760
      %2134 = vmatmul.f32.gmra.mxu0 %v2133
      %v2135 = vpop.f32.mrf.mxu0
      %v2136 = vadd.f32 %v2103, %v2135
      %v2137 = vand.u32 %v1973, 4294901760
      %2138 = vmatmul.f32.gmra.mxu0 %v2137
      %v2139 = vpop.f32.mrf.mxu0
      %v2140 = vadd.f32 %v2109, %v2139
      %2141 = vdwg.mxu0
      %2142 = vmatpush.xpose.msra.mxu0 0.0
      %2143 = vmatpush.xpose.msra.mxu0 0.0
      %2144 = vmatpush.xpose.msra.mxu0 0.0
      %2145 = vmatpush.xpose.msra.mxu0 0.0
      %2146 = vmatpush.xpose.msra.mxu0 0.0
      %2147 = vmatpush.xpose.msra.mxu0 0.0
      %2148 = vmatpush.xpose.msra.mxu0 0.0
      %2149 = vmatpush.xpose.msra.mxu0 0.0
      %2150 = vmatpush.xpose.msra.mxu0 0.0
      %2151 = vmatpush.xpose.msra.mxu0 0.0
      %2152 = vmatpush.xpose.msra.mxu0 0.0
      %2153 = vmatpush.xpose.msra.mxu0 0.0
      %2154 = vmatpush.xpose.msra.mxu0 0.0
      %2155 = vmatpush.xpose.msra.mxu0 0.0
      %v2156 = vand.u32 %v1977, 4294901760
      %2157 = vmatpush.xpose.msra.mxu0 %v2156
      %v2158 = vand.u32 %v1975, 4294901760
      %2159 = vmatpush.xpose.msra.mxu0 %v2158
      %v2160 = vand.u32 %v1971, 4294901760
      %2161 = vmatmul.f32.gmra.mxu0 %v2160
      %v2162 = vpop.f32.mrf.mxu0
      %v2163 = vadd.f32 %v2136, %v2162
      %v2164 = vand.u32 %v1973, 4294901760
      %2165 = vmatmul.f32.gmra.mxu0 %v2164
      %v2166 = vpop.f32.mrf.mxu0
      %v2167 = vadd.f32 %v2140, %v2166
      %2168 = vdwg.mxu0
      %v2169 = vmul.f32 %v2163, 0.25
      %v2170 = vmul.f32 %v2167, 0.25
      %v2171 = vsel %vm420, %v2169, -inf
      %2172 = vmax.xlane.f32.xlu0 %v2171
      %v2173 = vpop.xlane.xlu0 %2172
      %v2174 = vsel %vm420, %v2170, -inf
      %2175 = vmax.xlane.f32.xlu0 %v2174
      %v2176 = vpop.xlane.xlu0 %2175
      %v2177 = vsub.f32 %v2169, %v2173
      %v2178 = vsub.f32 %v2170, %v2176
      %v2179 = vmul.f32 %v2177, 1.442695
      %v2180 = vpow.pop %v2179
      %v2181 = vmul.f32 %v2178, 1.442695
      %v2182 = vpow.pop %v2181
      %v2183 = vsel %vm420, %v2180, 0.0
      %2184 = vadd.xlane.f32.xlu0 %v2183
      %v2185 = vpop.xlane.xlu0 %2184
      %v2186 = vsel %vm420, %v2182, 0.0
      %2187 = vadd.xlane.f32.xlu0 %v2186
      %v2188 = vpop.xlane.xlu0 %2187
      %v2189 = vrcp.pop %v2185
      %v2190 = vrcp.pop %v2188
      %v2191 = vmul.f32 %v2185, %v2189
      %v2192 = vmul.f32 %v2188, %v2190
      %v2193 = vsub.f32 2.0, %v2191
      %v2194 = vsub.f32 2.0, %v2192
      %v2195 = vmul.f32 %v2189, %v2193
      %v2196 = vmul.f32 %v2190, %v2194
      %v2197 = vmul.f32 %v2180, %v2195
      %v2198 = vmul.f32 %v2182, %v2196
      %2201 = vrot.lane.b32.xlu0 %v1527, 112
      %v2202 = vpop.permute.xlu0 %2201
      %2203 = vrot.lane.b32.xlu0 %v1531, 112
      %v2204 = vpop.permute.xlu0 %2203
      %v2208 = vsel %vm420, %v2197, 0
      %v2211 = vsel %vm420, %v2198, 0
      %2213 = vmatpush.msra.mxu0 0.0
      %2214 = vmatpush.msra.mxu0 0.0
      %2215 = vmatpush.msra.mxu0 0.0
      %2216 = vmatpush.msra.mxu0 0.0
      %2217 = vmatpush.msra.mxu0 0.0
      %2218 = vmatpush.msra.mxu0 0.0
      %2219 = vmatpush.msra.mxu0 0.0
      %2220 = vmatpush.msra.mxu0 0.0
      %2221 = vmatpush.msra.mxu0 0.0
      %2222 = vmatpush.msra.mxu0 0.0
      %2223 = vmatpush.msra.mxu0 0.0
      %2224 = vmatpush.msra.mxu0 0.0
      %2225 = vmatpush.msra.mxu0 0.0
      %2226 = vmatpush.msra.mxu0 0.0
      %v2227 = vand.u32 %v2204, 4294901760
      %2228 = vmatpush.msra.mxu0 %v2227
      %v2229 = vand.u32 %v2202, 4294901760
      %2230 = vmatpush.msra.mxu0 %v2229
      %v2231 = vand.u32 %v2208, 4294901760
      %v2232 = vsub.f32 %v2208, %v2231
      %v2233 = vand.u32 %v2232, 4294901760
      %v2234 = vsub.f32 %v2232, %v2233
      %v2235 = vand.u32 %v2234, 4294901760
      %2236 = vmatmul.f32.gmra.mxu0 %v2235
      %v2237 = vpop.f32.mrf.mxu0
      %v2238 = vadd.f32 0.0, %v2237
      %v2239 = vand.u32 %v2211, 4294901760
      %v2240 = vsub.f32 %v2211, %v2239
      %v2241 = vand.u32 %v2240, 4294901760
      %v2242 = vsub.f32 %v2240, %v2241
      %v2243 = vand.u32 %v2242, 4294901760
      %2244 = vmatmul.f32.gmra.mxu0 %v2243
      %v2245 = vpop.f32.mrf.mxu0
      %v2246 = vadd.f32 0.0, %v2245
      %2247 = vdwg.mxu0
      %2248 = vmatpush.msra.mxu0 0.0
      %2249 = vmatpush.msra.mxu0 0.0
      %2250 = vmatpush.msra.mxu0 0.0
      %2251 = vmatpush.msra.mxu0 0.0
      %2252 = vmatpush.msra.mxu0 0.0
      %2253 = vmatpush.msra.mxu0 0.0
      %2254 = vmatpush.msra.mxu0 0.0
      %2255 = vmatpush.msra.mxu0 0.0
      %2256 = vmatpush.msra.mxu0 0.0
      %2257 = vmatpush.msra.mxu0 0.0
      %2258 = vmatpush.msra.mxu0 0.0
      %2259 = vmatpush.msra.mxu0 0.0
      %2260 = vmatpush.msra.mxu0 0.0
      %2261 = vmatpush.msra.mxu0 0.0
      %v2262 = vand.u32 %v2204, 4294901760
      %v2263 = vsub.f32 %v2204, %v2262
      %v2264 = vand.u32 %v2263, 4294901760
      %v2265 = vsub.f32 %v2263, %v2264
      %v2266 = vand.u32 %v2265, 4294901760
      %2267 = vmatpush.msra.mxu0 %v2266
      %v2268 = vand.u32 %v2202, 4294901760
      %v2269 = vsub.f32 %v2202, %v2268
      %v2270 = vand.u32 %v2269, 4294901760
      %v2271 = vsub.f32 %v2269, %v2270
      %v2272 = vand.u32 %v2271, 4294901760
      %2273 = vmatpush.msra.mxu0 %v2272
      %v2274 = vand.u32 %v2208, 4294901760
      %2275 = vmatmul.f32.gmra.mxu0 %v2274
      %v2276 = vpop.f32.mrf.mxu0
      %v2277 = vadd.f32 %v2238, %v2276
      %v2278 = vand.u32 %v2211, 4294901760
      %2279 = vmatmul.f32.gmra.mxu0 %v2278
      %v2280 = vpop.f32.mrf.mxu0
      %v2281 = vadd.f32 %v2246, %v2280
      %2282 = vdwg.mxu0
      %2283 = vmatpush.msra.mxu0 0.0
      %2284 = vmatpush.msra.mxu0 0.0
      %2285 = vmatpush.msra.mxu0 0.0
      %2286 = vmatpush.msra.mxu0 0.0
      %2287 = vmatpush.msra.mxu0 0.0
      %2288 = vmatpush.msra.mxu0 0.0
      %2289 = vmatpush.msra.mxu0 0.0
      %2290 = vmatpush.msra.mxu0 0.0
      %2291 = vmatpush.msra.mxu0 0.0
      %2292 = vmatpush.msra.mxu0 0.0
      %2293 = vmatpush.msra.mxu0 0.0
      %2294 = vmatpush.msra.mxu0 0.0
      %2295 = vmatpush.msra.mxu0 0.0
      %2296 = vmatpush.msra.mxu0 0.0
      %v2297 = vand.u32 %v2204, 4294901760
      %v2298 = vsub.f32 %v2204, %v2297
      %2299 = vmatpush.msra.mxu0 %v2298
      %v2300 = vand.u32 %v2202, 4294901760
      %v2301 = vsub.f32 %v2202, %v2300
      %2302 = vmatpush.msra.mxu0 %v2301
      %v2303 = vand.u32 %v2208, 4294901760
      %v2304 = vsub.f32 %v2208, %v2303
      %2305 = vmatmul.f32.gmra.mxu0 %v2304
      %v2306 = vpop.f32.mrf.mxu0
      %v2307 = vadd.f32 %v2277, %v2306
      %v2308 = vand.u32 %v2211, 4294901760
      %v2309 = vsub.f32 %v2211, %v2308
      %2310 = vmatmul.f32.gmra.mxu0 %v2309
      %v2311 = vpop.f32.mrf.mxu0
      %v2312 = vadd.f32 %v2281, %v2311
      %2313 = vdwg.mxu0
      %2314 = vmatpush.msra.mxu0 0.0
      %2315 = vmatpush.msra.mxu0 0.0
      %2316 = vmatpush.msra.mxu0 0.0
      %2317 = vmatpush.msra.mxu0 0.0
      %2318 = vmatpush.msra.mxu0 0.0
      %2319 = vmatpush.msra.mxu0 0.0
      %2320 = vmatpush.msra.mxu0 0.0
      %2321 = vmatpush.msra.mxu0 0.0
      %2322 = vmatpush.msra.mxu0 0.0
      %2323 = vmatpush.msra.mxu0 0.0
      %2324 = vmatpush.msra.mxu0 0.0
      %2325 = vmatpush.msra.mxu0 0.0
      %2326 = vmatpush.msra.mxu0 0.0
      %2327 = vmatpush.msra.mxu0 0.0
      %v2328 = vand.u32 %v2204, 4294901760
      %2329 = vmatpush.msra.mxu0 %v2328
      %v2330 = vand.u32 %v2202, 4294901760
      %2331 = vmatpush.msra.mxu0 %v2330
      %v2332 = vand.u32 %v2208, 4294901760
      %v2333 = vsub.f32 %v2208, %v2332
      %v2334 = vand.u32 %v2333, 4294901760
      %2335 = vmatmul.f32.gmra.mxu0 %v2334
      %v2336 = vpop.f32.mrf.mxu0
      %v2337 = vadd.f32 %v2307, %v2336
      %v2338 = vand.u32 %v2211, 4294901760
      %v2339 = vsub.f32 %v2211, %v2338
      %v2340 = vand.u32 %v2339, 4294901760
      %2341 = vmatmul.f32.gmra.mxu0 %v2340
      %v2342 = vpop.f32.mrf.mxu0
      %v2343 = vadd.f32 %v2312, %v2342
      %2344 = vdwg.mxu0
      %2345 = vmatpush.msra.mxu0 0.0
      %2346 = vmatpush.msra.mxu0 0.0
      %2347 = vmatpush.msra.mxu0 0.0
      %2348 = vmatpush.msra.mxu0 0.0
      %2349 = vmatpush.msra.mxu0 0.0
      %2350 = vmatpush.msra.mxu0 0.0
      %2351 = vmatpush.msra.mxu0 0.0
      %2352 = vmatpush.msra.mxu0 0.0
      %2353 = vmatpush.msra.mxu0 0.0
      %2354 = vmatpush.msra.mxu0 0.0
      %2355 = vmatpush.msra.mxu0 0.0
      %2356 = vmatpush.msra.mxu0 0.0
      %2357 = vmatpush.msra.mxu0 0.0
      %2358 = vmatpush.msra.mxu0 0.0
      %v2359 = vand.u32 %v2204, 4294901760
      %v2360 = vsub.f32 %v2204, %v2359
      %v2361 = vand.u32 %v2360, 4294901760
      %2362 = vmatpush.msra.mxu0 %v2361
      %v2363 = vand.u32 %v2202, 4294901760
      %v2364 = vsub.f32 %v2202, %v2363
      %v2365 = vand.u32 %v2364, 4294901760
      %2366 = vmatpush.msra.mxu0 %v2365
      %v2367 = vand.u32 %v2208, 4294901760
      %2368 = vmatmul.f32.gmra.mxu0 %v2367
      %v2369 = vpop.f32.mrf.mxu0
      %v2370 = vadd.f32 %v2337, %v2369
      %v2371 = vand.u32 %v2211, 4294901760
      %2372 = vmatmul.f32.gmra.mxu0 %v2371
      %v2373 = vpop.f32.mrf.mxu0
      %v2374 = vadd.f32 %v2343, %v2373
      %2375 = vdwg.mxu0
      %2376 = vmatpush.msra.mxu0 0.0
      %2377 = vmatpush.msra.mxu0 0.0
      %2378 = vmatpush.msra.mxu0 0.0
      %2379 = vmatpush.msra.mxu0 0.0
      %2380 = vmatpush.msra.mxu0 0.0
      %2381 = vmatpush.msra.mxu0 0.0
      %2382 = vmatpush.msra.mxu0 0.0
      %2383 = vmatpush.msra.mxu0 0.0
      %2384 = vmatpush.msra.mxu0 0.0
      %2385 = vmatpush.msra.mxu0 0.0
      %2386 = vmatpush.msra.mxu0 0.0
      %2387 = vmatpush.msra.mxu0 0.0
      %2388 = vmatpush.msra.mxu0 0.0
      %2389 = vmatpush.msra.mxu0 0.0
      %v2390 = vand.u32 %v2204, 4294901760
      %2391 = vmatpush.msra.mxu0 %v2390
      %v2392 = vand.u32 %v2202, 4294901760
      %2393 = vmatpush.msra.mxu0 %v2392
      %v2394 = vand.u32 %v2208, 4294901760
      %2395 = vmatmul.f32.gmra.mxu0 %v2394
      %v2396 = vpop.f32.mrf.mxu0
      %v2397 = vadd.f32 %v2370, %v2396
      %v2398 = vand.u32 %v2211, 4294901760
      %2399 = vmatmul.f32.gmra.mxu0 %v2398
      %v2400 = vpop.f32.mrf.mxu0
      %v2401 = vadd.f32 %v2374, %v2400
      %2402 = vdwg.mxu0
      %v2404 = vsel %vm420, %v2397, 0
      %v2407 = vsel %vm420, %v2401, 0
      %2409 = vmatpush.msra.mxu0 0.0
      %2410 = vmatpush.msra.mxu0 0.0
      %2411 = vmatpush.msra.mxu0 0.0
      %2412 = vmatpush.msra.mxu0 0.0
      %2413 = vmatpush.msra.mxu0 0.0
      %2414 = vmatpush.msra.mxu0 0.0
      %2415 = vmatpush.msra.mxu0 0.0
      %2416 = vmatpush.msra.mxu0 0.0
      %2417 = vmatpush.msra.mxu0 0.0
      %2418 = vmatpush.msra.mxu0 0.0
      %2419 = vmatpush.msra.mxu0 0.0
      %2420 = vmatpush.msra.mxu0 0.0
      %2421 = vmatpush.msra.mxu0 0.0
      %2422 = vmatpush.msra.mxu0 0.0
      %v2423 = vand.u32 %v907, 4294901760
      %2424 = vmatpush.msra.mxu0 %v2423
      %v2425 = vand.u32 %v906, 4294901760
      %2426 = vmatpush.msra.mxu0 %v2425
      %v2427 = vand.u32 %v2404, 4294901760
      %v2428 = vsub.f32 %v2404, %v2427
      %v2429 = vand.u32 %v2428, 4294901760
      %v2430 = vsub.f32 %v2428, %v2429
      %v2431 = vand.u32 %v2430, 4294901760
      %2432 = vmatmul.f32.gmra.mxu0 %v2431
      %v2433 = vpop.f32.mrf.mxu0
      %v2434 = vadd.f32 0.0, %v2433
      %v2435 = vand.u32 %v2407, 4294901760
      %v2436 = vsub.f32 %v2407, %v2435
      %v2437 = vand.u32 %v2436, 4294901760
      %v2438 = vsub.f32 %v2436, %v2437
      %v2439 = vand.u32 %v2438, 4294901760
      %2440 = vmatmul.f32.gmra.mxu0 %v2439
      %v2441 = vpop.f32.mrf.mxu0
      %v2442 = vadd.f32 0.0, %v2441
      %2443 = vdwg.mxu0
      %2444 = vmatpush.msra.mxu0 0.0
      %2445 = vmatpush.msra.mxu0 0.0
      %2446 = vmatpush.msra.mxu0 0.0
      %2447 = vmatpush.msra.mxu0 0.0
      %2448 = vmatpush.msra.mxu0 0.0
      %2449 = vmatpush.msra.mxu0 0.0
      %2450 = vmatpush.msra.mxu0 0.0
      %2451 = vmatpush.msra.mxu0 0.0
      %2452 = vmatpush.msra.mxu0 0.0
      %2453 = vmatpush.msra.mxu0 0.0
      %2454 = vmatpush.msra.mxu0 0.0
      %2455 = vmatpush.msra.mxu0 0.0
      %2456 = vmatpush.msra.mxu0 0.0
      %2457 = vmatpush.msra.mxu0 0.0
      %v2458 = vand.u32 %v907, 4294901760
      %v2459 = vsub.f32 %v907, %v2458
      %v2460 = vand.u32 %v2459, 4294901760
      %v2461 = vsub.f32 %v2459, %v2460
      %v2462 = vand.u32 %v2461, 4294901760
      %2463 = vmatpush.msra.mxu0 %v2462
      %v2464 = vand.u32 %v906, 4294901760
      %v2465 = vsub.f32 %v906, %v2464
      %v2466 = vand.u32 %v2465, 4294901760
      %v2467 = vsub.f32 %v2465, %v2466
      %v2468 = vand.u32 %v2467, 4294901760
      %2469 = vmatpush.msra.mxu0 %v2468
      %v2470 = vand.u32 %v2404, 4294901760
      %2471 = vmatmul.f32.gmra.mxu0 %v2470
      %v2472 = vpop.f32.mrf.mxu0
      %v2473 = vadd.f32 %v2434, %v2472
      %v2474 = vand.u32 %v2407, 4294901760
      %2475 = vmatmul.f32.gmra.mxu0 %v2474
      %v2476 = vpop.f32.mrf.mxu0
      %v2477 = vadd.f32 %v2442, %v2476
      %2478 = vdwg.mxu0
      %2479 = vmatpush.msra.mxu0 0.0
      %2480 = vmatpush.msra.mxu0 0.0
      %2481 = vmatpush.msra.mxu0 0.0
      %2482 = vmatpush.msra.mxu0 0.0
      %2483 = vmatpush.msra.mxu0 0.0
      %2484 = vmatpush.msra.mxu0 0.0
      %2485 = vmatpush.msra.mxu0 0.0
      %2486 = vmatpush.msra.mxu0 0.0
      %2487 = vmatpush.msra.mxu0 0.0
      %2488 = vmatpush.msra.mxu0 0.0
      %2489 = vmatpush.msra.mxu0 0.0
      %2490 = vmatpush.msra.mxu0 0.0
      %2491 = vmatpush.msra.mxu0 0.0
      %2492 = vmatpush.msra.mxu0 0.0
      %v2493 = vand.u32 %v907, 4294901760
      %v2494 = vsub.f32 %v907, %v2493
      %2495 = vmatpush.msra.mxu0 %v2494
      %v2496 = vand.u32 %v906, 4294901760
      %v2497 = vsub.f32 %v906, %v2496
      %2498 = vmatpush.msra.mxu0 %v2497
      %v2499 = vand.u32 %v2404, 4294901760
      %v2500 = vsub.f32 %v2404, %v2499
      %2501 = vmatmul.f32.gmra.mxu0 %v2500
      %v2502 = vpop.f32.mrf.mxu0
      %v2503 = vadd.f32 %v2473, %v2502
      %v2504 = vand.u32 %v2407, 4294901760
      %v2505 = vsub.f32 %v2407, %v2504
      %2506 = vmatmul.f32.gmra.mxu0 %v2505
      %v2507 = vpop.f32.mrf.mxu0
      %v2508 = vadd.f32 %v2477, %v2507
      %2509 = vdwg.mxu0
      %2510 = vmatpush.msra.mxu0 0.0
      %2511 = vmatpush.msra.mxu0 0.0
      %2512 = vmatpush.msra.mxu0 0.0
      %2513 = vmatpush.msra.mxu0 0.0
      %2514 = vmatpush.msra.mxu0 0.0
      %2515 = vmatpush.msra.mxu0 0.0
      %2516 = vmatpush.msra.mxu0 0.0
      %2517 = vmatpush.msra.mxu0 0.0
      %2518 = vmatpush.msra.mxu0 0.0
      %2519 = vmatpush.msra.mxu0 0.0
      %2520 = vmatpush.msra.mxu0 0.0
      %2521 = vmatpush.msra.mxu0 0.0
      %2522 = vmatpush.msra.mxu0 0.0
      %2523 = vmatpush.msra.mxu0 0.0
      %v2524 = vand.u32 %v907, 4294901760
      %2525 = vmatpush.msra.mxu0 %v2524
      %v2526 = vand.u32 %v906, 4294901760
      %2527 = vmatpush.msra.mxu0 %v2526
      %v2528 = vand.u32 %v2404, 4294901760
      %v2529 = vsub.f32 %v2404, %v2528
      %v2530 = vand.u32 %v2529, 4294901760
      %2531 = vmatmul.f32.gmra.mxu0 %v2530
      %v2532 = vpop.f32.mrf.mxu0
      %v2533 = vadd.f32 %v2503, %v2532
      %v2534 = vand.u32 %v2407, 4294901760
      %v2535 = vsub.f32 %v2407, %v2534
      %v2536 = vand.u32 %v2535, 4294901760
      %2537 = vmatmul.f32.gmra.mxu0 %v2536
      %v2538 = vpop.f32.mrf.mxu0
      %v2539 = vadd.f32 %v2508, %v2538
      %2540 = vdwg.mxu0
      %2541 = vmatpush.msra.mxu0 0.0
      %2542 = vmatpush.msra.mxu0 0.0
      %2543 = vmatpush.msra.mxu0 0.0
      %2544 = vmatpush.msra.mxu0 0.0
      %2545 = vmatpush.msra.mxu0 0.0
      %2546 = vmatpush.msra.mxu0 0.0
      %2547 = vmatpush.msra.mxu0 0.0
      %2548 = vmatpush.msra.mxu0 0.0
      %2549 = vmatpush.msra.mxu0 0.0
      %2550 = vmatpush.msra.mxu0 0.0
      %2551 = vmatpush.msra.mxu0 0.0
      %2552 = vmatpush.msra.mxu0 0.0
      %2553 = vmatpush.msra.mxu0 0.0
      %2554 = vmatpush.msra.mxu0 0.0
      %v2555 = vand.u32 %v907, 4294901760
      %v2556 = vsub.f32 %v907, %v2555
      %v2557 = vand.u32 %v2556, 4294901760
      %2558 = vmatpush.msra.mxu0 %v2557
      %v2559 = vand.u32 %v906, 4294901760
      %v2560 = vsub.f32 %v906, %v2559
      %v2561 = vand.u32 %v2560, 4294901760
      %2562 = vmatpush.msra.mxu0 %v2561
      %v2563 = vand.u32 %v2404, 4294901760
      %2564 = vmatmul.f32.gmra.mxu0 %v2563
      %v2565 = vpop.f32.mrf.mxu0
      %v2566 = vadd.f32 %v2533, %v2565
      %v2567 = vand.u32 %v2407, 4294901760
      %2568 = vmatmul.f32.gmra.mxu0 %v2567
      %v2569 = vpop.f32.mrf.mxu0
      %v2570 = vadd.f32 %v2539, %v2569
      %2571 = vdwg.mxu0
      %2572 = vmatpush.msra.mxu0 0.0
      %2573 = vmatpush.msra.mxu0 0.0
      %2574 = vmatpush.msra.mxu0 0.0
      %2575 = vmatpush.msra.mxu0 0.0
      %2576 = vmatpush.msra.mxu0 0.0
      %2577 = vmatpush.msra.mxu0 0.0
      %2578 = vmatpush.msra.mxu0 0.0
      %2579 = vmatpush.msra.mxu0 0.0
      %2580 = vmatpush.msra.mxu0 0.0
      %2581 = vmatpush.msra.mxu0 0.0
      %2582 = vmatpush.msra.mxu0 0.0
      %2583 = vmatpush.msra.mxu0 0.0
      %2584 = vmatpush.msra.mxu0 0.0
      %2585 = vmatpush.msra.mxu0 0.0
      %v2586 = vand.u32 %v907, 4294901760
      %2587 = vmatpush.msra.mxu0 %v2586
      %v2588 = vand.u32 %v906, 4294901760
      %2589 = vmatpush.msra.mxu0 %v2588
      %v2590 = vand.u32 %v2404, 4294901760
      %2591 = vmatmul.f32.gmra.mxu0 %v2590
      %v2592 = vpop.f32.mrf.mxu0
      %v2593 = vadd.f32 %v2566, %v2592
      %v2594 = vand.u32 %v2407, 4294901760
      %2595 = vmatmul.f32.gmra.mxu0 %v2594
      %v2596 = vpop.f32.mrf.mxu0
      %v2597 = vadd.f32 %v2570, %v2596
      %2598 = vdwg.mxu0
      %v2600 = vsel %vm420, %v1957, 0
      %v2603 = vsel %vm420, %v1961, 0
      %2605 = vmatpush.msra.mxu0 0.0
      %2606 = vmatpush.msra.mxu0 0.0
      %2607 = vmatpush.msra.mxu0 0.0
      %2608 = vmatpush.msra.mxu0 0.0
      %2609 = vmatpush.msra.mxu0 0.0
      %2610 = vmatpush.msra.mxu0 0.0
      %2611 = vmatpush.msra.mxu0 0.0
      %2612 = vmatpush.msra.mxu0 0.0
      %2613 = vmatpush.msra.mxu0 0.0
      %2614 = vmatpush.msra.mxu0 0.0
      %2615 = vmatpush.msra.mxu0 0.0
      %2616 = vmatpush.msra.mxu0 0.0
      %2617 = vmatpush.msra.mxu0 0.0
      %2618 = vmatpush.msra.mxu0 0.0
      %v2619 = vand.u32 %v905, 4294901760
      %2620 = vmatpush.msra.mxu0 %v2619
      %v2621 = vand.u32 %v904, 4294901760
      %2622 = vmatpush.msra.mxu0 %v2621
      %v2623 = vand.u32 %v2600, 4294901760
      %v2624 = vsub.f32 %v2600, %v2623
      %v2625 = vand.u32 %v2624, 4294901760
      %v2626 = vsub.f32 %v2624, %v2625
      %v2627 = vand.u32 %v2626, 4294901760
      %2628 = vmatmul.f32.gmra.mxu0 %v2627
      %v2629 = vpop.f32.mrf.mxu0
      %v2630 = vadd.f32 %v2593, %v2629
      %v2631 = vand.u32 %v2603, 4294901760
      %v2632 = vsub.f32 %v2603, %v2631
      %v2633 = vand.u32 %v2632, 4294901760
      %v2634 = vsub.f32 %v2632, %v2633
      %v2635 = vand.u32 %v2634, 4294901760
      %2636 = vmatmul.f32.gmra.mxu0 %v2635
      %v2637 = vpop.f32.mrf.mxu0
      %v2638 = vadd.f32 %v2597, %v2637
      %2639 = vdwg.mxu0
      %2640 = vmatpush.msra.mxu0 0.0
      %2641 = vmatpush.msra.mxu0 0.0
      %2642 = vmatpush.msra.mxu0 0.0
      %2643 = vmatpush.msra.mxu0 0.0
      %2644 = vmatpush.msra.mxu0 0.0
      %2645 = vmatpush.msra.mxu0 0.0
      %2646 = vmatpush.msra.mxu0 0.0
      %2647 = vmatpush.msra.mxu0 0.0
      %2648 = vmatpush.msra.mxu0 0.0
      %2649 = vmatpush.msra.mxu0 0.0
      %2650 = vmatpush.msra.mxu0 0.0
      %2651 = vmatpush.msra.mxu0 0.0
      %2652 = vmatpush.msra.mxu0 0.0
      %2653 = vmatpush.msra.mxu0 0.0
      %v2654 = vand.u32 %v905, 4294901760
      %v2655 = vsub.f32 %v905, %v2654
      %v2656 = vand.u32 %v2655, 4294901760
      %v2657 = vsub.f32 %v2655, %v2656
      %v2658 = vand.u32 %v2657, 4294901760
      %2659 = vmatpush.msra.mxu0 %v2658
      %v2660 = vand.u32 %v904, 4294901760
      %v2661 = vsub.f32 %v904, %v2660
      %v2662 = vand.u32 %v2661, 4294901760
      %v2663 = vsub.f32 %v2661, %v2662
      %v2664 = vand.u32 %v2663, 4294901760
      %2665 = vmatpush.msra.mxu0 %v2664
      %v2666 = vand.u32 %v2600, 4294901760
      %2667 = vmatmul.f32.gmra.mxu0 %v2666
      %v2668 = vpop.f32.mrf.mxu0
      %v2669 = vadd.f32 %v2630, %v2668
      %v2670 = vand.u32 %v2603, 4294901760
      %2671 = vmatmul.f32.gmra.mxu0 %v2670
      %v2672 = vpop.f32.mrf.mxu0
      %v2673 = vadd.f32 %v2638, %v2672
      %2674 = vdwg.mxu0
      %2675 = vmatpush.msra.mxu0 0.0
      %2676 = vmatpush.msra.mxu0 0.0
      %2677 = vmatpush.msra.mxu0 0.0
      %2678 = vmatpush.msra.mxu0 0.0
      %2679 = vmatpush.msra.mxu0 0.0
      %2680 = vmatpush.msra.mxu0 0.0
      %2681 = vmatpush.msra.mxu0 0.0
      %2682 = vmatpush.msra.mxu0 0.0
      %2683 = vmatpush.msra.mxu0 0.0
      %2684 = vmatpush.msra.mxu0 0.0
      %2685 = vmatpush.msra.mxu0 0.0
      %2686 = vmatpush.msra.mxu0 0.0
      %2687 = vmatpush.msra.mxu0 0.0
      %2688 = vmatpush.msra.mxu0 0.0
      %v2689 = vand.u32 %v905, 4294901760
      %v2690 = vsub.f32 %v905, %v2689
      %2691 = vmatpush.msra.mxu0 %v2690
      %v2692 = vand.u32 %v904, 4294901760
      %v2693 = vsub.f32 %v904, %v2692
      %2694 = vmatpush.msra.mxu0 %v2693
      %v2695 = vand.u32 %v2600, 4294901760
      %v2696 = vsub.f32 %v2600, %v2695
      %2697 = vmatmul.f32.gmra.mxu0 %v2696
      %v2698 = vpop.f32.mrf.mxu0
      %v2699 = vadd.f32 %v2669, %v2698
      %v2700 = vand.u32 %v2603, 4294901760
      %v2701 = vsub.f32 %v2603, %v2700
      %2702 = vmatmul.f32.gmra.mxu0 %v2701
      %v2703 = vpop.f32.mrf.mxu0
      %v2704 = vadd.f32 %v2673, %v2703
      %2705 = vdwg.mxu0
      %2706 = vmatpush.msra.mxu0 0.0
      %2707 = vmatpush.msra.mxu0 0.0
      %2708 = vmatpush.msra.mxu0 0.0
      %2709 = vmatpush.msra.mxu0 0.0
      %2710 = vmatpush.msra.mxu0 0.0
      %2711 = vmatpush.msra.mxu0 0.0
      %2712 = vmatpush.msra.mxu0 0.0
      %2713 = vmatpush.msra.mxu0 0.0
      %2714 = vmatpush.msra.mxu0 0.0
      %2715 = vmatpush.msra.mxu0 0.0
      %2716 = vmatpush.msra.mxu0 0.0
      %2717 = vmatpush.msra.mxu0 0.0
      %2718 = vmatpush.msra.mxu0 0.0
      %2719 = vmatpush.msra.mxu0 0.0
      %v2720 = vand.u32 %v905, 4294901760
      %2721 = vmatpush.msra.mxu0 %v2720
      %v2722 = vand.u32 %v904, 4294901760
      %2723 = vmatpush.msra.mxu0 %v2722
      %v2724 = vand.u32 %v2600, 4294901760
      %v2725 = vsub.f32 %v2600, %v2724
      %v2726 = vand.u32 %v2725, 4294901760
      %2727 = vmatmul.f32.gmra.mxu0 %v2726
      %v2728 = vpop.f32.mrf.mxu0
      %v2729 = vadd.f32 %v2699, %v2728
      %v2730 = vand.u32 %v2603, 4294901760
      %v2731 = vsub.f32 %v2603, %v2730
      %v2732 = vand.u32 %v2731, 4294901760
      %2733 = vmatmul.f32.gmra.mxu0 %v2732
      %v2734 = vpop.f32.mrf.mxu0
      %v2735 = vadd.f32 %v2704, %v2734
      %2736 = vdwg.mxu0
      %2737 = vmatpush.msra.mxu0 0.0
      %2738 = vmatpush.msra.mxu0 0.0
      %2739 = vmatpush.msra.mxu0 0.0
      %2740 = vmatpush.msra.mxu0 0.0
      %2741 = vmatpush.msra.mxu0 0.0
      %2742 = vmatpush.msra.mxu0 0.0
      %2743 = vmatpush.msra.mxu0 0.0
      %2744 = vmatpush.msra.mxu0 0.0
      %2745 = vmatpush.msra.mxu0 0.0
      %2746 = vmatpush.msra.mxu0 0.0
      %2747 = vmatpush.msra.mxu0 0.0
      %2748 = vmatpush.msra.mxu0 0.0
      %2749 = vmatpush.msra.mxu0 0.0
      %2750 = vmatpush.msra.mxu0 0.0
      %v2751 = vand.u32 %v905, 4294901760
      %v2752 = vsub.f32 %v905, %v2751
      %v2753 = vand.u32 %v2752, 4294901760
      %2754 = vmatpush.msra.mxu0 %v2753
      %v2755 = vand.u32 %v904, 4294901760
      %v2756 = vsub.f32 %v904, %v2755
      %v2757 = vand.u32 %v2756, 4294901760
      %2758 = vmatpush.msra.mxu0 %v2757
      %v2759 = vand.u32 %v2600, 4294901760
      %2760 = vmatmul.f32.gmra.mxu0 %v2759
      %v2761 = vpop.f32.mrf.mxu0
      %v2762 = vadd.f32 %v2729, %v2761
      %v2763 = vand.u32 %v2603, 4294901760
      %2764 = vmatmul.f32.gmra.mxu0 %v2763
      %v2765 = vpop.f32.mrf.mxu0
      %v2766 = vadd.f32 %v2735, %v2765
      %2767 = vdwg.mxu0
      %2768 = vmatpush.msra.mxu0 0.0
      %2769 = vmatpush.msra.mxu0 0.0
      %2770 = vmatpush.msra.mxu0 0.0
      %2771 = vmatpush.msra.mxu0 0.0
      %2772 = vmatpush.msra.mxu0 0.0
      %2773 = vmatpush.msra.mxu0 0.0
      %2774 = vmatpush.msra.mxu0 0.0
      %2775 = vmatpush.msra.mxu0 0.0
      %2776 = vmatpush.msra.mxu0 0.0
      %2777 = vmatpush.msra.mxu0 0.0
      %2778 = vmatpush.msra.mxu0 0.0
      %2779 = vmatpush.msra.mxu0 0.0
      %2780 = vmatpush.msra.mxu0 0.0
      %2781 = vmatpush.msra.mxu0 0.0
      %v2782 = vand.u32 %v905, 4294901760
      %2783 = vmatpush.msra.mxu0 %v2782
      %v2784 = vand.u32 %v904, 4294901760
      %2785 = vmatpush.msra.mxu0 %v2784
      %v2786 = vand.u32 %v2600, 4294901760
      %2787 = vmatmul.f32.gmra.mxu0 %v2786
      %v2788 = vpop.f32.mrf.mxu0
      %v2789 = vadd.f32 %v2762, %v2788
      %v2790 = vand.u32 %v2603, 4294901760
      %2791 = vmatmul.f32.gmra.mxu0 %v2790
      %v2792 = vpop.f32.mrf.mxu0
      %v2793 = vadd.f32 %v2766, %v2792
      %2794 = vdwg.mxu0
      %2795 = vrot.lane.b32.xlu0 %v1259, 96
      %v2796 = vpop.permute.xlu0 %2795
      %2797 = vrot.lane.b32.xlu0 %v1263, 96
      %v2798 = vpop.permute.xlu0 %2797
      %2799 = vrot.lane.b32.xlu0 %v1259, 32
      %v2800 = vpop.permute.xlu0 %2799
      %2801 = vrot.lane.b32.xlu0 %v1263, 32
      %v2802 = vpop.permute.xlu0 %2801
      %v2803 = vsel %vm420, %v2796, 0
      %v2805 = vsel %vm420, %v2798, 0
      %v2807 = vsel %vm420, %v2800, 0
      %v2809 = vsel %vm420, %v2802, 0
      %2811 = vmatpush.xpose.msra.mxu0 0.0
      %2812 = vmatpush.xpose.msra.mxu0 0.0
      %2813 = vmatpush.xpose.msra.mxu0 0.0
      %2814 = vmatpush.xpose.msra.mxu0 0.0
      %2815 = vmatpush.xpose.msra.mxu0 0.0
      %2816 = vmatpush.xpose.msra.mxu0 0.0
      %2817 = vmatpush.xpose.msra.mxu0 0.0
      %2818 = vmatpush.xpose.msra.mxu0 0.0
      %2819 = vmatpush.xpose.msra.mxu0 0.0
      %2820 = vmatpush.xpose.msra.mxu0 0.0
      %2821 = vmatpush.xpose.msra.mxu0 0.0
      %2822 = vmatpush.xpose.msra.mxu0 0.0
      %2823 = vmatpush.xpose.msra.mxu0 0.0
      %2824 = vmatpush.xpose.msra.mxu0 0.0
      %v2825 = vand.u32 %v2809, 4294901760
      %2826 = vmatpush.xpose.msra.mxu0 %v2825
      %v2827 = vand.u32 %v2807, 4294901760
      %2828 = vmatpush.xpose.msra.mxu0 %v2827
      %v2829 = vand.u32 %v2803, 4294901760
      %v2830 = vsub.f32 %v2803, %v2829
      %v2831 = vand.u32 %v2830, 4294901760
      %v2832 = vsub.f32 %v2830, %v2831
      %v2833 = vand.u32 %v2832, 4294901760
      %2834 = vmatmul.f32.gmra.mxu0 %v2833
      %v2835 = vpop.f32.mrf.mxu0
      %v2836 = vadd.f32 0.0, %v2835
      %v2837 = vand.u32 %v2805, 4294901760
      %v2838 = vsub.f32 %v2805, %v2837
      %v2839 = vand.u32 %v2838, 4294901760
      %v2840 = vsub.f32 %v2838, %v2839
      %v2841 = vand.u32 %v2840, 4294901760
      %2842 = vmatmul.f32.gmra.mxu0 %v2841
      %v2843 = vpop.f32.mrf.mxu0
      %v2844 = vadd.f32 0.0, %v2843
      %2845 = vdwg.mxu0
      %2846 = vmatpush.xpose.msra.mxu0 0.0
      %2847 = vmatpush.xpose.msra.mxu0 0.0
      %2848 = vmatpush.xpose.msra.mxu0 0.0
      %2849 = vmatpush.xpose.msra.mxu0 0.0
      %2850 = vmatpush.xpose.msra.mxu0 0.0
      %2851 = vmatpush.xpose.msra.mxu0 0.0
      %2852 = vmatpush.xpose.msra.mxu0 0.0
      %2853 = vmatpush.xpose.msra.mxu0 0.0
      %2854 = vmatpush.xpose.msra.mxu0 0.0
      %2855 = vmatpush.xpose.msra.mxu0 0.0
      %2856 = vmatpush.xpose.msra.mxu0 0.0
      %2857 = vmatpush.xpose.msra.mxu0 0.0
      %2858 = vmatpush.xpose.msra.mxu0 0.0
      %2859 = vmatpush.xpose.msra.mxu0 0.0
      %v2860 = vand.u32 %v2809, 4294901760
      %v2861 = vsub.f32 %v2809, %v2860
      %v2862 = vand.u32 %v2861, 4294901760
      %v2863 = vsub.f32 %v2861, %v2862
      %v2864 = vand.u32 %v2863, 4294901760
      %2865 = vmatpush.xpose.msra.mxu0 %v2864
      %v2866 = vand.u32 %v2807, 4294901760
      %v2867 = vsub.f32 %v2807, %v2866
      %v2868 = vand.u32 %v2867, 4294901760
      %v2869 = vsub.f32 %v2867, %v2868
      %v2870 = vand.u32 %v2869, 4294901760
      %2871 = vmatpush.xpose.msra.mxu0 %v2870
      %v2872 = vand.u32 %v2803, 4294901760
      %2873 = vmatmul.f32.gmra.mxu0 %v2872
      %v2874 = vpop.f32.mrf.mxu0
      %v2875 = vadd.f32 %v2836, %v2874
      %v2876 = vand.u32 %v2805, 4294901760
      %2877 = vmatmul.f32.gmra.mxu0 %v2876
      %v2878 = vpop.f32.mrf.mxu0
      %v2879 = vadd.f32 %v2844, %v2878
      %2880 = vdwg.mxu0
      %2881 = vmatpush.xpose.msra.mxu0 0.0
      %2882 = vmatpush.xpose.msra.mxu0 0.0
      %2883 = vmatpush.xpose.msra.mxu0 0.0
      %2884 = vmatpush.xpose.msra.mxu0 0.0
      %2885 = vmatpush.xpose.msra.mxu0 0.0
      %2886 = vmatpush.xpose.msra.mxu0 0.0
      %2887 = vmatpush.xpose.msra.mxu0 0.0
      %2888 = vmatpush.xpose.msra.mxu0 0.0
      %2889 = vmatpush.xpose.msra.mxu0 0.0
      %2890 = vmatpush.xpose.msra.mxu0 0.0
      %2891 = vmatpush.xpose.msra.mxu0 0.0
      %2892 = vmatpush.xpose.msra.mxu0 0.0
      %2893 = vmatpush.xpose.msra.mxu0 0.0
      %2894 = vmatpush.xpose.msra.mxu0 0.0
      %v2895 = vand.u32 %v2809, 4294901760
      %v2896 = vsub.f32 %v2809, %v2895
      %2897 = vmatpush.xpose.msra.mxu0 %v2896
      %v2898 = vand.u32 %v2807, 4294901760
      %v2899 = vsub.f32 %v2807, %v2898
      %2900 = vmatpush.xpose.msra.mxu0 %v2899
      %v2901 = vand.u32 %v2803, 4294901760
      %v2902 = vsub.f32 %v2803, %v2901
      %2903 = vmatmul.f32.gmra.mxu0 %v2902
      %v2904 = vpop.f32.mrf.mxu0
      %v2905 = vadd.f32 %v2875, %v2904
      %v2906 = vand.u32 %v2805, 4294901760
      %v2907 = vsub.f32 %v2805, %v2906
      %2908 = vmatmul.f32.gmra.mxu0 %v2907
      %v2909 = vpop.f32.mrf.mxu0
      %v2910 = vadd.f32 %v2879, %v2909
      %2911 = vdwg.mxu0
      %2912 = vmatpush.xpose.msra.mxu0 0.0
      %2913 = vmatpush.xpose.msra.mxu0 0.0
      %2914 = vmatpush.xpose.msra.mxu0 0.0
      %2915 = vmatpush.xpose.msra.mxu0 0.0
      %2916 = vmatpush.xpose.msra.mxu0 0.0
      %2917 = vmatpush.xpose.msra.mxu0 0.0
      %2918 = vmatpush.xpose.msra.mxu0 0.0
      %2919 = vmatpush.xpose.msra.mxu0 0.0
      %2920 = vmatpush.xpose.msra.mxu0 0.0
      %2921 = vmatpush.xpose.msra.mxu0 0.0
      %2922 = vmatpush.xpose.msra.mxu0 0.0
      %2923 = vmatpush.xpose.msra.mxu0 0.0
      %2924 = vmatpush.xpose.msra.mxu0 0.0
      %2925 = vmatpush.xpose.msra.mxu0 0.0
      %v2926 = vand.u32 %v2809, 4294901760
      %2927 = vmatpush.xpose.msra.mxu0 %v2926
      %v2928 = vand.u32 %v2807, 4294901760
      %2929 = vmatpush.xpose.msra.mxu0 %v2928
      %v2930 = vand.u32 %v2803, 4294901760
      %v2931 = vsub.f32 %v2803, %v2930
      %v2932 = vand.u32 %v2931, 4294901760
      %2933 = vmatmul.f32.gmra.mxu0 %v2932
      %v2934 = vpop.f32.mrf.mxu0
      %v2935 = vadd.f32 %v2905, %v2934
      %v2936 = vand.u32 %v2805, 4294901760
      %v2937 = vsub.f32 %v2805, %v2936
      %v2938 = vand.u32 %v2937, 4294901760
      %2939 = vmatmul.f32.gmra.mxu0 %v2938
      %v2940 = vpop.f32.mrf.mxu0
      %v2941 = vadd.f32 %v2910, %v2940
      %2942 = vdwg.mxu0
      %2943 = vmatpush.xpose.msra.mxu0 0.0
      %2944 = vmatpush.xpose.msra.mxu0 0.0
      %2945 = vmatpush.xpose.msra.mxu0 0.0
      %2946 = vmatpush.xpose.msra.mxu0 0.0
      %2947 = vmatpush.xpose.msra.mxu0 0.0
      %2948 = vmatpush.xpose.msra.mxu0 0.0
      %2949 = vmatpush.xpose.msra.mxu0 0.0
      %2950 = vmatpush.xpose.msra.mxu0 0.0
      %2951 = vmatpush.xpose.msra.mxu0 0.0
      %2952 = vmatpush.xpose.msra.mxu0 0.0
      %2953 = vmatpush.xpose.msra.mxu0 0.0
      %2954 = vmatpush.xpose.msra.mxu0 0.0
      %2955 = vmatpush.xpose.msra.mxu0 0.0
      %2956 = vmatpush.xpose.msra.mxu0 0.0
      %v2957 = vand.u32 %v2809, 4294901760
      %v2958 = vsub.f32 %v2809, %v2957
      %v2959 = vand.u32 %v2958, 4294901760
      %2960 = vmatpush.xpose.msra.mxu0 %v2959
      %v2961 = vand.u32 %v2807, 4294901760
      %v2962 = vsub.f32 %v2807, %v2961
      %v2963 = vand.u32 %v2962, 4294901760
      %2964 = vmatpush.xpose.msra.mxu0 %v2963
      %v2965 = vand.u32 %v2803, 4294901760
      %2966 = vmatmul.f32.gmra.mxu0 %v2965
      %v2967 = vpop.f32.mrf.mxu0
      %v2968 = vadd.f32 %v2935, %v2967
      %v2969 = vand.u32 %v2805, 4294901760
      %2970 = vmatmul.f32.gmra.mxu0 %v2969
      %v2971 = vpop.f32.mrf.mxu0
      %v2972 = vadd.f32 %v2941, %v2971
      %2973 = vdwg.mxu0
      %2974 = vmatpush.xpose.msra.mxu0 0.0
      %2975 = vmatpush.xpose.msra.mxu0 0.0
      %2976 = vmatpush.xpose.msra.mxu0 0.0
      %2977 = vmatpush.xpose.msra.mxu0 0.0
      %2978 = vmatpush.xpose.msra.mxu0 0.0
      %2979 = vmatpush.xpose.msra.mxu0 0.0
      %2980 = vmatpush.xpose.msra.mxu0 0.0
      %2981 = vmatpush.xpose.msra.mxu0 0.0
      %2982 = vmatpush.xpose.msra.mxu0 0.0
      %2983 = vmatpush.xpose.msra.mxu0 0.0
      %2984 = vmatpush.xpose.msra.mxu0 0.0
      %2985 = vmatpush.xpose.msra.mxu0 0.0
      %2986 = vmatpush.xpose.msra.mxu0 0.0
      %2987 = vmatpush.xpose.msra.mxu0 0.0
      %v2988 = vand.u32 %v2809, 4294901760
      %2989 = vmatpush.xpose.msra.mxu0 %v2988
      %v2990 = vand.u32 %v2807, 4294901760
      %2991 = vmatpush.xpose.msra.mxu0 %v2990
      %v2992 = vand.u32 %v2803, 4294901760
      %2993 = vmatmul.f32.gmra.mxu0 %v2992
      %v2994 = vpop.f32.mrf.mxu0
      %v2995 = vadd.f32 %v2968, %v2994
      %v2996 = vand.u32 %v2805, 4294901760
      %2997 = vmatmul.f32.gmra.mxu0 %v2996
      %v2998 = vpop.f32.mrf.mxu0
      %v2999 = vadd.f32 %v2972, %v2998
      %3000 = vdwg.mxu0
      %v3001 = vmul.f32 %v2995, 0.25
      %v3002 = vmul.f32 %v2999, 0.25
      %v3003 = vsel %vm420, %v3001, -inf
      %3004 = vmax.xlane.f32.xlu0 %v3003
      %v3005 = vpop.xlane.xlu0 %3004
      %v3006 = vsel %vm420, %v3002, -inf
      %3007 = vmax.xlane.f32.xlu0 %v3006
      %v3008 = vpop.xlane.xlu0 %3007
      %v3009 = vsub.f32 %v3001, %v3005
      %v3010 = vsub.f32 %v3002, %v3008
      %v3011 = vmul.f32 %v3009, 1.442695
      %v3012 = vpow.pop %v3011
      %v3013 = vmul.f32 %v3010, 1.442695
      %v3014 = vpow.pop %v3013
      %v3015 = vsel %vm420, %v3012, 0.0
      %3016 = vadd.xlane.f32.xlu0 %v3015
      %v3017 = vpop.xlane.xlu0 %3016
      %v3018 = vsel %vm420, %v3014, 0.0
      %3019 = vadd.xlane.f32.xlu0 %v3018
      %v3020 = vpop.xlane.xlu0 %3019
      %v3021 = vrcp.pop %v3017
      %v3022 = vrcp.pop %v3020
      %v3023 = vmul.f32 %v3017, %v3021
      %v3024 = vmul.f32 %v3020, %v3022
      %v3025 = vsub.f32 2.0, %v3023
      %v3026 = vsub.f32 2.0, %v3024
      %v3027 = vmul.f32 %v3021, %v3025
      %v3028 = vmul.f32 %v3022, %v3026
      %v3029 = vmul.f32 %v3012, %v3027
      %v3030 = vmul.f32 %v3014, %v3028
      %3031 = vrot.lane.b32.xlu0 %v1527, 96
      %v3032 = vpop.permute.xlu0 %3031
      %3033 = vrot.lane.b32.xlu0 %v1531, 96
      %v3034 = vpop.permute.xlu0 %3033
      %v3038 = vsel %vm420, %v3029, 0
      %v3041 = vsel %vm420, %v3030, 0
      %3043 = vmatpush.msra.mxu0 0.0
      %3044 = vmatpush.msra.mxu0 0.0
      %3045 = vmatpush.msra.mxu0 0.0
      %3046 = vmatpush.msra.mxu0 0.0
      %3047 = vmatpush.msra.mxu0 0.0
      %3048 = vmatpush.msra.mxu0 0.0
      %3049 = vmatpush.msra.mxu0 0.0
      %3050 = vmatpush.msra.mxu0 0.0
      %3051 = vmatpush.msra.mxu0 0.0
      %3052 = vmatpush.msra.mxu0 0.0
      %3053 = vmatpush.msra.mxu0 0.0
      %3054 = vmatpush.msra.mxu0 0.0
      %3055 = vmatpush.msra.mxu0 0.0
      %3056 = vmatpush.msra.mxu0 0.0
      %v3057 = vand.u32 %v3034, 4294901760
      %3058 = vmatpush.msra.mxu0 %v3057
      %v3059 = vand.u32 %v3032, 4294901760
      %3060 = vmatpush.msra.mxu0 %v3059
      %v3061 = vand.u32 %v3038, 4294901760
      %v3062 = vsub.f32 %v3038, %v3061
      %v3063 = vand.u32 %v3062, 4294901760
      %v3064 = vsub.f32 %v3062, %v3063
      %v3065 = vand.u32 %v3064, 4294901760
      %3066 = vmatmul.f32.gmra.mxu0 %v3065
      %v3067 = vpop.f32.mrf.mxu0
      %v3068 = vadd.f32 0.0, %v3067
      %v3069 = vand.u32 %v3041, 4294901760
      %v3070 = vsub.f32 %v3041, %v3069
      %v3071 = vand.u32 %v3070, 4294901760
      %v3072 = vsub.f32 %v3070, %v3071
      %v3073 = vand.u32 %v3072, 4294901760
      %3074 = vmatmul.f32.gmra.mxu0 %v3073
      %v3075 = vpop.f32.mrf.mxu0
      %v3076 = vadd.f32 0.0, %v3075
      %3077 = vdwg.mxu0
      %3078 = vmatpush.msra.mxu0 0.0
      %3079 = vmatpush.msra.mxu0 0.0
      %3080 = vmatpush.msra.mxu0 0.0
      %3081 = vmatpush.msra.mxu0 0.0
      %3082 = vmatpush.msra.mxu0 0.0
      %3083 = vmatpush.msra.mxu0 0.0
      %3084 = vmatpush.msra.mxu0 0.0
      %3085 = vmatpush.msra.mxu0 0.0
      %3086 = vmatpush.msra.mxu0 0.0
      %3087 = vmatpush.msra.mxu0 0.0
      %3088 = vmatpush.msra.mxu0 0.0
      %3089 = vmatpush.msra.mxu0 0.0
      %3090 = vmatpush.msra.mxu0 0.0
      %3091 = vmatpush.msra.mxu0 0.0
      %v3092 = vand.u32 %v3034, 4294901760
      %v3093 = vsub.f32 %v3034, %v3092
      %v3094 = vand.u32 %v3093, 4294901760
      %v3095 = vsub.f32 %v3093, %v3094
      %v3096 = vand.u32 %v3095, 4294901760
      %3097 = vmatpush.msra.mxu0 %v3096
      %v3098 = vand.u32 %v3032, 4294901760
      %v3099 = vsub.f32 %v3032, %v3098
      %v3100 = vand.u32 %v3099, 4294901760
      %v3101 = vsub.f32 %v3099, %v3100
      %v3102 = vand.u32 %v3101, 4294901760
      %3103 = vmatpush.msra.mxu0 %v3102
      %v3104 = vand.u32 %v3038, 4294901760
      %3105 = vmatmul.f32.gmra.mxu0 %v3104
      %v3106 = vpop.f32.mrf.mxu0
      %v3107 = vadd.f32 %v3068, %v3106
      %v3108 = vand.u32 %v3041, 4294901760
      %3109 = vmatmul.f32.gmra.mxu0 %v3108
      %v3110 = vpop.f32.mrf.mxu0
      %v3111 = vadd.f32 %v3076, %v3110
      %3112 = vdwg.mxu0
      %3113 = vmatpush.msra.mxu0 0.0
      %3114 = vmatpush.msra.mxu0 0.0
      %3115 = vmatpush.msra.mxu0 0.0
      %3116 = vmatpush.msra.mxu0 0.0
      %3117 = vmatpush.msra.mxu0 0.0
      %3118 = vmatpush.msra.mxu0 0.0
      %3119 = vmatpush.msra.mxu0 0.0
      %3120 = vmatpush.msra.mxu0 0.0
      %3121 = vmatpush.msra.mxu0 0.0
      %3122 = vmatpush.msra.mxu0 0.0
      %3123 = vmatpush.msra.mxu0 0.0
      %3124 = vmatpush.msra.mxu0 0.0
      %3125 = vmatpush.msra.mxu0 0.0
      %3126 = vmatpush.msra.mxu0 0.0
      %v3127 = vand.u32 %v3034, 4294901760
      %v3128 = vsub.f32 %v3034, %v3127
      %3129 = vmatpush.msra.mxu0 %v3128
      %v3130 = vand.u32 %v3032, 4294901760
      %v3131 = vsub.f32 %v3032, %v3130
      %3132 = vmatpush.msra.mxu0 %v3131
      %v3133 = vand.u32 %v3038, 4294901760
      %v3134 = vsub.f32 %v3038, %v3133
      %3135 = vmatmul.f32.gmra.mxu0 %v3134
      %v3136 = vpop.f32.mrf.mxu0
      %v3137 = vadd.f32 %v3107, %v3136
      %v3138 = vand.u32 %v3041, 4294901760
      %v3139 = vsub.f32 %v3041, %v3138
      %3140 = vmatmul.f32.gmra.mxu0 %v3139
      %v3141 = vpop.f32.mrf.mxu0
      %v3142 = vadd.f32 %v3111, %v3141
      %3143 = vdwg.mxu0
      %3144 = vmatpush.msra.mxu0 0.0
      %3145 = vmatpush.msra.mxu0 0.0
      %3146 = vmatpush.msra.mxu0 0.0
      %3147 = vmatpush.msra.mxu0 0.0
      %3148 = vmatpush.msra.mxu0 0.0
      %3149 = vmatpush.msra.mxu0 0.0
      %3150 = vmatpush.msra.mxu0 0.0
      %3151 = vmatpush.msra.mxu0 0.0
      %3152 = vmatpush.msra.mxu0 0.0
      %3153 = vmatpush.msra.mxu0 0.0
      %3154 = vmatpush.msra.mxu0 0.0
      %3155 = vmatpush.msra.mxu0 0.0
      %3156 = vmatpush.msra.mxu0 0.0
      %3157 = vmatpush.msra.mxu0 0.0
      %v3158 = vand.u32 %v3034, 4294901760
      %3159 = vmatpush.msra.mxu0 %v3158
      %v3160 = vand.u32 %v3032, 4294901760
      %3161 = vmatpush.msra.mxu0 %v3160
      %v3162 = vand.u32 %v3038, 4294901760
      %v3163 = vsub.f32 %v3038, %v3162
      %v3164 = vand.u32 %v3163, 4294901760
      %3165 = vmatmul.f32.gmra.mxu0 %v3164
      %v3166 = vpop.f32.mrf.mxu0
      %v3167 = vadd.f32 %v3137, %v3166
      %v3168 = vand.u32 %v3041, 4294901760
      %v3169 = vsub.f32 %v3041, %v3168
      %v3170 = vand.u32 %v3169, 4294901760
      %3171 = vmatmul.f32.gmra.mxu0 %v3170
      %v3172 = vpop.f32.mrf.mxu0
      %v3173 = vadd.f32 %v3142, %v3172
      %3174 = vdwg.mxu0
      %3175 = vmatpush.msra.mxu0 0.0
      %3176 = vmatpush.msra.mxu0 0.0
      %3177 = vmatpush.msra.mxu0 0.0
      %3178 = vmatpush.msra.mxu0 0.0
      %3179 = vmatpush.msra.mxu0 0.0
      %3180 = vmatpush.msra.mxu0 0.0
      %3181 = vmatpush.msra.mxu0 0.0
      %3182 = vmatpush.msra.mxu0 0.0
      %3183 = vmatpush.msra.mxu0 0.0
      %3184 = vmatpush.msra.mxu0 0.0
      %3185 = vmatpush.msra.mxu0 0.0
      %3186 = vmatpush.msra.mxu0 0.0
      %3187 = vmatpush.msra.mxu0 0.0
      %3188 = vmatpush.msra.mxu0 0.0
      %v3189 = vand.u32 %v3034, 4294901760
      %v3190 = vsub.f32 %v3034, %v3189
      %v3191 = vand.u32 %v3190, 4294901760
      %3192 = vmatpush.msra.mxu0 %v3191
      %v3193 = vand.u32 %v3032, 4294901760
      %v3194 = vsub.f32 %v3032, %v3193
      %v3195 = vand.u32 %v3194, 4294901760
      %3196 = vmatpush.msra.mxu0 %v3195
      %v3197 = vand.u32 %v3038, 4294901760
      %3198 = vmatmul.f32.gmra.mxu0 %v3197
      %v3199 = vpop.f32.mrf.mxu0
      %v3200 = vadd.f32 %v3167, %v3199
      %v3201 = vand.u32 %v3041, 4294901760
      %3202 = vmatmul.f32.gmra.mxu0 %v3201
      %v3203 = vpop.f32.mrf.mxu0
      %v3204 = vadd.f32 %v3173, %v3203
      %3205 = vdwg.mxu0
      %3206 = vmatpush.msra.mxu0 0.0
      %3207 = vmatpush.msra.mxu0 0.0
      %3208 = vmatpush.msra.mxu0 0.0
      %3209 = vmatpush.msra.mxu0 0.0
      %3210 = vmatpush.msra.mxu0 0.0
      %3211 = vmatpush.msra.mxu0 0.0
      %3212 = vmatpush.msra.mxu0 0.0
      %3213 = vmatpush.msra.mxu0 0.0
      %3214 = vmatpush.msra.mxu0 0.0
      %3215 = vmatpush.msra.mxu0 0.0
      %3216 = vmatpush.msra.mxu0 0.0
      %3217 = vmatpush.msra.mxu0 0.0
      %3218 = vmatpush.msra.mxu0 0.0
      %3219 = vmatpush.msra.mxu0 0.0
      %v3220 = vand.u32 %v3034, 4294901760
      %3221 = vmatpush.msra.mxu0 %v3220
      %v3222 = vand.u32 %v3032, 4294901760
      %3223 = vmatpush.msra.mxu0 %v3222
      %v3224 = vand.u32 %v3038, 4294901760
      %3225 = vmatmul.f32.gmra.mxu0 %v3224
      %v3226 = vpop.f32.mrf.mxu0
      %v3227 = vadd.f32 %v3200, %v3226
      %v3228 = vand.u32 %v3041, 4294901760
      %3229 = vmatmul.f32.gmra.mxu0 %v3228
      %v3230 = vpop.f32.mrf.mxu0
      %v3231 = vadd.f32 %v3204, %v3230
      %3232 = vdwg.mxu0
      %v3234 = vsel %vm420, %v3227, 0
      %v3237 = vsel %vm420, %v3231, 0
      %3239 = vmatpush.msra.mxu0 0.0
      %3240 = vmatpush.msra.mxu0 0.0
      %3241 = vmatpush.msra.mxu0 0.0
      %3242 = vmatpush.msra.mxu0 0.0
      %3243 = vmatpush.msra.mxu0 0.0
      %3244 = vmatpush.msra.mxu0 0.0
      %3245 = vmatpush.msra.mxu0 0.0
      %3246 = vmatpush.msra.mxu0 0.0
      %3247 = vmatpush.msra.mxu0 0.0
      %3248 = vmatpush.msra.mxu0 0.0
      %3249 = vmatpush.msra.mxu0 0.0
      %3250 = vmatpush.msra.mxu0 0.0
      %3251 = vmatpush.msra.mxu0 0.0
      %3252 = vmatpush.msra.mxu0 0.0
      %v3253 = vand.u32 %v909, 4294901760
      %3254 = vmatpush.msra.mxu0 %v3253
      %v3255 = vand.u32 %v908, 4294901760
      %3256 = vmatpush.msra.mxu0 %v3255
      %v3257 = vand.u32 %v3234, 4294901760
      %v3258 = vsub.f32 %v3234, %v3257
      %v3259 = vand.u32 %v3258, 4294901760
      %v3260 = vsub.f32 %v3258, %v3259
      %v3261 = vand.u32 %v3260, 4294901760
      %3262 = vmatmul.f32.gmra.mxu0 %v3261
      %v3263 = vpop.f32.mrf.mxu0
      %v3264 = vadd.f32 0.0, %v3263
      %v3265 = vand.u32 %v3237, 4294901760
      %v3266 = vsub.f32 %v3237, %v3265
      %v3267 = vand.u32 %v3266, 4294901760
      %v3268 = vsub.f32 %v3266, %v3267
      %v3269 = vand.u32 %v3268, 4294901760
      %3270 = vmatmul.f32.gmra.mxu0 %v3269
      %v3271 = vpop.f32.mrf.mxu0
      %v3272 = vadd.f32 0.0, %v3271
      %3273 = vdwg.mxu0
      %3274 = vmatpush.msra.mxu0 0.0
      %3275 = vmatpush.msra.mxu0 0.0
      %3276 = vmatpush.msra.mxu0 0.0
      %3277 = vmatpush.msra.mxu0 0.0
      %3278 = vmatpush.msra.mxu0 0.0
      %3279 = vmatpush.msra.mxu0 0.0
      %3280 = vmatpush.msra.mxu0 0.0
      %3281 = vmatpush.msra.mxu0 0.0
      %3282 = vmatpush.msra.mxu0 0.0
      %3283 = vmatpush.msra.mxu0 0.0
      %3284 = vmatpush.msra.mxu0 0.0
      %3285 = vmatpush.msra.mxu0 0.0
      %3286 = vmatpush.msra.mxu0 0.0
      %3287 = vmatpush.msra.mxu0 0.0
      %v3288 = vand.u32 %v909, 4294901760
      %v3289 = vsub.f32 %v909, %v3288
      %v3290 = vand.u32 %v3289, 4294901760
      %v3291 = vsub.f32 %v3289, %v3290
      %v3292 = vand.u32 %v3291, 4294901760
      %3293 = vmatpush.msra.mxu0 %v3292
      %v3294 = vand.u32 %v908, 4294901760
      %v3295 = vsub.f32 %v908, %v3294
      %v3296 = vand.u32 %v3295, 4294901760
      %v3297 = vsub.f32 %v3295, %v3296
      %v3298 = vand.u32 %v3297, 4294901760
      %3299 = vmatpush.msra.mxu0 %v3298
      %v3300 = vand.u32 %v3234, 4294901760
      %3301 = vmatmul.f32.gmra.mxu0 %v3300
      %v3302 = vpop.f32.mrf.mxu0
      %v3303 = vadd.f32 %v3264, %v3302
      %v3304 = vand.u32 %v3237, 4294901760
      %3305 = vmatmul.f32.gmra.mxu0 %v3304
      %v3306 = vpop.f32.mrf.mxu0
      %v3307 = vadd.f32 %v3272, %v3306
      %3308 = vdwg.mxu0
      %3309 = vmatpush.msra.mxu0 0.0
      %3310 = vmatpush.msra.mxu0 0.0
      %3311 = vmatpush.msra.mxu0 0.0
      %3312 = vmatpush.msra.mxu0 0.0
      %3313 = vmatpush.msra.mxu0 0.0
      %3314 = vmatpush.msra.mxu0 0.0
      %3315 = vmatpush.msra.mxu0 0.0
      %3316 = vmatpush.msra.mxu0 0.0
      %3317 = vmatpush.msra.mxu0 0.0
      %3318 = vmatpush.msra.mxu0 0.0
      %3319 = vmatpush.msra.mxu0 0.0
      %3320 = vmatpush.msra.mxu0 0.0
      %3321 = vmatpush.msra.mxu0 0.0
      %3322 = vmatpush.msra.mxu0 0.0
      %v3323 = vand.u32 %v909, 4294901760
      %v3324 = vsub.f32 %v909, %v3323
      %3325 = vmatpush.msra.mxu0 %v3324
      %v3326 = vand.u32 %v908, 4294901760
      %v3327 = vsub.f32 %v908, %v3326
      %3328 = vmatpush.msra.mxu0 %v3327
      %v3329 = vand.u32 %v3234, 4294901760
      %v3330 = vsub.f32 %v3234, %v3329
      %3331 = vmatmul.f32.gmra.mxu0 %v3330
      %v3332 = vpop.f32.mrf.mxu0
      %v3333 = vadd.f32 %v3303, %v3332
      %v3334 = vand.u32 %v3237, 4294901760
      %v3335 = vsub.f32 %v3237, %v3334
      %3336 = vmatmul.f32.gmra.mxu0 %v3335
      %v3337 = vpop.f32.mrf.mxu0
      %v3338 = vadd.f32 %v3307, %v3337
      %3339 = vdwg.mxu0
      %3340 = vmatpush.msra.mxu0 0.0
      %3341 = vmatpush.msra.mxu0 0.0
      %3342 = vmatpush.msra.mxu0 0.0
      %3343 = vmatpush.msra.mxu0 0.0
      %3344 = vmatpush.msra.mxu0 0.0
      %3345 = vmatpush.msra.mxu0 0.0
      %3346 = vmatpush.msra.mxu0 0.0
      %3347 = vmatpush.msra.mxu0 0.0
      %3348 = vmatpush.msra.mxu0 0.0
      %3349 = vmatpush.msra.mxu0 0.0
      %3350 = vmatpush.msra.mxu0 0.0
      %3351 = vmatpush.msra.mxu0 0.0
      %3352 = vmatpush.msra.mxu0 0.0
      %3353 = vmatpush.msra.mxu0 0.0
      %v3354 = vand.u32 %v909, 4294901760
      %3355 = vmatpush.msra.mxu0 %v3354
      %v3356 = vand.u32 %v908, 4294901760
      %3357 = vmatpush.msra.mxu0 %v3356
      %v3358 = vand.u32 %v3234, 4294901760
      %v3359 = vsub.f32 %v3234, %v3358
      %v3360 = vand.u32 %v3359, 4294901760
      %3361 = vmatmul.f32.gmra.mxu0 %v3360
      %v3362 = vpop.f32.mrf.mxu0
      %v3363 = vadd.f32 %v3333, %v3362
      %v3364 = vand.u32 %v3237, 4294901760
      %v3365 = vsub.f32 %v3237, %v3364
      %v3366 = vand.u32 %v3365, 4294901760
      %3367 = vmatmul.f32.gmra.mxu0 %v3366
      %v3368 = vpop.f32.mrf.mxu0
      %v3369 = vadd.f32 %v3338, %v3368
      %3370 = vdwg.mxu0
      %3371 = vmatpush.msra.mxu0 0.0
      %3372 = vmatpush.msra.mxu0 0.0
      %3373 = vmatpush.msra.mxu0 0.0
      %3374 = vmatpush.msra.mxu0 0.0
      %3375 = vmatpush.msra.mxu0 0.0
      %3376 = vmatpush.msra.mxu0 0.0
      %3377 = vmatpush.msra.mxu0 0.0
      %3378 = vmatpush.msra.mxu0 0.0
      %3379 = vmatpush.msra.mxu0 0.0
      %3380 = vmatpush.msra.mxu0 0.0
      %3381 = vmatpush.msra.mxu0 0.0
      %3382 = vmatpush.msra.mxu0 0.0
      %3383 = vmatpush.msra.mxu0 0.0
      %3384 = vmatpush.msra.mxu0 0.0
      %v3385 = vand.u32 %v909, 4294901760
      %v3386 = vsub.f32 %v909, %v3385
      %v3387 = vand.u32 %v3386, 4294901760
      %3388 = vmatpush.msra.mxu0 %v3387
      %v3389 = vand.u32 %v908, 4294901760
      %v3390 = vsub.f32 %v908, %v3389
      %v3391 = vand.u32 %v3390, 4294901760
      %3392 = vmatpush.msra.mxu0 %v3391
      %v3393 = vand.u32 %v3234, 4294901760
      %3394 = vmatmul.f32.gmra.mxu0 %v3393
      %v3395 = vpop.f32.mrf.mxu0
      %v3396 = vadd.f32 %v3363, %v3395
      %v3397 = vand.u32 %v3237, 4294901760
      %3398 = vmatmul.f32.gmra.mxu0 %v3397
      %v3399 = vpop.f32.mrf.mxu0
      %v3400 = vadd.f32 %v3369, %v3399
      %3401 = vdwg.mxu0
      %3402 = vmatpush.msra.mxu0 0.0
      %3403 = vmatpush.msra.mxu0 0.0
      %3404 = vmatpush.msra.mxu0 0.0
      %3405 = vmatpush.msra.mxu0 0.0
      %3406 = vmatpush.msra.mxu0 0.0
      %3407 = vmatpush.msra.mxu0 0.0
      %3408 = vmatpush.msra.mxu0 0.0
      %3409 = vmatpush.msra.mxu0 0.0
      %3410 = vmatpush.msra.mxu0 0.0
      %3411 = vmatpush.msra.mxu0 0.0
      %3412 = vmatpush.msra.mxu0 0.0
      %3413 = vmatpush.msra.mxu0 0.0
      %3414 = vmatpush.msra.mxu0 0.0
      %3415 = vmatpush.msra.mxu0 0.0
      %v3416 = vand.u32 %v909, 4294901760
      %3417 = vmatpush.msra.mxu0 %v3416
      %v3418 = vand.u32 %v908, 4294901760
      %3419 = vmatpush.msra.mxu0 %v3418
      %v3420 = vand.u32 %v3234, 4294901760
      %3421 = vmatmul.f32.gmra.mxu0 %v3420
      %v3422 = vpop.f32.mrf.mxu0
      %v3423 = vadd.f32 %v3396, %v3422
      %v3424 = vand.u32 %v3237, 4294901760
      %3425 = vmatmul.f32.gmra.mxu0 %v3424
      %v3426 = vpop.f32.mrf.mxu0
      %v3427 = vadd.f32 %v3400, %v3426
      %3428 = vdwg.mxu0
      %v3429 = vadd.f32 %v2789, %v3423
      %v3430 = vadd.f32 %v2793, %v3427
      %3431 = vrot.lane.b32.xlu0 %v1259, 80
      %v3432 = vpop.permute.xlu0 %3431
      %3433 = vrot.lane.b32.xlu0 %v1263, 80
      %v3434 = vpop.permute.xlu0 %3433
      %3435 = vrot.lane.b32.xlu0 %v1259, 16
      %v3436 = vpop.permute.xlu0 %3435
      %3437 = vrot.lane.b32.xlu0 %v1263, 16
      %v3438 = vpop.permute.xlu0 %3437
      %v3439 = vsel %vm420, %v3432, 0
      %v3441 = vsel %vm420, %v3434, 0
      %v3443 = vsel %vm420, %v3436, 0
      %v3445 = vsel %vm420, %v3438, 0
      %3447 = vmatpush.xpose.msra.mxu0 0.0
      %3448 = vmatpush.xpose.msra.mxu0 0.0
      %3449 = vmatpush.xpose.msra.mxu0 0.0
      %3450 = vmatpush.xpose.msra.mxu0 0.0
      %3451 = vmatpush.xpose.msra.mxu0 0.0
      %3452 = vmatpush.xpose.msra.mxu0 0.0
      %3453 = vmatpush.xpose.msra.mxu0 0.0
      %3454 = vmatpush.xpose.msra.mxu0 0.0
      %3455 = vmatpush.xpose.msra.mxu0 0.0
      %3456 = vmatpush.xpose.msra.mxu0 0.0
      %3457 = vmatpush.xpose.msra.mxu0 0.0
      %3458 = vmatpush.xpose.msra.mxu0 0.0
      %3459 = vmatpush.xpose.msra.mxu0 0.0
      %3460 = vmatpush.xpose.msra.mxu0 0.0
      %v3461 = vand.u32 %v3445, 4294901760
      %3462 = vmatpush.xpose.msra.mxu0 %v3461
      %v3463 = vand.u32 %v3443, 4294901760
      %3464 = vmatpush.xpose.msra.mxu0 %v3463
      %v3465 = vand.u32 %v3439, 4294901760
      %v3466 = vsub.f32 %v3439, %v3465
      %v3467 = vand.u32 %v3466, 4294901760
      %v3468 = vsub.f32 %v3466, %v3467
      %v3469 = vand.u32 %v3468, 4294901760
      %3470 = vmatmul.f32.gmra.mxu0 %v3469
      %v3471 = vpop.f32.mrf.mxu0
      %v3472 = vadd.f32 0.0, %v3471
      %v3473 = vand.u32 %v3441, 4294901760
      %v3474 = vsub.f32 %v3441, %v3473
      %v3475 = vand.u32 %v3474, 4294901760
      %v3476 = vsub.f32 %v3474, %v3475
      %v3477 = vand.u32 %v3476, 4294901760
      %3478 = vmatmul.f32.gmra.mxu0 %v3477
      %v3479 = vpop.f32.mrf.mxu0
      %v3480 = vadd.f32 0.0, %v3479
      %3481 = vdwg.mxu0
      %3482 = vmatpush.xpose.msra.mxu0 0.0
      %3483 = vmatpush.xpose.msra.mxu0 0.0
      %3484 = vmatpush.xpose.msra.mxu0 0.0
      %3485 = vmatpush.xpose.msra.mxu0 0.0
      %3486 = vmatpush.xpose.msra.mxu0 0.0
      %3487 = vmatpush.xpose.msra.mxu0 0.0
      %3488 = vmatpush.xpose.msra.mxu0 0.0
      %3489 = vmatpush.xpose.msra.mxu0 0.0
      %3490 = vmatpush.xpose.msra.mxu0 0.0
      %3491 = vmatpush.xpose.msra.mxu0 0.0
      %3492 = vmatpush.xpose.msra.mxu0 0.0
      %3493 = vmatpush.xpose.msra.mxu0 0.0
      %3494 = vmatpush.xpose.msra.mxu0 0.0
      %3495 = vmatpush.xpose.msra.mxu0 0.0
      %v3496 = vand.u32 %v3445, 4294901760
      %v3497 = vsub.f32 %v3445, %v3496
      %v3498 = vand.u32 %v3497, 4294901760
      %v3499 = vsub.f32 %v3497, %v3498
      %v3500 = vand.u32 %v3499, 4294901760
      %3501 = vmatpush.xpose.msra.mxu0 %v3500
      %v3502 = vand.u32 %v3443, 4294901760
      %v3503 = vsub.f32 %v3443, %v3502
      %v3504 = vand.u32 %v3503, 4294901760
      %v3505 = vsub.f32 %v3503, %v3504
      %v3506 = vand.u32 %v3505, 4294901760
      %3507 = vmatpush.xpose.msra.mxu0 %v3506
      %v3508 = vand.u32 %v3439, 4294901760
      %3509 = vmatmul.f32.gmra.mxu0 %v3508
      %v3510 = vpop.f32.mrf.mxu0
      %v3511 = vadd.f32 %v3472, %v3510
      %v3512 = vand.u32 %v3441, 4294901760
      %3513 = vmatmul.f32.gmra.mxu0 %v3512
      %v3514 = vpop.f32.mrf.mxu0
      %v3515 = vadd.f32 %v3480, %v3514
      %3516 = vdwg.mxu0
      %3517 = vmatpush.xpose.msra.mxu0 0.0
      %3518 = vmatpush.xpose.msra.mxu0 0.0
      %3519 = vmatpush.xpose.msra.mxu0 0.0
      %3520 = vmatpush.xpose.msra.mxu0 0.0
      %3521 = vmatpush.xpose.msra.mxu0 0.0
      %3522 = vmatpush.xpose.msra.mxu0 0.0
      %3523 = vmatpush.xpose.msra.mxu0 0.0
      %3524 = vmatpush.xpose.msra.mxu0 0.0
      %3525 = vmatpush.xpose.msra.mxu0 0.0
      %3526 = vmatpush.xpose.msra.mxu0 0.0
      %3527 = vmatpush.xpose.msra.mxu0 0.0
      %3528 = vmatpush.xpose.msra.mxu0 0.0
      %3529 = vmatpush.xpose.msra.mxu0 0.0
      %3530 = vmatpush.xpose.msra.mxu0 0.0
      %v3531 = vand.u32 %v3445, 4294901760
      %v3532 = vsub.f32 %v3445, %v3531
      %3533 = vmatpush.xpose.msra.mxu0 %v3532
      %v3534 = vand.u32 %v3443, 4294901760
      %v3535 = vsub.f32 %v3443, %v3534
      %3536 = vmatpush.xpose.msra.mxu0 %v3535
      %v3537 = vand.u32 %v3439, 4294901760
      %v3538 = vsub.f32 %v3439, %v3537
      %3539 = vmatmul.f32.gmra.mxu0 %v3538
      %v3540 = vpop.f32.mrf.mxu0
      %v3541 = vadd.f32 %v3511, %v3540
      %v3542 = vand.u32 %v3441, 4294901760
      %v3543 = vsub.f32 %v3441, %v3542
      %3544 = vmatmul.f32.gmra.mxu0 %v3543
      %v3545 = vpop.f32.mrf.mxu0
      %v3546 = vadd.f32 %v3515, %v3545
      %3547 = vdwg.mxu0
      %3548 = vmatpush.xpose.msra.mxu0 0.0
      %3549 = vmatpush.xpose.msra.mxu0 0.0
      %3550 = vmatpush.xpose.msra.mxu0 0.0
      %3551 = vmatpush.xpose.msra.mxu0 0.0
      %3552 = vmatpush.xpose.msra.mxu0 0.0
      %3553 = vmatpush.xpose.msra.mxu0 0.0
      %3554 = vmatpush.xpose.msra.mxu0 0.0
      %3555 = vmatpush.xpose.msra.mxu0 0.0
      %3556 = vmatpush.xpose.msra.mxu0 0.0
      %3557 = vmatpush.xpose.msra.mxu0 0.0
      %3558 = vmatpush.xpose.msra.mxu0 0.0
      %3559 = vmatpush.xpose.msra.mxu0 0.0
      %3560 = vmatpush.xpose.msra.mxu0 0.0
      %3561 = vmatpush.xpose.msra.mxu0 0.0
      %v3562 = vand.u32 %v3445, 4294901760
      %3563 = vmatpush.xpose.msra.mxu0 %v3562
      %v3564 = vand.u32 %v3443, 4294901760
      %3565 = vmatpush.xpose.msra.mxu0 %v3564
      %v3566 = vand.u32 %v3439, 4294901760
      %v3567 = vsub.f32 %v3439, %v3566
      %v3568 = vand.u32 %v3567, 4294901760
      %3569 = vmatmul.f32.gmra.mxu0 %v3568
      %v3570 = vpop.f32.mrf.mxu0
      %v3571 = vadd.f32 %v3541, %v3570
      %v3572 = vand.u32 %v3441, 4294901760
      %v3573 = vsub.f32 %v3441, %v3572
      %v3574 = vand.u32 %v3573, 4294901760
      %3575 = vmatmul.f32.gmra.mxu0 %v3574
      %v3576 = vpop.f32.mrf.mxu0
      %v3577 = vadd.f32 %v3546, %v3576
      %3578 = vdwg.mxu0
      %3579 = vmatpush.xpose.msra.mxu0 0.0
      %3580 = vmatpush.xpose.msra.mxu0 0.0
      %3581 = vmatpush.xpose.msra.mxu0 0.0
      %3582 = vmatpush.xpose.msra.mxu0 0.0
      %3583 = vmatpush.xpose.msra.mxu0 0.0
      %3584 = vmatpush.xpose.msra.mxu0 0.0
      %3585 = vmatpush.xpose.msra.mxu0 0.0
      %3586 = vmatpush.xpose.msra.mxu0 0.0
      %3587 = vmatpush.xpose.msra.mxu0 0.0
      %3588 = vmatpush.xpose.msra.mxu0 0.0
      %3589 = vmatpush.xpose.msra.mxu0 0.0
      %3590 = vmatpush.xpose.msra.mxu0 0.0
      %3591 = vmatpush.xpose.msra.mxu0 0.0
      %3592 = vmatpush.xpose.msra.mxu0 0.0
      %v3593 = vand.u32 %v3445, 4294901760
      %v3594 = vsub.f32 %v3445, %v3593
      %v3595 = vand.u32 %v3594, 4294901760
      %3596 = vmatpush.xpose.msra.mxu0 %v3595
      %v3597 = vand.u32 %v3443, 4294901760
      %v3598 = vsub.f32 %v3443, %v3597
      %v3599 = vand.u32 %v3598, 4294901760
      %3600 = vmatpush.xpose.msra.mxu0 %v3599
      %v3601 = vand.u32 %v3439, 4294901760
      %3602 = vmatmul.f32.gmra.mxu0 %v3601
      %v3603 = vpop.f32.mrf.mxu0
      %v3604 = vadd.f32 %v3571, %v3603
      %v3605 = vand.u32 %v3441, 4294901760
      %3606 = vmatmul.f32.gmra.mxu0 %v3605
      %v3607 = vpop.f32.mrf.mxu0
      %v3608 = vadd.f32 %v3577, %v3607
      %3609 = vdwg.mxu0
      %3610 = vmatpush.xpose.msra.mxu0 0.0
      %3611 = vmatpush.xpose.msra.mxu0 0.0
      %3612 = vmatpush.xpose.msra.mxu0 0.0
      %3613 = vmatpush.xpose.msra.mxu0 0.0
      %3614 = vmatpush.xpose.msra.mxu0 0.0
      %3615 = vmatpush.xpose.msra.mxu0 0.0
      %3616 = vmatpush.xpose.msra.mxu0 0.0
      %3617 = vmatpush.xpose.msra.mxu0 0.0
      %3618 = vmatpush.xpose.msra.mxu0 0.0
      %3619 = vmatpush.xpose.msra.mxu0 0.0
      %3620 = vmatpush.xpose.msra.mxu0 0.0
      %3621 = vmatpush.xpose.msra.mxu0 0.0
      %3622 = vmatpush.xpose.msra.mxu0 0.0
      %3623 = vmatpush.xpose.msra.mxu0 0.0
      %v3624 = vand.u32 %v3445, 4294901760
      %3625 = vmatpush.xpose.msra.mxu0 %v3624
      %v3626 = vand.u32 %v3443, 4294901760
      %3627 = vmatpush.xpose.msra.mxu0 %v3626
      %v3628 = vand.u32 %v3439, 4294901760
      %3629 = vmatmul.f32.gmra.mxu0 %v3628
      %v3630 = vpop.f32.mrf.mxu0
      %v3631 = vadd.f32 %v3604, %v3630
      %v3632 = vand.u32 %v3441, 4294901760
      %3633 = vmatmul.f32.gmra.mxu0 %v3632
      %v3634 = vpop.f32.mrf.mxu0
      %v3635 = vadd.f32 %v3608, %v3634
      %3636 = vdwg.mxu0
      %v3637 = vmul.f32 %v3631, 0.25
      %v3638 = vmul.f32 %v3635, 0.25
      %v3639 = vsel %vm420, %v3637, -inf
      %3640 = vmax.xlane.f32.xlu0 %v3639
      %v3641 = vpop.xlane.xlu0 %3640
      %v3642 = vsel %vm420, %v3638, -inf
      %3643 = vmax.xlane.f32.xlu0 %v3642
      %v3644 = vpop.xlane.xlu0 %3643
      %v3645 = vsub.f32 %v3637, %v3641
      %v3646 = vsub.f32 %v3638, %v3644
      %v3647 = vmul.f32 %v3645, 1.442695
      %v3648 = vpow.pop %v3647
      %v3649 = vmul.f32 %v3646, 1.442695
      %v3650 = vpow.pop %v3649
      %v3651 = vsel %vm420, %v3648, 0.0
      %3652 = vadd.xlane.f32.xlu0 %v3651
      %v3653 = vpop.xlane.xlu0 %3652
      %v3654 = vsel %vm420, %v3650, 0.0
      %3655 = vadd.xlane.f32.xlu0 %v3654
      %v3656 = vpop.xlane.xlu0 %3655
      %v3657 = vrcp.pop %v3653
      %v3658 = vrcp.pop %v3656
      %v3659 = vmul.f32 %v3653, %v3657
      %v3660 = vmul.f32 %v3656, %v3658
      %v3661 = vsub.f32 2.0, %v3659
      %v3662 = vsub.f32 2.0, %v3660
      %v3663 = vmul.f32 %v3657, %v3661
      %v3664 = vmul.f32 %v3658, %v3662
      %v3665 = vmul.f32 %v3648, %v3663
      %v3666 = vmul.f32 %v3650, %v3664
      %3667 = vrot.lane.b32.xlu0 %v1527, 80
      %v3668 = vpop.permute.xlu0 %3667
      %3669 = vrot.lane.b32.xlu0 %v1531, 80
      %v3670 = vpop.permute.xlu0 %3669
      %v3674 = vsel %vm420, %v3665, 0
      %v3677 = vsel %vm420, %v3666, 0
      %3679 = vmatpush.msra.mxu0 0.0
      %3680 = vmatpush.msra.mxu0 0.0
      %3681 = vmatpush.msra.mxu0 0.0
      %3682 = vmatpush.msra.mxu0 0.0
      %3683 = vmatpush.msra.mxu0 0.0
      %3684 = vmatpush.msra.mxu0 0.0
      %3685 = vmatpush.msra.mxu0 0.0
      %3686 = vmatpush.msra.mxu0 0.0
      %3687 = vmatpush.msra.mxu0 0.0
      %3688 = vmatpush.msra.mxu0 0.0
      %3689 = vmatpush.msra.mxu0 0.0
      %3690 = vmatpush.msra.mxu0 0.0
      %3691 = vmatpush.msra.mxu0 0.0
      %3692 = vmatpush.msra.mxu0 0.0
      %v3693 = vand.u32 %v3670, 4294901760
      %3694 = vmatpush.msra.mxu0 %v3693
      %v3695 = vand.u32 %v3668, 4294901760
      %3696 = vmatpush.msra.mxu0 %v3695
      %v3697 = vand.u32 %v3674, 4294901760
      %v3698 = vsub.f32 %v3674, %v3697
      %v3699 = vand.u32 %v3698, 4294901760
      %v3700 = vsub.f32 %v3698, %v3699
      %v3701 = vand.u32 %v3700, 4294901760
      %3702 = vmatmul.f32.gmra.mxu0 %v3701
      %v3703 = vpop.f32.mrf.mxu0
      %v3704 = vadd.f32 0.0, %v3703
      %v3705 = vand.u32 %v3677, 4294901760
      %v3706 = vsub.f32 %v3677, %v3705
      %v3707 = vand.u32 %v3706, 4294901760
      %v3708 = vsub.f32 %v3706, %v3707
      %v3709 = vand.u32 %v3708, 4294901760
      %3710 = vmatmul.f32.gmra.mxu0 %v3709
      %v3711 = vpop.f32.mrf.mxu0
      %v3712 = vadd.f32 0.0, %v3711
      %3713 = vdwg.mxu0
      %3714 = vmatpush.msra.mxu0 0.0
      %3715 = vmatpush.msra.mxu0 0.0
      %3716 = vmatpush.msra.mxu0 0.0
      %3717 = vmatpush.msra.mxu0 0.0
      %3718 = vmatpush.msra.mxu0 0.0
      %3719 = vmatpush.msra.mxu0 0.0
      %3720 = vmatpush.msra.mxu0 0.0
      %3721 = vmatpush.msra.mxu0 0.0
      %3722 = vmatpush.msra.mxu0 0.0
      %3723 = vmatpush.msra.mxu0 0.0
      %3724 = vmatpush.msra.mxu0 0.0
      %3725 = vmatpush.msra.mxu0 0.0
      %3726 = vmatpush.msra.mxu0 0.0
      %3727 = vmatpush.msra.mxu0 0.0
      %v3728 = vand.u32 %v3670, 4294901760
      %v3729 = vsub.f32 %v3670, %v3728
      %v3730 = vand.u32 %v3729, 4294901760
      %v3731 = vsub.f32 %v3729, %v3730
      %v3732 = vand.u32 %v3731, 4294901760
      %3733 = vmatpush.msra.mxu0 %v3732
      %v3734 = vand.u32 %v3668, 4294901760
      %v3735 = vsub.f32 %v3668, %v3734
      %v3736 = vand.u32 %v3735, 4294901760
      %v3737 = vsub.f32 %v3735, %v3736
      %v3738 = vand.u32 %v3737, 4294901760
      %3739 = vmatpush.msra.mxu0 %v3738
      %v3740 = vand.u32 %v3674, 4294901760
      %3741 = vmatmul.f32.gmra.mxu0 %v3740
      %v3742 = vpop.f32.mrf.mxu0
      %v3743 = vadd.f32 %v3704, %v3742
      %v3744 = vand.u32 %v3677, 4294901760
      %3745 = vmatmul.f32.gmra.mxu0 %v3744
      %v3746 = vpop.f32.mrf.mxu0
      %v3747 = vadd.f32 %v3712, %v3746
      %3748 = vdwg.mxu0
      %3749 = vmatpush.msra.mxu0 0.0
      %3750 = vmatpush.msra.mxu0 0.0
      %3751 = vmatpush.msra.mxu0 0.0
      %3752 = vmatpush.msra.mxu0 0.0
      %3753 = vmatpush.msra.mxu0 0.0
      %3754 = vmatpush.msra.mxu0 0.0
      %3755 = vmatpush.msra.mxu0 0.0
      %3756 = vmatpush.msra.mxu0 0.0
      %3757 = vmatpush.msra.mxu0 0.0
      %3758 = vmatpush.msra.mxu0 0.0
      %3759 = vmatpush.msra.mxu0 0.0
      %3760 = vmatpush.msra.mxu0 0.0
      %3761 = vmatpush.msra.mxu0 0.0
      %3762 = vmatpush.msra.mxu0 0.0
      %v3763 = vand.u32 %v3670, 4294901760
      %v3764 = vsub.f32 %v3670, %v3763
      %3765 = vmatpush.msra.mxu0 %v3764
      %v3766 = vand.u32 %v3668, 4294901760
      %v3767 = vsub.f32 %v3668, %v3766
      %3768 = vmatpush.msra.mxu0 %v3767
      %v3769 = vand.u32 %v3674, 4294901760
      %v3770 = vsub.f32 %v3674, %v3769
      %3771 = vmatmul.f32.gmra.mxu0 %v3770
      %v3772 = vpop.f32.mrf.mxu0
      %v3773 = vadd.f32 %v3743, %v3772
      %v3774 = vand.u32 %v3677, 4294901760
      %v3775 = vsub.f32 %v3677, %v3774
      %3776 = vmatmul.f32.gmra.mxu0 %v3775
      %v3777 = vpop.f32.mrf.mxu0
      %v3778 = vadd.f32 %v3747, %v3777
      %3779 = vdwg.mxu0
      %3780 = vmatpush.msra.mxu0 0.0
      %3781 = vmatpush.msra.mxu0 0.0
      %3782 = vmatpush.msra.mxu0 0.0
      %3783 = vmatpush.msra.mxu0 0.0
      %3784 = vmatpush.msra.mxu0 0.0
      %3785 = vmatpush.msra.mxu0 0.0
      %3786 = vmatpush.msra.mxu0 0.0
      %3787 = vmatpush.msra.mxu0 0.0
      %3788 = vmatpush.msra.mxu0 0.0
      %3789 = vmatpush.msra.mxu0 0.0
      %3790 = vmatpush.msra.mxu0 0.0
      %3791 = vmatpush.msra.mxu0 0.0
      %3792 = vmatpush.msra.mxu0 0.0
      %3793 = vmatpush.msra.mxu0 0.0
      %v3794 = vand.u32 %v3670, 4294901760
      %3795 = vmatpush.msra.mxu0 %v3794
      %v3796 = vand.u32 %v3668, 4294901760
      %3797 = vmatpush.msra.mxu0 %v3796
      %v3798 = vand.u32 %v3674, 4294901760
      %v3799 = vsub.f32 %v3674, %v3798
      %v3800 = vand.u32 %v3799, 4294901760
      %3801 = vmatmul.f32.gmra.mxu0 %v3800
      %v3802 = vpop.f32.mrf.mxu0
      %v3803 = vadd.f32 %v3773, %v3802
      %v3804 = vand.u32 %v3677, 4294901760
      %v3805 = vsub.f32 %v3677, %v3804
      %v3806 = vand.u32 %v3805, 4294901760
      %3807 = vmatmul.f32.gmra.mxu0 %v3806
      %v3808 = vpop.f32.mrf.mxu0
      %v3809 = vadd.f32 %v3778, %v3808
      %3810 = vdwg.mxu0
      %3811 = vmatpush.msra.mxu0 0.0
      %3812 = vmatpush.msra.mxu0 0.0
      %3813 = vmatpush.msra.mxu0 0.0
      %3814 = vmatpush.msra.mxu0 0.0
      %3815 = vmatpush.msra.mxu0 0.0
      %3816 = vmatpush.msra.mxu0 0.0
      %3817 = vmatpush.msra.mxu0 0.0
      %3818 = vmatpush.msra.mxu0 0.0
      %3819 = vmatpush.msra.mxu0 0.0
      %3820 = vmatpush.msra.mxu0 0.0
      %3821 = vmatpush.msra.mxu0 0.0
      %3822 = vmatpush.msra.mxu0 0.0
      %3823 = vmatpush.msra.mxu0 0.0
      %3824 = vmatpush.msra.mxu0 0.0
      %v3825 = vand.u32 %v3670, 4294901760
      %v3826 = vsub.f32 %v3670, %v3825
      %v3827 = vand.u32 %v3826, 4294901760
      %3828 = vmatpush.msra.mxu0 %v3827
      %v3829 = vand.u32 %v3668, 4294901760
      %v3830 = vsub.f32 %v3668, %v3829
      %v3831 = vand.u32 %v3830, 4294901760
      %3832 = vmatpush.msra.mxu0 %v3831
      %v3833 = vand.u32 %v3674, 4294901760
      %3834 = vmatmul.f32.gmra.mxu0 %v3833
      %v3835 = vpop.f32.mrf.mxu0
      %v3836 = vadd.f32 %v3803, %v3835
      %v3837 = vand.u32 %v3677, 4294901760
      %3838 = vmatmul.f32.gmra.mxu0 %v3837
      %v3839 = vpop.f32.mrf.mxu0
      %v3840 = vadd.f32 %v3809, %v3839
      %3841 = vdwg.mxu0
      %3842 = vmatpush.msra.mxu0 0.0
      %3843 = vmatpush.msra.mxu0 0.0
      %3844 = vmatpush.msra.mxu0 0.0
      %3845 = vmatpush.msra.mxu0 0.0
      %3846 = vmatpush.msra.mxu0 0.0
      %3847 = vmatpush.msra.mxu0 0.0
      %3848 = vmatpush.msra.mxu0 0.0
      %3849 = vmatpush.msra.mxu0 0.0
      %3850 = vmatpush.msra.mxu0 0.0
      %3851 = vmatpush.msra.mxu0 0.0
      %3852 = vmatpush.msra.mxu0 0.0
      %3853 = vmatpush.msra.mxu0 0.0
      %3854 = vmatpush.msra.mxu0 0.0
      %3855 = vmatpush.msra.mxu0 0.0
      %v3856 = vand.u32 %v3670, 4294901760
      %3857 = vmatpush.msra.mxu0 %v3856
      %v3858 = vand.u32 %v3668, 4294901760
      %3859 = vmatpush.msra.mxu0 %v3858
      %v3860 = vand.u32 %v3674, 4294901760
      %3861 = vmatmul.f32.gmra.mxu0 %v3860
      %v3862 = vpop.f32.mrf.mxu0
      %v3863 = vadd.f32 %v3836, %v3862
      %v3864 = vand.u32 %v3677, 4294901760
      %3865 = vmatmul.f32.gmra.mxu0 %v3864
      %v3866 = vpop.f32.mrf.mxu0
      %v3867 = vadd.f32 %v3840, %v3866
      %3868 = vdwg.mxu0
      %v3870 = vsel %vm420, %v3863, 0
      %v3873 = vsel %vm420, %v3867, 0
      %3875 = vmatpush.msra.mxu0 0.0
      %3876 = vmatpush.msra.mxu0 0.0
      %3877 = vmatpush.msra.mxu0 0.0
      %3878 = vmatpush.msra.mxu0 0.0
      %3879 = vmatpush.msra.mxu0 0.0
      %3880 = vmatpush.msra.mxu0 0.0
      %3881 = vmatpush.msra.mxu0 0.0
      %3882 = vmatpush.msra.mxu0 0.0
      %3883 = vmatpush.msra.mxu0 0.0
      %3884 = vmatpush.msra.mxu0 0.0
      %3885 = vmatpush.msra.mxu0 0.0
      %3886 = vmatpush.msra.mxu0 0.0
      %3887 = vmatpush.msra.mxu0 0.0
      %3888 = vmatpush.msra.mxu0 0.0
      %v3889 = vand.u32 %v911, 4294901760
      %3890 = vmatpush.msra.mxu0 %v3889
      %v3891 = vand.u32 %v910, 4294901760
      %3892 = vmatpush.msra.mxu0 %v3891
      %v3893 = vand.u32 %v3870, 4294901760
      %v3894 = vsub.f32 %v3870, %v3893
      %v3895 = vand.u32 %v3894, 4294901760
      %v3896 = vsub.f32 %v3894, %v3895
      %v3897 = vand.u32 %v3896, 4294901760
      %3898 = vmatmul.f32.gmra.mxu0 %v3897
      %v3899 = vpop.f32.mrf.mxu0
      %v3900 = vadd.f32 0.0, %v3899
      %v3901 = vand.u32 %v3873, 4294901760
      %v3902 = vsub.f32 %v3873, %v3901
      %v3903 = vand.u32 %v3902, 4294901760
      %v3904 = vsub.f32 %v3902, %v3903
      %v3905 = vand.u32 %v3904, 4294901760
      %3906 = vmatmul.f32.gmra.mxu0 %v3905
      %v3907 = vpop.f32.mrf.mxu0
      %v3908 = vadd.f32 0.0, %v3907
      %3909 = vdwg.mxu0
      %3910 = vmatpush.msra.mxu0 0.0
      %3911 = vmatpush.msra.mxu0 0.0
      %3912 = vmatpush.msra.mxu0 0.0
      %3913 = vmatpush.msra.mxu0 0.0
      %3914 = vmatpush.msra.mxu0 0.0
      %3915 = vmatpush.msra.mxu0 0.0
      %3916 = vmatpush.msra.mxu0 0.0
      %3917 = vmatpush.msra.mxu0 0.0
      %3918 = vmatpush.msra.mxu0 0.0
      %3919 = vmatpush.msra.mxu0 0.0
      %3920 = vmatpush.msra.mxu0 0.0
      %3921 = vmatpush.msra.mxu0 0.0
      %3922 = vmatpush.msra.mxu0 0.0
      %3923 = vmatpush.msra.mxu0 0.0
      %v3924 = vand.u32 %v911, 4294901760
      %v3925 = vsub.f32 %v911, %v3924
      %v3926 = vand.u32 %v3925, 4294901760
      %v3927 = vsub.f32 %v3925, %v3926
      %v3928 = vand.u32 %v3927, 4294901760
      %3929 = vmatpush.msra.mxu0 %v3928
      %v3930 = vand.u32 %v910, 4294901760
      %v3931 = vsub.f32 %v910, %v3930
      %v3932 = vand.u32 %v3931, 4294901760
      %v3933 = vsub.f32 %v3931, %v3932
      %v3934 = vand.u32 %v3933, 4294901760
      %3935 = vmatpush.msra.mxu0 %v3934
      %v3936 = vand.u32 %v3870, 4294901760
      %3937 = vmatmul.f32.gmra.mxu0 %v3936
      %v3938 = vpop.f32.mrf.mxu0
      %v3939 = vadd.f32 %v3900, %v3938
      %v3940 = vand.u32 %v3873, 4294901760
      %3941 = vmatmul.f32.gmra.mxu0 %v3940
      %v3942 = vpop.f32.mrf.mxu0
      %v3943 = vadd.f32 %v3908, %v3942
      %3944 = vdwg.mxu0
      %3945 = vmatpush.msra.mxu0 0.0
      %3946 = vmatpush.msra.mxu0 0.0
      %3947 = vmatpush.msra.mxu0 0.0
      %3948 = vmatpush.msra.mxu0 0.0
      %3949 = vmatpush.msra.mxu0 0.0
      %3950 = vmatpush.msra.mxu0 0.0
      %3951 = vmatpush.msra.mxu0 0.0
      %3952 = vmatpush.msra.mxu0 0.0
      %3953 = vmatpush.msra.mxu0 0.0
      %3954 = vmatpush.msra.mxu0 0.0
      %3955 = vmatpush.msra.mxu0 0.0
      %3956 = vmatpush.msra.mxu0 0.0
      %3957 = vmatpush.msra.mxu0 0.0
      %3958 = vmatpush.msra.mxu0 0.0
      %v3959 = vand.u32 %v911, 4294901760
      %v3960 = vsub.f32 %v911, %v3959
      %3961 = vmatpush.msra.mxu0 %v3960
      %v3962 = vand.u32 %v910, 4294901760
      %v3963 = vsub.f32 %v910, %v3962
      %3964 = vmatpush.msra.mxu0 %v3963
      %v3965 = vand.u32 %v3870, 4294901760
      %v3966 = vsub.f32 %v3870, %v3965
      %3967 = vmatmul.f32.gmra.mxu0 %v3966
      %v3968 = vpop.f32.mrf.mxu0
      %v3969 = vadd.f32 %v3939, %v3968
      %v3970 = vand.u32 %v3873, 4294901760
      %v3971 = vsub.f32 %v3873, %v3970
      %3972 = vmatmul.f32.gmra.mxu0 %v3971
      %v3973 = vpop.f32.mrf.mxu0
      %v3974 = vadd.f32 %v3943, %v3973
      %3975 = vdwg.mxu0
      %3976 = vmatpush.msra.mxu0 0.0
      %3977 = vmatpush.msra.mxu0 0.0
      %3978 = vmatpush.msra.mxu0 0.0
      %3979 = vmatpush.msra.mxu0 0.0
      %3980 = vmatpush.msra.mxu0 0.0
      %3981 = vmatpush.msra.mxu0 0.0
      %3982 = vmatpush.msra.mxu0 0.0
      %3983 = vmatpush.msra.mxu0 0.0
      %3984 = vmatpush.msra.mxu0 0.0
      %3985 = vmatpush.msra.mxu0 0.0
      %3986 = vmatpush.msra.mxu0 0.0
      %3987 = vmatpush.msra.mxu0 0.0
      %3988 = vmatpush.msra.mxu0 0.0
      %3989 = vmatpush.msra.mxu0 0.0
      %v3990 = vand.u32 %v911, 4294901760
      %3991 = vmatpush.msra.mxu0 %v3990
      %v3992 = vand.u32 %v910, 4294901760
      %3993 = vmatpush.msra.mxu0 %v3992
      %v3994 = vand.u32 %v3870, 4294901760
      %v3995 = vsub.f32 %v3870, %v3994
      %v3996 = vand.u32 %v3995, 4294901760
      %3997 = vmatmul.f32.gmra.mxu0 %v3996
      %v3998 = vpop.f32.mrf.mxu0
      %v3999 = vadd.f32 %v3969, %v3998
      %v4000 = vand.u32 %v3873, 4294901760
      %v4001 = vsub.f32 %v3873, %v4000
      %v4002 = vand.u32 %v4001, 4294901760
      %4003 = vmatmul.f32.gmra.mxu0 %v4002
      %v4004 = vpop.f32.mrf.mxu0
      %v4005 = vadd.f32 %v3974, %v4004
      %4006 = vdwg.mxu0
      %4007 = vmatpush.msra.mxu0 0.0
      %4008 = vmatpush.msra.mxu0 0.0
      %4009 = vmatpush.msra.mxu0 0.0
      %4010 = vmatpush.msra.mxu0 0.0
      %4011 = vmatpush.msra.mxu0 0.0
      %4012 = vmatpush.msra.mxu0 0.0
      %4013 = vmatpush.msra.mxu0 0.0
      %4014 = vmatpush.msra.mxu0 0.0
      %4015 = vmatpush.msra.mxu0 0.0
      %4016 = vmatpush.msra.mxu0 0.0
      %4017 = vmatpush.msra.mxu0 0.0
      %4018 = vmatpush.msra.mxu0 0.0
      %4019 = vmatpush.msra.mxu0 0.0
      %4020 = vmatpush.msra.mxu0 0.0
      %v4021 = vand.u32 %v911, 4294901760
      %v4022 = vsub.f32 %v911, %v4021
      %v4023 = vand.u32 %v4022, 4294901760
      %4024 = vmatpush.msra.mxu0 %v4023
      %v4025 = vand.u32 %v910, 4294901760
      %v4026 = vsub.f32 %v910, %v4025
      %v4027 = vand.u32 %v4026, 4294901760
      %4028 = vmatpush.msra.mxu0 %v4027
      %v4029 = vand.u32 %v3870, 4294901760
      %4030 = vmatmul.f32.gmra.mxu0 %v4029
      %v4031 = vpop.f32.mrf.mxu0
      %v4032 = vadd.f32 %v3999, %v4031
      %v4033 = vand.u32 %v3873, 4294901760
      %4034 = vmatmul.f32.gmra.mxu0 %v4033
      %v4035 = vpop.f32.mrf.mxu0
      %v4036 = vadd.f32 %v4005, %v4035
      %4037 = vdwg.mxu0
      %4038 = vmatpush.msra.mxu0 0.0
      %4039 = vmatpush.msra.mxu0 0.0
      %4040 = vmatpush.msra.mxu0 0.0
      %4041 = vmatpush.msra.mxu0 0.0
      %4042 = vmatpush.msra.mxu0 0.0
      %4043 = vmatpush.msra.mxu0 0.0
      %4044 = vmatpush.msra.mxu0 0.0
      %4045 = vmatpush.msra.mxu0 0.0
      %4046 = vmatpush.msra.mxu0 0.0
      %4047 = vmatpush.msra.mxu0 0.0
      %4048 = vmatpush.msra.mxu0 0.0
      %4049 = vmatpush.msra.mxu0 0.0
      %4050 = vmatpush.msra.mxu0 0.0
      %4051 = vmatpush.msra.mxu0 0.0
      %v4052 = vand.u32 %v911, 4294901760
      %4053 = vmatpush.msra.mxu0 %v4052
      %v4054 = vand.u32 %v910, 4294901760
      %4055 = vmatpush.msra.mxu0 %v4054
      %v4056 = vand.u32 %v3870, 4294901760
      %4057 = vmatmul.f32.gmra.mxu0 %v4056
      %v4058 = vpop.f32.mrf.mxu0
      %v4059 = vadd.f32 %v4032, %v4058
      %v4060 = vand.u32 %v3873, 4294901760
      %4061 = vmatmul.f32.gmra.mxu0 %v4060
      %v4062 = vpop.f32.mrf.mxu0
      %v4063 = vadd.f32 %v4036, %v4062
      %4064 = vdwg.mxu0
      %v4065 = vadd.f32 %v3429, %v4059
      %v4066 = vadd.f32 %v3430, %v4063
      %v4067 = vadd.f32 %v897, %v4065
      %v4068 = vadd.f32 %v901, %v4066
      %v4069 = vperm.slane %v903, 2
      %v4070 = vadd.f32 %v4067, %v4069
      %v4071 = vadd.f32 %v4068, %v4069
      %v4072 = vsel %vm628, %v4070, 0.0
      %4073 = vadd.xlane.f32.xlu0 %v4072
      %v4074 = vpop.xlane.xlu0 %4073
      %v4075 = vsel %vm628, %v4071, 0.0
      %4076 = vadd.xlane.f32.xlu0 %v4075
      %v4077 = vpop.xlane.xlu0 %4076
      %v4078 = vmul.f32 %v4074, %v924
      %v4079 = vmul.f32 %v4077, %v924
      %v4080 = vsub.f32 %v4070, %v4078
      %v4081 = vsub.f32 %v4071, %v4079
      %v4082 = vmul.f32 %v4080, %v4080
      %v4083 = vmul.f32 %v4081, %v4081
      %v4084 = vsel %vm628, %v4082, 0.0
      %4085 = vadd.xlane.f32.xlu0 %v4084
      %v4086 = vpop.xlane.xlu0 %4085
      %v4087 = vsel %vm628, %v4083, 0.0
      %4088 = vadd.xlane.f32.xlu0 %v4087
      %v4089 = vpop.xlane.xlu0 %4088
      %v4090 = vmul.f32 %v4086, %v924
      %v4091 = vmul.f32 %v4089, %v924
      %v4092 = vadd.f32 %v4090, 1e-05
      %v4093 = vadd.f32 %v4091, 1e-05
      %v4094 = vrsqrt.pop %v4092
      %v4095 = vmul.f32 %v4094, %v4092
      %v4096 = vmul.f32 %v4095, %v4094
      %v4097 = vmul.f32 0.5, %v4096
      %v4098 = vsub.f32 1.5, %v4097
      %v4099 = vmul.f32 %v4094, %v4098
      %vm4100 = vweird.f32 %v4092
      %vm4101 = vweird.f32 %v4094
      %vm4102 = vmor %vm4100, %vm4101
      %v4103 = vsel %vm4102, %v4094, %v4099
      %v4104 = vrsqrt.pop %v4093
      %v4105 = vmul.f32 %v4104, %v4093
      %v4106 = vmul.f32 %v4105, %v4104
      %v4107 = vmul.f32 0.5, %v4106
      %v4108 = vsub.f32 1.5, %v4107
      %v4109 = vmul.f32 %v4104, %v4108
      %vm4110 = vweird.f32 %v4093
      %vm4111 = vweird.f32 %v4104
      %vm4112 = vmor %vm4110, %vm4111
      %v4113 = vsel %vm4112, %v4104, %v4109
      %v4114 = vmul.f32 %v4080, %v4103
      %v4115 = vmul.f32 %v4081, %v4113
      %v4116 = vperm.slane %v903, 3
      %v4117 = vmul.f32 %v4114, %v4116
      %v4118 = vmul.f32 %v4115, %v4116
      %v4119 = vperm.slane %v903, 4
      %v4120 = vadd.f32 %v4117, %v4119
      %v4121 = vadd.f32 %v4118, %v4119
      %v4122 = vld [vmem:[%s8] sm:$0xff]
      %v4123 = vld [vmem:[%s8 + $0x8] sm:$0xff]
      %v4124 = vld [vmem:[%s8 + $0x10] sm:$0xff]
      %v4125 = vld [vmem:[%s8 + $0x18] sm:$0xff]
      %v4126 = vld [vmem:[%s8 + $0x20] sm:$0xff]
      %v4127 = vld [vmem:[%s8 + $0x28] sm:$0xff]
      %v4128 = vld [vmem:[%s8 + $0x30] sm:$0xff]
      %v4129 = vld [vmem:[%s8 + $0x38] sm:$0xff]
      %v4130 = vld [vmem:[%s8 + $0x40] sm:$0xff]
      %v4131 = vld [vmem:[%s8 + $0x48] sm:$0xff]
      %v4132 = vld [vmem:[%s8 + $0x50] sm:$0xff]
      %v4133 = vld [vmem:[%s8 + $0x58] sm:$0xff]
      %v4134 = vld [vmem:[%s8 + $0x60] sm:$0xff]
      %v4135 = vld [vmem:[%s8 + $0x68] sm:$0xff]
      %v4136 = vld [vmem:[%s8 + $0x70] sm:$0xff]
      %v4137 = vld [vmem:[%s8 + $0x78] sm:$0xff]
      %v4138 = vld [vmem:[%s9] sm:$0x3]
      %v4140 = vperm.slane %v4138, 0
      %v4141 = vperm.slane %v4138, 1
      %v4145 = vsel %vm628, %v4120, 0
      %v4148 = vsel %vm628, %v4121, 0
      %4150 = vmatpush.msra.mxu0 0.0
      %4151 = vmatpush.msra.mxu0 0.0
      %4152 = vmatpush.msra.mxu0 0.0
      %4153 = vmatpush.msra.mxu0 0.0
      %4154 = vmatpush.msra.mxu0 0.0
      %4155 = vmatpush.msra.mxu0 0.0
      %4156 = vmatpush.msra.mxu0 0.0
      %4157 = vmatpush.msra.mxu0 0.0
      %v4158 = vand.u32 %v4136, 4294901760
      %4159 = vmatpush.msra.mxu0 %v4158
      %v4160 = vand.u32 %v4134, 4294901760
      %4161 = vmatpush.msra.mxu0 %v4160
      %v4162 = vand.u32 %v4132, 4294901760
      %4163 = vmatpush.msra.mxu0 %v4162
      %v4164 = vand.u32 %v4130, 4294901760
      %4165 = vmatpush.msra.mxu0 %v4164
      %v4166 = vand.u32 %v4128, 4294901760
      %4167 = vmatpush.msra.mxu0 %v4166
      %v4168 = vand.u32 %v4126, 4294901760
      %4169 = vmatpush.msra.mxu0 %v4168
      %v4170 = vand.u32 %v4124, 4294901760
      %4171 = vmatpush.msra.mxu0 %v4170
      %v4172 = vand.u32 %v4122, 4294901760
      %4173 = vmatpush.msra.mxu0 %v4172
      %v4174 = vand.u32 %v4145, 4294901760
      %v4175 = vsub.f32 %v4145, %v4174
      %v4176 = vand.u32 %v4175, 4294901760
      %v4177 = vsub.f32 %v4175, %v4176
      %v4178 = vand.u32 %v4177, 4294901760
      %4179 = vmatmul.f32.gmra.mxu0 %v4178
      %v4180 = vpop.f32.mrf.mxu0
      %v4181 = vadd.f32 %v4140, %v4180
      %v4182 = vand.u32 %v4148, 4294901760
      %v4183 = vsub.f32 %v4148, %v4182
      %v4184 = vand.u32 %v4183, 4294901760
      %v4185 = vsub.f32 %v4183, %v4184
      %v4186 = vand.u32 %v4185, 4294901760
      %4187 = vmatmul.f32.gmra.mxu0 %v4186
      %v4188 = vpop.f32.mrf.mxu0
      %v4189 = vadd.f32 %v4140, %v4188
      %4190 = vdwg.mxu0
      %4191 = vmatpush.msra.mxu0 0.0
      %4192 = vmatpush.msra.mxu0 0.0
      %4193 = vmatpush.msra.mxu0 0.0
      %4194 = vmatpush.msra.mxu0 0.0
      %4195 = vmatpush.msra.mxu0 0.0
      %4196 = vmatpush.msra.mxu0 0.0
      %4197 = vmatpush.msra.mxu0 0.0
      %4198 = vmatpush.msra.mxu0 0.0
      %v4199 = vand.u32 %v4136, 4294901760
      %v4200 = vsub.f32 %v4136, %v4199
      %v4201 = vand.u32 %v4200, 4294901760
      %v4202 = vsub.f32 %v4200, %v4201
      %v4203 = vand.u32 %v4202, 4294901760
      %4204 = vmatpush.msra.mxu0 %v4203
      %v4205 = vand.u32 %v4134, 4294901760
      %v4206 = vsub.f32 %v4134, %v4205
      %v4207 = vand.u32 %v4206, 4294901760
      %v4208 = vsub.f32 %v4206, %v4207
      %v4209 = vand.u32 %v4208, 4294901760
      %4210 = vmatpush.msra.mxu0 %v4209
      %v4211 = vand.u32 %v4132, 4294901760
      %v4212 = vsub.f32 %v4132, %v4211
      %v4213 = vand.u32 %v4212, 4294901760
      %v4214 = vsub.f32 %v4212, %v4213
      %v4215 = vand.u32 %v4214, 4294901760
      %4216 = vmatpush.msra.mxu0 %v4215
      %v4217 = vand.u32 %v4130, 4294901760
      %v4218 = vsub.f32 %v4130, %v4217
      %v4219 = vand.u32 %v4218, 4294901760
      %v4220 = vsub.f32 %v4218, %v4219
      %v4221 = vand.u32 %v4220, 4294901760
      %4222 = vmatpush.msra.mxu0 %v4221
      %v4223 = vand.u32 %v4128, 4294901760
      %v4224 = vsub.f32 %v4128, %v4223
      %v4225 = vand.u32 %v4224, 4294901760
      %v4226 = vsub.f32 %v4224, %v4225
      %v4227 = vand.u32 %v4226, 4294901760
      %4228 = vmatpush.msra.mxu0 %v4227
      %v4229 = vand.u32 %v4126, 4294901760
      %v4230 = vsub.f32 %v4126, %v4229
      %v4231 = vand.u32 %v4230, 4294901760
      %v4232 = vsub.f32 %v4230, %v4231
      %v4233 = vand.u32 %v4232, 4294901760
      %4234 = vmatpush.msra.mxu0 %v4233
      %v4235 = vand.u32 %v4124, 4294901760
      %v4236 = vsub.f32 %v4124, %v4235
      %v4237 = vand.u32 %v4236, 4294901760
      %v4238 = vsub.f32 %v4236, %v4237
      %v4239 = vand.u32 %v4238, 4294901760
      %4240 = vmatpush.msra.mxu0 %v4239
      %v4241 = vand.u32 %v4122, 4294901760
      %v4242 = vsub.f32 %v4122, %v4241
      %v4243 = vand.u32 %v4242, 4294901760
      %v4244 = vsub.f32 %v4242, %v4243
      %v4245 = vand.u32 %v4244, 4294901760
      %4246 = vmatpush.msra.mxu0 %v4245
      %v4247 = vand.u32 %v4145, 4294901760
      %4248 = vmatmul.f32.gmra.mxu0 %v4247
      %v4249 = vpop.f32.mrf.mxu0
      %v4250 = vadd.f32 %v4181, %v4249
      %v4251 = vand.u32 %v4148, 4294901760
      %4252 = vmatmul.f32.gmra.mxu0 %v4251
      %v4253 = vpop.f32.mrf.mxu0
      %v4254 = vadd.f32 %v4189, %v4253
      %4255 = vdwg.mxu0
      %4256 = vmatpush.msra.mxu0 0.0
      %4257 = vmatpush.msra.mxu0 0.0
      %4258 = vmatpush.msra.mxu0 0.0
      %4259 = vmatpush.msra.mxu0 0.0
      %4260 = vmatpush.msra.mxu0 0.0
      %4261 = vmatpush.msra.mxu0 0.0
      %4262 = vmatpush.msra.mxu0 0.0
      %4263 = vmatpush.msra.mxu0 0.0
      %v4264 = vand.u32 %v4136, 4294901760
      %v4265 = vsub.f32 %v4136, %v4264
      %4266 = vmatpush.msra.mxu0 %v4265
      %v4267 = vand.u32 %v4134, 4294901760
      %v4268 = vsub.f32 %v4134, %v4267
      %4269 = vmatpush.msra.mxu0 %v4268
      %v4270 = vand.u32 %v4132, 4294901760
      %v4271 = vsub.f32 %v4132, %v4270
      %4272 = vmatpush.msra.mxu0 %v4271
      %v4273 = vand.u32 %v4130, 4294901760
      %v4274 = vsub.f32 %v4130, %v4273
      %4275 = vmatpush.msra.mxu0 %v4274
      %v4276 = vand.u32 %v4128, 4294901760
      %v4277 = vsub.f32 %v4128, %v4276
      %4278 = vmatpush.msra.mxu0 %v4277
      %v4279 = vand.u32 %v4126, 4294901760
      %v4280 = vsub.f32 %v4126, %v4279
      %4281 = vmatpush.msra.mxu0 %v4280
      %v4282 = vand.u32 %v4124, 4294901760
      %v4283 = vsub.f32 %v4124, %v4282
      %4284 = vmatpush.msra.mxu0 %v4283
      %v4285 = vand.u32 %v4122, 4294901760
      %v4286 = vsub.f32 %v4122, %v4285
      %4287 = vmatpush.msra.mxu0 %v4286
      %v4288 = vand.u32 %v4145, 4294901760
      %v4289 = vsub.f32 %v4145, %v4288
      %4290 = vmatmul.f32.gmra.mxu0 %v4289
      %v4291 = vpop.f32.mrf.mxu0
      %v4292 = vadd.f32 %v4250, %v4291
      %v4293 = vand.u32 %v4148, 4294901760
      %v4294 = vsub.f32 %v4148, %v4293
      %4295 = vmatmul.f32.gmra.mxu0 %v4294
      %v4296 = vpop.f32.mrf.mxu0
      %v4297 = vadd.f32 %v4254, %v4296
      %4298 = vdwg.mxu0
      %4299 = vmatpush.msra.mxu0 0.0
      %4300 = vmatpush.msra.mxu0 0.0
      %4301 = vmatpush.msra.mxu0 0.0
      %4302 = vmatpush.msra.mxu0 0.0
      %4303 = vmatpush.msra.mxu0 0.0
      %4304 = vmatpush.msra.mxu0 0.0
      %4305 = vmatpush.msra.mxu0 0.0
      %4306 = vmatpush.msra.mxu0 0.0
      %v4307 = vand.u32 %v4136, 4294901760
      %4308 = vmatpush.msra.mxu0 %v4307
      %v4309 = vand.u32 %v4134, 4294901760
      %4310 = vmatpush.msra.mxu0 %v4309
      %v4311 = vand.u32 %v4132, 4294901760
      %4312 = vmatpush.msra.mxu0 %v4311
      %v4313 = vand.u32 %v4130, 4294901760
      %4314 = vmatpush.msra.mxu0 %v4313
      %v4315 = vand.u32 %v4128, 4294901760
      %4316 = vmatpush.msra.mxu0 %v4315
      %v4317 = vand.u32 %v4126, 4294901760
      %4318 = vmatpush.msra.mxu0 %v4317
      %v4319 = vand.u32 %v4124, 4294901760
      %4320 = vmatpush.msra.mxu0 %v4319
      %v4321 = vand.u32 %v4122, 4294901760
      %4322 = vmatpush.msra.mxu0 %v4321
      %v4323 = vand.u32 %v4145, 4294901760
      %v4324 = vsub.f32 %v4145, %v4323
      %v4325 = vand.u32 %v4324, 4294901760
      %4326 = vmatmul.f32.gmra.mxu0 %v4325
      %v4327 = vpop.f32.mrf.mxu0
      %v4328 = vadd.f32 %v4292, %v4327
      %v4329 = vand.u32 %v4148, 4294901760
      %v4330 = vsub.f32 %v4148, %v4329
      %v4331 = vand.u32 %v4330, 4294901760
      %4332 = vmatmul.f32.gmra.mxu0 %v4331
      %v4333 = vpop.f32.mrf.mxu0
      %v4334 = vadd.f32 %v4297, %v4333
      %4335 = vdwg.mxu0
      %4336 = vmatpush.msra.mxu0 0.0
      %4337 = vmatpush.msra.mxu0 0.0
      %4338 = vmatpush.msra.mxu0 0.0
      %4339 = vmatpush.msra.mxu0 0.0
      %4340 = vmatpush.msra.mxu0 0.0
      %4341 = vmatpush.msra.mxu0 0.0
      %4342 = vmatpush.msra.mxu0 0.0
      %4343 = vmatpush.msra.mxu0 0.0
      %v4344 = vand.u32 %v4136, 4294901760
      %v4345 = vsub.f32 %v4136, %v4344
      %v4346 = vand.u32 %v4345, 4294901760
      %4347 = vmatpush.msra.mxu0 %v4346
      %v4348 = vand.u32 %v4134, 4294901760
      %v4349 = vsub.f32 %v4134, %v4348
      %v4350 = vand.u32 %v4349, 4294901760
      %4351 = vmatpush.msra.mxu0 %v4350
      %v4352 = vand.u32 %v4132, 4294901760
      %v4353 = vsub.f32 %v4132, %v4352
      %v4354 = vand.u32 %v4353, 4294901760
      %4355 = vmatpush.msra.mxu0 %v4354
      %v4356 = vand.u32 %v4130, 4294901760
      %v4357 = vsub.f32 %v4130, %v4356
      %v4358 = vand.u32 %v4357, 4294901760
      %4359 = vmatpush.msra.mxu0 %v4358
      %v4360 = vand.u32 %v4128, 4294901760
      %v4361 = vsub.f32 %v4128, %v4360
      %v4362 = vand.u32 %v4361, 4294901760
      %4363 = vmatpush.msra.mxu0 %v4362
      %v4364 = vand.u32 %v4126, 4294901760
      %v4365 = vsub.f32 %v4126, %v4364
      %v4366 = vand.u32 %v4365, 4294901760
      %4367 = vmatpush.msra.mxu0 %v4366
      %v4368 = vand.u32 %v4124, 4294901760
      %v4369 = vsub.f32 %v4124, %v4368
      %v4370 = vand.u32 %v4369, 4294901760
      %4371 = vmatpush.msra.mxu0 %v4370
      %v4372 = vand.u32 %v4122, 4294901760
      %v4373 = vsub.f32 %v4122, %v4372
      %v4374 = vand.u32 %v4373, 4294901760
      %4375 = vmatpush.msra.mxu0 %v4374
      %v4376 = vand.u32 %v4145, 4294901760
      %4377 = vmatmul.f32.gmra.mxu0 %v4376
      %v4378 = vpop.f32.mrf.mxu0
      %v4379 = vadd.f32 %v4328, %v4378
      %v4380 = vand.u32 %v4148, 4294901760
      %4381 = vmatmul.f32.gmra.mxu0 %v4380
      %v4382 = vpop.f32.mrf.mxu0
      %v4383 = vadd.f32 %v4334, %v4382
      %4384 = vdwg.mxu0
      %4385 = vmatpush.msra.mxu0 0.0
      %4386 = vmatpush.msra.mxu0 0.0
      %4387 = vmatpush.msra.mxu0 0.0
      %4388 = vmatpush.msra.mxu0 0.0
      %4389 = vmatpush.msra.mxu0 0.0
      %4390 = vmatpush.msra.mxu0 0.0
      %4391 = vmatpush.msra.mxu0 0.0
      %4392 = vmatpush.msra.mxu0 0.0
      %v4393 = vand.u32 %v4136, 4294901760
      %4394 = vmatpush.msra.mxu0 %v4393
      %v4395 = vand.u32 %v4134, 4294901760
      %4396 = vmatpush.msra.mxu0 %v4395
      %v4397 = vand.u32 %v4132, 4294901760
      %4398 = vmatpush.msra.mxu0 %v4397
      %v4399 = vand.u32 %v4130, 4294901760
      %4400 = vmatpush.msra.mxu0 %v4399
      %v4401 = vand.u32 %v4128, 4294901760
      %4402 = vmatpush.msra.mxu0 %v4401
      %v4403 = vand.u32 %v4126, 4294901760
      %4404 = vmatpush.msra.mxu0 %v4403
      %v4405 = vand.u32 %v4124, 4294901760
      %4406 = vmatpush.msra.mxu0 %v4405
      %v4407 = vand.u32 %v4122, 4294901760
      %4408 = vmatpush.msra.mxu0 %v4407
      %v4409 = vand.u32 %v4145, 4294901760
      %4410 = vmatmul.f32.gmra.mxu0 %v4409
      %v4411 = vpop.f32.mrf.mxu0
      %v4412 = vadd.f32 %v4379, %v4411
      %v4413 = vand.u32 %v4148, 4294901760
      %4414 = vmatmul.f32.gmra.mxu0 %v4413
      %v4415 = vpop.f32.mrf.mxu0
      %v4416 = vadd.f32 %v4383, %v4415
      %4417 = vdwg.mxu0
      %4418 = vmatpush.msra.mxu0 0.0
      %4419 = vmatpush.msra.mxu0 0.0
      %4420 = vmatpush.msra.mxu0 0.0
      %4421 = vmatpush.msra.mxu0 0.0
      %4422 = vmatpush.msra.mxu0 0.0
      %4423 = vmatpush.msra.mxu0 0.0
      %4424 = vmatpush.msra.mxu0 0.0
      %4425 = vmatpush.msra.mxu0 0.0
      %v4426 = vand.u32 %v4137, 4294901760
      %4427 = vmatpush.msra.mxu0 %v4426
      %v4428 = vand.u32 %v4135, 4294901760
      %4429 = vmatpush.msra.mxu0 %v4428
      %v4430 = vand.u32 %v4133, 4294901760
      %4431 = vmatpush.msra.mxu0 %v4430
      %v4432 = vand.u32 %v4131, 4294901760
      %4433 = vmatpush.msra.mxu0 %v4432
      %v4434 = vand.u32 %v4129, 4294901760
      %4435 = vmatpush.msra.mxu0 %v4434
      %v4436 = vand.u32 %v4127, 4294901760
      %4437 = vmatpush.msra.mxu0 %v4436
      %v4438 = vand.u32 %v4125, 4294901760
      %4439 = vmatpush.msra.mxu0 %v4438
      %v4440 = vand.u32 %v4123, 4294901760
      %4441 = vmatpush.msra.mxu0 %v4440
      %v4442 = vand.u32 %v4145, 4294901760
      %v4443 = vsub.f32 %v4145, %v4442
      %v4444 = vand.u32 %v4443, 4294901760
      %v4445 = vsub.f32 %v4443, %v4444
      %v4446 = vand.u32 %v4445, 4294901760
      %4447 = vmatmul.f32.gmra.mxu0 %v4446
      %v4448 = vpop.f32.mrf.mxu0
      %v4449 = vadd.f32 %v4141, %v4448
      %v4450 = vand.u32 %v4148, 4294901760
      %v4451 = vsub.f32 %v4148, %v4450
      %v4452 = vand.u32 %v4451, 4294901760
      %v4453 = vsub.f32 %v4451, %v4452
      %v4454 = vand.u32 %v4453, 4294901760
      %4455 = vmatmul.f32.gmra.mxu0 %v4454
      %v4456 = vpop.f32.mrf.mxu0
      %v4457 = vadd.f32 %v4141, %v4456
      %4458 = vdwg.mxu0
      %4459 = vmatpush.msra.mxu0 0.0
      %4460 = vmatpush.msra.mxu0 0.0
      %4461 = vmatpush.msra.mxu0 0.0
      %4462 = vmatpush.msra.mxu0 0.0
      %4463 = vmatpush.msra.mxu0 0.0
      %4464 = vmatpush.msra.mxu0 0.0
      %4465 = vmatpush.msra.mxu0 0.0
      %4466 = vmatpush.msra.mxu0 0.0
      %v4467 = vand.u32 %v4137, 4294901760
      %v4468 = vsub.f32 %v4137, %v4467
      %v4469 = vand.u32 %v4468, 4294901760
      %v4470 = vsub.f32 %v4468, %v4469
      %v4471 = vand.u32 %v4470, 4294901760
      %4472 = vmatpush.msra.mxu0 %v4471
      %v4473 = vand.u32 %v4135, 4294901760
      %v4474 = vsub.f32 %v4135, %v4473
      %v4475 = vand.u32 %v4474, 4294901760
      %v4476 = vsub.f32 %v4474, %v4475
      %v4477 = vand.u32 %v4476, 4294901760
      %4478 = vmatpush.msra.mxu0 %v4477
      %v4479 = vand.u32 %v4133, 4294901760
      %v4480 = vsub.f32 %v4133, %v4479
      %v4481 = vand.u32 %v4480, 4294901760
      %v4482 = vsub.f32 %v4480, %v4481
      %v4483 = vand.u32 %v4482, 4294901760
      %4484 = vmatpush.msra.mxu0 %v4483
      %v4485 = vand.u32 %v4131, 4294901760
      %v4486 = vsub.f32 %v4131, %v4485
      %v4487 = vand.u32 %v4486, 4294901760
      %v4488 = vsub.f32 %v4486, %v4487
      %v4489 = vand.u32 %v4488, 4294901760
      %4490 = vmatpush.msra.mxu0 %v4489
      %v4491 = vand.u32 %v4129, 4294901760
      %v4492 = vsub.f32 %v4129, %v4491
      %v4493 = vand.u32 %v4492, 4294901760
      %v4494 = vsub.f32 %v4492, %v4493
      %v4495 = vand.u32 %v4494, 4294901760
      %4496 = vmatpush.msra.mxu0 %v4495
      %v4497 = vand.u32 %v4127, 4294901760
      %v4498 = vsub.f32 %v4127, %v4497
      %v4499 = vand.u32 %v4498, 4294901760
      %v4500 = vsub.f32 %v4498, %v4499
      %v4501 = vand.u32 %v4500, 4294901760
      %4502 = vmatpush.msra.mxu0 %v4501
      %v4503 = vand.u32 %v4125, 4294901760
      %v4504 = vsub.f32 %v4125, %v4503
      %v4505 = vand.u32 %v4504, 4294901760
      %v4506 = vsub.f32 %v4504, %v4505
      %v4507 = vand.u32 %v4506, 4294901760
      %4508 = vmatpush.msra.mxu0 %v4507
      %v4509 = vand.u32 %v4123, 4294901760
      %v4510 = vsub.f32 %v4123, %v4509
      %v4511 = vand.u32 %v4510, 4294901760
      %v4512 = vsub.f32 %v4510, %v4511
      %v4513 = vand.u32 %v4512, 4294901760
      %4514 = vmatpush.msra.mxu0 %v4513
      %v4515 = vand.u32 %v4145, 4294901760
      %4516 = vmatmul.f32.gmra.mxu0 %v4515
      %v4517 = vpop.f32.mrf.mxu0
      %v4518 = vadd.f32 %v4449, %v4517
      %v4519 = vand.u32 %v4148, 4294901760
      %4520 = vmatmul.f32.gmra.mxu0 %v4519
      %v4521 = vpop.f32.mrf.mxu0
      %v4522 = vadd.f32 %v4457, %v4521
      %4523 = vdwg.mxu0
      %4524 = vmatpush.msra.mxu0 0.0
      %4525 = vmatpush.msra.mxu0 0.0
      %4526 = vmatpush.msra.mxu0 0.0
      %4527 = vmatpush.msra.mxu0 0.0
      %4528 = vmatpush.msra.mxu0 0.0
      %4529 = vmatpush.msra.mxu0 0.0
      %4530 = vmatpush.msra.mxu0 0.0
      %4531 = vmatpush.msra.mxu0 0.0
      %v4532 = vand.u32 %v4137, 4294901760
      %v4533 = vsub.f32 %v4137, %v4532
      %4534 = vmatpush.msra.mxu0 %v4533
      %v4535 = vand.u32 %v4135, 4294901760
      %v4536 = vsub.f32 %v4135, %v4535
      %4537 = vmatpush.msra.mxu0 %v4536
      %v4538 = vand.u32 %v4133, 4294901760
      %v4539 = vsub.f32 %v4133, %v4538
      %4540 = vmatpush.msra.mxu0 %v4539
      %v4541 = vand.u32 %v4131, 4294901760
      %v4542 = vsub.f32 %v4131, %v4541
      %4543 = vmatpush.msra.mxu0 %v4542
      %v4544 = vand.u32 %v4129, 4294901760
      %v4545 = vsub.f32 %v4129, %v4544
      %4546 = vmatpush.msra.mxu0 %v4545
      %v4547 = vand.u32 %v4127, 4294901760
      %v4548 = vsub.f32 %v4127, %v4547
      %4549 = vmatpush.msra.mxu0 %v4548
      %v4550 = vand.u32 %v4125, 4294901760
      %v4551 = vsub.f32 %v4125, %v4550
      %4552 = vmatpush.msra.mxu0 %v4551
      %v4553 = vand.u32 %v4123, 4294901760
      %v4554 = vsub.f32 %v4123, %v4553
      %4555 = vmatpush.msra.mxu0 %v4554
      %v4556 = vand.u32 %v4145, 4294901760
      %v4557 = vsub.f32 %v4145, %v4556
      %4558 = vmatmul.f32.gmra.mxu0 %v4557
      %v4559 = vpop.f32.mrf.mxu0
      %v4560 = vadd.f32 %v4518, %v4559
      %v4561 = vand.u32 %v4148, 4294901760
      %v4562 = vsub.f32 %v4148, %v4561
      %4563 = vmatmul.f32.gmra.mxu0 %v4562
      %v4564 = vpop.f32.mrf.mxu0
      %v4565 = vadd.f32 %v4522, %v4564
      %4566 = vdwg.mxu0
      %4567 = vmatpush.msra.mxu0 0.0
      %4568 = vmatpush.msra.mxu0 0.0
      %4569 = vmatpush.msra.mxu0 0.0
      %4570 = vmatpush.msra.mxu0 0.0
      %4571 = vmatpush.msra.mxu0 0.0
      %4572 = vmatpush.msra.mxu0 0.0
      %4573 = vmatpush.msra.mxu0 0.0
      %4574 = vmatpush.msra.mxu0 0.0
      %v4575 = vand.u32 %v4137, 4294901760
      %4576 = vmatpush.msra.mxu0 %v4575
      %v4577 = vand.u32 %v4135, 4294901760
      %4578 = vmatpush.msra.mxu0 %v4577
      %v4579 = vand.u32 %v4133, 4294901760
      %4580 = vmatpush.msra.mxu0 %v4579
      %v4581 = vand.u32 %v4131, 4294901760
      %4582 = vmatpush.msra.mxu0 %v4581
      %v4583 = vand.u32 %v4129, 4294901760
      %4584 = vmatpush.msra.mxu0 %v4583
      %v4585 = vand.u32 %v4127, 4294901760
      %4586 = vmatpush.msra.mxu0 %v4585
      %v4587 = vand.u32 %v4125, 4294901760
      %4588 = vmatpush.msra.mxu0 %v4587
      %v4589 = vand.u32 %v4123, 4294901760
      %4590 = vmatpush.msra.mxu0 %v4589
      %v4591 = vand.u32 %v4145, 4294901760
      %v4592 = vsub.f32 %v4145, %v4591
      %v4593 = vand.u32 %v4592, 4294901760
      %4594 = vmatmul.f32.gmra.mxu0 %v4593
      %v4595 = vpop.f32.mrf.mxu0
      %v4596 = vadd.f32 %v4560, %v4595
      %v4597 = vand.u32 %v4148, 4294901760
      %v4598 = vsub.f32 %v4148, %v4597
      %v4599 = vand.u32 %v4598, 4294901760
      %4600 = vmatmul.f32.gmra.mxu0 %v4599
      %v4601 = vpop.f32.mrf.mxu0
      %v4602 = vadd.f32 %v4565, %v4601
      %4603 = vdwg.mxu0
      %4604 = vmatpush.msra.mxu0 0.0
      %4605 = vmatpush.msra.mxu0 0.0
      %4606 = vmatpush.msra.mxu0 0.0
      %4607 = vmatpush.msra.mxu0 0.0
      %4608 = vmatpush.msra.mxu0 0.0
      %4609 = vmatpush.msra.mxu0 0.0
      %4610 = vmatpush.msra.mxu0 0.0
      %4611 = vmatpush.msra.mxu0 0.0
      %v4612 = vand.u32 %v4137, 4294901760
      %v4613 = vsub.f32 %v4137, %v4612
      %v4614 = vand.u32 %v4613, 4294901760
      %4615 = vmatpush.msra.mxu0 %v4614
      %v4616 = vand.u32 %v4135, 4294901760
      %v4617 = vsub.f32 %v4135, %v4616
      %v4618 = vand.u32 %v4617, 4294901760
      %4619 = vmatpush.msra.mxu0 %v4618
      %v4620 = vand.u32 %v4133, 4294901760
      %v4621 = vsub.f32 %v4133, %v4620
      %v4622 = vand.u32 %v4621, 4294901760
      %4623 = vmatpush.msra.mxu0 %v4622
      %v4624 = vand.u32 %v4131, 4294901760
      %v4625 = vsub.f32 %v4131, %v4624
      %v4626 = vand.u32 %v4625, 4294901760
      %4627 = vmatpush.msra.mxu0 %v4626
      %v4628 = vand.u32 %v4129, 4294901760
      %v4629 = vsub.f32 %v4129, %v4628
      %v4630 = vand.u32 %v4629, 4294901760
      %4631 = vmatpush.msra.mxu0 %v4630
      %v4632 = vand.u32 %v4127, 4294901760
      %v4633 = vsub.f32 %v4127, %v4632
      %v4634 = vand.u32 %v4633, 4294901760
      %4635 = vmatpush.msra.mxu0 %v4634
      %v4636 = vand.u32 %v4125, 4294901760
      %v4637 = vsub.f32 %v4125, %v4636
      %v4638 = vand.u32 %v4637, 4294901760
      %4639 = vmatpush.msra.mxu0 %v4638
      %v4640 = vand.u32 %v4123, 4294901760
      %v4641 = vsub.f32 %v4123, %v4640
      %v4642 = vand.u32 %v4641, 4294901760
      %4643 = vmatpush.msra.mxu0 %v4642
      %v4644 = vand.u32 %v4145, 4294901760
      %4645 = vmatmul.f32.gmra.mxu0 %v4644
      %v4646 = vpop.f32.mrf.mxu0
      %v4647 = vadd.f32 %v4596, %v4646
      %v4648 = vand.u32 %v4148, 4294901760
      %4649 = vmatmul.f32.gmra.mxu0 %v4648
      %v4650 = vpop.f32.mrf.mxu0
      %v4651 = vadd.f32 %v4602, %v4650
      %4652 = vdwg.mxu0
      %4653 = vmatpush.msra.mxu0 0.0
      %4654 = vmatpush.msra.mxu0 0.0
      %4655 = vmatpush.msra.mxu0 0.0
      %4656 = vmatpush.msra.mxu0 0.0
      %4657 = vmatpush.msra.mxu0 0.0
      %4658 = vmatpush.msra.mxu0 0.0
      %4659 = vmatpush.msra.mxu0 0.0
      %4660 = vmatpush.msra.mxu0 0.0
      %v4661 = vand.u32 %v4137, 4294901760
      %4662 = vmatpush.msra.mxu0 %v4661
      %v4663 = vand.u32 %v4135, 4294901760
      %4664 = vmatpush.msra.mxu0 %v4663
      %v4665 = vand.u32 %v4133, 4294901760
      %4666 = vmatpush.msra.mxu0 %v4665
      %v4667 = vand.u32 %v4131, 4294901760
      %4668 = vmatpush.msra.mxu0 %v4667
      %v4669 = vand.u32 %v4129, 4294901760
      %4670 = vmatpush.msra.mxu0 %v4669
      %v4671 = vand.u32 %v4127, 4294901760
      %4672 = vmatpush.msra.mxu0 %v4671
      %v4673 = vand.u32 %v4125, 4294901760
      %4674 = vmatpush.msra.mxu0 %v4673
      %v4675 = vand.u32 %v4123, 4294901760
      %4676 = vmatpush.msra.mxu0 %v4675
      %v4677 = vand.u32 %v4145, 4294901760
      %4678 = vmatmul.f32.gmra.mxu0 %v4677
      %v4679 = vpop.f32.mrf.mxu0
      %v4680 = vadd.f32 %v4647, %v4679
      %v4681 = vand.u32 %v4148, 4294901760
      %4682 = vmatmul.f32.gmra.mxu0 %v4681
      %v4683 = vpop.f32.mrf.mxu0
      %v4684 = vadd.f32 %v4651, %v4683
      %4685 = vdwg.mxu0
      %vm4686 = vcmp.gt.f32.partialorder %v4412, 0.0
      %vm4687 = vcmp.gt.f32.partialorder %v4680, 0.0
      %vm4688 = vcmp.gt.f32.partialorder %v4416, 0.0
      %vm4689 = vcmp.gt.f32.partialorder %v4684, 0.0
      %v4690 = vmul.f32 %v4412, 0.3
      %v4691 = vmul.f32 %v4680, 0.3
      %v4692 = vmul.f32 %v4416, 0.3
      %v4693 = vmul.f32 %v4684, 0.3
      %v4694 = vsel %vm4686, %v4412, %v4690
      %v4695 = vsel %vm4687, %v4680, %v4691
      %v4696 = vsel %vm4688, %v4416, %v4692
      %v4697 = vsel %vm4689, %v4684, %v4693
      %v4698 = vld [vmem:[%s10] sm:$0xff]
      %v4699 = vld [vmem:[%s10 + $0x8] sm:$0xff]
      %v4700 = vld [vmem:[%s10 + $0x10] sm:$0xff]
      %v4701 = vld [vmem:[%s10 + $0x18] sm:$0xff]
      %v4702 = vld [vmem:[%s10 + $0x20] sm:$0xff]
      %v4703 = vld [vmem:[%s10 + $0x28] sm:$0xff]
      %v4704 = vld [vmem:[%s10 + $0x30] sm:$0xff]
      %v4705 = vld [vmem:[%s10 + $0x38] sm:$0xff]
      %v4706 = vld [vmem:[%s10 + $0x40] sm:$0xff]
      %v4707 = vld [vmem:[%s10 + $0x48] sm:$0xff]
      %v4708 = vld [vmem:[%s10 + $0x50] sm:$0xff]
      %v4709 = vld [vmem:[%s10 + $0x58] sm:$0xff]
      %v4710 = vld [vmem:[%s10 + $0x60] sm:$0xff]
      %v4711 = vld [vmem:[%s10 + $0x68] sm:$0xff]
      %v4712 = vld [vmem:[%s10 + $0x70] sm:$0xff]
      %v4713 = vld [vmem:[%s10 + $0x78] sm:$0xff]
      %v4714 = vld [vmem:[%s10 + $0x80] sm:$0xff]
      %v4715 = vld [vmem:[%s10 + $0x88] sm:$0xff]
      %v4716 = vld [vmem:[%s10 + $0x90] sm:$0xff]
      %v4717 = vld [vmem:[%s10 + $0x98] sm:$0xff]
      %v4718 = vld [vmem:[%s10 + $0xa0] sm:$0xff]
      %v4719 = vld [vmem:[%s10 + $0xa8] sm:$0xff]
      %v4720 = vld [vmem:[%s10 + $0xb0] sm:$0xff]
      %v4721 = vld [vmem:[%s10 + $0xb8] sm:$0xff]
      %v4722 = vld [vmem:[%s10 + $0xc0] sm:$0xff]
      %v4723 = vld [vmem:[%s10 + $0xc8] sm:$0xff]
      %v4724 = vld [vmem:[%s10 + $0xd0] sm:$0xff]
      %v4725 = vld [vmem:[%s10 + $0xd8] sm:$0xff]
      %v4726 = vld [vmem:[%s10 + $0xe0] sm:$0xff]
      %v4727 = vld [vmem:[%s10 + $0xe8] sm:$0xff]
      %v4728 = vld [vmem:[%s10 + $0xf0] sm:$0xff]
      %v4729 = vld [vmem:[%s10 + $0xf8] sm:$0xff]
      %v4730 = vperm.slane %v903, 5
      %v4731 = vand.u32 %v4713, 4294901760
      %4732 = vmatpush.msra.mxu0 %v4731
      %v4733 = vand.u32 %v4712, 4294901760
      %4734 = vmatpush.msra.mxu0 %v4733
      %v4735 = vand.u32 %v4711, 4294901760
      %4736 = vmatpush.msra.mxu0 %v4735
      %v4737 = vand.u32 %v4710, 4294901760
      %4738 = vmatpush.msra.mxu0 %v4737
      %v4739 = vand.u32 %v4709, 4294901760
      %4740 = vmatpush.msra.mxu0 %v4739
      %v4741 = vand.u32 %v4708, 4294901760
      %4742 = vmatpush.msra.mxu0 %v4741
      %v4743 = vand.u32 %v4707, 4294901760
      %4744 = vmatpush.msra.mxu0 %v4743
      %v4745 = vand.u32 %v4706, 4294901760
      %4746 = vmatpush.msra.mxu0 %v4745
      %v4747 = vand.u32 %v4705, 4294901760
      %4748 = vmatpush.msra.mxu0 %v4747
      %v4749 = vand.u32 %v4704, 4294901760
      %4750 = vmatpush.msra.mxu0 %v4749
      %v4751 = vand.u32 %v4703, 4294901760
      %4752 = vmatpush.msra.mxu0 %v4751
      %v4753 = vand.u32 %v4702, 4294901760
      %4754 = vmatpush.msra.mxu0 %v4753
      %v4755 = vand.u32 %v4701, 4294901760
      %4756 = vmatpush.msra.mxu0 %v4755
      %v4757 = vand.u32 %v4700, 4294901760
      %4758 = vmatpush.msra.mxu0 %v4757
      %v4759 = vand.u32 %v4699, 4294901760
      %4760 = vmatpush.msra.mxu0 %v4759
      %v4761 = vand.u32 %v4698, 4294901760
      %4762 = vmatpush.msra.mxu0 %v4761
      %v4763 = vand.u32 %v4694, 4294901760
      %v4764 = vsub.f32 %v4694, %v4763
      %v4765 = vand.u32 %v4764, 4294901760
      %v4766 = vsub.f32 %v4764, %v4765
      %v4767 = vand.u32 %v4766, 4294901760
      %4768 = vmatmul.f32.gmra.mxu0 %v4767
      %v4769 = vpop.f32.mrf.mxu0
      %v4770 = vadd.f32 %v4730, %v4769
      %v4771 = vand.u32 %v4696, 4294901760
      %v4772 = vsub.f32 %v4696, %v4771
      %v4773 = vand.u32 %v4772, 4294901760
      %v4774 = vsub.f32 %v4772, %v4773
      %v4775 = vand.u32 %v4774, 4294901760
      %4776 = vmatmul.f32.gmra.mxu0 %v4775
      %v4777 = vpop.f32.mrf.mxu0
      %v4778 = vadd.f32 %v4730, %v4777
      %4779 = vdwg.mxu0
      %v4780 = vand.u32 %v4713, 4294901760
      %v4781 = vsub.f32 %v4713, %v4780
      %v4782 = vand.u32 %v4781, 4294901760
      %v4783 = vsub.f32 %v4781, %v4782
      %v4784 = vand.u32 %v4783, 4294901760
      %4785 = vmatpush.msra.mxu0 %v4784
      %v4786 = vand.u32 %v4712, 4294901760
      %v4787 = vsub.f32 %v4712, %v4786
      %v4788 = vand.u32 %v4787, 4294901760
      %v4789 = vsub.f32 %v4787, %v4788
      %v4790 = vand.u32 %v4789, 4294901760
      %4791 = vmatpush.msra.mxu0 %v4790
      %v4792 = vand.u32 %v4711, 4294901760
      %v4793 = vsub.f32 %v4711, %v4792
      %v4794 = vand.u32 %v4793, 4294901760
      %v4795 = vsub.f32 %v4793, %v4794
      %v4796 = vand.u32 %v4795, 4294901760
      %4797 = vmatpush.msra.mxu0 %v4796
      %v4798 = vand.u32 %v4710, 4294901760
      %v4799 = vsub.f32 %v4710, %v4798
      %v4800 = vand.u32 %v4799, 4294901760
      %v4801 = vsub.f32 %v4799, %v4800
      %v4802 = vand.u32 %v4801, 4294901760
      %4803 = vmatpush.msra.mxu0 %v4802
      %v4804 = vand.u32 %v4709, 4294901760
      %v4805 = vsub.f32 %v4709, %v4804
      %v4806 = vand.u32 %v4805, 4294901760
      %v4807 = vsub.f32 %v4805, %v4806
      %v4808 = vand.u32 %v4807, 4294901760
      %4809 = vmatpush.msra.mxu0 %v4808
      %v4810 = vand.u32 %v4708, 4294901760
      %v4811 = vsub.f32 %v4708, %v4810
      %v4812 = vand.u32 %v4811, 4294901760
      %v4813 = vsub.f32 %v4811, %v4812
      %v4814 = vand.u32 %v4813, 4294901760
      %4815 = vmatpush.msra.mxu0 %v4814
      %v4816 = vand.u32 %v4707, 4294901760
      %v4817 = vsub.f32 %v4707, %v4816
      %v4818 = vand.u32 %v4817, 4294901760
      %v4819 = vsub.f32 %v4817, %v4818
      %v4820 = vand.u32 %v4819, 4294901760
      %4821 = vmatpush.msra.mxu0 %v4820
      %v4822 = vand.u32 %v4706, 4294901760
      %v4823 = vsub.f32 %v4706, %v4822
      %v4824 = vand.u32 %v4823, 4294901760
      %v4825 = vsub.f32 %v4823, %v4824
      %v4826 = vand.u32 %v4825, 4294901760
      %4827 = vmatpush.msra.mxu0 %v4826
      %v4828 = vand.u32 %v4705, 4294901760
      %v4829 = vsub.f32 %v4705, %v4828
      %v4830 = vand.u32 %v4829, 4294901760
      %v4831 = vsub.f32 %v4829, %v4830
      %v4832 = vand.u32 %v4831, 4294901760
      %4833 = vmatpush.msra.mxu0 %v4832
      %v4834 = vand.u32 %v4704, 4294901760
      %v4835 = vsub.f32 %v4704, %v4834
      %v4836 = vand.u32 %v4835, 4294901760
      %v4837 = vsub.f32 %v4835, %v4836
      %v4838 = vand.u32 %v4837, 4294901760
      %4839 = vmatpush.msra.mxu0 %v4838
      %v4840 = vand.u32 %v4703, 4294901760
      %v4841 = vsub.f32 %v4703, %v4840
      %v4842 = vand.u32 %v4841, 4294901760
      %v4843 = vsub.f32 %v4841, %v4842
      %v4844 = vand.u32 %v4843, 4294901760
      %4845 = vmatpush.msra.mxu0 %v4844
      %v4846 = vand.u32 %v4702, 4294901760
      %v4847 = vsub.f32 %v4702, %v4846
      %v4848 = vand.u32 %v4847, 4294901760
      %v4849 = vsub.f32 %v4847, %v4848
      %v4850 = vand.u32 %v4849, 4294901760
      %4851 = vmatpush.msra.mxu0 %v4850
      %v4852 = vand.u32 %v4701, 4294901760
      %v4853 = vsub.f32 %v4701, %v4852
      %v4854 = vand.u32 %v4853, 4294901760
      %v4855 = vsub.f32 %v4853, %v4854
      %v4856 = vand.u32 %v4855, 4294901760
      %4857 = vmatpush.msra.mxu0 %v4856
      %v4858 = vand.u32 %v4700, 4294901760
      %v4859 = vsub.f32 %v4700, %v4858
      %v4860 = vand.u32 %v4859, 4294901760
      %v4861 = vsub.f32 %v4859, %v4860
      %v4862 = vand.u32 %v4861, 4294901760
      %4863 = vmatpush.msra.mxu0 %v4862
      %v4864 = vand.u32 %v4699, 4294901760
      %v4865 = vsub.f32 %v4699, %v4864
      %v4866 = vand.u32 %v4865, 4294901760
      %v4867 = vsub.f32 %v4865, %v4866
      %v4868 = vand.u32 %v4867, 4294901760
      %4869 = vmatpush.msra.mxu0 %v4868
      %v4870 = vand.u32 %v4698, 4294901760
      %v4871 = vsub.f32 %v4698, %v4870
      %v4872 = vand.u32 %v4871, 4294901760
      %v4873 = vsub.f32 %v4871, %v4872
      %v4874 = vand.u32 %v4873, 4294901760
      %4875 = vmatpush.msra.mxu0 %v4874
      %v4876 = vand.u32 %v4694, 4294901760
      %4877 = vmatmul.f32.gmra.mxu0 %v4876
      %v4878 = vpop.f32.mrf.mxu0
      %v4879 = vadd.f32 %v4770, %v4878
      %v4880 = vand.u32 %v4696, 4294901760
      %4881 = vmatmul.f32.gmra.mxu0 %v4880
      %v4882 = vpop.f32.mrf.mxu0
      %v4883 = vadd.f32 %v4778, %v4882
      %4884 = vdwg.mxu0
      %v4885 = vand.u32 %v4713, 4294901760
      %v4886 = vsub.f32 %v4713, %v4885
      %4887 = vmatpush.msra.mxu0 %v4886
      %v4888 = vand.u32 %v4712, 4294901760
      %v4889 = vsub.f32 %v4712, %v4888
      %4890 = vmatpush.msra.mxu0 %v4889
      %v4891 = vand.u32 %v4711, 4294901760
      %v4892 = vsub.f32 %v4711, %v4891
      %4893 = vmatpush.msra.mxu0 %v4892
      %v4894 = vand.u32 %v4710, 4294901760
      %v4895 = vsub.f32 %v4710, %v4894
      %4896 = vmatpush.msra.mxu0 %v4895
      %v4897 = vand.u32 %v4709, 4294901760
      %v4898 = vsub.f32 %v4709, %v4897
      %4899 = vmatpush.msra.mxu0 %v4898
      %v4900 = vand.u32 %v4708, 4294901760
      %v4901 = vsub.f32 %v4708, %v4900
      %4902 = vmatpush.msra.mxu0 %v4901
      %v4903 = vand.u32 %v4707, 4294901760
      %v4904 = vsub.f32 %v4707, %v4903
      %4905 = vmatpush.msra.mxu0 %v4904
      %v4906 = vand.u32 %v4706, 4294901760
      %v4907 = vsub.f32 %v4706, %v4906
      %4908 = vmatpush.msra.mxu0 %v4907
      %v4909 = vand.u32 %v4705, 4294901760
      %v4910 = vsub.f32 %v4705, %v4909
      %4911 = vmatpush.msra.mxu0 %v4910
      %v4912 = vand.u32 %v4704, 4294901760
      %v4913 = vsub.f32 %v4704, %v4912
      %4914 = vmatpush.msra.mxu0 %v4913
      %v4915 = vand.u32 %v4703, 4294901760
      %v4916 = vsub.f32 %v4703, %v4915
      %4917 = vmatpush.msra.mxu0 %v4916
      %v4918 = vand.u32 %v4702, 4294901760
      %v4919 = vsub.f32 %v4702, %v4918
      %4920 = vmatpush.msra.mxu0 %v4919
      %v4921 = vand.u32 %v4701, 4294901760
      %v4922 = vsub.f32 %v4701, %v4921
      %4923 = vmatpush.msra.mxu0 %v4922
      %v4924 = vand.u32 %v4700, 4294901760
      %v4925 = vsub.f32 %v4700, %v4924
      %4926 = vmatpush.msra.mxu0 %v4925
      %v4927 = vand.u32 %v4699, 4294901760
      %v4928 = vsub.f32 %v4699, %v4927
      %4929 = vmatpush.msra.mxu0 %v4928
      %v4930 = vand.u32 %v4698, 4294901760
      %v4931 = vsub.f32 %v4698, %v4930
      %4932 = vmatpush.msra.mxu0 %v4931
      %v4933 = vand.u32 %v4694, 4294901760
      %v4934 = vsub.f32 %v4694, %v4933
      %4935 = vmatmul.f32.gmra.mxu0 %v4934
      %v4936 = vpop.f32.mrf.mxu0
      %v4937 = vadd.f32 %v4879, %v4936
      %v4938 = vand.u32 %v4696, 4294901760
      %v4939 = vsub.f32 %v4696, %v4938
      %4940 = vmatmul.f32.gmra.mxu0 %v4939
      %v4941 = vpop.f32.mrf.mxu0
      %v4942 = vadd.f32 %v4883, %v4941
      %4943 = vdwg.mxu0
      %v4944 = vand.u32 %v4713, 4294901760
      %4945 = vmatpush.msra.mxu0 %v4944
      %v4946 = vand.u32 %v4712, 4294901760
      %4947 = vmatpush.msra.mxu0 %v4946
      %v4948 = vand.u32 %v4711, 4294901760
      %4949 = vmatpush.msra.mxu0 %v4948
      %v4950 = vand.u32 %v4710, 4294901760
      %4951 = vmatpush.msra.mxu0 %v4950
      %v4952 = vand.u32 %v4709, 4294901760
      %4953 = vmatpush.msra.mxu0 %v4952
      %v4954 = vand.u32 %v4708, 4294901760
      %4955 = vmatpush.msra.mxu0 %v4954
      %v4956 = vand.u32 %v4707, 4294901760
      %4957 = vmatpush.msra.mxu0 %v4956
      %v4958 = vand.u32 %v4706, 4294901760
      %4959 = vmatpush.msra.mxu0 %v4958
      %v4960 = vand.u32 %v4705, 4294901760
      %4961 = vmatpush.msra.mxu0 %v4960
      %v4962 = vand.u32 %v4704, 4294901760
      %4963 = vmatpush.msra.mxu0 %v4962
      %v4964 = vand.u32 %v4703, 4294901760
      %4965 = vmatpush.msra.mxu0 %v4964
      %v4966 = vand.u32 %v4702, 4294901760
      %4967 = vmatpush.msra.mxu0 %v4966
      %v4968 = vand.u32 %v4701, 4294901760
      %4969 = vmatpush.msra.mxu0 %v4968
      %v4970 = vand.u32 %v4700, 4294901760
      %4971 = vmatpush.msra.mxu0 %v4970
      %v4972 = vand.u32 %v4699, 4294901760
      %4973 = vmatpush.msra.mxu0 %v4972
      %v4974 = vand.u32 %v4698, 4294901760
      %4975 = vmatpush.msra.mxu0 %v4974
      %v4976 = vand.u32 %v4694, 4294901760
      %v4977 = vsub.f32 %v4694, %v4976
      %v4978 = vand.u32 %v4977, 4294901760
      %4979 = vmatmul.f32.gmra.mxu0 %v4978
      %v4980 = vpop.f32.mrf.mxu0
      %v4981 = vadd.f32 %v4937, %v4980
      %v4982 = vand.u32 %v4696, 4294901760
      %v4983 = vsub.f32 %v4696, %v4982
      %v4984 = vand.u32 %v4983, 4294901760
      %4985 = vmatmul.f32.gmra.mxu0 %v4984
      %v4986 = vpop.f32.mrf.mxu0
      %v4987 = vadd.f32 %v4942, %v4986
      %4988 = vdwg.mxu0
      %v4989 = vand.u32 %v4713, 4294901760
      %v4990 = vsub.f32 %v4713, %v4989
      %v4991 = vand.u32 %v4990, 4294901760
      %4992 = vmatpush.msra.mxu0 %v4991
      %v4993 = vand.u32 %v4712, 4294901760
      %v4994 = vsub.f32 %v4712, %v4993
      %v4995 = vand.u32 %v4994, 4294901760
      %4996 = vmatpush.msra.mxu0 %v4995
      %v4997 = vand.u32 %v4711, 4294901760
      %v4998 = vsub.f32 %v4711, %v4997
      %v4999 = vand.u32 %v4998, 4294901760
      %5000 = vmatpush.msra.mxu0 %v4999
      %v5001 = vand.u32 %v4710, 4294901760
      %v5002 = vsub.f32 %v4710, %v5001
      %v5003 = vand.u32 %v5002, 4294901760
      %5004 = vmatpush.msra.mxu0 %v5003
      %v5005 = vand.u32 %v4709, 4294901760
      %v5006 = vsub.f32 %v4709, %v5005
      %v5007 = vand.u32 %v5006, 4294901760
      %5008 = vmatpush.msra.mxu0 %v5007
      %v5009 = vand.u32 %v4708, 4294901760
      %v5010 = vsub.f32 %v4708, %v5009
      %v5011 = vand.u32 %v5010, 4294901760
      %5012 = vmatpush.msra.mxu0 %v5011
      %v5013 = vand.u32 %v4707, 4294901760
      %v5014 = vsub.f32 %v4707, %v5013
      %v5015 = vand.u32 %v5014, 4294901760
      %5016 = vmatpush.msra.mxu0 %v5015
      %v5017 = vand.u32 %v4706, 4294901760
      %v5018 = vsub.f32 %v4706, %v5017
      %v5019 = vand.u32 %v5018, 4294901760
      %5020 = vmatpush.msra.mxu0 %v5019
      %v5021 = vand.u32 %v4705, 4294901760
      %v5022 = vsub.f32 %v4705, %v5021
      %v5023 = vand.u32 %v5022, 4294901760
      %5024 = vmatpush.msra.mxu0 %v5023
      %v5025 = vand.u32 %v4704, 4294901760
      %v5026 = vsub.f32 %v4704, %v5025
      %v5027 = vand.u32 %v5026, 4294901760
      %5028 = vmatpush.msra.mxu0 %v5027
      %v5029 = vand.u32 %v4703, 4294901760
      %v5030 = vsub.f32 %v4703, %v5029
      %v5031 = vand.u32 %v5030, 4294901760
      %5032 = vmatpush.msra.mxu0 %v5031
      %v5033 = vand.u32 %v4702, 4294901760
      %v5034 = vsub.f32 %v4702, %v5033
      %v5035 = vand.u32 %v5034, 4294901760
      %5036 = vmatpush.msra.mxu0 %v5035
      %v5037 = vand.u32 %v4701, 4294901760
      %v5038 = vsub.f32 %v4701, %v5037
      %v5039 = vand.u32 %v5038, 4294901760
      %5040 = vmatpush.msra.mxu0 %v5039
      %v5041 = vand.u32 %v4700, 4294901760
      %v5042 = vsub.f32 %v4700, %v5041
      %v5043 = vand.u32 %v5042, 4294901760
      %5044 = vmatpush.msra.mxu0 %v5043
      %v5045 = vand.u32 %v4699, 4294901760
      %v5046 = vsub.f32 %v4699, %v5045
      %v5047 = vand.u32 %v5046, 4294901760
      %5048 = vmatpush.msra.mxu0 %v5047
      %v5049 = vand.u32 %v4698, 4294901760
      %v5050 = vsub.f32 %v4698, %v5049
      %v5051 = vand.u32 %v5050, 4294901760
      %5052 = vmatpush.msra.mxu0 %v5051
      %v5053 = vand.u32 %v4694, 4294901760
      %5054 = vmatmul.f32.gmra.mxu0 %v5053
      %v5055 = vpop.f32.mrf.mxu0
      %v5056 = vadd.f32 %v4981, %v5055
      %v5057 = vand.u32 %v4696, 4294901760
      %5058 = vmatmul.f32.gmra.mxu0 %v5057
      %v5059 = vpop.f32.mrf.mxu0
      %v5060 = vadd.f32 %v4987, %v5059
      %5061 = vdwg.mxu0
      %v5062 = vand.u32 %v4713, 4294901760
      %5063 = vmatpush.msra.mxu0 %v5062
      %v5064 = vand.u32 %v4712, 4294901760
      %5065 = vmatpush.msra.mxu0 %v5064
      %v5066 = vand.u32 %v4711, 4294901760
      %5067 = vmatpush.msra.mxu0 %v5066
      %v5068 = vand.u32 %v4710, 4294901760
      %5069 = vmatpush.msra.mxu0 %v5068
      %v5070 = vand.u32 %v4709, 4294901760
      %5071 = vmatpush.msra.mxu0 %v5070
      %v5072 = vand.u32 %v4708, 4294901760
      %5073 = vmatpush.msra.mxu0 %v5072
      %v5074 = vand.u32 %v4707, 4294901760
      %5075 = vmatpush.msra.mxu0 %v5074
      %v5076 = vand.u32 %v4706, 4294901760
      %5077 = vmatpush.msra.mxu0 %v5076
      %v5078 = vand.u32 %v4705, 4294901760
      %5079 = vmatpush.msra.mxu0 %v5078
      %v5080 = vand.u32 %v4704, 4294901760
      %5081 = vmatpush.msra.mxu0 %v5080
      %v5082 = vand.u32 %v4703, 4294901760
      %5083 = vmatpush.msra.mxu0 %v5082
      %v5084 = vand.u32 %v4702, 4294901760
      %5085 = vmatpush.msra.mxu0 %v5084
      %v5086 = vand.u32 %v4701, 4294901760
      %5087 = vmatpush.msra.mxu0 %v5086
      %v5088 = vand.u32 %v4700, 4294901760
      %5089 = vmatpush.msra.mxu0 %v5088
      %v5090 = vand.u32 %v4699, 4294901760
      %5091 = vmatpush.msra.mxu0 %v5090
      %v5092 = vand.u32 %v4698, 4294901760
      %5093 = vmatpush.msra.mxu0 %v5092
      %v5094 = vand.u32 %v4694, 4294901760
      %5095 = vmatmul.f32.gmra.mxu0 %v5094
      %v5096 = vpop.f32.mrf.mxu0
      %v5097 = vadd.f32 %v5056, %v5096
      %v5098 = vand.u32 %v4696, 4294901760
      %5099 = vmatmul.f32.gmra.mxu0 %v5098
      %v5100 = vpop.f32.mrf.mxu0
      %v5101 = vadd.f32 %v5060, %v5100
      %5102 = vdwg.mxu0
      %v5103 = vand.u32 %v4729, 4294901760
      %5104 = vmatpush.msra.mxu0 %v5103
      %v5105 = vand.u32 %v4728, 4294901760
      %5106 = vmatpush.msra.mxu0 %v5105
      %v5107 = vand.u32 %v4727, 4294901760
      %5108 = vmatpush.msra.mxu0 %v5107
      %v5109 = vand.u32 %v4726, 4294901760
      %5110 = vmatpush.msra.mxu0 %v5109
      %v5111 = vand.u32 %v4725, 4294901760
      %5112 = vmatpush.msra.mxu0 %v5111
      %v5113 = vand.u32 %v4724, 4294901760
      %5114 = vmatpush.msra.mxu0 %v5113
      %v5115 = vand.u32 %v4723, 4294901760
      %5116 = vmatpush.msra.mxu0 %v5115
      %v5117 = vand.u32 %v4722, 4294901760
      %5118 = vmatpush.msra.mxu0 %v5117
      %v5119 = vand.u32 %v4721, 4294901760
      %5120 = vmatpush.msra.mxu0 %v5119
      %v5121 = vand.u32 %v4720, 4294901760
      %5122 = vmatpush.msra.mxu0 %v5121
      %v5123 = vand.u32 %v4719, 4294901760
      %5124 = vmatpush.msra.mxu0 %v5123
      %v5125 = vand.u32 %v4718, 4294901760
      %5126 = vmatpush.msra.mxu0 %v5125
      %v5127 = vand.u32 %v4717, 4294901760
      %5128 = vmatpush.msra.mxu0 %v5127
      %v5129 = vand.u32 %v4716, 4294901760
      %5130 = vmatpush.msra.mxu0 %v5129
      %v5131 = vand.u32 %v4715, 4294901760
      %5132 = vmatpush.msra.mxu0 %v5131
      %v5133 = vand.u32 %v4714, 4294901760
      %5134 = vmatpush.msra.mxu0 %v5133
      %v5135 = vand.u32 %v4695, 4294901760
      %v5136 = vsub.f32 %v4695, %v5135
      %v5137 = vand.u32 %v5136, 4294901760
      %v5138 = vsub.f32 %v5136, %v5137
      %v5139 = vand.u32 %v5138, 4294901760
      %5140 = vmatmul.f32.gmra.mxu0 %v5139
      %v5141 = vpop.f32.mrf.mxu0
      %v5142 = vadd.f32 %v5097, %v5141
      %v5143 = vand.u32 %v4697, 4294901760
      %v5144 = vsub.f32 %v4697, %v5143
      %v5145 = vand.u32 %v5144, 4294901760
      %v5146 = vsub.f32 %v5144, %v5145
      %v5147 = vand.u32 %v5146, 4294901760
      %5148 = vmatmul.f32.gmra.mxu0 %v5147
      %v5149 = vpop.f32.mrf.mxu0
      %v5150 = vadd.f32 %v5101, %v5149
      %5151 = vdwg.mxu0
      %v5152 = vand.u32 %v4729, 4294901760
      %v5153 = vsub.f32 %v4729, %v5152
      %v5154 = vand.u32 %v5153, 4294901760
      %v5155 = vsub.f32 %v5153, %v5154
      %v5156 = vand.u32 %v5155, 4294901760
      %5157 = vmatpush.msra.mxu0 %v5156
      %v5158 = vand.u32 %v4728, 4294901760
      %v5159 = vsub.f32 %v4728, %v5158
      %v5160 = vand.u32 %v5159, 4294901760
      %v5161 = vsub.f32 %v5159, %v5160
      %v5162 = vand.u32 %v5161, 4294901760
      %5163 = vmatpush.msra.mxu0 %v5162
      %v5164 = vand.u32 %v4727, 4294901760
      %v5165 = vsub.f32 %v4727, %v5164
      %v5166 = vand.u32 %v5165, 4294901760
      %v5167 = vsub.f32 %v5165, %v5166
      %v5168 = vand.u32 %v5167, 4294901760
      %5169 = vmatpush.msra.mxu0 %v5168
      %v5170 = vand.u32 %v4726, 4294901760
      %v5171 = vsub.f32 %v4726, %v5170
      %v5172 = vand.u32 %v5171, 4294901760
      %v5173 = vsub.f32 %v5171, %v5172
      %v5174 = vand.u32 %v5173, 4294901760
      %5175 = vmatpush.msra.mxu0 %v5174
      %v5176 = vand.u32 %v4725, 4294901760
      %v5177 = vsub.f32 %v4725, %v5176
      %v5178 = vand.u32 %v5177, 4294901760
      %v5179 = vsub.f32 %v5177, %v5178
      %v5180 = vand.u32 %v5179, 4294901760
      %5181 = vmatpush.msra.mxu0 %v5180
      %v5182 = vand.u32 %v4724, 4294901760
      %v5183 = vsub.f32 %v4724, %v5182
      %v5184 = vand.u32 %v5183, 4294901760
      %v5185 = vsub.f32 %v5183, %v5184
      %v5186 = vand.u32 %v5185, 4294901760
      %5187 = vmatpush.msra.mxu0 %v5186
      %v5188 = vand.u32 %v4723, 4294901760
      %v5189 = vsub.f32 %v4723, %v5188
      %v5190 = vand.u32 %v5189, 4294901760
      %v5191 = vsub.f32 %v5189, %v5190
      %v5192 = vand.u32 %v5191, 4294901760
      %5193 = vmatpush.msra.mxu0 %v5192
      %v5194 = vand.u32 %v4722, 4294901760
      %v5195 = vsub.f32 %v4722, %v5194
      %v5196 = vand.u32 %v5195, 4294901760
      %v5197 = vsub.f32 %v5195, %v5196
      %v5198 = vand.u32 %v5197, 4294901760
      %5199 = vmatpush.msra.mxu0 %v5198
      %v5200 = vand.u32 %v4721, 4294901760
      %v5201 = vsub.f32 %v4721, %v5200
      %v5202 = vand.u32 %v5201, 4294901760
      %v5203 = vsub.f32 %v5201, %v5202
      %v5204 = vand.u32 %v5203, 4294901760
      %5205 = vmatpush.msra.mxu0 %v5204
      %v5206 = vand.u32 %v4720, 4294901760
      %v5207 = vsub.f32 %v4720, %v5206
      %v5208 = vand.u32 %v5207, 4294901760
      %v5209 = vsub.f32 %v5207, %v5208
      %v5210 = vand.u32 %v5209, 4294901760
      %5211 = vmatpush.msra.mxu0 %v5210
      %v5212 = vand.u32 %v4719, 4294901760
      %v5213 = vsub.f32 %v4719, %v5212
      %v5214 = vand.u32 %v5213, 4294901760
      %v5215 = vsub.f32 %v5213, %v5214
      %v5216 = vand.u32 %v5215, 4294901760
      %5217 = vmatpush.msra.mxu0 %v5216
      %v5218 = vand.u32 %v4718, 4294901760
      %v5219 = vsub.f32 %v4718, %v5218
      %v5220 = vand.u32 %v5219, 4294901760
      %v5221 = vsub.f32 %v5219, %v5220
      %v5222 = vand.u32 %v5221, 4294901760
      %5223 = vmatpush.msra.mxu0 %v5222
      %v5224 = vand.u32 %v4717, 4294901760
      %v5225 = vsub.f32 %v4717, %v5224
      %v5226 = vand.u32 %v5225, 4294901760
      %v5227 = vsub.f32 %v5225, %v5226
      %v5228 = vand.u32 %v5227, 4294901760
      %5229 = vmatpush.msra.mxu0 %v5228
      %v5230 = vand.u32 %v4716, 4294901760
      %v5231 = vsub.f32 %v4716, %v5230
      %v5232 = vand.u32 %v5231, 4294901760
      %v5233 = vsub.f32 %v5231, %v5232
      %v5234 = vand.u32 %v5233, 4294901760
      %5235 = vmatpush.msra.mxu0 %v5234
      %v5236 = vand.u32 %v4715, 4294901760
      %v5237 = vsub.f32 %v4715, %v5236
      %v5238 = vand.u32 %v5237, 4294901760
      %v5239 = vsub.f32 %v5237, %v5238
      %v5240 = vand.u32 %v5239, 4294901760
      %5241 = vmatpush.msra.mxu0 %v5240
      %v5242 = vand.u32 %v4714, 4294901760
      %v5243 = vsub.f32 %v4714, %v5242
      %v5244 = vand.u32 %v5243, 4294901760
      %v5245 = vsub.f32 %v5243, %v5244
      %v5246 = vand.u32 %v5245, 4294901760
      %5247 = vmatpush.msra.mxu0 %v5246
      %v5248 = vand.u32 %v4695, 4294901760
      %5249 = vmatmul.f32.gmra.mxu0 %v5248
      %v5250 = vpop.f32.mrf.mxu0
      %v5251 = vadd.f32 %v5142, %v5250
      %v5252 = vand.u32 %v4697, 4294901760
      %5253 = vmatmul.f32.gmra.mxu0 %v5252
      %v5254 = vpop.f32.mrf.mxu0
      %v5255 = vadd.f32 %v5150, %v5254
      %5256 = vdwg.mxu0
      %v5257 = vand.u32 %v4729, 4294901760
      %v5258 = vsub.f32 %v4729, %v5257
      %5259 = vmatpush.msra.mxu0 %v5258
      %v5260 = vand.u32 %v4728, 4294901760
      %v5261 = vsub.f32 %v4728, %v5260
      %5262 = vmatpush.msra.mxu0 %v5261
      %v5263 = vand.u32 %v4727, 4294901760
      %v5264 = vsub.f32 %v4727, %v5263
      %5265 = vmatpush.msra.mxu0 %v5264
      %v5266 = vand.u32 %v4726, 4294901760
      %v5267 = vsub.f32 %v4726, %v5266
      %5268 = vmatpush.msra.mxu0 %v5267
      %v5269 = vand.u32 %v4725, 4294901760
      %v5270 = vsub.f32 %v4725, %v5269
      %5271 = vmatpush.msra.mxu0 %v5270
      %v5272 = vand.u32 %v4724, 4294901760
      %v5273 = vsub.f32 %v4724, %v5272
      %5274 = vmatpush.msra.mxu0 %v5273
      %v5275 = vand.u32 %v4723, 4294901760
      %v5276 = vsub.f32 %v4723, %v5275
      %5277 = vmatpush.msra.mxu0 %v5276
      %v5278 = vand.u32 %v4722, 4294901760
      %v5279 = vsub.f32 %v4722, %v5278
      %5280 = vmatpush.msra.mxu0 %v5279
      %v5281 = vand.u32 %v4721, 4294901760
      %v5282 = vsub.f32 %v4721, %v5281
      %5283 = vmatpush.msra.mxu0 %v5282
      %v5284 = vand.u32 %v4720, 4294901760
      %v5285 = vsub.f32 %v4720, %v5284
      %5286 = vmatpush.msra.mxu0 %v5285
      %v5287 = vand.u32 %v4719, 4294901760
      %v5288 = vsub.f32 %v4719, %v5287
      %5289 = vmatpush.msra.mxu0 %v5288
      %v5290 = vand.u32 %v4718, 4294901760
      %v5291 = vsub.f32 %v4718, %v5290
      %5292 = vmatpush.msra.mxu0 %v5291
      %v5293 = vand.u32 %v4717, 4294901760
      %v5294 = vsub.f32 %v4717, %v5293
      %5295 = vmatpush.msra.mxu0 %v5294
      %v5296 = vand.u32 %v4716, 4294901760
      %v5297 = vsub.f32 %v4716, %v5296
      %5298 = vmatpush.msra.mxu0 %v5297
      %v5299 = vand.u32 %v4715, 4294901760
      %v5300 = vsub.f32 %v4715, %v5299
      %5301 = vmatpush.msra.mxu0 %v5300
      %v5302 = vand.u32 %v4714, 4294901760
      %v5303 = vsub.f32 %v4714, %v5302
      %5304 = vmatpush.msra.mxu0 %v5303
      %v5305 = vand.u32 %v4695, 4294901760
      %v5306 = vsub.f32 %v4695, %v5305
      %5307 = vmatmul.f32.gmra.mxu0 %v5306
      %v5308 = vpop.f32.mrf.mxu0
      %v5309 = vadd.f32 %v5251, %v5308
      %v5310 = vand.u32 %v4697, 4294901760
      %v5311 = vsub.f32 %v4697, %v5310
      %5312 = vmatmul.f32.gmra.mxu0 %v5311
      %v5313 = vpop.f32.mrf.mxu0
      %v5314 = vadd.f32 %v5255, %v5313
      %5315 = vdwg.mxu0
      %v5316 = vand.u32 %v4729, 4294901760
      %5317 = vmatpush.msra.mxu0 %v5316
      %v5318 = vand.u32 %v4728, 4294901760
      %5319 = vmatpush.msra.mxu0 %v5318
      %v5320 = vand.u32 %v4727, 4294901760
      %5321 = vmatpush.msra.mxu0 %v5320
      %v5322 = vand.u32 %v4726, 4294901760
      %5323 = vmatpush.msra.mxu0 %v5322
      %v5324 = vand.u32 %v4725, 4294901760
      %5325 = vmatpush.msra.mxu0 %v5324
      %v5326 = vand.u32 %v4724, 4294901760
      %5327 = vmatpush.msra.mxu0 %v5326
      %v5328 = vand.u32 %v4723, 4294901760
      %5329 = vmatpush.msra.mxu0 %v5328
      %v5330 = vand.u32 %v4722, 4294901760
      %5331 = vmatpush.msra.mxu0 %v5330
      %v5332 = vand.u32 %v4721, 4294901760
      %5333 = vmatpush.msra.mxu0 %v5332
      %v5334 = vand.u32 %v4720, 4294901760
      %5335 = vmatpush.msra.mxu0 %v5334
      %v5336 = vand.u32 %v4719, 4294901760
      %5337 = vmatpush.msra.mxu0 %v5336
      %v5338 = vand.u32 %v4718, 4294901760
      %5339 = vmatpush.msra.mxu0 %v5338
      %v5340 = vand.u32 %v4717, 4294901760
      %5341 = vmatpush.msra.mxu0 %v5340
      %v5342 = vand.u32 %v4716, 4294901760
      %5343 = vmatpush.msra.mxu0 %v5342
      %v5344 = vand.u32 %v4715, 4294901760
      %5345 = vmatpush.msra.mxu0 %v5344
      %v5346 = vand.u32 %v4714, 4294901760
      %5347 = vmatpush.msra.mxu0 %v5346
      %v5348 = vand.u32 %v4695, 4294901760
      %v5349 = vsub.f32 %v4695, %v5348
      %v5350 = vand.u32 %v5349, 4294901760
      %5351 = vmatmul.f32.gmra.mxu0 %v5350
      %v5352 = vpop.f32.mrf.mxu0
      %v5353 = vadd.f32 %v5309, %v5352
      %v5354 = vand.u32 %v4697, 4294901760
      %v5355 = vsub.f32 %v4697, %v5354
      %v5356 = vand.u32 %v5355, 4294901760
      %5357 = vmatmul.f32.gmra.mxu0 %v5356
      %v5358 = vpop.f32.mrf.mxu0
      %v5359 = vadd.f32 %v5314, %v5358
      %5360 = vdwg.mxu0
      %v5361 = vand.u32 %v4729, 4294901760
      %v5362 = vsub.f32 %v4729, %v5361
      %v5363 = vand.u32 %v5362, 4294901760
      %5364 = vmatpush.msra.mxu0 %v5363
      %v5365 = vand.u32 %v4728, 4294901760
      %v5366 = vsub.f32 %v4728, %v5365
      %v5367 = vand.u32 %v5366, 4294901760
      %5368 = vmatpush.msra.mxu0 %v5367
      %v5369 = vand.u32 %v4727, 4294901760
      %v5370 = vsub.f32 %v4727, %v5369
      %v5371 = vand.u32 %v5370, 4294901760
      %5372 = vmatpush.msra.mxu0 %v5371
      %v5373 = vand.u32 %v4726, 4294901760
      %v5374 = vsub.f32 %v4726, %v5373
      %v5375 = vand.u32 %v5374, 4294901760
      %5376 = vmatpush.msra.mxu0 %v5375
      %v5377 = vand.u32 %v4725, 4294901760
      %v5378 = vsub.f32 %v4725, %v5377
      %v5379 = vand.u32 %v5378, 4294901760
      %5380 = vmatpush.msra.mxu0 %v5379
      %v5381 = vand.u32 %v4724, 4294901760
      %v5382 = vsub.f32 %v4724, %v5381
      %v5383 = vand.u32 %v5382, 4294901760
      %5384 = vmatpush.msra.mxu0 %v5383
      %v5385 = vand.u32 %v4723, 4294901760
      %v5386 = vsub.f32 %v4723, %v5385
      %v5387 = vand.u32 %v5386, 4294901760
      %5388 = vmatpush.msra.mxu0 %v5387
      %v5389 = vand.u32 %v4722, 4294901760
      %v5390 = vsub.f32 %v4722, %v5389
      %v5391 = vand.u32 %v5390, 4294901760
      %5392 = vmatpush.msra.mxu0 %v5391
      %v5393 = vand.u32 %v4721, 4294901760
      %v5394 = vsub.f32 %v4721, %v5393
      %v5395 = vand.u32 %v5394, 4294901760
      %5396 = vmatpush.msra.mxu0 %v5395
      %v5397 = vand.u32 %v4720, 4294901760
      %v5398 = vsub.f32 %v4720, %v5397
      %v5399 = vand.u32 %v5398, 4294901760
      %5400 = vmatpush.msra.mxu0 %v5399
      %v5401 = vand.u32 %v4719, 4294901760
      %v5402 = vsub.f32 %v4719, %v5401
      %v5403 = vand.u32 %v5402, 4294901760
      %5404 = vmatpush.msra.mxu0 %v5403
      %v5405 = vand.u32 %v4718, 4294901760
      %v5406 = vsub.f32 %v4718, %v5405
      %v5407 = vand.u32 %v5406, 4294901760
      %5408 = vmatpush.msra.mxu0 %v5407
      %v5409 = vand.u32 %v4717, 4294901760
      %v5410 = vsub.f32 %v4717, %v5409
      %v5411 = vand.u32 %v5410, 4294901760
      %5412 = vmatpush.msra.mxu0 %v5411
      %v5413 = vand.u32 %v4716, 4294901760
      %v5414 = vsub.f32 %v4716, %v5413
      %v5415 = vand.u32 %v5414, 4294901760
      %5416 = vmatpush.msra.mxu0 %v5415
      %v5417 = vand.u32 %v4715, 4294901760
      %v5418 = vsub.f32 %v4715, %v5417
      %v5419 = vand.u32 %v5418, 4294901760
      %5420 = vmatpush.msra.mxu0 %v5419
      %v5421 = vand.u32 %v4714, 4294901760
      %v5422 = vsub.f32 %v4714, %v5421
      %v5423 = vand.u32 %v5422, 4294901760
      %5424 = vmatpush.msra.mxu0 %v5423
      %v5425 = vand.u32 %v4695, 4294901760
      %5426 = vmatmul.f32.gmra.mxu0 %v5425
      %v5427 = vpop.f32.mrf.mxu0
      %v5428 = vadd.f32 %v5353, %v5427
      %v5429 = vand.u32 %v4697, 4294901760
      %5430 = vmatmul.f32.gmra.mxu0 %v5429
      %v5431 = vpop.f32.mrf.mxu0
      %v5432 = vadd.f32 %v5359, %v5431
      %5433 = vdwg.mxu0
      %v5434 = vand.u32 %v4729, 4294901760
      %5435 = vmatpush.msra.mxu0 %v5434
      %v5436 = vand.u32 %v4728, 4294901760
      %5437 = vmatpush.msra.mxu0 %v5436
      %v5438 = vand.u32 %v4727, 4294901760
      %5439 = vmatpush.msra.mxu0 %v5438
      %v5440 = vand.u32 %v4726, 4294901760
      %5441 = vmatpush.msra.mxu0 %v5440
      %v5442 = vand.u32 %v4725, 4294901760
      %5443 = vmatpush.msra.mxu0 %v5442
      %v5444 = vand.u32 %v4724, 4294901760
      %5445 = vmatpush.msra.mxu0 %v5444
      %v5446 = vand.u32 %v4723, 4294901760
      %5447 = vmatpush.msra.mxu0 %v5446
      %v5448 = vand.u32 %v4722, 4294901760
      %5449 = vmatpush.msra.mxu0 %v5448
      %v5450 = vand.u32 %v4721, 4294901760
      %5451 = vmatpush.msra.mxu0 %v5450
      %v5452 = vand.u32 %v4720, 4294901760
      %5453 = vmatpush.msra.mxu0 %v5452
      %v5454 = vand.u32 %v4719, 4294901760
      %5455 = vmatpush.msra.mxu0 %v5454
      %v5456 = vand.u32 %v4718, 4294901760
      %5457 = vmatpush.msra.mxu0 %v5456
      %v5458 = vand.u32 %v4717, 4294901760
      %5459 = vmatpush.msra.mxu0 %v5458
      %v5460 = vand.u32 %v4716, 4294901760
      %5461 = vmatpush.msra.mxu0 %v5460
      %v5462 = vand.u32 %v4715, 4294901760
      %5463 = vmatpush.msra.mxu0 %v5462
      %v5464 = vand.u32 %v4714, 4294901760
      %5465 = vmatpush.msra.mxu0 %v5464
      %v5466 = vand.u32 %v4695, 4294901760
      %5467 = vmatmul.f32.gmra.mxu0 %v5466
      %v5468 = vpop.f32.mrf.mxu0
      %v5469 = vadd.f32 %v5428, %v5468
      %v5470 = vand.u32 %v4697, 4294901760
      %5471 = vmatmul.f32.gmra.mxu0 %v5470
      %v5472 = vpop.f32.mrf.mxu0
      %v5473 = vadd.f32 %v5432, %v5472
      %5474 = vdwg.mxu0
      %v5475 = vadd.f32 %v4070, %v5469
      %v5476 = vadd.f32 %v4071, %v5473
      %s5477 = scalar_lea.vmem %s7, 8
      %v5478 = vld [vmem:[%s5477] sm:$0x3f]
      %s5479 = scalar_lea.vmem %s6, 64
      %v5480 = vld [vmem:[%s5479] sm:$0xff]
      %v5481 = vld [vmem:[%s5479 + $0x8] sm:$0xff]
      %v5482 = vld [vmem:[%s5479 + $0x10] sm:$0xff]
      %v5483 = vld [vmem:[%s5479 + $0x18] sm:$0xff]
      %v5484 = vld [vmem:[%s5479 + $0x20] sm:$0xff]
      %v5485 = vld [vmem:[%s5479 + $0x28] sm:$0xff]
      %v5486 = vld [vmem:[%s5479 + $0x30] sm:$0xff]
      %v5487 = vld [vmem:[%s5479 + $0x38] sm:$0xff]
      %v5488 = vsel %vm628, %v5475, 0.0
      %5489 = vadd.xlane.f32.xlu0 %v5488
      %v5490 = vpop.xlane.xlu0 %5489
      %v5491 = vsel %vm628, %v5476, 0.0
      %5492 = vadd.xlane.f32.xlu0 %v5491
      %v5493 = vpop.xlane.xlu0 %5492
      %v5494 = vmul.f32 %v5490, %v924
      %v5495 = vmul.f32 %v5493, %v924
      %v5496 = vsub.f32 %v5475, %v5494
      %v5497 = vsub.f32 %v5476, %v5495
      %v5498 = vmul.f32 %v5496, %v5496
      %v5499 = vmul.f32 %v5497, %v5497
      %v5500 = vsel %vm628, %v5498, 0.0
      %5501 = vadd.xlane.f32.xlu0 %v5500
      %v5502 = vpop.xlane.xlu0 %5501
      %v5503 = vsel %vm628, %v5499, 0.0
      %5504 = vadd.xlane.f32.xlu0 %v5503
      %v5505 = vpop.xlane.xlu0 %5504
      %v5506 = vmul.f32 %v5502, %v924
      %v5507 = vmul.f32 %v5505, %v924
      %v5508 = vadd.f32 %v5506, 1e-05
      %v5509 = vadd.f32 %v5507, 1e-05
      %v5510 = vrsqrt.pop %v5508
      %v5511 = vmul.f32 %v5510, %v5508
      %v5512 = vmul.f32 %v5511, %v5510
      %v5513 = vmul.f32 0.5, %v5512
      %v5514 = vsub.f32 1.5, %v5513
      %v5515 = vmul.f32 %v5510, %v5514
      %vm5516 = vweird.f32 %v5508
      %vm5517 = vweird.f32 %v5510
      %vm5518 = vmor %vm5516, %vm5517
      %v5519 = vsel %vm5518, %v5510, %v5515
      %v5520 = vrsqrt.pop %v5509
      %v5521 = vmul.f32 %v5520, %v5509
      %v5522 = vmul.f32 %v5521, %v5520
      %v5523 = vmul.f32 0.5, %v5522
      %v5524 = vsub.f32 1.5, %v5523
      %v5525 = vmul.f32 %v5520, %v5524
      %vm5526 = vweird.f32 %v5509
      %vm5527 = vweird.f32 %v5520
      %vm5528 = vmor %vm5526, %vm5527
      %v5529 = vsel %vm5528, %v5520, %v5525
      %v5530 = vmul.f32 %v5496, %v5519
      %v5531 = vmul.f32 %v5497, %v5529
      %v5532 = vperm.slane %v5478, 0
      %v5533 = vmul.f32 %v5530, %v5532
      %v5534 = vmul.f32 %v5531, %v5532
      %v5535 = vperm.slane %v5478, 1
      %v5536 = vadd.f32 %v5533, %v5535
      %v5537 = vadd.f32 %v5534, %v5535
      %s5538 = scalar_lea.vmem %s4, 128
      %v5539 = vld [vmem:[%s5538] sm:$0xff]
      %v5540 = vld [vmem:[%s5538 + $0x8] sm:$0xff]
      %v5541 = vld [vmem:[%s5538 + $0x10] sm:$0xff]
      %v5542 = vld [vmem:[%s5538 + $0x18] sm:$0xff]
      %v5543 = vld [vmem:[%s5538 + $0x20] sm:$0xff]
      %v5544 = vld [vmem:[%s5538 + $0x28] sm:$0xff]
      %v5545 = vld [vmem:[%s5538 + $0x30] sm:$0xff]
      %v5546 = vld [vmem:[%s5538 + $0x38] sm:$0xff]
      %v5547 = vld [vmem:[%s5538 + $0x40] sm:$0xff]
      %v5548 = vld [vmem:[%s5538 + $0x48] sm:$0xff]
      %v5549 = vld [vmem:[%s5538 + $0x50] sm:$0xff]
      %v5550 = vld [vmem:[%s5538 + $0x58] sm:$0xff]
      %v5551 = vld [vmem:[%s5538 + $0x60] sm:$0xff]
      %v5552 = vld [vmem:[%s5538 + $0x68] sm:$0xff]
      %v5553 = vld [vmem:[%s5538 + $0x70] sm:$0xff]
      %v5554 = vld [vmem:[%s5538 + $0x78] sm:$0xff]
      %s5555 = scalar_lea.vmem %s5, 2
      %v5556 = vld [vmem:[%s5555] sm:$0x3]
      %v5558 = vperm.slane %v5556, 0
      %v5559 = vperm.slane %v5556, 1
      %v5563 = vsel %vm628, %v5536, 0
      %v5566 = vsel %vm628, %v5537, 0
      %5568 = vmatpush.msra.mxu0 0.0
      %5569 = vmatpush.msra.mxu0 0.0
      %5570 = vmatpush.msra.mxu0 0.0
      %5571 = vmatpush.msra.mxu0 0.0
      %5572 = vmatpush.msra.mxu0 0.0
      %5573 = vmatpush.msra.mxu0 0.0
      %5574 = vmatpush.msra.mxu0 0.0
      %5575 = vmatpush.msra.mxu0 0.0
      %v5576 = vand.u32 %v5553, 4294901760
      %5577 = vmatpush.msra.mxu0 %v5576
      %v5578 = vand.u32 %v5551, 4294901760
      %5579 = vmatpush.msra.mxu0 %v5578
      %v5580 = vand.u32 %v5549, 4294901760
      %5581 = vmatpush.msra.mxu0 %v5580
      %v5582 = vand.u32 %v5547, 4294901760
      %5583 = vmatpush.msra.mxu0 %v5582
      %v5584 = vand.u32 %v5545, 4294901760
      %5585 = vmatpush.msra.mxu0 %v5584
      %v5586 = vand.u32 %v5543, 4294901760
      %5587 = vmatpush.msra.mxu0 %v5586
      %v5588 = vand.u32 %v5541, 4294901760
      %5589 = vmatpush.msra.mxu0 %v5588
      %v5590 = vand.u32 %v5539, 4294901760
      %5591 = vmatpush.msra.mxu0 %v5590
      %v5592 = vand.u32 %v5563, 4294901760
      %v5593 = vsub.f32 %v5563, %v5592
      %v5594 = vand.u32 %v5593, 4294901760
      %v5595 = vsub.f32 %v5593, %v5594
      %v5596 = vand.u32 %v5595, 4294901760
      %5597 = vmatmul.f32.gmra.mxu0 %v5596
      %v5598 = vpop.f32.mrf.mxu0
      %v5599 = vadd.f32 %v5558, %v5598
      %v5600 = vand.u32 %v5566, 4294901760
      %v5601 = vsub.f32 %v5566, %v5600
      %v5602 = vand.u32 %v5601, 4294901760
      %v5603 = vsub.f32 %v5601, %v5602
      %v5604 = vand.u32 %v5603, 4294901760
      %5605 = vmatmul.f32.gmra.mxu0 %v5604
      %v5606 = vpop.f32.mrf.mxu0
      %v5607 = vadd.f32 %v5558, %v5606
      %5608 = vdwg.mxu0
      %5609 = vmatpush.msra.mxu0 0.0
      %5610 = vmatpush.msra.mxu0 0.0
      %5611 = vmatpush.msra.mxu0 0.0
      %5612 = vmatpush.msra.mxu0 0.0
      %5613 = vmatpush.msra.mxu0 0.0
      %5614 = vmatpush.msra.mxu0 0.0
      %5615 = vmatpush.msra.mxu0 0.0
      %5616 = vmatpush.msra.mxu0 0.0
      %v5617 = vand.u32 %v5553, 4294901760
      %v5618 = vsub.f32 %v5553, %v5617
      %v5619 = vand.u32 %v5618, 4294901760
      %v5620 = vsub.f32 %v5618, %v5619
      %v5621 = vand.u32 %v5620, 4294901760
      %5622 = vmatpush.msra.mxu0 %v5621
      %v5623 = vand.u32 %v5551, 4294901760
      %v5624 = vsub.f32 %v5551, %v5623
      %v5625 = vand.u32 %v5624, 4294901760
      %v5626 = vsub.f32 %v5624, %v5625
      %v5627 = vand.u32 %v5626, 4294901760
      %5628 = vmatpush.msra.mxu0 %v5627
      %v5629 = vand.u32 %v5549, 4294901760
      %v5630 = vsub.f32 %v5549, %v5629
      %v5631 = vand.u32 %v5630, 4294901760
      %v5632 = vsub.f32 %v5630, %v5631
      %v5633 = vand.u32 %v5632, 4294901760
      %5634 = vmatpush.msra.mxu0 %v5633
      %v5635 = vand.u32 %v5547, 4294901760
      %v5636 = vsub.f32 %v5547, %v5635
      %v5637 = vand.u32 %v5636, 4294901760
      %v5638 = vsub.f32 %v5636, %v5637
      %v5639 = vand.u32 %v5638, 4294901760
      %5640 = vmatpush.msra.mxu0 %v5639
      %v5641 = vand.u32 %v5545, 4294901760
      %v5642 = vsub.f32 %v5545, %v5641
      %v5643 = vand.u32 %v5642, 4294901760
      %v5644 = vsub.f32 %v5642, %v5643
      %v5645 = vand.u32 %v5644, 4294901760
      %5646 = vmatpush.msra.mxu0 %v5645
      %v5647 = vand.u32 %v5543, 4294901760
      %v5648 = vsub.f32 %v5543, %v5647
      %v5649 = vand.u32 %v5648, 4294901760
      %v5650 = vsub.f32 %v5648, %v5649
      %v5651 = vand.u32 %v5650, 4294901760
      %5652 = vmatpush.msra.mxu0 %v5651
      %v5653 = vand.u32 %v5541, 4294901760
      %v5654 = vsub.f32 %v5541, %v5653
      %v5655 = vand.u32 %v5654, 4294901760
      %v5656 = vsub.f32 %v5654, %v5655
      %v5657 = vand.u32 %v5656, 4294901760
      %5658 = vmatpush.msra.mxu0 %v5657
      %v5659 = vand.u32 %v5539, 4294901760
      %v5660 = vsub.f32 %v5539, %v5659
      %v5661 = vand.u32 %v5660, 4294901760
      %v5662 = vsub.f32 %v5660, %v5661
      %v5663 = vand.u32 %v5662, 4294901760
      %5664 = vmatpush.msra.mxu0 %v5663
      %v5665 = vand.u32 %v5563, 4294901760
      %5666 = vmatmul.f32.gmra.mxu0 %v5665
      %v5667 = vpop.f32.mrf.mxu0
      %v5668 = vadd.f32 %v5599, %v5667
      %v5669 = vand.u32 %v5566, 4294901760
      %5670 = vmatmul.f32.gmra.mxu0 %v5669
      %v5671 = vpop.f32.mrf.mxu0
      %v5672 = vadd.f32 %v5607, %v5671
      %5673 = vdwg.mxu0
      %5674 = vmatpush.msra.mxu0 0.0
      %5675 = vmatpush.msra.mxu0 0.0
      %5676 = vmatpush.msra.mxu0 0.0
      %5677 = vmatpush.msra.mxu0 0.0
      %5678 = vmatpush.msra.mxu0 0.0
      %5679 = vmatpush.msra.mxu0 0.0
      %5680 = vmatpush.msra.mxu0 0.0
      %5681 = vmatpush.msra.mxu0 0.0
      %v5682 = vand.u32 %v5553, 4294901760
      %v5683 = vsub.f32 %v5553, %v5682
      %5684 = vmatpush.msra.mxu0 %v5683
      %v5685 = vand.u32 %v5551, 4294901760
      %v5686 = vsub.f32 %v5551, %v5685
      %5687 = vmatpush.msra.mxu0 %v5686
      %v5688 = vand.u32 %v5549, 4294901760
      %v5689 = vsub.f32 %v5549, %v5688
      %5690 = vmatpush.msra.mxu0 %v5689
      %v5691 = vand.u32 %v5547, 4294901760
      %v5692 = vsub.f32 %v5547, %v5691
      %5693 = vmatpush.msra.mxu0 %v5692
      %v5694 = vand.u32 %v5545, 4294901760
      %v5695 = vsub.f32 %v5545, %v5694
      %5696 = vmatpush.msra.mxu0 %v5695
      %v5697 = vand.u32 %v5543, 4294901760
      %v5698 = vsub.f32 %v5543, %v5697
      %5699 = vmatpush.msra.mxu0 %v5698
      %v5700 = vand.u32 %v5541, 4294901760
      %v5701 = vsub.f32 %v5541, %v5700
      %5702 = vmatpush.msra.mxu0 %v5701
      %v5703 = vand.u32 %v5539, 4294901760
      %v5704 = vsub.f32 %v5539, %v5703
      %5705 = vmatpush.msra.mxu0 %v5704
      %v5706 = vand.u32 %v5563, 4294901760
      %v5707 = vsub.f32 %v5563, %v5706
      %5708 = vmatmul.f32.gmra.mxu0 %v5707
      %v5709 = vpop.f32.mrf.mxu0
      %v5710 = vadd.f32 %v5668, %v5709
      %v5711 = vand.u32 %v5566, 4294901760
      %v5712 = vsub.f32 %v5566, %v5711
      %5713 = vmatmul.f32.gmra.mxu0 %v5712
      %v5714 = vpop.f32.mrf.mxu0
      %v5715 = vadd.f32 %v5672, %v5714
      %5716 = vdwg.mxu0
      %5717 = vmatpush.msra.mxu0 0.0
      %5718 = vmatpush.msra.mxu0 0.0
      %5719 = vmatpush.msra.mxu0 0.0
      %5720 = vmatpush.msra.mxu0 0.0
      %5721 = vmatpush.msra.mxu0 0.0
      %5722 = vmatpush.msra.mxu0 0.0
      %5723 = vmatpush.msra.mxu0 0.0
      %5724 = vmatpush.msra.mxu0 0.0
      %v5725 = vand.u32 %v5553, 4294901760
      %5726 = vmatpush.msra.mxu0 %v5725
      %v5727 = vand.u32 %v5551, 4294901760
      %5728 = vmatpush.msra.mxu0 %v5727
      %v5729 = vand.u32 %v5549, 4294901760
      %5730 = vmatpush.msra.mxu0 %v5729
      %v5731 = vand.u32 %v5547, 4294901760
      %5732 = vmatpush.msra.mxu0 %v5731
      %v5733 = vand.u32 %v5545, 4294901760
      %5734 = vmatpush.msra.mxu0 %v5733
      %v5735 = vand.u32 %v5543, 4294901760
      %5736 = vmatpush.msra.mxu0 %v5735
      %v5737 = vand.u32 %v5541, 4294901760
      %5738 = vmatpush.msra.mxu0 %v5737
      %v5739 = vand.u32 %v5539, 4294901760
      %5740 = vmatpush.msra.mxu0 %v5739
      %v5741 = vand.u32 %v5563, 4294901760
      %v5742 = vsub.f32 %v5563, %v5741
      %v5743 = vand.u32 %v5742, 4294901760
      %5744 = vmatmul.f32.gmra.mxu0 %v5743
      %v5745 = vpop.f32.mrf.mxu0
      %v5746 = vadd.f32 %v5710, %v5745
      %v5747 = vand.u32 %v5566, 4294901760
      %v5748 = vsub.f32 %v5566, %v5747
      %v5749 = vand.u32 %v5748, 4294901760
      %5750 = vmatmul.f32.gmra.mxu0 %v5749
      %v5751 = vpop.f32.mrf.mxu0
      %v5752 = vadd.f32 %v5715, %v5751
      %5753 = vdwg.mxu0
      %5754 = vmatpush.msra.mxu0 0.0
      %5755 = vmatpush.msra.mxu0 0.0
      %5756 = vmatpush.msra.mxu0 0.0
      %5757 = vmatpush.msra.mxu0 0.0
      %5758 = vmatpush.msra.mxu0 0.0
      %5759 = vmatpush.msra.mxu0 0.0
      %5760 = vmatpush.msra.mxu0 0.0
      %5761 = vmatpush.msra.mxu0 0.0
      %v5762 = vand.u32 %v5553, 4294901760
      %v5763 = vsub.f32 %v5553, %v5762
      %v5764 = vand.u32 %v5763, 4294901760
      %5765 = vmatpush.msra.mxu0 %v5764
      %v5766 = vand.u32 %v5551, 4294901760
      %v5767 = vsub.f32 %v5551, %v5766
      %v5768 = vand.u32 %v5767, 4294901760
      %5769 = vmatpush.msra.mxu0 %v5768
      %v5770 = vand.u32 %v5549, 4294901760
      %v5771 = vsub.f32 %v5549, %v5770
      %v5772 = vand.u32 %v5771, 4294901760
      %5773 = vmatpush.msra.mxu0 %v5772
      %v5774 = vand.u32 %v5547, 4294901760
      %v5775 = vsub.f32 %v5547, %v5774
      %v5776 = vand.u32 %v5775, 4294901760
      %5777 = vmatpush.msra.mxu0 %v5776
      %v5778 = vand.u32 %v5545, 4294901760
      %v5779 = vsub.f32 %v5545, %v5778
      %v5780 = vand.u32 %v5779, 4294901760
      %5781 = vmatpush.msra.mxu0 %v5780
      %v5782 = vand.u32 %v5543, 4294901760
      %v5783 = vsub.f32 %v5543, %v5782
      %v5784 = vand.u32 %v5783, 4294901760
      %5785 = vmatpush.msra.mxu0 %v5784
      %v5786 = vand.u32 %v5541, 4294901760
      %v5787 = vsub.f32 %v5541, %v5786
      %v5788 = vand.u32 %v5787, 4294901760
      %5789 = vmatpush.msra.mxu0 %v5788
      %v5790 = vand.u32 %v5539, 4294901760
      %v5791 = vsub.f32 %v5539, %v5790
      %v5792 = vand.u32 %v5791, 4294901760
      %5793 = vmatpush.msra.mxu0 %v5792
      %v5794 = vand.u32 %v5563, 4294901760
      %5795 = vmatmul.f32.gmra.mxu0 %v5794
      %v5796 = vpop.f32.mrf.mxu0
      %v5797 = vadd.f32 %v5746, %v5796
      %v5798 = vand.u32 %v5566, 4294901760
      %5799 = vmatmul.f32.gmra.mxu0 %v5798
      %v5800 = vpop.f32.mrf.mxu0
      %v5801 = vadd.f32 %v5752, %v5800
      %5802 = vdwg.mxu0
      %5803 = vmatpush.msra.mxu0 0.0
      %5804 = vmatpush.msra.mxu0 0.0
      %5805 = vmatpush.msra.mxu0 0.0
      %5806 = vmatpush.msra.mxu0 0.0
      %5807 = vmatpush.msra.mxu0 0.0
      %5808 = vmatpush.msra.mxu0 0.0
      %5809 = vmatpush.msra.mxu0 0.0
      %5810 = vmatpush.msra.mxu0 0.0
      %v5811 = vand.u32 %v5553, 4294901760
      %5812 = vmatpush.msra.mxu0 %v5811
      %v5813 = vand.u32 %v5551, 4294901760
      %5814 = vmatpush.msra.mxu0 %v5813
      %v5815 = vand.u32 %v5549, 4294901760
      %5816 = vmatpush.msra.mxu0 %v5815
      %v5817 = vand.u32 %v5547, 4294901760
      %5818 = vmatpush.msra.mxu0 %v5817
      %v5819 = vand.u32 %v5545, 4294901760
      %5820 = vmatpush.msra.mxu0 %v5819
      %v5821 = vand.u32 %v5543, 4294901760
      %5822 = vmatpush.msra.mxu0 %v5821
      %v5823 = vand.u32 %v5541, 4294901760
      %5824 = vmatpush.msra.mxu0 %v5823
      %v5825 = vand.u32 %v5539, 4294901760
      %5826 = vmatpush.msra.mxu0 %v5825
      %v5827 = vand.u32 %v5563, 4294901760
      %5828 = vmatmul.f32.gmra.mxu0 %v5827
      %v5829 = vpop.f32.mrf.mxu0
      %v5830 = vadd.f32 %v5797, %v5829
      %v5831 = vand.u32 %v5566, 4294901760
      %5832 = vmatmul.f32.gmra.mxu0 %v5831
      %v5833 = vpop.f32.mrf.mxu0
      %v5834 = vadd.f32 %v5801, %v5833
      %5835 = vdwg.mxu0
      %5836 = vmatpush.msra.mxu0 0.0
      %5837 = vmatpush.msra.mxu0 0.0
      %5838 = vmatpush.msra.mxu0 0.0
      %5839 = vmatpush.msra.mxu0 0.0
      %5840 = vmatpush.msra.mxu0 0.0
      %5841 = vmatpush.msra.mxu0 0.0
      %5842 = vmatpush.msra.mxu0 0.0
      %5843 = vmatpush.msra.mxu0 0.0
      %v5844 = vand.u32 %v5554, 4294901760
      %5845 = vmatpush.msra.mxu0 %v5844
      %v5846 = vand.u32 %v5552, 4294901760
      %5847 = vmatpush.msra.mxu0 %v5846
      %v5848 = vand.u32 %v5550, 4294901760
      %5849 = vmatpush.msra.mxu0 %v5848
      %v5850 = vand.u32 %v5548, 4294901760
      %5851 = vmatpush.msra.mxu0 %v5850
      %v5852 = vand.u32 %v5546, 4294901760
      %5853 = vmatpush.msra.mxu0 %v5852
      %v5854 = vand.u32 %v5544, 4294901760
      %5855 = vmatpush.msra.mxu0 %v5854
      %v5856 = vand.u32 %v5542, 4294901760
      %5857 = vmatpush.msra.mxu0 %v5856
      %v5858 = vand.u32 %v5540, 4294901760
      %5859 = vmatpush.msra.mxu0 %v5858
      %v5860 = vand.u32 %v5563, 4294901760
      %v5861 = vsub.f32 %v5563, %v5860
      %v5862 = vand.u32 %v5861, 4294901760
      %v5863 = vsub.f32 %v5861, %v5862
      %v5864 = vand.u32 %v5863, 4294901760
      %5865 = vmatmul.f32.gmra.mxu0 %v5864
      %v5866 = vpop.f32.mrf.mxu0
      %v5867 = vadd.f32 %v5559, %v5866
      %v5868 = vand.u32 %v5566, 4294901760
      %v5869 = vsub.f32 %v5566, %v5868
      %v5870 = vand.u32 %v5869, 4294901760
      %v5871 = vsub.f32 %v5869, %v5870
      %v5872 = vand.u32 %v5871, 4294901760
      %5873 = vmatmul.f32.gmra.mxu0 %v5872
      %v5874 = vpop.f32.mrf.mxu0
      %v5875 = vadd.f32 %v5559, %v5874
      %5876 = vdwg.mxu0
      %5877 = vmatpush.msra.mxu0 0.0
      %5878 = vmatpush.msra.mxu0 0.0
      %5879 = vmatpush.msra.mxu0 0.0
      %5880 = vmatpush.msra.mxu0 0.0
      %5881 = vmatpush.msra.mxu0 0.0
      %5882 = vmatpush.msra.mxu0 0.0
      %5883 = vmatpush.msra.mxu0 0.0
      %5884 = vmatpush.msra.mxu0 0.0
      %v5885 = vand.u32 %v5554, 4294901760
      %v5886 = vsub.f32 %v5554, %v5885
      %v5887 = vand.u32 %v5886, 4294901760
      %v5888 = vsub.f32 %v5886, %v5887
      %v5889 = vand.u32 %v5888, 4294901760
      %5890 = vmatpush.msra.mxu0 %v5889
      %v5891 = vand.u32 %v5552, 4294901760
      %v5892 = vsub.f32 %v5552, %v5891
      %v5893 = vand.u32 %v5892, 4294901760
      %v5894 = vsub.f32 %v5892, %v5893
      %v5895 = vand.u32 %v5894, 4294901760
      %5896 = vmatpush.msra.mxu0 %v5895
      %v5897 = vand.u32 %v5550, 4294901760
      %v5898 = vsub.f32 %v5550, %v5897
      %v5899 = vand.u32 %v5898, 4294901760
      %v5900 = vsub.f32 %v5898, %v5899
      %v5901 = vand.u32 %v5900, 4294901760
      %5902 = vmatpush.msra.mxu0 %v5901
      %v5903 = vand.u32 %v5548, 4294901760
      %v5904 = vsub.f32 %v5548, %v5903
      %v5905 = vand.u32 %v5904, 4294901760
      %v5906 = vsub.f32 %v5904, %v5905
      %v5907 = vand.u32 %v5906, 4294901760
      %5908 = vmatpush.msra.mxu0 %v5907
      %v5909 = vand.u32 %v5546, 4294901760
      %v5910 = vsub.f32 %v5546, %v5909
      %v5911 = vand.u32 %v5910, 4294901760
      %v5912 = vsub.f32 %v5910, %v5911
      %v5913 = vand.u32 %v5912, 4294901760
      %5914 = vmatpush.msra.mxu0 %v5913
      %v5915 = vand.u32 %v5544, 4294901760
      %v5916 = vsub.f32 %v5544, %v5915
      %v5917 = vand.u32 %v5916, 4294901760
      %v5918 = vsub.f32 %v5916, %v5917
      %v5919 = vand.u32 %v5918, 4294901760
      %5920 = vmatpush.msra.mxu0 %v5919
      %v5921 = vand.u32 %v5542, 4294901760
      %v5922 = vsub.f32 %v5542, %v5921
      %v5923 = vand.u32 %v5922, 4294901760
      %v5924 = vsub.f32 %v5922, %v5923
      %v5925 = vand.u32 %v5924, 4294901760
      %5926 = vmatpush.msra.mxu0 %v5925
      %v5927 = vand.u32 %v5540, 4294901760
      %v5928 = vsub.f32 %v5540, %v5927
      %v5929 = vand.u32 %v5928, 4294901760
      %v5930 = vsub.f32 %v5928, %v5929
      %v5931 = vand.u32 %v5930, 4294901760
      %5932 = vmatpush.msra.mxu0 %v5931
      %v5933 = vand.u32 %v5563, 4294901760
      %5934 = vmatmul.f32.gmra.mxu0 %v5933
      %v5935 = vpop.f32.mrf.mxu0
      %v5936 = vadd.f32 %v5867, %v5935
      %v5937 = vand.u32 %v5566, 4294901760
      %5938 = vmatmul.f32.gmra.mxu0 %v5937
      %v5939 = vpop.f32.mrf.mxu0
      %v5940 = vadd.f32 %v5875, %v5939
      %5941 = vdwg.mxu0
      %5942 = vmatpush.msra.mxu0 0.0
      %5943 = vmatpush.msra.mxu0 0.0
      %5944 = vmatpush.msra.mxu0 0.0
      %5945 = vmatpush.msra.mxu0 0.0
      %5946 = vmatpush.msra.mxu0 0.0
      %5947 = vmatpush.msra.mxu0 0.0
      %5948 = vmatpush.msra.mxu0 0.0
      %5949 = vmatpush.msra.mxu0 0.0
      %v5950 = vand.u32 %v5554, 4294901760
      %v5951 = vsub.f32 %v5554, %v5950
      %5952 = vmatpush.msra.mxu0 %v5951
      %v5953 = vand.u32 %v5552, 4294901760
      %v5954 = vsub.f32 %v5552, %v5953
      %5955 = vmatpush.msra.mxu0 %v5954
      %v5956 = vand.u32 %v5550, 4294901760
      %v5957 = vsub.f32 %v5550, %v5956
      %5958 = vmatpush.msra.mxu0 %v5957
      %v5959 = vand.u32 %v5548, 4294901760
      %v5960 = vsub.f32 %v5548, %v5959
      %5961 = vmatpush.msra.mxu0 %v5960
      %v5962 = vand.u32 %v5546, 4294901760
      %v5963 = vsub.f32 %v5546, %v5962
      %5964 = vmatpush.msra.mxu0 %v5963
      %v5965 = vand.u32 %v5544, 4294901760
      %v5966 = vsub.f32 %v5544, %v5965
      %5967 = vmatpush.msra.mxu0 %v5966
      %v5968 = vand.u32 %v5542, 4294901760
      %v5969 = vsub.f32 %v5542, %v5968
      %5970 = vmatpush.msra.mxu0 %v5969
      %v5971 = vand.u32 %v5540, 4294901760
      %v5972 = vsub.f32 %v5540, %v5971
      %5973 = vmatpush.msra.mxu0 %v5972
      %v5974 = vand.u32 %v5563, 4294901760
      %v5975 = vsub.f32 %v5563, %v5974
      %5976 = vmatmul.f32.gmra.mxu0 %v5975
      %v5977 = vpop.f32.mrf.mxu0
      %v5978 = vadd.f32 %v5936, %v5977
      %v5979 = vand.u32 %v5566, 4294901760
      %v5980 = vsub.f32 %v5566, %v5979
      %5981 = vmatmul.f32.gmra.mxu0 %v5980
      %v5982 = vpop.f32.mrf.mxu0
      %v5983 = vadd.f32 %v5940, %v5982
      %5984 = vdwg.mxu0
      %5985 = vmatpush.msra.mxu0 0.0
      %5986 = vmatpush.msra.mxu0 0.0
      %5987 = vmatpush.msra.mxu0 0.0
      %5988 = vmatpush.msra.mxu0 0.0
      %5989 = vmatpush.msra.mxu0 0.0
      %5990 = vmatpush.msra.mxu0 0.0
      %5991 = vmatpush.msra.mxu0 0.0
      %5992 = vmatpush.msra.mxu0 0.0
      %v5993 = vand.u32 %v5554, 4294901760
      %5994 = vmatpush.msra.mxu0 %v5993
      %v5995 = vand.u32 %v5552, 4294901760
      %5996 = vmatpush.msra.mxu0 %v5995
      %v5997 = vand.u32 %v5550, 4294901760
      %5998 = vmatpush.msra.mxu0 %v5997
      %v5999 = vand.u32 %v5548, 4294901760
      %6000 = vmatpush.msra.mxu0 %v5999
      %v6001 = vand.u32 %v5546, 4294901760
      %6002 = vmatpush.msra.mxu0 %v6001
      %v6003 = vand.u32 %v5544, 4294901760
      %6004 = vmatpush.msra.mxu0 %v6003
      %v6005 = vand.u32 %v5542, 4294901760
      %6006 = vmatpush.msra.mxu0 %v6005
      %v6007 = vand.u32 %v5540, 4294901760
      %6008 = vmatpush.msra.mxu0 %v6007
      %v6009 = vand.u32 %v5563, 4294901760
      %v6010 = vsub.f32 %v5563, %v6009
      %v6011 = vand.u32 %v6010, 4294901760
      %6012 = vmatmul.f32.gmra.mxu0 %v6011
      %v6013 = vpop.f32.mrf.mxu0
      %v6014 = vadd.f32 %v5978, %v6013
      %v6015 = vand.u32 %v5566, 4294901760
      %v6016 = vsub.f32 %v5566, %v6015
      %v6017 = vand.u32 %v6016, 4294901760
      %6018 = vmatmul.f32.gmra.mxu0 %v6017
      %v6019 = vpop.f32.mrf.mxu0
      %v6020 = vadd.f32 %v5983, %v6019
      %6021 = vdwg.mxu0
      %6022 = vmatpush.msra.mxu0 0.0
      %6023 = vmatpush.msra.mxu0 0.0
      %6024 = vmatpush.msra.mxu0 0.0
      %6025 = vmatpush.msra.mxu0 0.0
      %6026 = vmatpush.msra.mxu0 0.0
      %6027 = vmatpush.msra.mxu0 0.0
      %6028 = vmatpush.msra.mxu0 0.0
      %6029 = vmatpush.msra.mxu0 0.0
      %v6030 = vand.u32 %v5554, 4294901760
      %v6031 = vsub.f32 %v5554, %v6030
      %v6032 = vand.u32 %v6031, 4294901760
      %6033 = vmatpush.msra.mxu0 %v6032
      %v6034 = vand.u32 %v5552, 4294901760
      %v6035 = vsub.f32 %v5552, %v6034
      %v6036 = vand.u32 %v6035, 4294901760
      %6037 = vmatpush.msra.mxu0 %v6036
      %v6038 = vand.u32 %v5550, 4294901760
      %v6039 = vsub.f32 %v5550, %v6038
      %v6040 = vand.u32 %v6039, 4294901760
      %6041 = vmatpush.msra.mxu0 %v6040
      %v6042 = vand.u32 %v5548, 4294901760
      %v6043 = vsub.f32 %v5548, %v6042
      %v6044 = vand.u32 %v6043, 4294901760
      %6045 = vmatpush.msra.mxu0 %v6044
      %v6046 = vand.u32 %v5546, 4294901760
      %v6047 = vsub.f32 %v5546, %v6046
      %v6048 = vand.u32 %v6047, 4294901760
      %6049 = vmatpush.msra.mxu0 %v6048
      %v6050 = vand.u32 %v5544, 4294901760
      %v6051 = vsub.f32 %v5544, %v6050
      %v6052 = vand.u32 %v6051, 4294901760
      %6053 = vmatpush.msra.mxu0 %v6052
      %v6054 = vand.u32 %v5542, 4294901760
      %v6055 = vsub.f32 %v5542, %v6054
      %v6056 = vand.u32 %v6055, 4294901760
      %6057 = vmatpush.msra.mxu0 %v6056
      %v6058 = vand.u32 %v5540, 4294901760
      %v6059 = vsub.f32 %v5540, %v6058
      %v6060 = vand.u32 %v6059, 4294901760
      %6061 = vmatpush.msra.mxu0 %v6060
      %v6062 = vand.u32 %v5563, 4294901760
      %6063 = vmatmul.f32.gmra.mxu0 %v6062
      %v6064 = vpop.f32.mrf.mxu0
      %v6065 = vadd.f32 %v6014, %v6064
      %v6066 = vand.u32 %v5566, 4294901760
      %6067 = vmatmul.f32.gmra.mxu0 %v6066
      %v6068 = vpop.f32.mrf.mxu0
      %v6069 = vadd.f32 %v6020, %v6068
      %6070 = vdwg.mxu0
      %6071 = vmatpush.msra.mxu0 0.0
      %6072 = vmatpush.msra.mxu0 0.0
      %6073 = vmatpush.msra.mxu0 0.0
      %6074 = vmatpush.msra.mxu0 0.0
      %6075 = vmatpush.msra.mxu0 0.0
      %6076 = vmatpush.msra.mxu0 0.0
      %6077 = vmatpush.msra.mxu0 0.0
      %6078 = vmatpush.msra.mxu0 0.0
      %v6079 = vand.u32 %v5554, 4294901760
      %6080 = vmatpush.msra.mxu0 %v6079
      %v6081 = vand.u32 %v5552, 4294901760
      %6082 = vmatpush.msra.mxu0 %v6081
      %v6083 = vand.u32 %v5550, 4294901760
      %6084 = vmatpush.msra.mxu0 %v6083
      %v6085 = vand.u32 %v5548, 4294901760
      %6086 = vmatpush.msra.mxu0 %v6085
      %v6087 = vand.u32 %v5546, 4294901760
      %6088 = vmatpush.msra.mxu0 %v6087
      %v6089 = vand.u32 %v5544, 4294901760
      %6090 = vmatpush.msra.mxu0 %v6089
      %v6091 = vand.u32 %v5542, 4294901760
      %6092 = vmatpush.msra.mxu0 %v6091
      %v6093 = vand.u32 %v5540, 4294901760
      %6094 = vmatpush.msra.mxu0 %v6093
      %v6095 = vand.u32 %v5563, 4294901760
      %6096 = vmatmul.f32.gmra.mxu0 %v6095
      %v6097 = vpop.f32.mrf.mxu0
      %v6098 = vadd.f32 %v6065, %v6097
      %v6099 = vand.u32 %v5566, 4294901760
      %6100 = vmatmul.f32.gmra.mxu0 %v6099
      %v6101 = vpop.f32.mrf.mxu0
      %v6102 = vadd.f32 %v6069, %v6101
      %6103 = vdwg.mxu0
      %6106 = vrot.lane.b32.xlu0 %v5830, 64
      %v6107 = vpop.permute.xlu0 %6106
      %6108 = vrot.lane.b32.xlu0 %v5834, 64
      %v6109 = vpop.permute.xlu0 %6108
      %v6110 = vsel %vm420, %v5830, 0
      %v6112 = vsel %vm420, %v5834, 0
      %v6114 = vsel %vm420, %v6107, 0
      %v6116 = vsel %vm420, %v6109, 0
      %6118 = vmatpush.xpose.msra.mxu0 0.0
      %6119 = vmatpush.xpose.msra.mxu0 0.0
      %6120 = vmatpush.xpose.msra.mxu0 0.0
      %6121 = vmatpush.xpose.msra.mxu0 0.0
      %6122 = vmatpush.xpose.msra.mxu0 0.0
      %6123 = vmatpush.xpose.msra.mxu0 0.0
      %6124 = vmatpush.xpose.msra.mxu0 0.0
      %6125 = vmatpush.xpose.msra.mxu0 0.0
      %6126 = vmatpush.xpose.msra.mxu0 0.0
      %6127 = vmatpush.xpose.msra.mxu0 0.0
      %6128 = vmatpush.xpose.msra.mxu0 0.0
      %6129 = vmatpush.xpose.msra.mxu0 0.0
      %6130 = vmatpush.xpose.msra.mxu0 0.0
      %6131 = vmatpush.xpose.msra.mxu0 0.0
      %v6132 = vand.u32 %v6116, 4294901760
      %6133 = vmatpush.xpose.msra.mxu0 %v6132
      %v6134 = vand.u32 %v6114, 4294901760
      %6135 = vmatpush.xpose.msra.mxu0 %v6134
      %v6136 = vand.u32 %v6110, 4294901760
      %v6137 = vsub.f32 %v6110, %v6136
      %v6138 = vand.u32 %v6137, 4294901760
      %v6139 = vsub.f32 %v6137, %v6138
      %v6140 = vand.u32 %v6139, 4294901760
      %6141 = vmatmul.f32.gmra.mxu0 %v6140
      %v6142 = vpop.f32.mrf.mxu0
      %v6143 = vadd.f32 0.0, %v6142
      %v6144 = vand.u32 %v6112, 4294901760
      %v6145 = vsub.f32 %v6112, %v6144
      %v6146 = vand.u32 %v6145, 4294901760
      %v6147 = vsub.f32 %v6145, %v6146
      %v6148 = vand.u32 %v6147, 4294901760
      %6149 = vmatmul.f32.gmra.mxu0 %v6148
      %v6150 = vpop.f32.mrf.mxu0
      %v6151 = vadd.f32 0.0, %v6150
      %6152 = vdwg.mxu0
      %6153 = vmatpush.xpose.msra.mxu0 0.0
      %6154 = vmatpush.xpose.msra.mxu0 0.0
      %6155 = vmatpush.xpose.msra.mxu0 0.0
      %6156 = vmatpush.xpose.msra.mxu0 0.0
      %6157 = vmatpush.xpose.msra.mxu0 0.0
      %6158 = vmatpush.xpose.msra.mxu0 0.0
      %6159 = vmatpush.xpose.msra.mxu0 0.0
      %6160 = vmatpush.xpose.msra.mxu0 0.0
      %6161 = vmatpush.xpose.msra.mxu0 0.0
      %6162 = vmatpush.xpose.msra.mxu0 0.0
      %6163 = vmatpush.xpose.msra.mxu0 0.0
      %6164 = vmatpush.xpose.msra.mxu0 0.0
      %6165 = vmatpush.xpose.msra.mxu0 0.0
      %6166 = vmatpush.xpose.msra.mxu0 0.0
      %v6167 = vand.u32 %v6116, 4294901760
      %v6168 = vsub.f32 %v6116, %v6167
      %v6169 = vand.u32 %v6168, 4294901760
      %v6170 = vsub.f32 %v6168, %v6169
      %v6171 = vand.u32 %v6170, 4294901760
      %6172 = vmatpush.xpose.msra.mxu0 %v6171
      %v6173 = vand.u32 %v6114, 4294901760
      %v6174 = vsub.f32 %v6114, %v6173
      %v6175 = vand.u32 %v6174, 4294901760
      %v6176 = vsub.f32 %v6174, %v6175
      %v6177 = vand.u32 %v6176, 4294901760
      %6178 = vmatpush.xpose.msra.mxu0 %v6177
      %v6179 = vand.u32 %v6110, 4294901760
      %6180 = vmatmul.f32.gmra.mxu0 %v6179
      %v6181 = vpop.f32.mrf.mxu0
      %v6182 = vadd.f32 %v6143, %v6181
      %v6183 = vand.u32 %v6112, 4294901760
      %6184 = vmatmul.f32.gmra.mxu0 %v6183
      %v6185 = vpop.f32.mrf.mxu0
      %v6186 = vadd.f32 %v6151, %v6185
      %6187 = vdwg.mxu0
      %6188 = vmatpush.xpose.msra.mxu0 0.0
      %6189 = vmatpush.xpose.msra.mxu0 0.0
      %6190 = vmatpush.xpose.msra.mxu0 0.0
      %6191 = vmatpush.xpose.msra.mxu0 0.0
      %6192 = vmatpush.xpose.msra.mxu0 0.0
      %6193 = vmatpush.xpose.msra.mxu0 0.0
      %6194 = vmatpush.xpose.msra.mxu0 0.0
      %6195 = vmatpush.xpose.msra.mxu0 0.0
      %6196 = vmatpush.xpose.msra.mxu0 0.0
      %6197 = vmatpush.xpose.msra.mxu0 0.0
      %6198 = vmatpush.xpose.msra.mxu0 0.0
      %6199 = vmatpush.xpose.msra.mxu0 0.0
      %6200 = vmatpush.xpose.msra.mxu0 0.0
      %6201 = vmatpush.xpose.msra.mxu0 0.0
      %v6202 = vand.u32 %v6116, 4294901760
      %v6203 = vsub.f32 %v6116, %v6202
      %6204 = vmatpush.xpose.msra.mxu0 %v6203
      %v6205 = vand.u32 %v6114, 4294901760
      %v6206 = vsub.f32 %v6114, %v6205
      %6207 = vmatpush.xpose.msra.mxu0 %v6206
      %v6208 = vand.u32 %v6110, 4294901760
      %v6209 = vsub.f32 %v6110, %v6208
      %6210 = vmatmul.f32.gmra.mxu0 %v6209
      %v6211 = vpop.f32.mrf.mxu0
      %v6212 = vadd.f32 %v6182, %v6211
      %v6213 = vand.u32 %v6112, 4294901760
      %v6214 = vsub.f32 %v6112, %v6213
      %6215 = vmatmul.f32.gmra.mxu0 %v6214
      %v6216 = vpop.f32.mrf.mxu0
      %v6217 = vadd.f32 %v6186, %v6216
      %6218 = vdwg.mxu0
      %6219 = vmatpush.xpose.msra.mxu0 0.0
      %6220 = vmatpush.xpose.msra.mxu0 0.0
      %6221 = vmatpush.xpose.msra.mxu0 0.0
      %6222 = vmatpush.xpose.msra.mxu0 0.0
      %6223 = vmatpush.xpose.msra.mxu0 0.0
      %6224 = vmatpush.xpose.msra.mxu0 0.0
      %6225 = vmatpush.xpose.msra.mxu0 0.0
      %6226 = vmatpush.xpose.msra.mxu0 0.0
      %6227 = vmatpush.xpose.msra.mxu0 0.0
      %6228 = vmatpush.xpose.msra.mxu0 0.0
      %6229 = vmatpush.xpose.msra.mxu0 0.0
      %6230 = vmatpush.xpose.msra.mxu0 0.0
      %6231 = vmatpush.xpose.msra.mxu0 0.0
      %6232 = vmatpush.xpose.msra.mxu0 0.0
      %v6233 = vand.u32 %v6116, 4294901760
      %6234 = vmatpush.xpose.msra.mxu0 %v6233
      %v6235 = vand.u32 %v6114, 4294901760
      %6236 = vmatpush.xpose.msra.mxu0 %v6235
      %v6237 = vand.u32 %v6110, 4294901760
      %v6238 = vsub.f32 %v6110, %v6237
      %v6239 = vand.u32 %v6238, 4294901760
      %6240 = vmatmul.f32.gmra.mxu0 %v6239
      %v6241 = vpop.f32.mrf.mxu0
      %v6242 = vadd.f32 %v6212, %v6241
      %v6243 = vand.u32 %v6112, 4294901760
      %v6244 = vsub.f32 %v6112, %v6243
      %v6245 = vand.u32 %v6244, 4294901760
      %6246 = vmatmul.f32.gmra.mxu0 %v6245
      %v6247 = vpop.f32.mrf.mxu0
      %v6248 = vadd.f32 %v6217, %v6247
      %6249 = vdwg.mxu0
      %6250 = vmatpush.xpose.msra.mxu0 0.0
      %6251 = vmatpush.xpose.msra.mxu0 0.0
      %6252 = vmatpush.xpose.msra.mxu0 0.0
      %6253 = vmatpush.xpose.msra.mxu0 0.0
      %6254 = vmatpush.xpose.msra.mxu0 0.0
      %6255 = vmatpush.xpose.msra.mxu0 0.0
      %6256 = vmatpush.xpose.msra.mxu0 0.0
      %6257 = vmatpush.xpose.msra.mxu0 0.0
      %6258 = vmatpush.xpose.msra.mxu0 0.0
      %6259 = vmatpush.xpose.msra.mxu0 0.0
      %6260 = vmatpush.xpose.msra.mxu0 0.0
      %6261 = vmatpush.xpose.msra.mxu0 0.0
      %6262 = vmatpush.xpose.msra.mxu0 0.0
      %6263 = vmatpush.xpose.msra.mxu0 0.0
      %v6264 = vand.u32 %v6116, 4294901760
      %v6265 = vsub.f32 %v6116, %v6264
      %v6266 = vand.u32 %v6265, 4294901760
      %6267 = vmatpush.xpose.msra.mxu0 %v6266
      %v6268 = vand.u32 %v6114, 4294901760
      %v6269 = vsub.f32 %v6114, %v6268
      %v6270 = vand.u32 %v6269, 4294901760
      %6271 = vmatpush.xpose.msra.mxu0 %v6270
      %v6272 = vand.u32 %v6110, 4294901760
      %6273 = vmatmul.f32.gmra.mxu0 %v6272
      %v6274 = vpop.f32.mrf.mxu0
      %v6275 = vadd.f32 %v6242, %v6274
      %v6276 = vand.u32 %v6112, 4294901760
      %6277 = vmatmul.f32.gmra.mxu0 %v6276
      %v6278 = vpop.f32.mrf.mxu0
      %v6279 = vadd.f32 %v6248, %v6278
      %6280 = vdwg.mxu0
      %6281 = vmatpush.xpose.msra.mxu0 0.0
      %6282 = vmatpush.xpose.msra.mxu0 0.0
      %6283 = vmatpush.xpose.msra.mxu0 0.0
      %6284 = vmatpush.xpose.msra.mxu0 0.0
      %6285 = vmatpush.xpose.msra.mxu0 0.0
      %6286 = vmatpush.xpose.msra.mxu0 0.0
      %6287 = vmatpush.xpose.msra.mxu0 0.0
      %6288 = vmatpush.xpose.msra.mxu0 0.0
      %6289 = vmatpush.xpose.msra.mxu0 0.0
      %6290 = vmatpush.xpose.msra.mxu0 0.0
      %6291 = vmatpush.xpose.msra.mxu0 0.0
      %6292 = vmatpush.xpose.msra.mxu0 0.0
      %6293 = vmatpush.xpose.msra.mxu0 0.0
      %6294 = vmatpush.xpose.msra.mxu0 0.0
      %v6295 = vand.u32 %v6116, 4294901760
      %6296 = vmatpush.xpose.msra.mxu0 %v6295
      %v6297 = vand.u32 %v6114, 4294901760
      %6298 = vmatpush.xpose.msra.mxu0 %v6297
      %v6299 = vand.u32 %v6110, 4294901760
      %6300 = vmatmul.f32.gmra.mxu0 %v6299
      %v6301 = vpop.f32.mrf.mxu0
      %v6302 = vadd.f32 %v6275, %v6301
      %v6303 = vand.u32 %v6112, 4294901760
      %6304 = vmatmul.f32.gmra.mxu0 %v6303
      %v6305 = vpop.f32.mrf.mxu0
      %v6306 = vadd.f32 %v6279, %v6305
      %6307 = vdwg.mxu0
      %v6308 = vmul.f32 %v6302, 0.25
      %v6309 = vmul.f32 %v6306, 0.25
      %v6310 = vsel %vm420, %v6308, -inf
      %6311 = vmax.xlane.f32.xlu0 %v6310
      %v6312 = vpop.xlane.xlu0 %6311
      %v6313 = vsel %vm420, %v6309, -inf
      %6314 = vmax.xlane.f32.xlu0 %v6313
      %v6315 = vpop.xlane.xlu0 %6314
      %v6316 = vsub.f32 %v6308, %v6312
      %v6317 = vsub.f32 %v6309, %v6315
      %v6318 = vmul.f32 %v6316, 1.442695
      %v6319 = vpow.pop %v6318
      %v6320 = vmul.f32 %v6317, 1.442695
      %v6321 = vpow.pop %v6320
      %v6322 = vsel %vm420, %v6319, 0.0
      %6323 = vadd.xlane.f32.xlu0 %v6322
      %v6324 = vpop.xlane.xlu0 %6323
      %v6325 = vsel %vm420, %v6321, 0.0
      %6326 = vadd.xlane.f32.xlu0 %v6325
      %v6327 = vpop.xlane.xlu0 %6326
      %v6328 = vrcp.pop %v6324
      %v6329 = vrcp.pop %v6327
      %v6330 = vmul.f32 %v6324, %v6328
      %v6331 = vmul.f32 %v6327, %v6329
      %v6332 = vsub.f32 2.0, %v6330
      %v6333 = vsub.f32 2.0, %v6331
      %v6334 = vmul.f32 %v6328, %v6332
      %v6335 = vmul.f32 %v6329, %v6333
      %v6336 = vmul.f32 %v6319, %v6334
      %v6337 = vmul.f32 %v6321, %v6335
      %v6339 = vsel %vm420, %v6336, 0
      %v6342 = vsel %vm420, %v6337, 0
      %6344 = vmatpush.msra.mxu0 0.0
      %6345 = vmatpush.msra.mxu0 0.0
      %6346 = vmatpush.msra.mxu0 0.0
      %6347 = vmatpush.msra.mxu0 0.0
      %6348 = vmatpush.msra.mxu0 0.0
      %6349 = vmatpush.msra.mxu0 0.0
      %6350 = vmatpush.msra.mxu0 0.0
      %6351 = vmatpush.msra.mxu0 0.0
      %6352 = vmatpush.msra.mxu0 0.0
      %6353 = vmatpush.msra.mxu0 0.0
      %6354 = vmatpush.msra.mxu0 0.0
      %6355 = vmatpush.msra.mxu0 0.0
      %6356 = vmatpush.msra.mxu0 0.0
      %6357 = vmatpush.msra.mxu0 0.0
      %v6358 = vand.u32 %v6102, 4294901760
      %6359 = vmatpush.msra.mxu0 %v6358
      %v6360 = vand.u32 %v6098, 4294901760
      %6361 = vmatpush.msra.mxu0 %v6360
      %v6362 = vand.u32 %v6339, 4294901760
      %v6363 = vsub.f32 %v6339, %v6362
      %v6364 = vand.u32 %v6363, 4294901760
      %v6365 = vsub.f32 %v6363, %v6364
      %v6366 = vand.u32 %v6365, 4294901760
      %6367 = vmatmul.f32.gmra.mxu0 %v6366
      %v6368 = vpop.f32.mrf.mxu0
      %v6369 = vadd.f32 0.0, %v6368
      %v6370 = vand.u32 %v6342, 4294901760
      %v6371 = vsub.f32 %v6342, %v6370
      %v6372 = vand.u32 %v6371, 4294901760
      %v6373 = vsub.f32 %v6371, %v6372
      %v6374 = vand.u32 %v6373, 4294901760
      %6375 = vmatmul.f32.gmra.mxu0 %v6374
      %v6376 = vpop.f32.mrf.mxu0
      %v6377 = vadd.f32 0.0, %v6376
      %6378 = vdwg.mxu0
      %6379 = vmatpush.msra.mxu0 0.0
      %6380 = vmatpush.msra.mxu0 0.0
      %6381 = vmatpush.msra.mxu0 0.0
      %6382 = vmatpush.msra.mxu0 0.0
      %6383 = vmatpush.msra.mxu0 0.0
      %6384 = vmatpush.msra.mxu0 0.0
      %6385 = vmatpush.msra.mxu0 0.0
      %6386 = vmatpush.msra.mxu0 0.0
      %6387 = vmatpush.msra.mxu0 0.0
      %6388 = vmatpush.msra.mxu0 0.0
      %6389 = vmatpush.msra.mxu0 0.0
      %6390 = vmatpush.msra.mxu0 0.0
      %6391 = vmatpush.msra.mxu0 0.0
      %6392 = vmatpush.msra.mxu0 0.0
      %v6393 = vand.u32 %v6102, 4294901760
      %v6394 = vsub.f32 %v6102, %v6393
      %v6395 = vand.u32 %v6394, 4294901760
      %v6396 = vsub.f32 %v6394, %v6395
      %v6397 = vand.u32 %v6396, 4294901760
      %6398 = vmatpush.msra.mxu0 %v6397
      %v6399 = vand.u32 %v6098, 4294901760
      %v6400 = vsub.f32 %v6098, %v6399
      %v6401 = vand.u32 %v6400, 4294901760
      %v6402 = vsub.f32 %v6400, %v6401
      %v6403 = vand.u32 %v6402, 4294901760
      %6404 = vmatpush.msra.mxu0 %v6403
      %v6405 = vand.u32 %v6339, 4294901760
      %6406 = vmatmul.f32.gmra.mxu0 %v6405
      %v6407 = vpop.f32.mrf.mxu0
      %v6408 = vadd.f32 %v6369, %v6407
      %v6409 = vand.u32 %v6342, 4294901760
      %6410 = vmatmul.f32.gmra.mxu0 %v6409
      %v6411 = vpop.f32.mrf.mxu0
      %v6412 = vadd.f32 %v6377, %v6411
      %6413 = vdwg.mxu0
      %6414 = vmatpush.msra.mxu0 0.0
      %6415 = vmatpush.msra.mxu0 0.0
      %6416 = vmatpush.msra.mxu0 0.0
      %6417 = vmatpush.msra.mxu0 0.0
      %6418 = vmatpush.msra.mxu0 0.0
      %6419 = vmatpush.msra.mxu0 0.0
      %6420 = vmatpush.msra.mxu0 0.0
      %6421 = vmatpush.msra.mxu0 0.0
      %6422 = vmatpush.msra.mxu0 0.0
      %6423 = vmatpush.msra.mxu0 0.0
      %6424 = vmatpush.msra.mxu0 0.0
      %6425 = vmatpush.msra.mxu0 0.0
      %6426 = vmatpush.msra.mxu0 0.0
      %6427 = vmatpush.msra.mxu0 0.0
      %v6428 = vand.u32 %v6102, 4294901760
      %v6429 = vsub.f32 %v6102, %v6428
      %6430 = vmatpush.msra.mxu0 %v6429
      %v6431 = vand.u32 %v6098, 4294901760
      %v6432 = vsub.f32 %v6098, %v6431
      %6433 = vmatpush.msra.mxu0 %v6432
      %v6434 = vand.u32 %v6339, 4294901760
      %v6435 = vsub.f32 %v6339, %v6434
      %6436 = vmatmul.f32.gmra.mxu0 %v6435
      %v6437 = vpop.f32.mrf.mxu0
      %v6438 = vadd.f32 %v6408, %v6437
      %v6439 = vand.u32 %v6342, 4294901760
      %v6440 = vsub.f32 %v6342, %v6439
      %6441 = vmatmul.f32.gmra.mxu0 %v6440
      %v6442 = vpop.f32.mrf.mxu0
      %v6443 = vadd.f32 %v6412, %v6442
      %6444 = vdwg.mxu0
      %6445 = vmatpush.msra.mxu0 0.0
      %6446 = vmatpush.msra.mxu0 0.0
      %6447 = vmatpush.msra.mxu0 0.0
      %6448 = vmatpush.msra.mxu0 0.0
      %6449 = vmatpush.msra.mxu0 0.0
      %6450 = vmatpush.msra.mxu0 0.0
      %6451 = vmatpush.msra.mxu0 0.0
      %6452 = vmatpush.msra.mxu0 0.0
      %6453 = vmatpush.msra.mxu0 0.0
      %6454 = vmatpush.msra.mxu0 0.0
      %6455 = vmatpush.msra.mxu0 0.0
      %6456 = vmatpush.msra.mxu0 0.0
      %6457 = vmatpush.msra.mxu0 0.0
      %6458 = vmatpush.msra.mxu0 0.0
      %v6459 = vand.u32 %v6102, 4294901760
      %6460 = vmatpush.msra.mxu0 %v6459
      %v6461 = vand.u32 %v6098, 4294901760
      %6462 = vmatpush.msra.mxu0 %v6461
      %v6463 = vand.u32 %v6339, 4294901760
      %v6464 = vsub.f32 %v6339, %v6463
      %v6465 = vand.u32 %v6464, 4294901760
      %6466 = vmatmul.f32.gmra.mxu0 %v6465
      %v6467 = vpop.f32.mrf.mxu0
      %v6468 = vadd.f32 %v6438, %v6467
      %v6469 = vand.u32 %v6342, 4294901760
      %v6470 = vsub.f32 %v6342, %v6469
      %v6471 = vand.u32 %v6470, 4294901760
      %6472 = vmatmul.f32.gmra.mxu0 %v6471
      %v6473 = vpop.f32.mrf.mxu0
      %v6474 = vadd.f32 %v6443, %v6473
      %6475 = vdwg.mxu0
      %6476 = vmatpush.msra.mxu0 0.0
      %6477 = vmatpush.msra.mxu0 0.0
      %6478 = vmatpush.msra.mxu0 0.0
      %6479 = vmatpush.msra.mxu0 0.0
      %6480 = vmatpush.msra.mxu0 0.0
      %6481 = vmatpush.msra.mxu0 0.0
      %6482 = vmatpush.msra.mxu0 0.0
      %6483 = vmatpush.msra.mxu0 0.0
      %6484 = vmatpush.msra.mxu0 0.0
      %6485 = vmatpush.msra.mxu0 0.0
      %6486 = vmatpush.msra.mxu0 0.0
      %6487 = vmatpush.msra.mxu0 0.0
      %6488 = vmatpush.msra.mxu0 0.0
      %6489 = vmatpush.msra.mxu0 0.0
      %v6490 = vand.u32 %v6102, 4294901760
      %v6491 = vsub.f32 %v6102, %v6490
      %v6492 = vand.u32 %v6491, 4294901760
      %6493 = vmatpush.msra.mxu0 %v6492
      %v6494 = vand.u32 %v6098, 4294901760
      %v6495 = vsub.f32 %v6098, %v6494
      %v6496 = vand.u32 %v6495, 4294901760
      %6497 = vmatpush.msra.mxu0 %v6496
      %v6498 = vand.u32 %v6339, 4294901760
      %6499 = vmatmul.f32.gmra.mxu0 %v6498
      %v6500 = vpop.f32.mrf.mxu0
      %v6501 = vadd.f32 %v6468, %v6500
      %v6502 = vand.u32 %v6342, 4294901760
      %6503 = vmatmul.f32.gmra.mxu0 %v6502
      %v6504 = vpop.f32.mrf.mxu0
      %v6505 = vadd.f32 %v6474, %v6504
      %6506 = vdwg.mxu0
      %6507 = vmatpush.msra.mxu0 0.0
      %6508 = vmatpush.msra.mxu0 0.0
      %6509 = vmatpush.msra.mxu0 0.0
      %6510 = vmatpush.msra.mxu0 0.0
      %6511 = vmatpush.msra.mxu0 0.0
      %6512 = vmatpush.msra.mxu0 0.0
      %6513 = vmatpush.msra.mxu0 0.0
      %6514 = vmatpush.msra.mxu0 0.0
      %6515 = vmatpush.msra.mxu0 0.0
      %6516 = vmatpush.msra.mxu0 0.0
      %6517 = vmatpush.msra.mxu0 0.0
      %6518 = vmatpush.msra.mxu0 0.0
      %6519 = vmatpush.msra.mxu0 0.0
      %6520 = vmatpush.msra.mxu0 0.0
      %v6521 = vand.u32 %v6102, 4294901760
      %6522 = vmatpush.msra.mxu0 %v6521
      %v6523 = vand.u32 %v6098, 4294901760
      %6524 = vmatpush.msra.mxu0 %v6523
      %v6525 = vand.u32 %v6339, 4294901760
      %6526 = vmatmul.f32.gmra.mxu0 %v6525
      %v6527 = vpop.f32.mrf.mxu0
      %v6528 = vadd.f32 %v6501, %v6527
      %v6529 = vand.u32 %v6342, 4294901760
      %6530 = vmatmul.f32.gmra.mxu0 %v6529
      %v6531 = vpop.f32.mrf.mxu0
      %v6532 = vadd.f32 %v6505, %v6531
      %6533 = vdwg.mxu0
      %6534 = vrot.lane.b32.xlu0 %v5830, 112
      %v6535 = vpop.permute.xlu0 %6534
      %6536 = vrot.lane.b32.xlu0 %v5834, 112
      %v6537 = vpop.permute.xlu0 %6536
      %6538 = vrot.lane.b32.xlu0 %v5830, 48
      %v6539 = vpop.permute.xlu0 %6538
      %6540 = vrot.lane.b32.xlu0 %v5834, 48
      %v6541 = vpop.permute.xlu0 %6540
      %v6542 = vsel %vm420, %v6535, 0
      %v6544 = vsel %vm420, %v6537, 0
      %v6546 = vsel %vm420, %v6539, 0
      %v6548 = vsel %vm420, %v6541, 0
      %6550 = vmatpush.xpose.msra.mxu0 0.0
      %6551 = vmatpush.xpose.msra.mxu0 0.0
      %6552 = vmatpush.xpose.msra.mxu0 0.0
      %6553 = vmatpush.xpose.msra.mxu0 0.0
      %6554 = vmatpush.xpose.msra.mxu0 0.0
      %6555 = vmatpush.xpose.msra.mxu0 0.0
      %6556 = vmatpush.xpose.msra.mxu0 0.0
      %6557 = vmatpush.xpose.msra.mxu0 0.0
      %6558 = vmatpush.xpose.msra.mxu0 0.0
      %6559 = vmatpush.xpose.msra.mxu0 0.0
      %6560 = vmatpush.xpose.msra.mxu0 0.0
      %6561 = vmatpush.xpose.msra.mxu0 0.0
      %6562 = vmatpush.xpose.msra.mxu0 0.0
      %6563 = vmatpush.xpose.msra.mxu0 0.0
      %v6564 = vand.u32 %v6548, 4294901760
      %6565 = vmatpush.xpose.msra.mxu0 %v6564
      %v6566 = vand.u32 %v6546, 4294901760
      %6567 = vmatpush.xpose.msra.mxu0 %v6566
      %v6568 = vand.u32 %v6542, 4294901760
      %v6569 = vsub.f32 %v6542, %v6568
      %v6570 = vand.u32 %v6569, 4294901760
      %v6571 = vsub.f32 %v6569, %v6570
      %v6572 = vand.u32 %v6571, 4294901760
      %6573 = vmatmul.f32.gmra.mxu0 %v6572
      %v6574 = vpop.f32.mrf.mxu0
      %v6575 = vadd.f32 0.0, %v6574
      %v6576 = vand.u32 %v6544, 4294901760
      %v6577 = vsub.f32 %v6544, %v6576
      %v6578 = vand.u32 %v6577, 4294901760
      %v6579 = vsub.f32 %v6577, %v6578
      %v6580 = vand.u32 %v6579, 4294901760
      %6581 = vmatmul.f32.gmra.mxu0 %v6580
      %v6582 = vpop.f32.mrf.mxu0
      %v6583 = vadd.f32 0.0, %v6582
      %6584 = vdwg.mxu0
      %6585 = vmatpush.xpose.msra.mxu0 0.0
      %6586 = vmatpush.xpose.msra.mxu0 0.0
      %6587 = vmatpush.xpose.msra.mxu0 0.0
      %6588 = vmatpush.xpose.msra.mxu0 0.0
      %6589 = vmatpush.xpose.msra.mxu0 0.0
      %6590 = vmatpush.xpose.msra.mxu0 0.0
      %6591 = vmatpush.xpose.msra.mxu0 0.0
      %6592 = vmatpush.xpose.msra.mxu0 0.0
      %6593 = vmatpush.xpose.msra.mxu0 0.0
      %6594 = vmatpush.xpose.msra.mxu0 0.0
      %6595 = vmatpush.xpose.msra.mxu0 0.0
      %6596 = vmatpush.xpose.msra.mxu0 0.0
      %6597 = vmatpush.xpose.msra.mxu0 0.0
      %6598 = vmatpush.xpose.msra.mxu0 0.0
      %v6599 = vand.u32 %v6548, 4294901760
      %v6600 = vsub.f32 %v6548, %v6599
      %v6601 = vand.u32 %v6600, 4294901760
      %v6602 = vsub.f32 %v6600, %v6601
      %v6603 = vand.u32 %v6602, 4294901760
      %6604 = vmatpush.xpose.msra.mxu0 %v6603
      %v6605 = vand.u32 %v6546, 4294901760
      %v6606 = vsub.f32 %v6546, %v6605
      %v6607 = vand.u32 %v6606, 4294901760
      %v6608 = vsub.f32 %v6606, %v6607
      %v6609 = vand.u32 %v6608, 4294901760
      %6610 = vmatpush.xpose.msra.mxu0 %v6609
      %v6611 = vand.u32 %v6542, 4294901760
      %6612 = vmatmul.f32.gmra.mxu0 %v6611
      %v6613 = vpop.f32.mrf.mxu0
      %v6614 = vadd.f32 %v6575, %v6613
      %v6615 = vand.u32 %v6544, 4294901760
      %6616 = vmatmul.f32.gmra.mxu0 %v6615
      %v6617 = vpop.f32.mrf.mxu0
      %v6618 = vadd.f32 %v6583, %v6617
      %6619 = vdwg.mxu0
      %6620 = vmatpush.xpose.msra.mxu0 0.0
      %6621 = vmatpush.xpose.msra.mxu0 0.0
      %6622 = vmatpush.xpose.msra.mxu0 0.0
      %6623 = vmatpush.xpose.msra.mxu0 0.0
      %6624 = vmatpush.xpose.msra.mxu0 0.0
      %6625 = vmatpush.xpose.msra.mxu0 0.0
      %6626 = vmatpush.xpose.msra.mxu0 0.0
      %6627 = vmatpush.xpose.msra.mxu0 0.0
      %6628 = vmatpush.xpose.msra.mxu0 0.0
      %6629 = vmatpush.xpose.msra.mxu0 0.0
      %6630 = vmatpush.xpose.msra.mxu0 0.0
      %6631 = vmatpush.xpose.msra.mxu0 0.0
      %6632 = vmatpush.xpose.msra.mxu0 0.0
      %6633 = vmatpush.xpose.msra.mxu0 0.0
      %v6634 = vand.u32 %v6548, 4294901760
      %v6635 = vsub.f32 %v6548, %v6634
      %6636 = vmatpush.xpose.msra.mxu0 %v6635
      %v6637 = vand.u32 %v6546, 4294901760
      %v6638 = vsub.f32 %v6546, %v6637
      %6639 = vmatpush.xpose.msra.mxu0 %v6638
      %v6640 = vand.u32 %v6542, 4294901760
      %v6641 = vsub.f32 %v6542, %v6640
      %6642 = vmatmul.f32.gmra.mxu0 %v6641
      %v6643 = vpop.f32.mrf.mxu0
      %v6644 = vadd.f32 %v6614, %v6643
      %v6645 = vand.u32 %v6544, 4294901760
      %v6646 = vsub.f32 %v6544, %v6645
      %6647 = vmatmul.f32.gmra.mxu0 %v6646
      %v6648 = vpop.f32.mrf.mxu0
      %v6649 = vadd.f32 %v6618, %v6648
      %6650 = vdwg.mxu0
      %6651 = vmatpush.xpose.msra.mxu0 0.0
      %6652 = vmatpush.xpose.msra.mxu0 0.0
      %6653 = vmatpush.xpose.msra.mxu0 0.0
      %6654 = vmatpush.xpose.msra.mxu0 0.0
      %6655 = vmatpush.xpose.msra.mxu0 0.0
      %6656 = vmatpush.xpose.msra.mxu0 0.0
      %6657 = vmatpush.xpose.msra.mxu0 0.0
      %6658 = vmatpush.xpose.msra.mxu0 0.0
      %6659 = vmatpush.xpose.msra.mxu0 0.0
      %6660 = vmatpush.xpose.msra.mxu0 0.0
      %6661 = vmatpush.xpose.msra.mxu0 0.0
      %6662 = vmatpush.xpose.msra.mxu0 0.0
      %6663 = vmatpush.xpose.msra.mxu0 0.0
      %6664 = vmatpush.xpose.msra.mxu0 0.0
      %v6665 = vand.u32 %v6548, 4294901760
      %6666 = vmatpush.xpose.msra.mxu0 %v6665
      %v6667 = vand.u32 %v6546, 4294901760
      %6668 = vmatpush.xpose.msra.mxu0 %v6667
      %v6669 = vand.u32 %v6542, 4294901760
      %v6670 = vsub.f32 %v6542, %v6669
      %v6671 = vand.u32 %v6670, 4294901760
      %6672 = vmatmul.f32.gmra.mxu0 %v6671
      %v6673 = vpop.f32.mrf.mxu0
      %v6674 = vadd.f32 %v6644, %v6673
      %v6675 = vand.u32 %v6544, 4294901760
      %v6676 = vsub.f32 %v6544, %v6675
      %v6677 = vand.u32 %v6676, 4294901760
      %6678 = vmatmul.f32.gmra.mxu0 %v6677
      %v6679 = vpop.f32.mrf.mxu0
      %v6680 = vadd.f32 %v6649, %v6679
      %6681 = vdwg.mxu0
      %6682 = vmatpush.xpose.msra.mxu0 0.0
      %6683 = vmatpush.xpose.msra.mxu0 0.0
      %6684 = vmatpush.xpose.msra.mxu0 0.0
      %6685 = vmatpush.xpose.msra.mxu0 0.0
      %6686 = vmatpush.xpose.msra.mxu0 0.0
      %6687 = vmatpush.xpose.msra.mxu0 0.0
      %6688 = vmatpush.xpose.msra.mxu0 0.0
      %6689 = vmatpush.xpose.msra.mxu0 0.0
      %6690 = vmatpush.xpose.msra.mxu0 0.0
      %6691 = vmatpush.xpose.msra.mxu0 0.0
      %6692 = vmatpush.xpose.msra.mxu0 0.0
      %6693 = vmatpush.xpose.msra.mxu0 0.0
      %6694 = vmatpush.xpose.msra.mxu0 0.0
      %6695 = vmatpush.xpose.msra.mxu0 0.0
      %v6696 = vand.u32 %v6548, 4294901760
      %v6697 = vsub.f32 %v6548, %v6696
      %v6698 = vand.u32 %v6697, 4294901760
      %6699 = vmatpush.xpose.msra.mxu0 %v6698
      %v6700 = vand.u32 %v6546, 4294901760
      %v6701 = vsub.f32 %v6546, %v6700
      %v6702 = vand.u32 %v6701, 4294901760
      %6703 = vmatpush.xpose.msra.mxu0 %v6702
      %v6704 = vand.u32 %v6542, 4294901760
      %6705 = vmatmul.f32.gmra.mxu0 %v6704
      %v6706 = vpop.f32.mrf.mxu0
      %v6707 = vadd.f32 %v6674, %v6706
      %v6708 = vand.u32 %v6544, 4294901760
      %6709 = vmatmul.f32.gmra.mxu0 %v6708
      %v6710 = vpop.f32.mrf.mxu0
      %v6711 = vadd.f32 %v6680, %v6710
      %6712 = vdwg.mxu0
      %6713 = vmatpush.xpose.msra.mxu0 0.0
      %6714 = vmatpush.xpose.msra.mxu0 0.0
      %6715 = vmatpush.xpose.msra.mxu0 0.0
      %6716 = vmatpush.xpose.msra.mxu0 0.0
      %6717 = vmatpush.xpose.msra.mxu0 0.0
      %6718 = vmatpush.xpose.msra.mxu0 0.0
      %6719 = vmatpush.xpose.msra.mxu0 0.0
      %6720 = vmatpush.xpose.msra.mxu0 0.0
      %6721 = vmatpush.xpose.msra.mxu0 0.0
      %6722 = vmatpush.xpose.msra.mxu0 0.0
      %6723 = vmatpush.xpose.msra.mxu0 0.0
      %6724 = vmatpush.xpose.msra.mxu0 0.0
      %6725 = vmatpush.xpose.msra.mxu0 0.0
      %6726 = vmatpush.xpose.msra.mxu0 0.0
      %v6727 = vand.u32 %v6548, 4294901760
      %6728 = vmatpush.xpose.msra.mxu0 %v6727
      %v6729 = vand.u32 %v6546, 4294901760
      %6730 = vmatpush.xpose.msra.mxu0 %v6729
      %v6731 = vand.u32 %v6542, 4294901760
      %6732 = vmatmul.f32.gmra.mxu0 %v6731
      %v6733 = vpop.f32.mrf.mxu0
      %v6734 = vadd.f32 %v6707, %v6733
      %v6735 = vand.u32 %v6544, 4294901760
      %6736 = vmatmul.f32.gmra.mxu0 %v6735
      %v6737 = vpop.f32.mrf.mxu0
      %v6738 = vadd.f32 %v6711, %v6737
      %6739 = vdwg.mxu0
      %v6740 = vmul.f32 %v6734, 0.25
      %v6741 = vmul.f32 %v6738, 0.25
      %v6742 = vsel %vm420, %v6740, -inf
      %6743 = vmax.xlane.f32.xlu0 %v6742
      %v6744 = vpop.xlane.xlu0 %6743
      %v6745 = vsel %vm420, %v6741, -inf
      %6746 = vmax.xlane.f32.xlu0 %v6745
      %v6747 = vpop.xlane.xlu0 %6746
      %v6748 = vsub.f32 %v6740, %v6744
      %v6749 = vsub.f32 %v6741, %v6747
      %v6750 = vmul.f32 %v6748, 1.442695
      %v6751 = vpow.pop %v6750
      %v6752 = vmul.f32 %v6749, 1.442695
      %v6753 = vpow.pop %v6752
      %v6754 = vsel %vm420, %v6751, 0.0
      %6755 = vadd.xlane.f32.xlu0 %v6754
      %v6756 = vpop.xlane.xlu0 %6755
      %v6757 = vsel %vm420, %v6753, 0.0
      %6758 = vadd.xlane.f32.xlu0 %v6757
      %v6759 = vpop.xlane.xlu0 %6758
      %v6760 = vrcp.pop %v6756
      %v6761 = vrcp.pop %v6759
      %v6762 = vmul.f32 %v6756, %v6760
      %v6763 = vmul.f32 %v6759, %v6761
      %v6764 = vsub.f32 2.0, %v6762
      %v6765 = vsub.f32 2.0, %v6763
      %v6766 = vmul.f32 %v6760, %v6764
      %v6767 = vmul.f32 %v6761, %v6765
      %v6768 = vmul.f32 %v6751, %v6766
      %v6769 = vmul.f32 %v6753, %v6767
      %6772 = vrot.lane.b32.xlu0 %v6098, 112
      %v6773 = vpop.permute.xlu0 %6772
      %6774 = vrot.lane.b32.xlu0 %v6102, 112
      %v6775 = vpop.permute.xlu0 %6774
      %v6779 = vsel %vm420, %v6768, 0
      %v6782 = vsel %vm420, %v6769, 0
      %6784 = vmatpush.msra.mxu0 0.0
      %6785 = vmatpush.msra.mxu0 0.0
      %6786 = vmatpush.msra.mxu0 0.0
      %6787 = vmatpush.msra.mxu0 0.0
      %6788 = vmatpush.msra.mxu0 0.0
      %6789 = vmatpush.msra.mxu0 0.0
      %6790 = vmatpush.msra.mxu0 0.0
      %6791 = vmatpush.msra.mxu0 0.0
      %6792 = vmatpush.msra.mxu0 0.0
      %6793 = vmatpush.msra.mxu0 0.0
      %6794 = vmatpush.msra.mxu0 0.0
      %6795 = vmatpush.msra.mxu0 0.0
      %6796 = vmatpush.msra.mxu0 0.0
      %6797 = vmatpush.msra.mxu0 0.0
      %v6798 = vand.u32 %v6775, 4294901760
      %6799 = vmatpush.msra.mxu0 %v6798
      %v6800 = vand.u32 %v6773, 4294901760
      %6801 = vmatpush.msra.mxu0 %v6800
      %v6802 = vand.u32 %v6779, 4294901760
      %v6803 = vsub.f32 %v6779, %v6802
      %v6804 = vand.u32 %v6803, 4294901760
      %v6805 = vsub.f32 %v6803, %v6804
      %v6806 = vand.u32 %v6805, 4294901760
      %6807 = vmatmul.f32.gmra.mxu0 %v6806
      %v6808 = vpop.f32.mrf.mxu0
      %v6809 = vadd.f32 0.0, %v6808
      %v6810 = vand.u32 %v6782, 4294901760
      %v6811 = vsub.f32 %v6782, %v6810
      %v6812 = vand.u32 %v6811, 4294901760
      %v6813 = vsub.f32 %v6811, %v6812
      %v6814 = vand.u32 %v6813, 4294901760
      %6815 = vmatmul.f32.gmra.mxu0 %v6814
      %v6816 = vpop.f32.mrf.mxu0
      %v6817 = vadd.f32 0.0, %v6816
      %6818 = vdwg.mxu0
      %6819 = vmatpush.msra.mxu0 0.0
      %6820 = vmatpush.msra.mxu0 0.0
      %6821 = vmatpush.msra.mxu0 0.0
      %6822 = vmatpush.msra.mxu0 0.0
      %6823 = vmatpush.msra.mxu0 0.0
      %6824 = vmatpush.msra.mxu0 0.0
      %6825 = vmatpush.msra.mxu0 0.0
      %6826 = vmatpush.msra.mxu0 0.0
      %6827 = vmatpush.msra.mxu0 0.0
      %6828 = vmatpush.msra.mxu0 0.0
      %6829 = vmatpush.msra.mxu0 0.0
      %6830 = vmatpush.msra.mxu0 0.0
      %6831 = vmatpush.msra.mxu0 0.0
      %6832 = vmatpush.msra.mxu0 0.0
      %v6833 = vand.u32 %v6775, 4294901760
      %v6834 = vsub.f32 %v6775, %v6833
      %v6835 = vand.u32 %v6834, 4294901760
      %v6836 = vsub.f32 %v6834, %v6835
      %v6837 = vand.u32 %v6836, 4294901760
      %6838 = vmatpush.msra.mxu0 %v6837
      %v6839 = vand.u32 %v6773, 4294901760
      %v6840 = vsub.f32 %v6773, %v6839
      %v6841 = vand.u32 %v6840, 4294901760
      %v6842 = vsub.f32 %v6840, %v6841
      %v6843 = vand.u32 %v6842, 4294901760
      %6844 = vmatpush.msra.mxu0 %v6843
      %v6845 = vand.u32 %v6779, 4294901760
      %6846 = vmatmul.f32.gmra.mxu0 %v6845
      %v6847 = vpop.f32.mrf.mxu0
      %v6848 = vadd.f32 %v6809, %v6847
      %v6849 = vand.u32 %v6782, 4294901760
      %6850 = vmatmul.f32.gmra.mxu0 %v6849
      %v6851 = vpop.f32.mrf.mxu0
      %v6852 = vadd.f32 %v6817, %v6851
      %6853 = vdwg.mxu0
      %6854 = vmatpush.msra.mxu0 0.0
      %6855 = vmatpush.msra.mxu0 0.0
      %6856 = vmatpush.msra.mxu0 0.0
      %6857 = vmatpush.msra.mxu0 0.0
      %6858 = vmatpush.msra.mxu0 0.0
      %6859 = vmatpush.msra.mxu0 0.0
      %6860 = vmatpush.msra.mxu0 0.0
      %6861 = vmatpush.msra.mxu0 0.0
      %6862 = vmatpush.msra.mxu0 0.0
      %6863 = vmatpush.msra.mxu0 0.0
      %6864 = vmatpush.msra.mxu0 0.0
      %6865 = vmatpush.msra.mxu0 0.0
      %6866 = vmatpush.msra.mxu0 0.0
      %6867 = vmatpush.msra.mxu0 0.0
      %v6868 = vand.u32 %v6775, 4294901760
      %v6869 = vsub.f32 %v6775, %v6868
      %6870 = vmatpush.msra.mxu0 %v6869
      %v6871 = vand.u32 %v6773, 4294901760
      %v6872 = vsub.f32 %v6773, %v6871
      %6873 = vmatpush.msra.mxu0 %v6872
      %v6874 = vand.u32 %v6779, 4294901760
      %v6875 = vsub.f32 %v6779, %v6874
      %6876 = vmatmul.f32.gmra.mxu0 %v6875
      %v6877 = vpop.f32.mrf.mxu0
      %v6878 = vadd.f32 %v6848, %v6877
      %v6879 = vand.u32 %v6782, 4294901760
      %v6880 = vsub.f32 %v6782, %v6879
      %6881 = vmatmul.f32.gmra.mxu0 %v6880
      %v6882 = vpop.f32.mrf.mxu0
      %v6883 = vadd.f32 %v6852, %v6882
      %6884 = vdwg.mxu0
      %6885 = vmatpush.msra.mxu0 0.0
      %6886 = vmatpush.msra.mxu0 0.0
      %6887 = vmatpush.msra.mxu0 0.0
      %6888 = vmatpush.msra.mxu0 0.0
      %6889 = vmatpush.msra.mxu0 0.0
      %6890 = vmatpush.msra.mxu0 0.0
      %6891 = vmatpush.msra.mxu0 0.0
      %6892 = vmatpush.msra.mxu0 0.0
      %6893 = vmatpush.msra.mxu0 0.0
      %6894 = vmatpush.msra.mxu0 0.0
      %6895 = vmatpush.msra.mxu0 0.0
      %6896 = vmatpush.msra.mxu0 0.0
      %6897 = vmatpush.msra.mxu0 0.0
      %6898 = vmatpush.msra.mxu0 0.0
      %v6899 = vand.u32 %v6775, 4294901760
      %6900 = vmatpush.msra.mxu0 %v6899
      %v6901 = vand.u32 %v6773, 4294901760
      %6902 = vmatpush.msra.mxu0 %v6901
      %v6903 = vand.u32 %v6779, 4294901760
      %v6904 = vsub.f32 %v6779, %v6903
      %v6905 = vand.u32 %v6904, 4294901760
      %6906 = vmatmul.f32.gmra.mxu0 %v6905
      %v6907 = vpop.f32.mrf.mxu0
      %v6908 = vadd.f32 %v6878, %v6907
      %v6909 = vand.u32 %v6782, 4294901760
      %v6910 = vsub.f32 %v6782, %v6909
      %v6911 = vand.u32 %v6910, 4294901760
      %6912 = vmatmul.f32.gmra.mxu0 %v6911
      %v6913 = vpop.f32.mrf.mxu0
      %v6914 = vadd.f32 %v6883, %v6913
      %6915 = vdwg.mxu0
      %6916 = vmatpush.msra.mxu0 0.0
      %6917 = vmatpush.msra.mxu0 0.0
      %6918 = vmatpush.msra.mxu0 0.0
      %6919 = vmatpush.msra.mxu0 0.0
      %6920 = vmatpush.msra.mxu0 0.0
      %6921 = vmatpush.msra.mxu0 0.0
      %6922 = vmatpush.msra.mxu0 0.0
      %6923 = vmatpush.msra.mxu0 0.0
      %6924 = vmatpush.msra.mxu0 0.0
      %6925 = vmatpush.msra.mxu0 0.0
      %6926 = vmatpush.msra.mxu0 0.0
      %6927 = vmatpush.msra.mxu0 0.0
      %6928 = vmatpush.msra.mxu0 0.0
      %6929 = vmatpush.msra.mxu0 0.0
      %v6930 = vand.u32 %v6775, 4294901760
      %v6931 = vsub.f32 %v6775, %v6930
      %v6932 = vand.u32 %v6931, 4294901760
      %6933 = vmatpush.msra.mxu0 %v6932
      %v6934 = vand.u32 %v6773, 4294901760
      %v6935 = vsub.f32 %v6773, %v6934
      %v6936 = vand.u32 %v6935, 4294901760
      %6937 = vmatpush.msra.mxu0 %v6936
      %v6938 = vand.u32 %v6779, 4294901760
      %6939 = vmatmul.f32.gmra.mxu0 %v6938
      %v6940 = vpop.f32.mrf.mxu0
      %v6941 = vadd.f32 %v6908, %v6940
      %v6942 = vand.u32 %v6782, 4294901760
      %6943 = vmatmul.f32.gmra.mxu0 %v6942
      %v6944 = vpop.f32.mrf.mxu0
      %v6945 = vadd.f32 %v6914, %v6944
      %6946 = vdwg.mxu0
      %6947 = vmatpush.msra.mxu0 0.0
      %6948 = vmatpush.msra.mxu0 0.0
      %6949 = vmatpush.msra.mxu0 0.0
      %6950 = vmatpush.msra.mxu0 0.0
      %6951 = vmatpush.msra.mxu0 0.0
      %6952 = vmatpush.msra.mxu0 0.0
      %6953 = vmatpush.msra.mxu0 0.0
      %6954 = vmatpush.msra.mxu0 0.0
      %6955 = vmatpush.msra.mxu0 0.0
      %6956 = vmatpush.msra.mxu0 0.0
      %6957 = vmatpush.msra.mxu0 0.0
      %6958 = vmatpush.msra.mxu0 0.0
      %6959 = vmatpush.msra.mxu0 0.0
      %6960 = vmatpush.msra.mxu0 0.0
      %v6961 = vand.u32 %v6775, 4294901760
      %6962 = vmatpush.msra.mxu0 %v6961
      %v6963 = vand.u32 %v6773, 4294901760
      %6964 = vmatpush.msra.mxu0 %v6963
      %v6965 = vand.u32 %v6779, 4294901760
      %6966 = vmatmul.f32.gmra.mxu0 %v6965
      %v6967 = vpop.f32.mrf.mxu0
      %v6968 = vadd.f32 %v6941, %v6967
      %v6969 = vand.u32 %v6782, 4294901760
      %6970 = vmatmul.f32.gmra.mxu0 %v6969
      %v6971 = vpop.f32.mrf.mxu0
      %v6972 = vadd.f32 %v6945, %v6971
      %6973 = vdwg.mxu0
      %v6975 = vsel %vm420, %v6968, 0
      %v6978 = vsel %vm420, %v6972, 0
      %6980 = vmatpush.msra.mxu0 0.0
      %6981 = vmatpush.msra.mxu0 0.0
      %6982 = vmatpush.msra.mxu0 0.0
      %6983 = vmatpush.msra.mxu0 0.0
      %6984 = vmatpush.msra.mxu0 0.0
      %6985 = vmatpush.msra.mxu0 0.0
      %6986 = vmatpush.msra.mxu0 0.0
      %6987 = vmatpush.msra.mxu0 0.0
      %6988 = vmatpush.msra.mxu0 0.0
      %6989 = vmatpush.msra.mxu0 0.0
      %6990 = vmatpush.msra.mxu0 0.0
      %6991 = vmatpush.msra.mxu0 0.0
      %6992 = vmatpush.msra.mxu0 0.0
      %6993 = vmatpush.msra.mxu0 0.0
      %v6994 = vand.u32 %v5483, 4294901760
      %6995 = vmatpush.msra.mxu0 %v6994
      %v6996 = vand.u32 %v5482, 4294901760
      %6997 = vmatpush.msra.mxu0 %v6996
      %v6998 = vand.u32 %v6975, 4294901760
      %v6999 = vsub.f32 %v6975, %v6998
      %v7000 = vand.u32 %v6999, 4294901760
      %v7001 = vsub.f32 %v6999, %v7000
      %v7002 = vand.u32 %v7001, 4294901760
      %7003 = vmatmul.f32.gmra.mxu0 %v7002
      %v7004 = vpop.f32.mrf.mxu0
      %v7005 = vadd.f32 0.0, %v7004
      %v7006 = vand.u32 %v6978, 4294901760
      %v7007 = vsub.f32 %v6978, %v7006
      %v7008 = vand.u32 %v7007, 4294901760
      %v7009 = vsub.f32 %v7007, %v7008
      %v7010 = vand.u32 %v7009, 4294901760
      %7011 = vmatmul.f32.gmra.mxu0 %v7010
      %v7012 = vpop.f32.mrf.mxu0
      %v7013 = vadd.f32 0.0, %v7012
      %7014 = vdwg.mxu0
      %7015 = vmatpush.msra.mxu0 0.0
      %7016 = vmatpush.msra.mxu0 0.0
      %7017 = vmatpush.msra.mxu0 0.0
      %7018 = vmatpush.msra.mxu0 0.0
      %7019 = vmatpush.msra.mxu0 0.0
      %7020 = vmatpush.msra.mxu0 0.0
      %7021 = vmatpush.msra.mxu0 0.0
      %7022 = vmatpush.msra.mxu0 0.0
      %7023 = vmatpush.msra.mxu0 0.0
      %7024 = vmatpush.msra.mxu0 0.0
      %7025 = vmatpush.msra.mxu0 0.0
      %7026 = vmatpush.msra.mxu0 0.0
      %7027 = vmatpush.msra.mxu0 0.0
      %7028 = vmatpush.msra.mxu0 0.0
      %v7029 = vand.u32 %v5483, 4294901760
      %v7030 = vsub.f32 %v5483, %v7029
      %v7031 = vand.u32 %v7030, 4294901760
      %v7032 = vsub.f32 %v7030, %v7031
      %v7033 = vand.u32 %v7032, 4294901760
      %7034 = vmatpush.msra.mxu0 %v7033
      %v7035 = vand.u32 %v5482, 4294901760
      %v7036 = vsub.f32 %v5482, %v7035
      %v7037 = vand.u32 %v7036, 4294901760
      %v7038 = vsub.f32 %v7036, %v7037
      %v7039 = vand.u32 %v7038, 4294901760
      %7040 = vmatpush.msra.mxu0 %v7039
      %v7041 = vand.u32 %v6975, 4294901760
      %7042 = vmatmul.f32.gmra.mxu0 %v7041
      %v7043 = vpop.f32.mrf.mxu0
      %v7044 = vadd.f32 %v7005, %v7043
      %v7045 = vand.u32 %v6978, 4294901760
      %7046 = vmatmul.f32.gmra.mxu0 %v7045
      %v7047 = vpop.f32.mrf.mxu0
      %v7048 = vadd.f32 %v7013, %v7047
      %7049 = vdwg.mxu0
      %7050 = vmatpush.msra.mxu0 0.0
      %7051 = vmatpush.msra.mxu0 0.0
      %7052 = vmatpush.msra.mxu0 0.0
      %7053 = vmatpush.msra.mxu0 0.0
      %7054 = vmatpush.msra.mxu0 0.0
      %7055 = vmatpush.msra.mxu0 0.0
      %7056 = vmatpush.msra.mxu0 0.0
      %7057 = vmatpush.msra.mxu0 0.0
      %7058 = vmatpush.msra.mxu0 0.0
      %7059 = vmatpush.msra.mxu0 0.0
      %7060 = vmatpush.msra.mxu0 0.0
      %7061 = vmatpush.msra.mxu0 0.0
      %7062 = vmatpush.msra.mxu0 0.0
      %7063 = vmatpush.msra.mxu0 0.0
      %v7064 = vand.u32 %v5483, 4294901760
      %v7065 = vsub.f32 %v5483, %v7064
      %7066 = vmatpush.msra.mxu0 %v7065
      %v7067 = vand.u32 %v5482, 4294901760
      %v7068 = vsub.f32 %v5482, %v7067
      %7069 = vmatpush.msra.mxu0 %v7068
      %v7070 = vand.u32 %v6975, 4294901760
      %v7071 = vsub.f32 %v6975, %v7070
      %7072 = vmatmul.f32.gmra.mxu0 %v7071
      %v7073 = vpop.f32.mrf.mxu0
      %v7074 = vadd.f32 %v7044, %v7073
      %v7075 = vand.u32 %v6978, 4294901760
      %v7076 = vsub.f32 %v6978, %v7075
      %7077 = vmatmul.f32.gmra.mxu0 %v7076
      %v7078 = vpop.f32.mrf.mxu0
      %v7079 = vadd.f32 %v7048, %v7078
      %7080 = vdwg.mxu0
      %7081 = vmatpush.msra.mxu0 0.0
      %7082 = vmatpush.msra.mxu0 0.0
      %7083 = vmatpush.msra.mxu0 0.0
      %7084 = vmatpush.msra.mxu0 0.0
      %7085 = vmatpush.msra.mxu0 0.0
      %7086 = vmatpush.msra.mxu0 0.0
      %7087 = vmatpush.msra.mxu0 0.0
      %7088 = vmatpush.msra.mxu0 0.0
      %7089 = vmatpush.msra.mxu0 0.0
      %7090 = vmatpush.msra.mxu0 0.0
      %7091 = vmatpush.msra.mxu0 0.0
      %7092 = vmatpush.msra.mxu0 0.0
      %7093 = vmatpush.msra.mxu0 0.0
      %7094 = vmatpush.msra.mxu0 0.0
      %v7095 = vand.u32 %v5483, 4294901760
      %7096 = vmatpush.msra.mxu0 %v7095
      %v7097 = vand.u32 %v5482, 4294901760
      %7098 = vmatpush.msra.mxu0 %v7097
      %v7099 = vand.u32 %v6975, 4294901760
      %v7100 = vsub.f32 %v6975, %v7099
      %v7101 = vand.u32 %v7100, 4294901760
      %7102 = vmatmul.f32.gmra.mxu0 %v7101
      %v7103 = vpop.f32.mrf.mxu0
      %v7104 = vadd.f32 %v7074, %v7103
      %v7105 = vand.u32 %v6978, 4294901760
      %v7106 = vsub.f32 %v6978, %v7105
      %v7107 = vand.u32 %v7106, 4294901760
      %7108 = vmatmul.f32.gmra.mxu0 %v7107
      %v7109 = vpop.f32.mrf.mxu0
      %v7110 = vadd.f32 %v7079, %v7109
      %7111 = vdwg.mxu0
      %7112 = vmatpush.msra.mxu0 0.0
      %7113 = vmatpush.msra.mxu0 0.0
      %7114 = vmatpush.msra.mxu0 0.0
      %7115 = vmatpush.msra.mxu0 0.0
      %7116 = vmatpush.msra.mxu0 0.0
      %7117 = vmatpush.msra.mxu0 0.0
      %7118 = vmatpush.msra.mxu0 0.0
      %7119 = vmatpush.msra.mxu0 0.0
      %7120 = vmatpush.msra.mxu0 0.0
      %7121 = vmatpush.msra.mxu0 0.0
      %7122 = vmatpush.msra.mxu0 0.0
      %7123 = vmatpush.msra.mxu0 0.0
      %7124 = vmatpush.msra.mxu0 0.0
      %7125 = vmatpush.msra.mxu0 0.0
      %v7126 = vand.u32 %v5483, 4294901760
      %v7127 = vsub.f32 %v5483, %v7126
      %v7128 = vand.u32 %v7127, 4294901760
      %7129 = vmatpush.msra.mxu0 %v7128
      %v7130 = vand.u32 %v5482, 4294901760
      %v7131 = vsub.f32 %v5482, %v7130
      %v7132 = vand.u32 %v7131, 4294901760
      %7133 = vmatpush.msra.mxu0 %v7132
      %v7134 = vand.u32 %v6975, 4294901760
      %7135 = vmatmul.f32.gmra.mxu0 %v7134
      %v7136 = vpop.f32.mrf.mxu0
      %v7137 = vadd.f32 %v7104, %v7136
      %v7138 = vand.u32 %v6978, 4294901760
      %7139 = vmatmul.f32.gmra.mxu0 %v7138
      %v7140 = vpop.f32.mrf.mxu0
      %v7141 = vadd.f32 %v7110, %v7140
      %7142 = vdwg.mxu0
      %7143 = vmatpush.msra.mxu0 0.0
      %7144 = vmatpush.msra.mxu0 0.0
      %7145 = vmatpush.msra.mxu0 0.0
      %7146 = vmatpush.msra.mxu0 0.0
      %7147 = vmatpush.msra.mxu0 0.0
      %7148 = vmatpush.msra.mxu0 0.0
      %7149 = vmatpush.msra.mxu0 0.0
      %7150 = vmatpush.msra.mxu0 0.0
      %7151 = vmatpush.msra.mxu0 0.0
      %7152 = vmatpush.msra.mxu0 0.0
      %7153 = vmatpush.msra.mxu0 0.0
      %7154 = vmatpush.msra.mxu0 0.0
      %7155 = vmatpush.msra.mxu0 0.0
      %7156 = vmatpush.msra.mxu0 0.0
      %v7157 = vand.u32 %v5483, 4294901760
      %7158 = vmatpush.msra.mxu0 %v7157
      %v7159 = vand.u32 %v5482, 4294901760
      %7160 = vmatpush.msra.mxu0 %v7159
      %v7161 = vand.u32 %v6975, 4294901760
      %7162 = vmatmul.f32.gmra.mxu0 %v7161
      %v7163 = vpop.f32.mrf.mxu0
      %v7164 = vadd.f32 %v7137, %v7163
      %v7165 = vand.u32 %v6978, 4294901760
      %7166 = vmatmul.f32.gmra.mxu0 %v7165
      %v7167 = vpop.f32.mrf.mxu0
      %v7168 = vadd.f32 %v7141, %v7167
      %7169 = vdwg.mxu0
      %v7171 = vsel %vm420, %v6528, 0
      %v7174 = vsel %vm420, %v6532, 0
      %7176 = vmatpush.msra.mxu0 0.0
      %7177 = vmatpush.msra.mxu0 0.0
      %7178 = vmatpush.msra.mxu0 0.0
      %7179 = vmatpush.msra.mxu0 0.0
      %7180 = vmatpush.msra.mxu0 0.0
      %7181 = vmatpush.msra.mxu0 0.0
      %7182 = vmatpush.msra.mxu0 0.0
      %7183 = vmatpush.msra.mxu0 0.0
      %7184 = vmatpush.msra.mxu0 0.0
      %7185 = vmatpush.msra.mxu0 0.0
      %7186 = vmatpush.msra.mxu0 0.0
      %7187 = vmatpush.msra.mxu0 0.0
      %7188 = vmatpush.msra.mxu0 0.0
      %7189 = vmatpush.msra.mxu0 0.0
      %v7190 = vand.u32 %v5481, 4294901760
      %7191 = vmatpush.msra.mxu0 %v7190
      %v7192 = vand.u32 %v5480, 4294901760
      %7193 = vmatpush.msra.mxu0 %v7192
      %v7194 = vand.u32 %v7171, 4294901760
      %v7195 = vsub.f32 %v7171, %v7194
      %v7196 = vand.u32 %v7195, 4294901760
      %v7197 = vsub.f32 %v7195, %v7196
      %v7198 = vand.u32 %v7197, 4294901760
      %7199 = vmatmul.f32.gmra.mxu0 %v7198
      %v7200 = vpop.f32.mrf.mxu0
      %v7201 = vadd.f32 %v7164, %v7200
      %v7202 = vand.u32 %v7174, 4294901760
      %v7203 = vsub.f32 %v7174, %v7202
      %v7204 = vand.u32 %v7203, 4294901760
      %v7205 = vsub.f32 %v7203, %v7204
      %v7206 = vand.u32 %v7205, 4294901760
      %7207 = vmatmul.f32.gmra.mxu0 %v7206
      %v7208 = vpop.f32.mrf.mxu0
      %v7209 = vadd.f32 %v7168, %v7208
      %7210 = vdwg.mxu0
      %7211 = vmatpush.msra.mxu0 0.0
      %7212 = vmatpush.msra.mxu0 0.0
      %7213 = vmatpush.msra.mxu0 0.0
      %7214 = vmatpush.msra.mxu0 0.0
      %7215 = vmatpush.msra.mxu0 0.0
      %7216 = vmatpush.msra.mxu0 0.0
      %7217 = vmatpush.msra.mxu0 0.0
      %7218 = vmatpush.msra.mxu0 0.0
      %7219 = vmatpush.msra.mxu0 0.0
      %7220 = vmatpush.msra.mxu0 0.0
      %7221 = vmatpush.msra.mxu0 0.0
      %7222 = vmatpush.msra.mxu0 0.0
      %7223 = vmatpush.msra.mxu0 0.0
      %7224 = vmatpush.msra.mxu0 0.0
      %v7225 = vand.u32 %v5481, 4294901760
      %v7226 = vsub.f32 %v5481, %v7225
      %v7227 = vand.u32 %v7226, 4294901760
      %v7228 = vsub.f32 %v7226, %v7227
      %v7229 = vand.u32 %v7228, 4294901760
      %7230 = vmatpush.msra.mxu0 %v7229
      %v7231 = vand.u32 %v5480, 4294901760
      %v7232 = vsub.f32 %v5480, %v7231
      %v7233 = vand.u32 %v7232, 4294901760
      %v7234 = vsub.f32 %v7232, %v7233
      %v7235 = vand.u32 %v7234, 4294901760
      %7236 = vmatpush.msra.mxu0 %v7235
      %v7237 = vand.u32 %v7171, 4294901760
      %7238 = vmatmul.f32.gmra.mxu0 %v7237
      %v7239 = vpop.f32.mrf.mxu0
      %v7240 = vadd.f32 %v7201, %v7239
      %v7241 = vand.u32 %v7174, 4294901760
      %7242 = vmatmul.f32.gmra.mxu0 %v7241
      %v7243 = vpop.f32.mrf.mxu0
      %v7244 = vadd.f32 %v7209, %v7243
      %7245 = vdwg.mxu0
      %7246 = vmatpush.msra.mxu0 0.0
      %7247 = vmatpush.msra.mxu0 0.0
      %7248 = vmatpush.msra.mxu0 0.0
      %7249 = vmatpush.msra.mxu0 0.0
      %7250 = vmatpush.msra.mxu0 0.0
      %7251 = vmatpush.msra.mxu0 0.0
      %7252 = vmatpush.msra.mxu0 0.0
      %7253 = vmatpush.msra.mxu0 0.0
      %7254 = vmatpush.msra.mxu0 0.0
      %7255 = vmatpush.msra.mxu0 0.0
      %7256 = vmatpush.msra.mxu0 0.0
      %7257 = vmatpush.msra.mxu0 0.0
      %7258 = vmatpush.msra.mxu0 0.0
      %7259 = vmatpush.msra.mxu0 0.0
      %v7260 = vand.u32 %v5481, 4294901760
      %v7261 = vsub.f32 %v5481, %v7260
      %7262 = vmatpush.msra.mxu0 %v7261
      %v7263 = vand.u32 %v5480, 4294901760
      %v7264 = vsub.f32 %v5480, %v7263
      %7265 = vmatpush.msra.mxu0 %v7264
      %v7266 = vand.u32 %v7171, 4294901760
      %v7267 = vsub.f32 %v7171, %v7266
      %7268 = vmatmul.f32.gmra.mxu0 %v7267
      %v7269 = vpop.f32.mrf.mxu0
      %v7270 = vadd.f32 %v7240, %v7269
      %v7271 = vand.u32 %v7174, 4294901760
      %v7272 = vsub.f32 %v7174, %v7271
      %7273 = vmatmul.f32.gmra.mxu0 %v7272
      %v7274 = vpop.f32.mrf.mxu0
      %v7275 = vadd.f32 %v7244, %v7274
      %7276 = vdwg.mxu0
      %7277 = vmatpush.msra.mxu0 0.0
      %7278 = vmatpush.msra.mxu0 0.0
      %7279 = vmatpush.msra.mxu0 0.0
      %7280 = vmatpush.msra.mxu0 0.0
      %7281 = vmatpush.msra.mxu0 0.0
      %7282 = vmatpush.msra.mxu0 0.0
      %7283 = vmatpush.msra.mxu0 0.0
      %7284 = vmatpush.msra.mxu0 0.0
      %7285 = vmatpush.msra.mxu0 0.0
      %7286 = vmatpush.msra.mxu0 0.0
      %7287 = vmatpush.msra.mxu0 0.0
      %7288 = vmatpush.msra.mxu0 0.0
      %7289 = vmatpush.msra.mxu0 0.0
      %7290 = vmatpush.msra.mxu0 0.0
      %v7291 = vand.u32 %v5481, 4294901760
      %7292 = vmatpush.msra.mxu0 %v7291
      %v7293 = vand.u32 %v5480, 4294901760
      %7294 = vmatpush.msra.mxu0 %v7293
      %v7295 = vand.u32 %v7171, 4294901760
      %v7296 = vsub.f32 %v7171, %v7295
      %v7297 = vand.u32 %v7296, 4294901760
      %7298 = vmatmul.f32.gmra.mxu0 %v7297
      %v7299 = vpop.f32.mrf.mxu0
      %v7300 = vadd.f32 %v7270, %v7299
      %v7301 = vand.u32 %v7174, 4294901760
      %v7302 = vsub.f32 %v7174, %v7301
      %v7303 = vand.u32 %v7302, 4294901760
      %7304 = vmatmul.f32.gmra.mxu0 %v7303
      %v7305 = vpop.f32.mrf.mxu0
      %v7306 = vadd.f32 %v7275, %v7305
      %7307 = vdwg.mxu0
      %7308 = vmatpush.msra.mxu0 0.0
      %7309 = vmatpush.msra.mxu0 0.0
      %7310 = vmatpush.msra.mxu0 0.0
      %7311 = vmatpush.msra.mxu0 0.0
      %7312 = vmatpush.msra.mxu0 0.0
      %7313 = vmatpush.msra.mxu0 0.0
      %7314 = vmatpush.msra.mxu0 0.0
      %7315 = vmatpush.msra.mxu0 0.0
      %7316 = vmatpush.msra.mxu0 0.0
      %7317 = vmatpush.msra.mxu0 0.0
      %7318 = vmatpush.msra.mxu0 0.0
      %7319 = vmatpush.msra.mxu0 0.0
      %7320 = vmatpush.msra.mxu0 0.0
      %7321 = vmatpush.msra.mxu0 0.0
      %v7322 = vand.u32 %v5481, 4294901760
      %v7323 = vsub.f32 %v5481, %v7322
      %v7324 = vand.u32 %v7323, 4294901760
      %7325 = vmatpush.msra.mxu0 %v7324
      %v7326 = vand.u32 %v5480, 4294901760
      %v7327 = vsub.f32 %v5480, %v7326
      %v7328 = vand.u32 %v7327, 4294901760
      %7329 = vmatpush.msra.mxu0 %v7328
      %v7330 = vand.u32 %v7171, 4294901760
      %7331 = vmatmul.f32.gmra.mxu0 %v7330
      %v7332 = vpop.f32.mrf.mxu0
      %v7333 = vadd.f32 %v7300, %v7332
      %v7334 = vand.u32 %v7174, 4294901760
      %7335 = vmatmul.f32.gmra.mxu0 %v7334
      %v7336 = vpop.f32.mrf.mxu0
      %v7337 = vadd.f32 %v7306, %v7336
      %7338 = vdwg.mxu0
      %7339 = vmatpush.msra.mxu0 0.0
      %7340 = vmatpush.msra.mxu0 0.0
      %7341 = vmatpush.msra.mxu0 0.0
      %7342 = vmatpush.msra.mxu0 0.0
      %7343 = vmatpush.msra.mxu0 0.0
      %7344 = vmatpush.msra.mxu0 0.0
      %7345 = vmatpush.msra.mxu0 0.0
      %7346 = vmatpush.msra.mxu0 0.0
      %7347 = vmatpush.msra.mxu0 0.0
      %7348 = vmatpush.msra.mxu0 0.0
      %7349 = vmatpush.msra.mxu0 0.0
      %7350 = vmatpush.msra.mxu0 0.0
      %7351 = vmatpush.msra.mxu0 0.0
      %7352 = vmatpush.msra.mxu0 0.0
      %v7353 = vand.u32 %v5481, 4294901760
      %7354 = vmatpush.msra.mxu0 %v7353
      %v7355 = vand.u32 %v5480, 4294901760
      %7356 = vmatpush.msra.mxu0 %v7355
      %v7357 = vand.u32 %v7171, 4294901760
      %7358 = vmatmul.f32.gmra.mxu0 %v7357
      %v7359 = vpop.f32.mrf.mxu0
      %v7360 = vadd.f32 %v7333, %v7359
      %v7361 = vand.u32 %v7174, 4294901760
      %7362 = vmatmul.f32.gmra.mxu0 %v7361
      %v7363 = vpop.f32.mrf.mxu0
      %v7364 = vadd.f32 %v7337, %v7363
      %7365 = vdwg.mxu0
      %7366 = vrot.lane.b32.xlu0 %v5830, 96
      %v7367 = vpop.permute.xlu0 %7366
      %7368 = vrot.lane.b32.xlu0 %v5834, 96
      %v7369 = vpop.permute.xlu0 %7368
      %7370 = vrot.lane.b32.xlu0 %v5830, 32
      %v7371 = vpop.permute.xlu0 %7370
      %7372 = vrot.lane.b32.xlu0 %v5834, 32
      %v7373 = vpop.permute.xlu0 %7372
      %v7374 = vsel %vm420, %v7367, 0
      %v7376 = vsel %vm420, %v7369, 0
      %v7378 = vsel %vm420, %v7371, 0
      %v7380 = vsel %vm420, %v7373, 0
      %7382 = vmatpush.xpose.msra.mxu0 0.0
      %7383 = vmatpush.xpose.msra.mxu0 0.0
      %7384 = vmatpush.xpose.msra.mxu0 0.0
      %7385 = vmatpush.xpose.msra.mxu0 0.0
      %7386 = vmatpush.xpose.msra.mxu0 0.0
      %7387 = vmatpush.xpose.msra.mxu0 0.0
      %7388 = vmatpush.xpose.msra.mxu0 0.0
      %7389 = vmatpush.xpose.msra.mxu0 0.0
      %7390 = vmatpush.xpose.msra.mxu0 0.0
      %7391 = vmatpush.xpose.msra.mxu0 0.0
      %7392 = vmatpush.xpose.msra.mxu0 0.0
      %7393 = vmatpush.xpose.msra.mxu0 0.0
      %7394 = vmatpush.xpose.msra.mxu0 0.0
      %7395 = vmatpush.xpose.msra.mxu0 0.0
      %v7396 = vand.u32 %v7380, 4294901760
      %7397 = vmatpush.xpose.msra.mxu0 %v7396
      %v7398 = vand.u32 %v7378, 4294901760
      %7399 = vmatpush.xpose.msra.mxu0 %v7398
      %v7400 = vand.u32 %v7374, 4294901760
      %v7401 = vsub.f32 %v7374, %v7400
      %v7402 = vand.u32 %v7401, 4294901760
      %v7403 = vsub.f32 %v7401, %v7402
      %v7404 = vand.u32 %v7403, 4294901760
      %7405 = vmatmul.f32.gmra.mxu0 %v7404
      %v7406 = vpop.f32.mrf.mxu0
      %v7407 = vadd.f32 0.0, %v7406
      %v7408 = vand.u32 %v7376, 4294901760
      %v7409 = vsub.f32 %v7376, %v7408
      %v7410 = vand.u32 %v7409, 4294901760
      %v7411 = vsub.f32 %v7409, %v7410
      %v7412 = vand.u32 %v7411, 4294901760
      %7413 = vmatmul.f32.gmra.mxu0 %v7412
      %v7414 = vpop.f32.mrf.mxu0
      %v7415 = vadd.f32 0.0, %v7414
      %7416 = vdwg.mxu0
      %7417 = vmatpush.xpose.msra.mxu0 0.0
      %7418 = vmatpush.xpose.msra.mxu0 0.0
      %7419 = vmatpush.xpose.msra.mxu0 0.0
      %7420 = vmatpush.xpose.msra.mxu0 0.0
      %7421 = vmatpush.xpose.msra.mxu0 0.0
      %7422 = vmatpush.xpose.msra.mxu0 0.0
      %7423 = vmatpush.xpose.msra.mxu0 0.0
      %7424 = vmatpush.xpose.msra.mxu0 0.0
      %7425 = vmatpush.xpose.msra.mxu0 0.0
      %7426 = vmatpush.xpose.msra.mxu0 0.0
      %7427 = vmatpush.xpose.msra.mxu0 0.0
      %7428 = vmatpush.xpose.msra.mxu0 0.0
      %7429 = vmatpush.xpose.msra.mxu0 0.0
      %7430 = vmatpush.xpose.msra.mxu0 0.0
      %v7431 = vand.u32 %v7380, 4294901760
      %v7432 = vsub.f32 %v7380, %v7431
      %v7433 = vand.u32 %v7432, 4294901760
      %v7434 = vsub.f32 %v7432, %v7433
      %v7435 = vand.u32 %v7434, 4294901760
      %7436 = vmatpush.xpose.msra.mxu0 %v7435
      %v7437 = vand.u32 %v7378, 4294901760
      %v7438 = vsub.f32 %v7378, %v7437
      %v7439 = vand.u32 %v7438, 4294901760
      %v7440 = vsub.f32 %v7438, %v7439
      %v7441 = vand.u32 %v7440, 4294901760
      %7442 = vmatpush.xpose.msra.mxu0 %v7441
      %v7443 = vand.u32 %v7374, 4294901760
      %7444 = vmatmul.f32.gmra.mxu0 %v7443
      %v7445 = vpop.f32.mrf.mxu0
      %v7446 = vadd.f32 %v7407, %v7445
      %v7447 = vand.u32 %v7376, 4294901760
      %7448 = vmatmul.f32.gmra.mxu0 %v7447
      %v7449 = vpop.f32.mrf.mxu0
      %v7450 = vadd.f32 %v7415, %v7449
      %7451 = vdwg.mxu0
      %7452 = vmatpush.xpose.msra.mxu0 0.0
      %7453 = vmatpush.xpose.msra.mxu0 0.0
      %7454 = vmatpush.xpose.msra.mxu0 0.0
      %7455 = vmatpush.xpose.msra.mxu0 0.0
      %7456 = vmatpush.xpose.msra.mxu0 0.0
      %7457 = vmatpush.xpose.msra.mxu0 0.0
      %7458 = vmatpush.xpose.msra.mxu0 0.0
      %7459 = vmatpush.xpose.msra.mxu0 0.0
      %7460 = vmatpush.xpose.msra.mxu0 0.0
      %7461 = vmatpush.xpose.msra.mxu0 0.0
      %7462 = vmatpush.xpose.msra.mxu0 0.0
      %7463 = vmatpush.xpose.msra.mxu0 0.0
      %7464 = vmatpush.xpose.msra.mxu0 0.0
      %7465 = vmatpush.xpose.msra.mxu0 0.0
      %v7466 = vand.u32 %v7380, 4294901760
      %v7467 = vsub.f32 %v7380, %v7466
      %7468 = vmatpush.xpose.msra.mxu0 %v7467
      %v7469 = vand.u32 %v7378, 4294901760
      %v7470 = vsub.f32 %v7378, %v7469
      %7471 = vmatpush.xpose.msra.mxu0 %v7470
      %v7472 = vand.u32 %v7374, 4294901760
      %v7473 = vsub.f32 %v7374, %v7472
      %7474 = vmatmul.f32.gmra.mxu0 %v7473
      %v7475 = vpop.f32.mrf.mxu0
      %v7476 = vadd.f32 %v7446, %v7475
      %v7477 = vand.u32 %v7376, 4294901760
      %v7478 = vsub.f32 %v7376, %v7477
      %7479 = vmatmul.f32.gmra.mxu0 %v7478
      %v7480 = vpop.f32.mrf.mxu0
      %v7481 = vadd.f32 %v7450, %v7480
      %7482 = vdwg.mxu0
      %7483 = vmatpush.xpose.msra.mxu0 0.0
      %7484 = vmatpush.xpose.msra.mxu0 0.0
      %7485 = vmatpush.xpose.msra.mxu0 0.0
      %7486 = vmatpush.xpose.msra.mxu0 0.0
      %7487 = vmatpush.xpose.msra.mxu0 0.0
      %7488 = vmatpush.xpose.msra.mxu0 0.0
      %7489 = vmatpush.xpose.msra.mxu0 0.0
      %7490 = vmatpush.xpose.msra.mxu0 0.0
      %7491 = vmatpush.xpose.msra.mxu0 0.0
      %7492 = vmatpush.xpose.msra.mxu0 0.0
      %7493 = vmatpush.xpose.msra.mxu0 0.0
      %7494 = vmatpush.xpose.msra.mxu0 0.0
      %7495 = vmatpush.xpose.msra.mxu0 0.0
      %7496 = vmatpush.xpose.msra.mxu0 0.0
      %v7497 = vand.u32 %v7380, 4294901760
      %7498 = vmatpush.xpose.msra.mxu0 %v7497
      %v7499 = vand.u32 %v7378, 4294901760
      %7500 = vmatpush.xpose.msra.mxu0 %v7499
      %v7501 = vand.u32 %v7374, 4294901760
      %v7502 = vsub.f32 %v7374, %v7501
      %v7503 = vand.u32 %v7502, 4294901760
      %7504 = vmatmul.f32.gmra.mxu0 %v7503
      %v7505 = vpop.f32.mrf.mxu0
      %v7506 = vadd.f32 %v7476, %v7505
      %v7507 = vand.u32 %v7376, 4294901760
      %v7508 = vsub.f32 %v7376, %v7507
      %v7509 = vand.u32 %v7508, 4294901760
      %7510 = vmatmul.f32.gmra.mxu0 %v7509
      %v7511 = vpop.f32.mrf.mxu0
      %v7512 = vadd.f32 %v7481, %v7511
      %7513 = vdwg.mxu0
      %7514 = vmatpush.xpose.msra.mxu0 0.0
      %7515 = vmatpush.xpose.msra.mxu0 0.0
      %7516 = vmatpush.xpose.msra.mxu0 0.0
      %7517 = vmatpush.xpose.msra.mxu0 0.0
      %7518 = vmatpush.xpose.msra.mxu0 0.0
      %7519 = vmatpush.xpose.msra.mxu0 0.0
      %7520 = vmatpush.xpose.msra.mxu0 0.0
      %7521 = vmatpush.xpose.msra.mxu0 0.0
      %7522 = vmatpush.xpose.msra.mxu0 0.0
      %7523 = vmatpush.xpose.msra.mxu0 0.0
      %7524 = vmatpush.xpose.msra.mxu0 0.0
      %7525 = vmatpush.xpose.msra.mxu0 0.0
      %7526 = vmatpush.xpose.msra.mxu0 0.0
      %7527 = vmatpush.xpose.msra.mxu0 0.0
      %v7528 = vand.u32 %v7380, 4294901760
      %v7529 = vsub.f32 %v7380, %v7528
      %v7530 = vand.u32 %v7529, 4294901760
      %7531 = vmatpush.xpose.msra.mxu0 %v7530
      %v7532 = vand.u32 %v7378, 4294901760
      %v7533 = vsub.f32 %v7378, %v7532
      %v7534 = vand.u32 %v7533, 4294901760
      %7535 = vmatpush.xpose.msra.mxu0 %v7534
      %v7536 = vand.u32 %v7374, 4294901760
      %7537 = vmatmul.f32.gmra.mxu0 %v7536
      %v7538 = vpop.f32.mrf.mxu0
      %v7539 = vadd.f32 %v7506, %v7538
      %v7540 = vand.u32 %v7376, 4294901760
      %7541 = vmatmul.f32.gmra.mxu0 %v7540
      %v7542 = vpop.f32.mrf.mxu0
      %v7543 = vadd.f32 %v7512, %v7542
      %7544 = vdwg.mxu0
      %7545 = vmatpush.xpose.msra.mxu0 0.0
      %7546 = vmatpush.xpose.msra.mxu0 0.0
      %7547 = vmatpush.xpose.msra.mxu0 0.0
      %7548 = vmatpush.xpose.msra.mxu0 0.0
      %7549 = vmatpush.xpose.msra.mxu0 0.0
      %7550 = vmatpush.xpose.msra.mxu0 0.0
      %7551 = vmatpush.xpose.msra.mxu0 0.0
      %7552 = vmatpush.xpose.msra.mxu0 0.0
      %7553 = vmatpush.xpose.msra.mxu0 0.0
      %7554 = vmatpush.xpose.msra.mxu0 0.0
      %7555 = vmatpush.xpose.msra.mxu0 0.0
      %7556 = vmatpush.xpose.msra.mxu0 0.0
      %7557 = vmatpush.xpose.msra.mxu0 0.0
      %7558 = vmatpush.xpose.msra.mxu0 0.0
      %v7559 = vand.u32 %v7380, 4294901760
      %7560 = vmatpush.xpose.msra.mxu0 %v7559
      %v7561 = vand.u32 %v7378, 4294901760
      %7562 = vmatpush.xpose.msra.mxu0 %v7561
      %v7563 = vand.u32 %v7374, 4294901760
      %7564 = vmatmul.f32.gmra.mxu0 %v7563
      %v7565 = vpop.f32.mrf.mxu0
      %v7566 = vadd.f32 %v7539, %v7565
      %v7567 = vand.u32 %v7376, 4294901760
      %7568 = vmatmul.f32.gmra.mxu0 %v7567
      %v7569 = vpop.f32.mrf.mxu0
      %v7570 = vadd.f32 %v7543, %v7569
      %7571 = vdwg.mxu0
      %v7572 = vmul.f32 %v7566, 0.25
      %v7573 = vmul.f32 %v7570, 0.25
      %v7574 = vsel %vm420, %v7572, -inf
      %7575 = vmax.xlane.f32.xlu0 %v7574
      %v7576 = vpop.xlane.xlu0 %7575
      %v7577 = vsel %vm420, %v7573, -inf
      %7578 = vmax.xlane.f32.xlu0 %v7577
      %v7579 = vpop.xlane.xlu0 %7578
      %v7580 = vsub.f32 %v7572, %v7576
      %v7581 = vsub.f32 %v7573, %v7579
      %v7582 = vmul.f32 %v7580, 1.442695
      %v7583 = vpow.pop %v7582
      %v7584 = vmul.f32 %v7581, 1.442695
      %v7585 = vpow.pop %v7584
      %v7586 = vsel %vm420, %v7583, 0.0
      %7587 = vadd.xlane.f32.xlu0 %v7586
      %v7588 = vpop.xlane.xlu0 %7587
      %v7589 = vsel %vm420, %v7585, 0.0
      %7590 = vadd.xlane.f32.xlu0 %v7589
      %v7591 = vpop.xlane.xlu0 %7590
      %v7592 = vrcp.pop %v7588
      %v7593 = vrcp.pop %v7591
      %v7594 = vmul.f32 %v7588, %v7592
      %v7595 = vmul.f32 %v7591, %v7593
      %v7596 = vsub.f32 2.0, %v7594
      %v7597 = vsub.f32 2.0, %v7595
      %v7598 = vmul.f32 %v7592, %v7596
      %v7599 = vmul.f32 %v7593, %v7597
      %v7600 = vmul.f32 %v7583, %v7598
      %v7601 = vmul.f32 %v7585, %v7599
      %7602 = vrot.lane.b32.xlu0 %v6098, 96
      %v7603 = vpop.permute.xlu0 %7602
      %7604 = vrot.lane.b32.xlu0 %v6102, 96
      %v7605 = vpop.permute.xlu0 %7604
      %v7609 = vsel %vm420, %v7600, 0
      %v7612 = vsel %vm420, %v7601, 0
      %7614 = vmatpush.msra.mxu0 0.0
      %7615 = vmatpush.msra.mxu0 0.0
      %7616 = vmatpush.msra.mxu0 0.0
      %7617 = vmatpush.msra.mxu0 0.0
      %7618 = vmatpush.msra.mxu0 0.0
      %7619 = vmatpush.msra.mxu0 0.0
      %7620 = vmatpush.msra.mxu0 0.0
      %7621 = vmatpush.msra.mxu0 0.0
      %7622 = vmatpush.msra.mxu0 0.0
      %7623 = vmatpush.msra.mxu0 0.0
      %7624 = vmatpush.msra.mxu0 0.0
      %7625 = vmatpush.msra.mxu0 0.0
      %7626 = vmatpush.msra.mxu0 0.0
      %7627 = vmatpush.msra.mxu0 0.0
      %v7628 = vand.u32 %v7605, 4294901760
      %7629 = vmatpush.msra.mxu0 %v7628
      %v7630 = vand.u32 %v7603, 4294901760
      %7631 = vmatpush.msra.mxu0 %v7630
      %v7632 = vand.u32 %v7609, 4294901760
      %v7633 = vsub.f32 %v7609, %v7632
      %v7634 = vand.u32 %v7633, 4294901760
      %v7635 = vsub.f32 %v7633, %v7634
      %v7636 = vand.u32 %v7635, 4294901760
      %7637 = vmatmul.f32.gmra.mxu0 %v7636
      %v7638 = vpop.f32.mrf.mxu0
      %v7639 = vadd.f32 0.0, %v7638
      %v7640 = vand.u32 %v7612, 4294901760
      %v7641 = vsub.f32 %v7612, %v7640
      %v7642 = vand.u32 %v7641, 4294901760
      %v7643 = vsub.f32 %v7641, %v7642
      %v7644 = vand.u32 %v7643, 4294901760
      %7645 = vmatmul.f32.gmra.mxu0 %v7644
      %v7646 = vpop.f32.mrf.mxu0
      %v7647 = vadd.f32 0.0, %v7646
      %7648 = vdwg.mxu0
      %7649 = vmatpush.msra.mxu0 0.0
      %7650 = vmatpush.msra.mxu0 0.0
      %7651 = vmatpush.msra.mxu0 0.0
      %7652 = vmatpush.msra.mxu0 0.0
      %7653 = vmatpush.msra.mxu0 0.0
      %7654 = vmatpush.msra.mxu0 0.0
      %7655 = vmatpush.msra.mxu0 0.0
      %7656 = vmatpush.msra.mxu0 0.0
      %7657 = vmatpush.msra.mxu0 0.0
      %7658 = vmatpush.msra.mxu0 0.0
      %7659 = vmatpush.msra.mxu0 0.0
      %7660 = vmatpush.msra.mxu0 0.0
      %7661 = vmatpush.msra.mxu0 0.0
      %7662 = vmatpush.msra.mxu0 0.0
      %v7663 = vand.u32 %v7605, 4294901760
      %v7664 = vsub.f32 %v7605, %v7663
      %v7665 = vand.u32 %v7664, 4294901760
      %v7666 = vsub.f32 %v7664, %v7665
      %v7667 = vand.u32 %v7666, 4294901760
      %7668 = vmatpush.msra.mxu0 %v7667
      %v7669 = vand.u32 %v7603, 4294901760
      %v7670 = vsub.f32 %v7603, %v7669
      %v7671 = vand.u32 %v7670, 4294901760
      %v7672 = vsub.f32 %v7670, %v7671
      %v7673 = vand.u32 %v7672, 4294901760
      %7674 = vmatpush.msra.mxu0 %v7673
      %v7675 = vand.u32 %v7609, 4294901760
      %7676 = vmatmul.f32.gmra.mxu0 %v7675
      %v7677 = vpop.f32.mrf.mxu0
      %v7678 = vadd.f32 %v7639, %v7677
      %v7679 = vand.u32 %v7612, 4294901760
      %7680 = vmatmul.f32.gmra.mxu0 %v7679
      %v7681 = vpop.f32.mrf.mxu0
      %v7682 = vadd.f32 %v7647, %v7681
      %7683 = vdwg.mxu0
      %7684 = vmatpush.msra.mxu0 0.0
      %7685 = vmatpush.msra.mxu0 0.0
      %7686 = vmatpush.msra.mxu0 0.0
      %7687 = vmatpush.msra.mxu0 0.0
      %7688 = vmatpush.msra.mxu0 0.0
      %7689 = vmatpush.msra.mxu0 0.0
      %7690 = vmatpush.msra.mxu0 0.0
      %7691 = vmatpush.msra.mxu0 0.0
      %7692 = vmatpush.msra.mxu0 0.0
      %7693 = vmatpush.msra.mxu0 0.0
      %7694 = vmatpush.msra.mxu0 0.0
      %7695 = vmatpush.msra.mxu0 0.0
      %7696 = vmatpush.msra.mxu0 0.0
      %7697 = vmatpush.msra.mxu0 0.0
      %v7698 = vand.u32 %v7605, 4294901760
      %v7699 = vsub.f32 %v7605, %v7698
      %7700 = vmatpush.msra.mxu0 %v7699
      %v7701 = vand.u32 %v7603, 4294901760
      %v7702 = vsub.f32 %v7603, %v7701
      %7703 = vmatpush.msra.mxu0 %v7702
      %v7704 = vand.u32 %v7609, 4294901760
      %v7705 = vsub.f32 %v7609, %v7704
      %7706 = vmatmul.f32.gmra.mxu0 %v7705
      %v7707 = vpop.f32.mrf.mxu0
      %v7708 = vadd.f32 %v7678, %v7707
      %v7709 = vand.u32 %v7612, 4294901760
      %v7710 = vsub.f32 %v7612, %v7709
      %7711 = vmatmul.f32.gmra.mxu0 %v7710
      %v7712 = vpop.f32.mrf.mxu0
      %v7713 = vadd.f32 %v7682, %v7712
      %7714 = vdwg.mxu0
      %7715 = vmatpush.msra.mxu0 0.0
      %7716 = vmatpush.msra.mxu0 0.0
      %7717 = vmatpush.msra.mxu0 0.0
      %7718 = vmatpush.msra.mxu0 0.0
      %7719 = vmatpush.msra.mxu0 0.0
      %7720 = vmatpush.msra.mxu0 0.0
      %7721 = vmatpush.msra.mxu0 0.0
      %7722 = vmatpush.msra.mxu0 0.0
      %7723 = vmatpush.msra.mxu0 0.0
      %7724 = vmatpush.msra.mxu0 0.0
      %7725 = vmatpush.msra.mxu0 0.0
      %7726 = vmatpush.msra.mxu0 0.0
      %7727 = vmatpush.msra.mxu0 0.0
      %7728 = vmatpush.msra.mxu0 0.0
      %v7729 = vand.u32 %v7605, 4294901760
      %7730 = vmatpush.msra.mxu0 %v7729
      %v7731 = vand.u32 %v7603, 4294901760
      %7732 = vmatpush.msra.mxu0 %v7731
      %v7733 = vand.u32 %v7609, 4294901760
      %v7734 = vsub.f32 %v7609, %v7733
      %v7735 = vand.u32 %v7734, 4294901760
      %7736 = vmatmul.f32.gmra.mxu0 %v7735
      %v7737 = vpop.f32.mrf.mxu0
      %v7738 = vadd.f32 %v7708, %v7737
      %v7739 = vand.u32 %v7612, 4294901760
      %v7740 = vsub.f32 %v7612, %v7739
      %v7741 = vand.u32 %v7740, 4294901760
      %7742 = vmatmul.f32.gmra.mxu0 %v7741
      %v7743 = vpop.f32.mrf.mxu0
      %v7744 = vadd.f32 %v7713, %v7743
      %7745 = vdwg.mxu0
      %7746 = vmatpush.msra.mxu0 0.0
      %7747 = vmatpush.msra.mxu0 0.0
      %7748 = vmatpush.msra.mxu0 0.0
      %7749 = vmatpush.msra.mxu0 0.0
      %7750 = vmatpush.msra.mxu0 0.0
      %7751 = vmatpush.msra.mxu0 0.0
      %7752 = vmatpush.msra.mxu0 0.0
      %7753 = vmatpush.msra.mxu0 0.0
      %7754 = vmatpush.msra.mxu0 0.0
      %7755 = vmatpush.msra.mxu0 0.0
      %7756 = vmatpush.msra.mxu0 0.0
      %7757 = vmatpush.msra.mxu0 0.0
      %7758 = vmatpush.msra.mxu0 0.0
      %7759 = vmatpush.msra.mxu0 0.0
      %v7760 = vand.u32 %v7605, 4294901760
      %v7761 = vsub.f32 %v7605, %v7760
      %v7762 = vand.u32 %v7761, 4294901760
      %7763 = vmatpush.msra.mxu0 %v7762
      %v7764 = vand.u32 %v7603, 4294901760
      %v7765 = vsub.f32 %v7603, %v7764
      %v7766 = vand.u32 %v7765, 4294901760
      %7767 = vmatpush.msra.mxu0 %v7766
      %v7768 = vand.u32 %v7609, 4294901760
      %7769 = vmatmul.f32.gmra.mxu0 %v7768
      %v7770 = vpop.f32.mrf.mxu0
      %v7771 = vadd.f32 %v7738, %v7770
      %v7772 = vand.u32 %v7612, 4294901760
      %7773 = vmatmul.f32.gmra.mxu0 %v7772
      %v7774 = vpop.f32.mrf.mxu0
      %v7775 = vadd.f32 %v7744, %v7774
      %7776 = vdwg.mxu0
      %7777 = vmatpush.msra.mxu0 0.0
      %7778 = vmatpush.msra.mxu0 0.0
      %7779 = vmatpush.msra.mxu0 0.0
      %7780 = vmatpush.msra.mxu0 0.0
      %7781 = vmatpush.msra.mxu0 0.0
      %7782 = vmatpush.msra.mxu0 0.0
      %7783 = vmatpush.msra.mxu0 0.0
      %7784 = vmatpush.msra.mxu0 0.0
      %7785 = vmatpush.msra.mxu0 0.0
      %7786 = vmatpush.msra.mxu0 0.0
      %7787 = vmatpush.msra.mxu0 0.0
      %7788 = vmatpush.msra.mxu0 0.0
      %7789 = vmatpush.msra.mxu0 0.0
      %7790 = vmatpush.msra.mxu0 0.0
      %v7791 = vand.u32 %v7605, 4294901760
      %7792 = vmatpush.msra.mxu0 %v7791
      %v7793 = vand.u32 %v7603, 4294901760
      %7794 = vmatpush.msra.mxu0 %v7793
      %v7795 = vand.u32 %v7609, 4294901760
      %7796 = vmatmul.f32.gmra.mxu0 %v7795
      %v7797 = vpop.f32.mrf.mxu0
      %v7798 = vadd.f32 %v7771, %v7797
      %v7799 = vand.u32 %v7612, 4294901760
      %7800 = vmatmul.f32.gmra.mxu0 %v7799
      %v7801 = vpop.f32.mrf.mxu0
      %v7802 = vadd.f32 %v7775, %v7801
      %7803 = vdwg.mxu0
      %v7805 = vsel %vm420, %v7798, 0
      %v7808 = vsel %vm420, %v7802, 0
      %7810 = vmatpush.msra.mxu0 0.0
      %7811 = vmatpush.msra.mxu0 0.0
      %7812 = vmatpush.msra.mxu0 0.0
      %7813 = vmatpush.msra.mxu0 0.0
      %7814 = vmatpush.msra.mxu0 0.0
      %7815 = vmatpush.msra.mxu0 0.0
      %7816 = vmatpush.msra.mxu0 0.0
      %7817 = vmatpush.msra.mxu0 0.0
      %7818 = vmatpush.msra.mxu0 0.0
      %7819 = vmatpush.msra.mxu0 0.0
      %7820 = vmatpush.msra.mxu0 0.0
      %7821 = vmatpush.msra.mxu0 0.0
      %7822 = vmatpush.msra.mxu0 0.0
      %7823 = vmatpush.msra.mxu0 0.0
      %v7824 = vand.u32 %v5485, 4294901760
      %7825 = vmatpush.msra.mxu0 %v7824
      %v7826 = vand.u32 %v5484, 4294901760
      %7827 = vmatpush.msra.mxu0 %v7826
      %v7828 = vand.u32 %v7805, 4294901760
      %v7829 = vsub.f32 %v7805, %v7828
      %v7830 = vand.u32 %v7829, 4294901760
      %v7831 = vsub.f32 %v7829, %v7830
      %v7832 = vand.u32 %v7831, 4294901760
      %7833 = vmatmul.f32.gmra.mxu0 %v7832
      %v7834 = vpop.f32.mrf.mxu0
      %v7835 = vadd.f32 0.0, %v7834
      %v7836 = vand.u32 %v7808, 4294901760
      %v7837 = vsub.f32 %v7808, %v7836
      %v7838 = vand.u32 %v7837, 4294901760
      %v7839 = vsub.f32 %v7837, %v7838
      %v7840 = vand.u32 %v7839, 4294901760
      %7841 = vmatmul.f32.gmra.mxu0 %v7840
      %v7842 = vpop.f32.mrf.mxu0
      %v7843 = vadd.f32 0.0, %v7842
      %7844 = vdwg.mxu0
      %7845 = vmatpush.msra.mxu0 0.0
      %7846 = vmatpush.msra.mxu0 0.0
      %7847 = vmatpush.msra.mxu0 0.0
      %7848 = vmatpush.msra.mxu0 0.0
      %7849 = vmatpush.msra.mxu0 0.0
      %7850 = vmatpush.msra.mxu0 0.0
      %7851 = vmatpush.msra.mxu0 0.0
      %7852 = vmatpush.msra.mxu0 0.0
      %7853 = vmatpush.msra.mxu0 0.0
      %7854 = vmatpush.msra.mxu0 0.0
      %7855 = vmatpush.msra.mxu0 0.0
      %7856 = vmatpush.msra.mxu0 0.0
      %7857 = vmatpush.msra.mxu0 0.0
      %7858 = vmatpush.msra.mxu0 0.0
      %v7859 = vand.u32 %v5485, 4294901760
      %v7860 = vsub.f32 %v5485, %v7859
      %v7861 = vand.u32 %v7860, 4294901760
      %v7862 = vsub.f32 %v7860, %v7861
      %v7863 = vand.u32 %v7862, 4294901760
      %7864 = vmatpush.msra.mxu0 %v7863
      %v7865 = vand.u32 %v5484, 4294901760
      %v7866 = vsub.f32 %v5484, %v7865
      %v7867 = vand.u32 %v7866, 4294901760
      %v7868 = vsub.f32 %v7866, %v7867
      %v7869 = vand.u32 %v7868, 4294901760
      %7870 = vmatpush.msra.mxu0 %v7869
      %v7871 = vand.u32 %v7805, 4294901760
      %7872 = vmatmul.f32.gmra.mxu0 %v7871
      %v7873 = vpop.f32.mrf.mxu0
      %v7874 = vadd.f32 %v7835, %v7873
      %v7875 = vand.u32 %v7808, 4294901760
      %7876 = vmatmul.f32.gmra.mxu0 %v7875
      %v7877 = vpop.f32.mrf.mxu0
      %v7878 = vadd.f32 %v7843, %v7877
      %7879 = vdwg.mxu0
      %7880 = vmatpush.msra.mxu0 0.0
      %7881 = vmatpush.msra.mxu0 0.0
      %7882 = vmatpush.msra.mxu0 0.0
      %7883 = vmatpush.msra.mxu0 0.0
      %7884 = vmatpush.msra.mxu0 0.0
      %7885 = vmatpush.msra.mxu0 0.0
      %7886 = vmatpush.msra.mxu0 0.0
      %7887 = vmatpush.msra.mxu0 0.0
      %7888 = vmatpush.msra.mxu0 0.0
      %7889 = vmatpush.msra.mxu0 0.0
      %7890 = vmatpush.msra.mxu0 0.0
      %7891 = vmatpush.msra.mxu0 0.0
      %7892 = vmatpush.msra.mxu0 0.0
      %7893 = vmatpush.msra.mxu0 0.0
      %v7894 = vand.u32 %v5485, 4294901760
      %v7895 = vsub.f32 %v5485, %v7894
      %7896 = vmatpush.msra.mxu0 %v7895
      %v7897 = vand.u32 %v5484, 4294901760
      %v7898 = vsub.f32 %v5484, %v7897
      %7899 = vmatpush.msra.mxu0 %v7898
      %v7900 = vand.u32 %v7805, 4294901760
      %v7901 = vsub.f32 %v7805, %v7900
      %7902 = vmatmul.f32.gmra.mxu0 %v7901
      %v7903 = vpop.f32.mrf.mxu0
      %v7904 = vadd.f32 %v7874, %v7903
      %v7905 = vand.u32 %v7808, 4294901760
      %v7906 = vsub.f32 %v7808, %v7905
      %7907 = vmatmul.f32.gmra.mxu0 %v7906
      %v7908 = vpop.f32.mrf.mxu0
      %v7909 = vadd.f32 %v7878, %v7908
      %7910 = vdwg.mxu0
      %7911 = vmatpush.msra.mxu0 0.0
      %7912 = vmatpush.msra.mxu0 0.0
      %7913 = vmatpush.msra.mxu0 0.0
      %7914 = vmatpush.msra.mxu0 0.0
      %7915 = vmatpush.msra.mxu0 0.0
      %7916 = vmatpush.msra.mxu0 0.0
      %7917 = vmatpush.msra.mxu0 0.0
      %7918 = vmatpush.msra.mxu0 0.0
      %7919 = vmatpush.msra.mxu0 0.0
      %7920 = vmatpush.msra.mxu0 0.0
      %7921 = vmatpush.msra.mxu0 0.0
      %7922 = vmatpush.msra.mxu0 0.0
      %7923 = vmatpush.msra.mxu0 0.0
      %7924 = vmatpush.msra.mxu0 0.0
      %v7925 = vand.u32 %v5485, 4294901760
      %7926 = vmatpush.msra.mxu0 %v7925
      %v7927 = vand.u32 %v5484, 4294901760
      %7928 = vmatpush.msra.mxu0 %v7927
      %v7929 = vand.u32 %v7805, 4294901760
      %v7930 = vsub.f32 %v7805, %v7929
      %v7931 = vand.u32 %v7930, 4294901760
      %7932 = vmatmul.f32.gmra.mxu0 %v7931
      %v7933 = vpop.f32.mrf.mxu0
      %v7934 = vadd.f32 %v7904, %v7933
      %v7935 = vand.u32 %v7808, 4294901760
      %v7936 = vsub.f32 %v7808, %v7935
      %v7937 = vand.u32 %v7936, 4294901760
      %7938 = vmatmul.f32.gmra.mxu0 %v7937
      %v7939 = vpop.f32.mrf.mxu0
      %v7940 = vadd.f32 %v7909, %v7939
      %7941 = vdwg.mxu0
      %7942 = vmatpush.msra.mxu0 0.0
      %7943 = vmatpush.msra.mxu0 0.0
      %7944 = vmatpush.msra.mxu0 0.0
      %7945 = vmatpush.msra.mxu0 0.0
      %7946 = vmatpush.msra.mxu0 0.0
      %7947 = vmatpush.msra.mxu0 0.0
      %7948 = vmatpush.msra.mxu0 0.0
      %7949 = vmatpush.msra.mxu0 0.0
      %7950 = vmatpush.msra.mxu0 0.0
      %7951 = vmatpush.msra.mxu0 0.0
      %7952 = vmatpush.msra.mxu0 0.0
      %7953 = vmatpush.msra.mxu0 0.0
      %7954 = vmatpush.msra.mxu0 0.0
      %7955 = vmatpush.msra.mxu0 0.0
      %v7956 = vand.u32 %v5485, 4294901760
      %v7957 = vsub.f32 %v5485, %v7956
      %v7958 = vand.u32 %v7957, 4294901760
      %7959 = vmatpush.msra.mxu0 %v7958
      %v7960 = vand.u32 %v5484, 4294901760
      %v7961 = vsub.f32 %v5484, %v7960
      %v7962 = vand.u32 %v7961, 4294901760
      %7963 = vmatpush.msra.mxu0 %v7962
      %v7964 = vand.u32 %v7805, 4294901760
      %7965 = vmatmul.f32.gmra.mxu0 %v7964
      %v7966 = vpop.f32.mrf.mxu0
      %v7967 = vadd.f32 %v7934, %v7966
      %v7968 = vand.u32 %v7808, 4294901760
      %7969 = vmatmul.f32.gmra.mxu0 %v7968
      %v7970 = vpop.f32.mrf.mxu0
      %v7971 = vadd.f32 %v7940, %v7970
      %7972 = vdwg.mxu0
      %7973 = vmatpush.msra.mxu0 0.0
      %7974 = vmatpush.msra.mxu0 0.0
      %7975 = vmatpush.msra.mxu0 0.0
      %7976 = vmatpush.msra.mxu0 0.0
      %7977 = vmatpush.msra.mxu0 0.0
      %7978 = vmatpush.msra.mxu0 0.0
      %7979 = vmatpush.msra.mxu0 0.0
      %7980 = vmatpush.msra.mxu0 0.0
      %7981 = vmatpush.msra.mxu0 0.0
      %7982 = vmatpush.msra.mxu0 0.0
      %7983 = vmatpush.msra.mxu0 0.0
      %7984 = vmatpush.msra.mxu0 0.0
      %7985 = vmatpush.msra.mxu0 0.0
      %7986 = vmatpush.msra.mxu0 0.0
      %v7987 = vand.u32 %v5485, 4294901760
      %7988 = vmatpush.msra.mxu0 %v7987
      %v7989 = vand.u32 %v5484, 4294901760
      %7990 = vmatpush.msra.mxu0 %v7989
      %v7991 = vand.u32 %v7805, 4294901760
      %7992 = vmatmul.f32.gmra.mxu0 %v7991
      %v7993 = vpop.f32.mrf.mxu0
      %v7994 = vadd.f32 %v7967, %v7993
      %v7995 = vand.u32 %v7808, 4294901760
      %7996 = vmatmul.f32.gmra.mxu0 %v7995
      %v7997 = vpop.f32.mrf.mxu0
      %v7998 = vadd.f32 %v7971, %v7997
      %7999 = vdwg.mxu0
      %v8000 = vadd.f32 %v7360, %v7994
      %v8001 = vadd.f32 %v7364, %v7998
      %8002 = vrot.lane.b32.xlu0 %v5830, 80
      %v8003 = vpop.permute.xlu0 %8002
      %8004 = vrot.lane.b32.xlu0 %v5834, 80
      %v8005 = vpop.permute.xlu0 %8004
      %8006 = vrot.lane.b32.xlu0 %v5830, 16
      %v8007 = vpop.permute.xlu0 %8006
      %8008 = vrot.lane.b32.xlu0 %v5834, 16
      %v8009 = vpop.permute.xlu0 %8008
      %v8010 = vsel %vm420, %v8003, 0
      %v8012 = vsel %vm420, %v8005, 0
      %v8014 = vsel %vm420, %v8007, 0
      %v8016 = vsel %vm420, %v8009, 0
      %8018 = vmatpush.xpose.msra.mxu0 0.0
      %8019 = vmatpush.xpose.msra.mxu0 0.0
      %8020 = vmatpush.xpose.msra.mxu0 0.0
      %8021 = vmatpush.xpose.msra.mxu0 0.0
      %8022 = vmatpush.xpose.msra.mxu0 0.0
      %8023 = vmatpush.xpose.msra.mxu0 0.0
      %8024 = vmatpush.xpose.msra.mxu0 0.0
      %8025 = vmatpush.xpose.msra.mxu0 0.0
      %8026 = vmatpush.xpose.msra.mxu0 0.0
      %8027 = vmatpush.xpose.msra.mxu0 0.0
      %8028 = vmatpush.xpose.msra.mxu0 0.0
      %8029 = vmatpush.xpose.msra.mxu0 0.0
      %8030 = vmatpush.xpose.msra.mxu0 0.0
      %8031 = vmatpush.xpose.msra.mxu0 0.0
      %v8032 = vand.u32 %v8016, 4294901760
      %8033 = vmatpush.xpose.msra.mxu0 %v8032
      %v8034 = vand.u32 %v8014, 4294901760
      %8035 = vmatpush.xpose.msra.mxu0 %v8034
      %v8036 = vand.u32 %v8010, 4294901760
      %v8037 = vsub.f32 %v8010, %v8036
      %v8038 = vand.u32 %v8037, 4294901760
      %v8039 = vsub.f32 %v8037, %v8038
      %v8040 = vand.u32 %v8039, 4294901760
      %8041 = vmatmul.f32.gmra.mxu0 %v8040
      %v8042 = vpop.f32.mrf.mxu0
      %v8043 = vadd.f32 0.0, %v8042
      %v8044 = vand.u32 %v8012, 4294901760
      %v8045 = vsub.f32 %v8012, %v8044
      %v8046 = vand.u32 %v8045, 4294901760
      %v8047 = vsub.f32 %v8045, %v8046
      %v8048 = vand.u32 %v8047, 4294901760
      %8049 = vmatmul.f32.gmra.mxu0 %v8048
      %v8050 = vpop.f32.mrf.mxu0
      %v8051 = vadd.f32 0.0, %v8050
      %8052 = vdwg.mxu0
      %8053 = vmatpush.xpose.msra.mxu0 0.0
      %8054 = vmatpush.xpose.msra.mxu0 0.0
      %8055 = vmatpush.xpose.msra.mxu0 0.0
      %8056 = vmatpush.xpose.msra.mxu0 0.0
      %8057 = vmatpush.xpose.msra.mxu0 0.0
      %8058 = vmatpush.xpose.msra.mxu0 0.0
      %8059 = vmatpush.xpose.msra.mxu0 0.0
      %8060 = vmatpush.xpose.msra.mxu0 0.0
      %8061 = vmatpush.xpose.msra.mxu0 0.0
      %8062 = vmatpush.xpose.msra.mxu0 0.0
      %8063 = vmatpush.xpose.msra.mxu0 0.0
      %8064 = vmatpush.xpose.msra.mxu0 0.0
      %8065 = vmatpush.xpose.msra.mxu0 0.0
      %8066 = vmatpush.xpose.msra.mxu0 0.0
      %v8067 = vand.u32 %v8016, 4294901760
      %v8068 = vsub.f32 %v8016, %v8067
      %v8069 = vand.u32 %v8068, 4294901760
      %v8070 = vsub.f32 %v8068, %v8069
      %v8071 = vand.u32 %v8070, 4294901760
      %8072 = vmatpush.xpose.msra.mxu0 %v8071
      %v8073 = vand.u32 %v8014, 4294901760
      %v8074 = vsub.f32 %v8014, %v8073
      %v8075 = vand.u32 %v8074, 4294901760
      %v8076 = vsub.f32 %v8074, %v8075
      %v8077 = vand.u32 %v8076, 4294901760
      %8078 = vmatpush.xpose.msra.mxu0 %v8077
      %v8079 = vand.u32 %v8010, 4294901760
      %8080 = vmatmul.f32.gmra.mxu0 %v8079
      %v8081 = vpop.f32.mrf.mxu0
      %v8082 = vadd.f32 %v8043, %v8081
      %v8083 = vand.u32 %v8012, 4294901760
      %8084 = vmatmul.f32.gmra.mxu0 %v8083
      %v8085 = vpop.f32.mrf.mxu0
      %v8086 = vadd.f32 %v8051, %v8085
      %8087 = vdwg.mxu0
      %8088 = vmatpush.xpose.msra.mxu0 0.0
      %8089 = vmatpush.xpose.msra.mxu0 0.0
      %8090 = vmatpush.xpose.msra.mxu0 0.0
      %8091 = vmatpush.xpose.msra.mxu0 0.0
      %8092 = vmatpush.xpose.msra.mxu0 0.0
      %8093 = vmatpush.xpose.msra.mxu0 0.0
      %8094 = vmatpush.xpose.msra.mxu0 0.0
      %8095 = vmatpush.xpose.msra.mxu0 0.0
      %8096 = vmatpush.xpose.msra.mxu0 0.0
      %8097 = vmatpush.xpose.msra.mxu0 0.0
      %8098 = vmatpush.xpose.msra.mxu0 0.0
      %8099 = vmatpush.xpose.msra.mxu0 0.0
      %8100 = vmatpush.xpose.msra.mxu0 0.0
      %8101 = vmatpush.xpose.msra.mxu0 0.0
      %v8102 = vand.u32 %v8016, 4294901760
      %v8103 = vsub.f32 %v8016, %v8102
      %8104 = vmatpush.xpose.msra.mxu0 %v8103
      %v8105 = vand.u32 %v8014, 4294901760
      %v8106 = vsub.f32 %v8014, %v8105
      %8107 = vmatpush.xpose.msra.mxu0 %v8106
      %v8108 = vand.u32 %v8010, 4294901760
      %v8109 = vsub.f32 %v8010, %v8108
      %8110 = vmatmul.f32.gmra.mxu0 %v8109
      %v8111 = vpop.f32.mrf.mxu0
      %v8112 = vadd.f32 %v8082, %v8111
      %v8113 = vand.u32 %v8012, 4294901760
      %v8114 = vsub.f32 %v8012, %v8113
      %8115 = vmatmul.f32.gmra.mxu0 %v8114
      %v8116 = vpop.f32.mrf.mxu0
      %v8117 = vadd.f32 %v8086, %v8116
      %8118 = vdwg.mxu0
      %8119 = vmatpush.xpose.msra.mxu0 0.0
      %8120 = vmatpush.xpose.msra.mxu0 0.0
      %8121 = vmatpush.xpose.msra.mxu0 0.0
      %8122 = vmatpush.xpose.msra.mxu0 0.0
      %8123 = vmatpush.xpose.msra.mxu0 0.0
      %8124 = vmatpush.xpose.msra.mxu0 0.0
      %8125 = vmatpush.xpose.msra.mxu0 0.0
      %8126 = vmatpush.xpose.msra.mxu0 0.0
      %8127 = vmatpush.xpose.msra.mxu0 0.0
      %8128 = vmatpush.xpose.msra.mxu0 0.0
      %8129 = vmatpush.xpose.msra.mxu0 0.0
      %8130 = vmatpush.xpose.msra.mxu0 0.0
      %8131 = vmatpush.xpose.msra.mxu0 0.0
      %8132 = vmatpush.xpose.msra.mxu0 0.0
      %v8133 = vand.u32 %v8016, 4294901760
      %8134 = vmatpush.xpose.msra.mxu0 %v8133
      %v8135 = vand.u32 %v8014, 4294901760
      %8136 = vmatpush.xpose.msra.mxu0 %v8135
      %v8137 = vand.u32 %v8010, 4294901760
      %v8138 = vsub.f32 %v8010, %v8137
      %v8139 = vand.u32 %v8138, 4294901760
      %8140 = vmatmul.f32.gmra.mxu0 %v8139
      %v8141 = vpop.f32.mrf.mxu0
      %v8142 = vadd.f32 %v8112, %v8141
      %v8143 = vand.u32 %v8012, 4294901760
      %v8144 = vsub.f32 %v8012, %v8143
      %v8145 = vand.u32 %v8144, 4294901760
      %8146 = vmatmul.f32.gmra.mxu0 %v8145
      %v8147 = vpop.f32.mrf.mxu0
      %v8148 = vadd.f32 %v8117, %v8147
      %8149 = vdwg.mxu0
      %8150 = vmatpush.xpose.msra.mxu0 0.0
      %8151 = vmatpush.xpose.msra.mxu0 0.0
      %8152 = vmatpush.xpose.msra.mxu0 0.0
      %8153 = vmatpush.xpose.msra.mxu0 0.0
      %8154 = vmatpush.xpose.msra.mxu0 0.0
      %8155 = vmatpush.xpose.msra.mxu0 0.0
      %8156 = vmatpush.xpose.msra.mxu0 0.0
      %8157 = vmatpush.xpose.msra.mxu0 0.0
      %8158 = vmatpush.xpose.msra.mxu0 0.0
      %8159 = vmatpush.xpose.msra.mxu0 0.0
      %8160 = vmatpush.xpose.msra.mxu0 0.0
      %8161 = vmatpush.xpose.msra.mxu0 0.0
      %8162 = vmatpush.xpose.msra.mxu0 0.0
      %8163 = vmatpush.xpose.msra.mxu0 0.0
      %v8164 = vand.u32 %v8016, 4294901760
      %v8165 = vsub.f32 %v8016, %v8164
      %v8166 = vand.u32 %v8165, 4294901760
      %8167 = vmatpush.xpose.msra.mxu0 %v8166
      %v8168 = vand.u32 %v8014, 4294901760
      %v8169 = vsub.f32 %v8014, %v8168
      %v8170 = vand.u32 %v8169, 4294901760
      %8171 = vmatpush.xpose.msra.mxu0 %v8170
      %v8172 = vand.u32 %v8010, 4294901760
      %8173 = vmatmul.f32.gmra.mxu0 %v8172
      %v8174 = vpop.f32.mrf.mxu0
      %v8175 = vadd.f32 %v8142, %v8174
      %v8176 = vand.u32 %v8012, 4294901760
      %8177 = vmatmul.f32.gmra.mxu0 %v8176
      %v8178 = vpop.f32.mrf.mxu0
      %v8179 = vadd.f32 %v8148, %v8178
      %8180 = vdwg.mxu0
      %8181 = vmatpush.xpose.msra.mxu0 0.0
      %8182 = vmatpush.xpose.msra.mxu0 0.0
      %8183 = vmatpush.xpose.msra.mxu0 0.0
      %8184 = vmatpush.xpose.msra.mxu0 0.0
      %8185 = vmatpush.xpose.msra.mxu0 0.0
      %8186 = vmatpush.xpose.msra.mxu0 0.0
      %8187 = vmatpush.xpose.msra.mxu0 0.0
      %8188 = vmatpush.xpose.msra.mxu0 0.0
      %8189 = vmatpush.xpose.msra.mxu0 0.0
      %8190 = vmatpush.xpose.msra.mxu0 0.0
      %8191 = vmatpush.xpose.msra.mxu0 0.0
      %8192 = vmatpush.xpose.msra.mxu0 0.0
      %8193 = vmatpush.xpose.msra.mxu0 0.0
      %8194 = vmatpush.xpose.msra.mxu0 0.0
      %v8195 = vand.u32 %v8016, 4294901760
      %8196 = vmatpush.xpose.msra.mxu0 %v8195
      %v8197 = vand.u32 %v8014, 4294901760
      %8198 = vmatpush.xpose.msra.mxu0 %v8197
      %v8199 = vand.u32 %v8010, 4294901760
      %8200 = vmatmul.f32.gmra.mxu0 %v8199
      %v8201 = vpop.f32.mrf.mxu0
      %v8202 = vadd.f32 %v8175, %v8201
      %v8203 = vand.u32 %v8012, 4294901760
      %8204 = vmatmul.f32.gmra.mxu0 %v8203
      %v8205 = vpop.f32.mrf.mxu0
      %v8206 = vadd.f32 %v8179, %v8205
      %8207 = vdwg.mxu0
      %v8208 = vmul.f32 %v8202, 0.25
      %v8209 = vmul.f32 %v8206, 0.25
      %v8210 = vsel %vm420, %v8208, -inf
      %8211 = vmax.xlane.f32.xlu0 %v8210
      %v8212 = vpop.xlane.xlu0 %8211
      %v8213 = vsel %vm420, %v8209, -inf
      %8214 = vmax.xlane.f32.xlu0 %v8213
      %v8215 = vpop.xlane.xlu0 %8214
      %v8216 = vsub.f32 %v8208, %v8212
      %v8217 = vsub.f32 %v8209, %v8215
      %v8218 = vmul.f32 %v8216, 1.442695
      %v8219 = vpow.pop %v8218
      %v8220 = vmul.f32 %v8217, 1.442695
      %v8221 = vpow.pop %v8220
      %v8222 = vsel %vm420, %v8219, 0.0
      %8223 = vadd.xlane.f32.xlu0 %v8222
      %v8224 = vpop.xlane.xlu0 %8223
      %v8225 = vsel %vm420, %v8221, 0.0
      %8226 = vadd.xlane.f32.xlu0 %v8225
      %v8227 = vpop.xlane.xlu0 %8226
      %v8228 = vrcp.pop %v8224
      %v8229 = vrcp.pop %v8227
      %v8230 = vmul.f32 %v8224, %v8228
      %v8231 = vmul.f32 %v8227, %v8229
      %v8232 = vsub.f32 2.0, %v8230
      %v8233 = vsub.f32 2.0, %v8231
      %v8234 = vmul.f32 %v8228, %v8232
      %v8235 = vmul.f32 %v8229, %v8233
      %v8236 = vmul.f32 %v8219, %v8234
      %v8237 = vmul.f32 %v8221, %v8235
      %8238 = vrot.lane.b32.xlu0 %v6098, 80
      %v8239 = vpop.permute.xlu0 %8238
      %8240 = vrot.lane.b32.xlu0 %v6102, 80
      %v8241 = vpop.permute.xlu0 %8240
      %v8245 = vsel %vm420, %v8236, 0
      %v8248 = vsel %vm420, %v8237, 0
      %8250 = vmatpush.msra.mxu0 0.0
      %8251 = vmatpush.msra.mxu0 0.0
      %8252 = vmatpush.msra.mxu0 0.0
      %8253 = vmatpush.msra.mxu0 0.0
      %8254 = vmatpush.msra.mxu0 0.0
      %8255 = vmatpush.msra.mxu0 0.0
      %8256 = vmatpush.msra.mxu0 0.0
      %8257 = vmatpush.msra.mxu0 0.0
      %8258 = vmatpush.msra.mxu0 0.0
      %8259 = vmatpush.msra.mxu0 0.0
      %8260 = vmatpush.msra.mxu0 0.0
      %8261 = vmatpush.msra.mxu0 0.0
      %8262 = vmatpush.msra.mxu0 0.0
      %8263 = vmatpush.msra.mxu0 0.0
      %v8264 = vand.u32 %v8241, 4294901760
      %8265 = vmatpush.msra.mxu0 %v8264
      %v8266 = vand.u32 %v8239, 4294901760
      %8267 = vmatpush.msra.mxu0 %v8266
      %v8268 = vand.u32 %v8245, 4294901760
      %v8269 = vsub.f32 %v8245, %v8268
      %v8270 = vand.u32 %v8269, 4294901760
      %v8271 = vsub.f32 %v8269, %v8270
      %v8272 = vand.u32 %v8271, 4294901760
      %8273 = vmatmul.f32.gmra.mxu0 %v8272
      %v8274 = vpop.f32.mrf.mxu0
      %v8275 = vadd.f32 0.0, %v8274
      %v8276 = vand.u32 %v8248, 4294901760
      %v8277 = vsub.f32 %v8248, %v8276
      %v8278 = vand.u32 %v8277, 4294901760
      %v8279 = vsub.f32 %v8277, %v8278
      %v8280 = vand.u32 %v8279, 4294901760
      %8281 = vmatmul.f32.gmra.mxu0 %v8280
      %v8282 = vpop.f32.mrf.mxu0
      %v8283 = vadd.f32 0.0, %v8282
      %8284 = vdwg.mxu0
      %8285 = vmatpush.msra.mxu0 0.0
      %8286 = vmatpush.msra.mxu0 0.0
      %8287 = vmatpush.msra.mxu0 0.0
      %8288 = vmatpush.msra.mxu0 0.0
      %8289 = vmatpush.msra.mxu0 0.0
      %8290 = vmatpush.msra.mxu0 0.0
      %8291 = vmatpush.msra.mxu0 0.0
      %8292 = vmatpush.msra.mxu0 0.0
      %8293 = vmatpush.msra.mxu0 0.0
      %8294 = vmatpush.msra.mxu0 0.0
      %8295 = vmatpush.msra.mxu0 0.0
      %8296 = vmatpush.msra.mxu0 0.0
      %8297 = vmatpush.msra.mxu0 0.0
      %8298 = vmatpush.msra.mxu0 0.0
      %v8299 = vand.u32 %v8241, 4294901760
      %v8300 = vsub.f32 %v8241, %v8299
      %v8301 = vand.u32 %v8300, 4294901760
      %v8302 = vsub.f32 %v8300, %v8301
      %v8303 = vand.u32 %v8302, 4294901760
      %8304 = vmatpush.msra.mxu0 %v8303
      %v8305 = vand.u32 %v8239, 4294901760
      %v8306 = vsub.f32 %v8239, %v8305
      %v8307 = vand.u32 %v8306, 4294901760
      %v8308 = vsub.f32 %v8306, %v8307
      %v8309 = vand.u32 %v8308, 4294901760
      %8310 = vmatpush.msra.mxu0 %v8309
      %v8311 = vand.u32 %v8245, 4294901760
      %8312 = vmatmul.f32.gmra.mxu0 %v8311
      %v8313 = vpop.f32.mrf.mxu0
      %v8314 = vadd.f32 %v8275, %v8313
      %v8315 = vand.u32 %v8248, 4294901760
      %8316 = vmatmul.f32.gmra.mxu0 %v8315
      %v8317 = vpop.f32.mrf.mxu0
      %v8318 = vadd.f32 %v8283, %v8317
      %8319 = vdwg.mxu0
      %8320 = vmatpush.msra.mxu0 0.0
      %8321 = vmatpush.msra.mxu0 0.0
      %8322 = vmatpush.msra.mxu0 0.0
      %8323 = vmatpush.msra.mxu0 0.0
      %8324 = vmatpush.msra.mxu0 0.0
      %8325 = vmatpush.msra.mxu0 0.0
      %8326 = vmatpush.msra.mxu0 0.0
      %8327 = vmatpush.msra.mxu0 0.0
      %8328 = vmatpush.msra.mxu0 0.0
      %8329 = vmatpush.msra.mxu0 0.0
      %8330 = vmatpush.msra.mxu0 0.0
      %8331 = vmatpush.msra.mxu0 0.0
      %8332 = vmatpush.msra.mxu0 0.0
      %8333 = vmatpush.msra.mxu0 0.0
      %v8334 = vand.u32 %v8241, 4294901760
      %v8335 = vsub.f32 %v8241, %v8334
      %8336 = vmatpush.msra.mxu0 %v8335
      %v8337 = vand.u32 %v8239, 4294901760
      %v8338 = vsub.f32 %v8239, %v8337
      %8339 = vmatpush.msra.mxu0 %v8338
      %v8340 = vand.u32 %v8245, 4294901760
      %v8341 = vsub.f32 %v8245, %v8340
      %8342 = vmatmul.f32.gmra.mxu0 %v8341
      %v8343 = vpop.f32.mrf.mxu0
      %v8344 = vadd.f32 %v8314, %v8343
      %v8345 = vand.u32 %v8248, 4294901760
      %v8346 = vsub.f32 %v8248, %v8345
      %8347 = vmatmul.f32.gmra.mxu0 %v8346
      %v8348 = vpop.f32.mrf.mxu0
      %v8349 = vadd.f32 %v8318, %v8348
      %8350 = vdwg.mxu0
      %8351 = vmatpush.msra.mxu0 0.0
      %8352 = vmatpush.msra.mxu0 0.0
      %8353 = vmatpush.msra.mxu0 0.0
      %8354 = vmatpush.msra.mxu0 0.0
      %8355 = vmatpush.msra.mxu0 0.0
      %8356 = vmatpush.msra.mxu0 0.0
      %8357 = vmatpush.msra.mxu0 0.0
      %8358 = vmatpush.msra.mxu0 0.0
      %8359 = vmatpush.msra.mxu0 0.0
      %8360 = vmatpush.msra.mxu0 0.0
      %8361 = vmatpush.msra.mxu0 0.0
      %8362 = vmatpush.msra.mxu0 0.0
      %8363 = vmatpush.msra.mxu0 0.0
      %8364 = vmatpush.msra.mxu0 0.0
      %v8365 = vand.u32 %v8241, 4294901760
      %8366 = vmatpush.msra.mxu0 %v8365
      %v8367 = vand.u32 %v8239, 4294901760
      %8368 = vmatpush.msra.mxu0 %v8367
      %v8369 = vand.u32 %v8245, 4294901760
      %v8370 = vsub.f32 %v8245, %v8369
      %v8371 = vand.u32 %v8370, 4294901760
      %8372 = vmatmul.f32.gmra.mxu0 %v8371
      %v8373 = vpop.f32.mrf.mxu0
      %v8374 = vadd.f32 %v8344, %v8373
      %v8375 = vand.u32 %v8248, 4294901760
      %v8376 = vsub.f32 %v8248, %v8375
      %v8377 = vand.u32 %v8376, 4294901760
      %8378 = vmatmul.f32.gmra.mxu0 %v8377
      %v8379 = vpop.f32.mrf.mxu0
      %v8380 = vadd.f32 %v8349, %v8379
      %8381 = vdwg.mxu0
      %8382 = vmatpush.msra.mxu0 0.0
      %8383 = vmatpush.msra.mxu0 0.0
      %8384 = vmatpush.msra.mxu0 0.0
      %8385 = vmatpush.msra.mxu0 0.0
      %8386 = vmatpush.msra.mxu0 0.0
      %8387 = vmatpush.msra.mxu0 0.0
      %8388 = vmatpush.msra.mxu0 0.0
      %8389 = vmatpush.msra.mxu0 0.0
      %8390 = vmatpush.msra.mxu0 0.0
      %8391 = vmatpush.msra.mxu0 0.0
      %8392 = vmatpush.msra.mxu0 0.0
      %8393 = vmatpush.msra.mxu0 0.0
      %8394 = vmatpush.msra.mxu0 0.0
      %8395 = vmatpush.msra.mxu0 0.0
      %v8396 = vand.u32 %v8241, 4294901760
      %v8397 = vsub.f32 %v8241, %v8396
      %v8398 = vand.u32 %v8397, 4294901760
      %8399 = vmatpush.msra.mxu0 %v8398
      %v8400 = vand.u32 %v8239, 4294901760
      %v8401 = vsub.f32 %v8239, %v8400
      %v8402 = vand.u32 %v8401, 4294901760
      %8403 = vmatpush.msra.mxu0 %v8402
      %v8404 = vand.u32 %v8245, 4294901760
      %8405 = vmatmul.f32.gmra.mxu0 %v8404
      %v8406 = vpop.f32.mrf.mxu0
      %v8407 = vadd.f32 %v8374, %v8406
      %v8408 = vand.u32 %v8248, 4294901760
      %8409 = vmatmul.f32.gmra.mxu0 %v8408
      %v8410 = vpop.f32.mrf.mxu0
      %v8411 = vadd.f32 %v8380, %v8410
      %8412 = vdwg.mxu0
      %8413 = vmatpush.msra.mxu0 0.0
      %8414 = vmatpush.msra.mxu0 0.0
      %8415 = vmatpush.msra.mxu0 0.0
      %8416 = vmatpush.msra.mxu0 0.0
      %8417 = vmatpush.msra.mxu0 0.0
      %8418 = vmatpush.msra.mxu0 0.0
      %8419 = vmatpush.msra.mxu0 0.0
      %8420 = vmatpush.msra.mxu0 0.0
      %8421 = vmatpush.msra.mxu0 0.0
      %8422 = vmatpush.msra.mxu0 0.0
      %8423 = vmatpush.msra.mxu0 0.0
      %8424 = vmatpush.msra.mxu0 0.0
      %8425 = vmatpush.msra.mxu0 0.0
      %8426 = vmatpush.msra.mxu0 0.0
      %v8427 = vand.u32 %v8241, 4294901760
      %8428 = vmatpush.msra.mxu0 %v8427
      %v8429 = vand.u32 %v8239, 4294901760
      %8430 = vmatpush.msra.mxu0 %v8429
      %v8431 = vand.u32 %v8245, 4294901760
      %8432 = vmatmul.f32.gmra.mxu0 %v8431
      %v8433 = vpop.f32.mrf.mxu0
      %v8434 = vadd.f32 %v8407, %v8433
      %v8435 = vand.u32 %v8248, 4294901760
      %8436 = vmatmul.f32.gmra.mxu0 %v8435
      %v8437 = vpop.f32.mrf.mxu0
      %v8438 = vadd.f32 %v8411, %v8437
      %8439 = vdwg.mxu0
      %v8441 = vsel %vm420, %v8434, 0
      %v8444 = vsel %vm420, %v8438, 0
      %8446 = vmatpush.msra.mxu0 0.0
      %8447 = vmatpush.msra.mxu0 0.0
      %8448 = vmatpush.msra.mxu0 0.0
      %8449 = vmatpush.msra.mxu0 0.0
      %8450 = vmatpush.msra.mxu0 0.0
      %8451 = vmatpush.msra.mxu0 0.0
      %8452 = vmatpush.msra.mxu0 0.0
      %8453 = vmatpush.msra.mxu0 0.0
      %8454 = vmatpush.msra.mxu0 0.0
      %8455 = vmatpush.msra.mxu0 0.0
      %8456 = vmatpush.msra.mxu0 0.0
      %8457 = vmatpush.msra.mxu0 0.0
      %8458 = vmatpush.msra.mxu0 0.0
      %8459 = vmatpush.msra.mxu0 0.0
      %v8460 = vand.u32 %v5487, 4294901760
      %8461 = vmatpush.msra.mxu0 %v8460
      %v8462 = vand.u32 %v5486, 4294901760
      %8463 = vmatpush.msra.mxu0 %v8462
      %v8464 = vand.u32 %v8441, 4294901760
      %v8465 = vsub.f32 %v8441, %v8464
      %v8466 = vand.u32 %v8465, 4294901760
      %v8467 = vsub.f32 %v8465, %v8466
      %v8468 = vand.u32 %v8467, 4294901760
      %8469 = vmatmul.f32.gmra.mxu0 %v8468
      %v8470 = vpop.f32.mrf.mxu0
      %v8471 = vadd.f32 0.0, %v8470
      %v8472 = vand.u32 %v8444, 4294901760
      %v8473 = vsub.f32 %v8444, %v8472
      %v8474 = vand.u32 %v8473, 4294901760
      %v8475 = vsub.f32 %v8473, %v8474
      %v8476 = vand.u32 %v8475, 4294901760
      %8477 = vmatmul.f32.gmra.mxu0 %v8476
      %v8478 = vpop.f32.mrf.mxu0
      %v8479 = vadd.f32 0.0, %v8478
      %8480 = vdwg.mxu0
      %8481 = vmatpush.msra.mxu0 0.0
      %8482 = vmatpush.msra.mxu0 0.0
      %8483 = vmatpush.msra.mxu0 0.0
      %8484 = vmatpush.msra.mxu0 0.0
      %8485 = vmatpush.msra.mxu0 0.0
      %8486 = vmatpush.msra.mxu0 0.0
      %8487 = vmatpush.msra.mxu0 0.0
      %8488 = vmatpush.msra.mxu0 0.0
      %8489 = vmatpush.msra.mxu0 0.0
      %8490 = vmatpush.msra.mxu0 0.0
      %8491 = vmatpush.msra.mxu0 0.0
      %8492 = vmatpush.msra.mxu0 0.0
      %8493 = vmatpush.msra.mxu0 0.0
      %8494 = vmatpush.msra.mxu0 0.0
      %v8495 = vand.u32 %v5487, 4294901760
      %v8496 = vsub.f32 %v5487, %v8495
      %v8497 = vand.u32 %v8496, 4294901760
      %v8498 = vsub.f32 %v8496, %v8497
      %v8499 = vand.u32 %v8498, 4294901760
      %8500 = vmatpush.msra.mxu0 %v8499
      %v8501 = vand.u32 %v5486, 4294901760
      %v8502 = vsub.f32 %v5486, %v8501
      %v8503 = vand.u32 %v8502, 4294901760
      %v8504 = vsub.f32 %v8502, %v8503
      %v8505 = vand.u32 %v8504, 4294901760
      %8506 = vmatpush.msra.mxu0 %v8505
      %v8507 = vand.u32 %v8441, 4294901760
      %8508 = vmatmul.f32.gmra.mxu0 %v8507
      %v8509 = vpop.f32.mrf.mxu0
      %v8510 = vadd.f32 %v8471, %v8509
      %v8511 = vand.u32 %v8444, 4294901760
      %8512 = vmatmul.f32.gmra.mxu0 %v8511
      %v8513 = vpop.f32.mrf.mxu0
      %v8514 = vadd.f32 %v8479, %v8513
      %8515 = vdwg.mxu0
      %8516 = vmatpush.msra.mxu0 0.0
      %8517 = vmatpush.msra.mxu0 0.0
      %8518 = vmatpush.msra.mxu0 0.0
      %8519 = vmatpush.msra.mxu0 0.0
      %8520 = vmatpush.msra.mxu0 0.0
      %8521 = vmatpush.msra.mxu0 0.0
      %8522 = vmatpush.msra.mxu0 0.0
      %8523 = vmatpush.msra.mxu0 0.0
      %8524 = vmatpush.msra.mxu0 0.0
      %8525 = vmatpush.msra.mxu0 0.0
      %8526 = vmatpush.msra.mxu0 0.0
      %8527 = vmatpush.msra.mxu0 0.0
      %8528 = vmatpush.msra.mxu0 0.0
      %8529 = vmatpush.msra.mxu0 0.0
      %v8530 = vand.u32 %v5487, 4294901760
      %v8531 = vsub.f32 %v5487, %v8530
      %8532 = vmatpush.msra.mxu0 %v8531
      %v8533 = vand.u32 %v5486, 4294901760
      %v8534 = vsub.f32 %v5486, %v8533
      %8535 = vmatpush.msra.mxu0 %v8534
      %v8536 = vand.u32 %v8441, 4294901760
      %v8537 = vsub.f32 %v8441, %v8536
      %8538 = vmatmul.f32.gmra.mxu0 %v8537
      %v8539 = vpop.f32.mrf.mxu0
      %v8540 = vadd.f32 %v8510, %v8539
      %v8541 = vand.u32 %v8444, 4294901760
      %v8542 = vsub.f32 %v8444, %v8541
      %8543 = vmatmul.f32.gmra.mxu0 %v8542
      %v8544 = vpop.f32.mrf.mxu0
      %v8545 = vadd.f32 %v8514, %v8544
      %8546 = vdwg.mxu0
      %8547 = vmatpush.msra.mxu0 0.0
      %8548 = vmatpush.msra.mxu0 0.0
      %8549 = vmatpush.msra.mxu0 0.0
      %8550 = vmatpush.msra.mxu0 0.0
      %8551 = vmatpush.msra.mxu0 0.0
      %8552 = vmatpush.msra.mxu0 0.0
      %8553 = vmatpush.msra.mxu0 0.0
      %8554 = vmatpush.msra.mxu0 0.0
      %8555 = vmatpush.msra.mxu0 0.0
      %8556 = vmatpush.msra.mxu0 0.0
      %8557 = vmatpush.msra.mxu0 0.0
      %8558 = vmatpush.msra.mxu0 0.0
      %8559 = vmatpush.msra.mxu0 0.0
      %8560 = vmatpush.msra.mxu0 0.0
      %v8561 = vand.u32 %v5487, 4294901760
      %8562 = vmatpush.msra.mxu0 %v8561
      %v8563 = vand.u32 %v5486, 4294901760
      %8564 = vmatpush.msra.mxu0 %v8563
      %v8565 = vand.u32 %v8441, 4294901760
      %v8566 = vsub.f32 %v8441, %v8565
      %v8567 = vand.u32 %v8566, 4294901760
      %8568 = vmatmul.f32.gmra.mxu0 %v8567
      %v8569 = vpop.f32.mrf.mxu0
      %v8570 = vadd.f32 %v8540, %v8569
      %v8571 = vand.u32 %v8444, 4294901760
      %v8572 = vsub.f32 %v8444, %v8571
      %v8573 = vand.u32 %v8572, 4294901760
      %8574 = vmatmul.f32.gmra.mxu0 %v8573
      %v8575 = vpop.f32.mrf.mxu0
      %v8576 = vadd.f32 %v8545, %v8575
      %8577 = vdwg.mxu0
      %8578 = vmatpush.msra.mxu0 0.0
      %8579 = vmatpush.msra.mxu0 0.0
      %8580 = vmatpush.msra.mxu0 0.0
      %8581 = vmatpush.msra.mxu0 0.0
      %8582 = vmatpush.msra.mxu0 0.0
      %8583 = vmatpush.msra.mxu0 0.0
      %8584 = vmatpush.msra.mxu0 0.0
      %8585 = vmatpush.msra.mxu0 0.0
      %8586 = vmatpush.msra.mxu0 0.0
      %8587 = vmatpush.msra.mxu0 0.0
      %8588 = vmatpush.msra.mxu0 0.0
      %8589 = vmatpush.msra.mxu0 0.0
      %8590 = vmatpush.msra.mxu0 0.0
      %8591 = vmatpush.msra.mxu0 0.0
      %v8592 = vand.u32 %v5487, 4294901760
      %v8593 = vsub.f32 %v5487, %v8592
      %v8594 = vand.u32 %v8593, 4294901760
      %8595 = vmatpush.msra.mxu0 %v8594
      %v8596 = vand.u32 %v5486, 4294901760
      %v8597 = vsub.f32 %v5486, %v8596
      %v8598 = vand.u32 %v8597, 4294901760
      %8599 = vmatpush.msra.mxu0 %v8598
      %v8600 = vand.u32 %v8441, 4294901760
      %8601 = vmatmul.f32.gmra.mxu0 %v8600
      %v8602 = vpop.f32.mrf.mxu0
      %v8603 = vadd.f32 %v8570, %v8602
      %v8604 = vand.u32 %v8444, 4294901760
      %8605 = vmatmul.f32.gmra.mxu0 %v8604
      %v8606 = vpop.f32.mrf.mxu0
      %v8607 = vadd.f32 %v8576, %v8606
      %8608 = vdwg.mxu0
      %8609 = vmatpush.msra.mxu0 0.0
      %8610 = vmatpush.msra.mxu0 0.0
      %8611 = vmatpush.msra.mxu0 0.0
      %8612 = vmatpush.msra.mxu0 0.0
      %8613 = vmatpush.msra.mxu0 0.0
      %8614 = vmatpush.msra.mxu0 0.0
      %8615 = vmatpush.msra.mxu0 0.0
      %8616 = vmatpush.msra.mxu0 0.0
      %8617 = vmatpush.msra.mxu0 0.0
      %8618 = vmatpush.msra.mxu0 0.0
      %8619 = vmatpush.msra.mxu0 0.0
      %8620 = vmatpush.msra.mxu0 0.0
      %8621 = vmatpush.msra.mxu0 0.0
      %8622 = vmatpush.msra.mxu0 0.0
      %v8623 = vand.u32 %v5487, 4294901760
      %8624 = vmatpush.msra.mxu0 %v8623
      %v8625 = vand.u32 %v5486, 4294901760
      %8626 = vmatpush.msra.mxu0 %v8625
      %v8627 = vand.u32 %v8441, 4294901760
      %8628 = vmatmul.f32.gmra.mxu0 %v8627
      %v8629 = vpop.f32.mrf.mxu0
      %v8630 = vadd.f32 %v8603, %v8629
      %v8631 = vand.u32 %v8444, 4294901760
      %8632 = vmatmul.f32.gmra.mxu0 %v8631
      %v8633 = vpop.f32.mrf.mxu0
      %v8634 = vadd.f32 %v8607, %v8633
      %8635 = vdwg.mxu0
      %v8636 = vadd.f32 %v8000, %v8630
      %v8637 = vadd.f32 %v8001, %v8634
      %v8638 = vadd.f32 %v5475, %v8636
      %v8639 = vadd.f32 %v5476, %v8637
      %v8640 = vperm.slane %v5478, 2
      %v8641 = vadd.f32 %v8638, %v8640
      %v8642 = vadd.f32 %v8639, %v8640
      %v8643 = vsel %vm628, %v8641, 0.0
      %8644 = vadd.xlane.f32.xlu0 %v8643
      %v8645 = vpop.xlane.xlu0 %8644
      %v8646 = vsel %vm628, %v8642, 0.0
      %8647 = vadd.xlane.f32.xlu0 %v8646
      %v8648 = vpop.xlane.xlu0 %8647
      %v8649 = vmul.f32 %v8645, %v924
      %v8650 = vmul.f32 %v8648, %v924
      %v8651 = vsub.f32 %v8641, %v8649
      %v8652 = vsub.f32 %v8642, %v8650
      %v8653 = vmul.f32 %v8651, %v8651
      %v8654 = vmul.f32 %v8652, %v8652
      %v8655 = vsel %vm628, %v8653, 0.0
      %8656 = vadd.xlane.f32.xlu0 %v8655
      %v8657 = vpop.xlane.xlu0 %8656
      %v8658 = vsel %vm628, %v8654, 0.0
      %8659 = vadd.xlane.f32.xlu0 %v8658
      %v8660 = vpop.xlane.xlu0 %8659
      %v8661 = vmul.f32 %v8657, %v924
      %v8662 = vmul.f32 %v8660, %v924
      %v8663 = vadd.f32 %v8661, 1e-05
      %v8664 = vadd.f32 %v8662, 1e-05
      %v8665 = vrsqrt.pop %v8663
      %v8666 = vmul.f32 %v8665, %v8663
      %v8667 = vmul.f32 %v8666, %v8665
      %v8668 = vmul.f32 0.5, %v8667
      %v8669 = vsub.f32 1.5, %v8668
      %v8670 = vmul.f32 %v8665, %v8669
      %vm8671 = vweird.f32 %v8663
      %vm8672 = vweird.f32 %v8665
      %vm8673 = vmor %vm8671, %vm8672
      %v8674 = vsel %vm8673, %v8665, %v8670
      %v8675 = vrsqrt.pop %v8664
      %v8676 = vmul.f32 %v8675, %v8664
      %v8677 = vmul.f32 %v8676, %v8675
      %v8678 = vmul.f32 0.5, %v8677
      %v8679 = vsub.f32 1.5, %v8678
      %v8680 = vmul.f32 %v8675, %v8679
      %vm8681 = vweird.f32 %v8664
      %vm8682 = vweird.f32 %v8675
      %vm8683 = vmor %vm8681, %vm8682
      %v8684 = vsel %vm8683, %v8675, %v8680
      %v8685 = vmul.f32 %v8651, %v8674
      %v8686 = vmul.f32 %v8652, %v8684
      %v8687 = vperm.slane %v5478, 3
      %v8688 = vmul.f32 %v8685, %v8687
      %v8689 = vmul.f32 %v8686, %v8687
      %v8690 = vperm.slane %v5478, 4
      %v8691 = vadd.f32 %v8688, %v8690
      %v8692 = vadd.f32 %v8689, %v8690
      %s8693 = scalar_lea.vmem %s8, 128
      %v8694 = vld [vmem:[%s8693] sm:$0xff]
      %v8695 = vld [vmem:[%s8693 + $0x8] sm:$0xff]
      %v8696 = vld [vmem:[%s8693 + $0x10] sm:$0xff]
      %v8697 = vld [vmem:[%s8693 + $0x18] sm:$0xff]
      %v8698 = vld [vmem:[%s8693 + $0x20] sm:$0xff]
      %v8699 = vld [vmem:[%s8693 + $0x28] sm:$0xff]
      %v8700 = vld [vmem:[%s8693 + $0x30] sm:$0xff]
      %v8701 = vld [vmem:[%s8693 + $0x38] sm:$0xff]
      %v8702 = vld [vmem:[%s8693 + $0x40] sm:$0xff]
      %v8703 = vld [vmem:[%s8693 + $0x48] sm:$0xff]
      %v8704 = vld [vmem:[%s8693 + $0x50] sm:$0xff]
      %v8705 = vld [vmem:[%s8693 + $0x58] sm:$0xff]
      %v8706 = vld [vmem:[%s8693 + $0x60] sm:$0xff]
      %v8707 = vld [vmem:[%s8693 + $0x68] sm:$0xff]
      %v8708 = vld [vmem:[%s8693 + $0x70] sm:$0xff]
      %v8709 = vld [vmem:[%s8693 + $0x78] sm:$0xff]
      %s8710 = scalar_lea.vmem %s9, 2
      %v8711 = vld [vmem:[%s8710] sm:$0x3]
      %v8713 = vperm.slane %v8711, 0
      %v8714 = vperm.slane %v8711, 1
      %v8718 = vsel %vm628, %v8691, 0
      %v8721 = vsel %vm628, %v8692, 0
      %8723 = vmatpush.msra.mxu0 0.0
      %8724 = vmatpush.msra.mxu0 0.0
      %8725 = vmatpush.msra.mxu0 0.0
      %8726 = vmatpush.msra.mxu0 0.0
      %8727 = vmatpush.msra.mxu0 0.0
      %8728 = vmatpush.msra.mxu0 0.0
      %8729 = vmatpush.msra.mxu0 0.0
      %8730 = vmatpush.msra.mxu0 0.0
      %v8731 = vand.u32 %v8708, 4294901760
      %8732 = vmatpush.msra.mxu0 %v8731
      %v8733 = vand.u32 %v8706, 4294901760
      %8734 = vmatpush.msra.mxu0 %v8733
      %v8735 = vand.u32 %v8704, 4294901760
      %8736 = vmatpush.msra.mxu0 %v8735
      %v8737 = vand.u32 %v8702, 4294901760
      %8738 = vmatpush.msra.mxu0 %v8737
      %v8739 = vand.u32 %v8700, 4294901760
      %8740 = vmatpush.msra.mxu0 %v8739
      %v8741 = vand.u32 %v8698, 4294901760
      %8742 = vmatpush.msra.mxu0 %v8741
      %v8743 = vand.u32 %v8696, 4294901760
      %8744 = vmatpush.msra.mxu0 %v8743
      %v8745 = vand.u32 %v8694, 4294901760
      %8746 = vmatpush.msra.mxu0 %v8745
      %v8747 = vand.u32 %v8718, 4294901760
      %v8748 = vsub.f32 %v8718, %v8747
      %v8749 = vand.u32 %v8748, 4294901760
      %v8750 = vsub.f32 %v8748, %v8749
      %v8751 = vand.u32 %v8750, 4294901760
      %8752 = vmatmul.f32.gmra.mxu0 %v8751
      %v8753 = vpop.f32.mrf.mxu0
      %v8754 = vadd.f32 %v8713, %v8753
      %v8755 = vand.u32 %v8721, 4294901760
      %v8756 = vsub.f32 %v8721, %v8755
      %v8757 = vand.u32 %v8756, 4294901760
      %v8758 = vsub.f32 %v8756, %v8757
      %v8759 = vand.u32 %v8758, 4294901760
      %8760 = vmatmul.f32.gmra.mxu0 %v8759
      %v8761 = vpop.f32.mrf.mxu0
      %v8762 = vadd.f32 %v8713, %v8761
      %8763 = vdwg.mxu0
      %8764 = vmatpush.msra.mxu0 0.0
      %8765 = vmatpush.msra.mxu0 0.0
      %8766 = vmatpush.msra.mxu0 0.0
      %8767 = vmatpush.msra.mxu0 0.0
      %8768 = vmatpush.msra.mxu0 0.0
      %8769 = vmatpush.msra.mxu0 0.0
      %8770 = vmatpush.msra.mxu0 0.0
      %8771 = vmatpush.msra.mxu0 0.0
      %v8772 = vand.u32 %v8708, 4294901760
      %v8773 = vsub.f32 %v8708, %v8772
      %v8774 = vand.u32 %v8773, 4294901760
      %v8775 = vsub.f32 %v8773, %v8774
      %v8776 = vand.u32 %v8775, 4294901760
      %8777 = vmatpush.msra.mxu0 %v8776
      %v8778 = vand.u32 %v8706, 4294901760
      %v8779 = vsub.f32 %v8706, %v8778
      %v8780 = vand.u32 %v8779, 4294901760
      %v8781 = vsub.f32 %v8779, %v8780
      %v8782 = vand.u32 %v8781, 4294901760
      %8783 = vmatpush.msra.mxu0 %v8782
      %v8784 = vand.u32 %v8704, 4294901760
      %v8785 = vsub.f32 %v8704, %v8784
      %v8786 = vand.u32 %v8785, 4294901760
      %v8787 = vsub.f32 %v8785, %v8786
      %v8788 = vand.u32 %v8787, 4294901760
      %8789 = vmatpush.msra.mxu0 %v8788
      %v8790 = vand.u32 %v8702, 4294901760
      %v8791 = vsub.f32 %v8702, %v8790
      %v8792 = vand.u32 %v8791, 4294901760
      %v8793 = vsub.f32 %v8791, %v8792
      %v8794 = vand.u32 %v8793, 4294901760
      %8795 = vmatpush.msra.mxu0 %v8794
      %v8796 = vand.u32 %v8700, 4294901760
      %v8797 = vsub.f32 %v8700, %v8796
      %v8798 = vand.u32 %v8797, 4294901760
      %v8799 = vsub.f32 %v8797, %v8798
      %v8800 = vand.u32 %v8799, 4294901760
      %8801 = vmatpush.msra.mxu0 %v8800
      %v8802 = vand.u32 %v8698, 4294901760
      %v8803 = vsub.f32 %v8698, %v8802
      %v8804 = vand.u32 %v8803, 4294901760
      %v8805 = vsub.f32 %v8803, %v8804
      %v8806 = vand.u32 %v8805, 4294901760
      %8807 = vmatpush.msra.mxu0 %v8806
      %v8808 = vand.u32 %v8696, 4294901760
      %v8809 = vsub.f32 %v8696, %v8808
      %v8810 = vand.u32 %v8809, 4294901760
      %v8811 = vsub.f32 %v8809, %v8810
      %v8812 = vand.u32 %v8811, 4294901760
      %8813 = vmatpush.msra.mxu0 %v8812
      %v8814 = vand.u32 %v8694, 4294901760
      %v8815 = vsub.f32 %v8694, %v8814
      %v8816 = vand.u32 %v8815, 4294901760
      %v8817 = vsub.f32 %v8815, %v8816
      %v8818 = vand.u32 %v8817, 4294901760
      %8819 = vmatpush.msra.mxu0 %v8818
      %v8820 = vand.u32 %v8718, 4294901760
      %8821 = vmatmul.f32.gmra.mxu0 %v8820
      %v8822 = vpop.f32.mrf.mxu0
      %v8823 = vadd.f32 %v8754, %v8822
      %v8824 = vand.u32 %v8721, 4294901760
      %8825 = vmatmul.f32.gmra.mxu0 %v8824
      %v8826 = vpop.f32.mrf.mxu0
      %v8827 = vadd.f32 %v8762, %v8826
      %8828 = vdwg.mxu0
      %8829 = vmatpush.msra.mxu0 0.0
      %8830 = vmatpush.msra.mxu0 0.0
      %8831 = vmatpush.msra.mxu0 0.0
      %8832 = vmatpush.msra.mxu0 0.0
      %8833 = vmatpush.msra.mxu0 0.0
      %8834 = vmatpush.msra.mxu0 0.0
      %8835 = vmatpush.msra.mxu0 0.0
      %8836 = vmatpush.msra.mxu0 0.0
      %v8837 = vand.u32 %v8708, 4294901760
      %v8838 = vsub.f32 %v8708, %v8837
      %8839 = vmatpush.msra.mxu0 %v8838
      %v8840 = vand.u32 %v8706, 4294901760
      %v8841 = vsub.f32 %v8706, %v8840
      %8842 = vmatpush.msra.mxu0 %v8841
      %v8843 = vand.u32 %v8704, 4294901760
      %v8844 = vsub.f32 %v8704, %v8843
      %8845 = vmatpush.msra.mxu0 %v8844
      %v8846 = vand.u32 %v8702, 4294901760
      %v8847 = vsub.f32 %v8702, %v8846
      %8848 = vmatpush.msra.mxu0 %v8847
      %v8849 = vand.u32 %v8700, 4294901760
      %v8850 = vsub.f32 %v8700, %v8849
      %8851 = vmatpush.msra.mxu0 %v8850
      %v8852 = vand.u32 %v8698, 4294901760
      %v8853 = vsub.f32 %v8698, %v8852
      %8854 = vmatpush.msra.mxu0 %v8853
      %v8855 = vand.u32 %v8696, 4294901760
      %v8856 = vsub.f32 %v8696, %v8855
      %8857 = vmatpush.msra.mxu0 %v8856
      %v8858 = vand.u32 %v8694, 4294901760
      %v8859 = vsub.f32 %v8694, %v8858
      %8860 = vmatpush.msra.mxu0 %v8859
      %v8861 = vand.u32 %v8718, 4294901760
      %v8862 = vsub.f32 %v8718, %v8861
      %8863 = vmatmul.f32.gmra.mxu0 %v8862
      %v8864 = vpop.f32.mrf.mxu0
      %v8865 = vadd.f32 %v8823, %v8864
      %v8866 = vand.u32 %v8721, 4294901760
      %v8867 = vsub.f32 %v8721, %v8866
      %8868 = vmatmul.f32.gmra.mxu0 %v8867
      %v8869 = vpop.f32.mrf.mxu0
      %v8870 = vadd.f32 %v8827, %v8869
      %8871 = vdwg.mxu0
      %8872 = vmatpush.msra.mxu0 0.0
      %8873 = vmatpush.msra.mxu0 0.0
      %8874 = vmatpush.msra.mxu0 0.0
      %8875 = vmatpush.msra.mxu0 0.0
      %8876 = vmatpush.msra.mxu0 0.0
      %8877 = vmatpush.msra.mxu0 0.0
      %8878 = vmatpush.msra.mxu0 0.0
      %8879 = vmatpush.msra.mxu0 0.0
      %v8880 = vand.u32 %v8708, 4294901760
      %8881 = vmatpush.msra.mxu0 %v8880
      %v8882 = vand.u32 %v8706, 4294901760
      %8883 = vmatpush.msra.mxu0 %v8882
      %v8884 = vand.u32 %v8704, 4294901760
      %8885 = vmatpush.msra.mxu0 %v8884
      %v8886 = vand.u32 %v8702, 4294901760
      %8887 = vmatpush.msra.mxu0 %v8886
      %v8888 = vand.u32 %v8700, 4294901760
      %8889 = vmatpush.msra.mxu0 %v8888
      %v8890 = vand.u32 %v8698, 4294901760
      %8891 = vmatpush.msra.mxu0 %v8890
      %v8892 = vand.u32 %v8696, 4294901760
      %8893 = vmatpush.msra.mxu0 %v8892
      %v8894 = vand.u32 %v8694, 4294901760
      %8895 = vmatpush.msra.mxu0 %v8894
      %v8896 = vand.u32 %v8718, 4294901760
      %v8897 = vsub.f32 %v8718, %v8896
      %v8898 = vand.u32 %v8897, 4294901760
      %8899 = vmatmul.f32.gmra.mxu0 %v8898
      %v8900 = vpop.f32.mrf.mxu0
      %v8901 = vadd.f32 %v8865, %v8900
      %v8902 = vand.u32 %v8721, 4294901760
      %v8903 = vsub.f32 %v8721, %v8902
      %v8904 = vand.u32 %v8903, 4294901760
      %8905 = vmatmul.f32.gmra.mxu0 %v8904
      %v8906 = vpop.f32.mrf.mxu0
      %v8907 = vadd.f32 %v8870, %v8906
      %8908 = vdwg.mxu0
      %8909 = vmatpush.msra.mxu0 0.0
      %8910 = vmatpush.msra.mxu0 0.0
      %8911 = vmatpush.msra.mxu0 0.0
      %8912 = vmatpush.msra.mxu0 0.0
      %8913 = vmatpush.msra.mxu0 0.0
      %8914 = vmatpush.msra.mxu0 0.0
      %8915 = vmatpush.msra.mxu0 0.0
      %8916 = vmatpush.msra.mxu0 0.0
      %v8917 = vand.u32 %v8708, 4294901760
      %v8918 = vsub.f32 %v8708, %v8917
      %v8919 = vand.u32 %v8918, 4294901760
      %8920 = vmatpush.msra.mxu0 %v8919
      %v8921 = vand.u32 %v8706, 4294901760
      %v8922 = vsub.f32 %v8706, %v8921
      %v8923 = vand.u32 %v8922, 4294901760
      %8924 = vmatpush.msra.mxu0 %v8923
      %v8925 = vand.u32 %v8704, 4294901760
      %v8926 = vsub.f32 %v8704, %v8925
      %v8927 = vand.u32 %v8926, 4294901760
      %8928 = vmatpush.msra.mxu0 %v8927
      %v8929 = vand.u32 %v8702, 4294901760
      %v8930 = vsub.f32 %v8702, %v8929
      %v8931 = vand.u32 %v8930, 4294901760
      %8932 = vmatpush.msra.mxu0 %v8931
      %v8933 = vand.u32 %v8700, 4294901760
      %v8934 = vsub.f32 %v8700, %v8933
      %v8935 = vand.u32 %v8934, 4294901760
      %8936 = vmatpush.msra.mxu0 %v8935
      %v8937 = vand.u32 %v8698, 4294901760
      %v8938 = vsub.f32 %v8698, %v8937
      %v8939 = vand.u32 %v8938, 4294901760
      %8940 = vmatpush.msra.mxu0 %v8939
      %v8941 = vand.u32 %v8696, 4294901760
      %v8942 = vsub.f32 %v8696, %v8941
      %v8943 = vand.u32 %v8942, 4294901760
      %8944 = vmatpush.msra.mxu0 %v8943
      %v8945 = vand.u32 %v8694, 4294901760
      %v8946 = vsub.f32 %v8694, %v8945
      %v8947 = vand.u32 %v8946, 4294901760
      %8948 = vmatpush.msra.mxu0 %v8947
      %v8949 = vand.u32 %v8718, 4294901760
      %8950 = vmatmul.f32.gmra.mxu0 %v8949
      %v8951 = vpop.f32.mrf.mxu0
      %v8952 = vadd.f32 %v8901, %v8951
      %v8953 = vand.u32 %v8721, 4294901760
      %8954 = vmatmul.f32.gmra.mxu0 %v8953
      %v8955 = vpop.f32.mrf.mxu0
      %v8956 = vadd.f32 %v8907, %v8955
      %8957 = vdwg.mxu0
      %8958 = vmatpush.msra.mxu0 0.0
      %8959 = vmatpush.msra.mxu0 0.0
      %8960 = vmatpush.msra.mxu0 0.0
      %8961 = vmatpush.msra.mxu0 0.0
      %8962 = vmatpush.msra.mxu0 0.0
      %8963 = vmatpush.msra.mxu0 0.0
      %8964 = vmatpush.msra.mxu0 0.0
      %8965 = vmatpush.msra.mxu0 0.0
      %v8966 = vand.u32 %v8708, 4294901760
      %8967 = vmatpush.msra.mxu0 %v8966
      %v8968 = vand.u32 %v8706, 4294901760
      %8969 = vmatpush.msra.mxu0 %v8968
      %v8970 = vand.u32 %v8704, 4294901760
      %8971 = vmatpush.msra.mxu0 %v8970
      %v8972 = vand.u32 %v8702, 4294901760
      %8973 = vmatpush.msra.mxu0 %v8972
      %v8974 = vand.u32 %v8700, 4294901760
      %8975 = vmatpush.msra.mxu0 %v8974
      %v8976 = vand.u32 %v8698, 4294901760
      %8977 = vmatpush.msra.mxu0 %v8976
      %v8978 = vand.u32 %v8696, 4294901760
      %8979 = vmatpush.msra.mxu0 %v8978
      %v8980 = vand.u32 %v8694, 4294901760
      %8981 = vmatpush.msra.mxu0 %v8980
      %v8982 = vand.u32 %v8718, 4294901760
      %8983 = vmatmul.f32.gmra.mxu0 %v8982
      %v8984 = vpop.f32.mrf.mxu0
      %v8985 = vadd.f32 %v8952, %v8984
      %v8986 = vand.u32 %v8721, 4294901760
      %8987 = vmatmul.f32.gmra.mxu0 %v8986
      %v8988 = vpop.f32.mrf.mxu0
      %v8989 = vadd.f32 %v8956, %v8988
      %8990 = vdwg.mxu0
      %8991 = vmatpush.msra.mxu0 0.0
      %8992 = vmatpush.msra.mxu0 0.0
      %8993 = vmatpush.msra.mxu0 0.0
      %8994 = vmatpush.msra.mxu0 0.0
      %8995 = vmatpush.msra.mxu0 0.0
      %8996 = vmatpush.msra.mxu0 0.0
      %8997 = vmatpush.msra.mxu0 0.0
      %8998 = vmatpush.msra.mxu0 0.0
      %v8999 = vand.u32 %v8709, 4294901760
      %9000 = vmatpush.msra.mxu0 %v8999
      %v9001 = vand.u32 %v8707, 4294901760
      %9002 = vmatpush.msra.mxu0 %v9001
      %v9003 = vand.u32 %v8705, 4294901760
      %9004 = vmatpush.msra.mxu0 %v9003
      %v9005 = vand.u32 %v8703, 4294901760
      %9006 = vmatpush.msra.mxu0 %v9005
      %v9007 = vand.u32 %v8701, 4294901760
      %9008 = vmatpush.msra.mxu0 %v9007
      %v9009 = vand.u32 %v8699, 4294901760
      %9010 = vmatpush.msra.mxu0 %v9009
      %v9011 = vand.u32 %v8697, 4294901760
      %9012 = vmatpush.msra.mxu0 %v9011
      %v9013 = vand.u32 %v8695, 4294901760
      %9014 = vmatpush.msra.mxu0 %v9013
      %v9015 = vand.u32 %v8718, 4294901760
      %v9016 = vsub.f32 %v8718, %v9015
      %v9017 = vand.u32 %v9016, 4294901760
      %v9018 = vsub.f32 %v9016, %v9017
      %v9019 = vand.u32 %v9018, 4294901760
      %9020 = vmatmul.f32.gmra.mxu0 %v9019
      %v9021 = vpop.f32.mrf.mxu0
      %v9022 = vadd.f32 %v8714, %v9021
      %v9023 = vand.u32 %v8721, 4294901760
      %v9024 = vsub.f32 %v8721, %v9023
      %v9025 = vand.u32 %v9024, 4294901760
      %v9026 = vsub.f32 %v9024, %v9025
      %v9027 = vand.u32 %v9026, 4294901760
      %9028 = vmatmul.f32.gmra.mxu0 %v9027
      %v9029 = vpop.f32.mrf.mxu0
      %v9030 = vadd.f32 %v8714, %v9029
      %9031 = vdwg.mxu0
      %9032 = vmatpush.msra.mxu0 0.0
      %9033 = vmatpush.msra.mxu0 0.0
      %9034 = vmatpush.msra.mxu0 0.0
      %9035 = vmatpush.msra.mxu0 0.0
      %9036 = vmatpush.msra.mxu0 0.0
      %9037 = vmatpush.msra.mxu0 0.0
      %9038 = vmatpush.msra.mxu0 0.0
      %9039 = vmatpush.msra.mxu0 0.0
      %v9040 = vand.u32 %v8709, 4294901760
      %v9041 = vsub.f32 %v8709, %v9040
      %v9042 = vand.u32 %v9041, 4294901760
      %v9043 = vsub.f32 %v9041, %v9042
      %v9044 = vand.u32 %v9043, 4294901760
      %9045 = vmatpush.msra.mxu0 %v9044
      %v9046 = vand.u32 %v8707, 4294901760
      %v9047 = vsub.f32 %v8707, %v9046
      %v9048 = vand.u32 %v9047, 4294901760
      %v9049 = vsub.f32 %v9047, %v9048
      %v9050 = vand.u32 %v9049, 4294901760
      %9051 = vmatpush.msra.mxu0 %v9050
      %v9052 = vand.u32 %v8705, 4294901760
      %v9053 = vsub.f32 %v8705, %v9052
      %v9054 = vand.u32 %v9053, 4294901760
      %v9055 = vsub.f32 %v9053, %v9054
      %v9056 = vand.u32 %v9055, 4294901760
      %9057 = vmatpush.msra.mxu0 %v9056
      %v9058 = vand.u32 %v8703, 4294901760
      %v9059 = vsub.f32 %v8703, %v9058
      %v9060 = vand.u32 %v9059, 4294901760
      %v9061 = vsub.f32 %v9059, %v9060
      %v9062 = vand.u32 %v9061, 4294901760
      %9063 = vmatpush.msra.mxu0 %v9062
      %v9064 = vand.u32 %v8701, 4294901760
      %v9065 = vsub.f32 %v8701, %v9064
      %v9066 = vand.u32 %v9065, 4294901760
      %v9067 = vsub.f32 %v9065, %v9066
      %v9068 = vand.u32 %v9067, 4294901760
      %9069 = vmatpush.msra.mxu0 %v9068
      %v9070 = vand.u32 %v8699, 4294901760
      %v9071 = vsub.f32 %v8699, %v9070
      %v9072 = vand.u32 %v9071, 4294901760
      %v9073 = vsub.f32 %v9071, %v9072
      %v9074 = vand.u32 %v9073, 4294901760
      %9075 = vmatpush.msra.mxu0 %v9074
      %v9076 = vand.u32 %v8697, 4294901760
      %v9077 = vsub.f32 %v8697, %v9076
      %v9078 = vand.u32 %v9077, 4294901760
      %v9079 = vsub.f32 %v9077, %v9078
      %v9080 = vand.u32 %v9079, 4294901760
      %9081 = vmatpush.msra.mxu0 %v9080
      %v9082 = vand.u32 %v8695, 4294901760
      %v9083 = vsub.f32 %v8695, %v9082
      %v9084 = vand.u32 %v9083, 4294901760
      %v9085 = vsub.f32 %v9083, %v9084
      %v9086 = vand.u32 %v9085, 4294901760
      %9087 = vmatpush.msra.mxu0 %v9086
      %v9088 = vand.u32 %v8718, 4294901760
      %9089 = vmatmul.f32.gmra.mxu0 %v9088
      %v9090 = vpop.f32.mrf.mxu0
      %v9091 = vadd.f32 %v9022, %v9090
      %v9092 = vand.u32 %v8721, 4294901760
      %9093 = vmatmul.f32.gmra.mxu0 %v9092
      %v9094 = vpop.f32.mrf.mxu0
      %v9095 = vadd.f32 %v9030, %v9094
      %9096 = vdwg.mxu0
      %9097 = vmatpush.msra.mxu0 0.0
      %9098 = vmatpush.msra.mxu0 0.0
      %9099 = vmatpush.msra.mxu0 0.0
      %9100 = vmatpush.msra.mxu0 0.0
      %9101 = vmatpush.msra.mxu0 0.0
      %9102 = vmatpush.msra.mxu0 0.0
      %9103 = vmatpush.msra.mxu0 0.0
      %9104 = vmatpush.msra.mxu0 0.0
      %v9105 = vand.u32 %v8709, 4294901760
      %v9106 = vsub.f32 %v8709, %v9105
      %9107 = vmatpush.msra.mxu0 %v9106
      %v9108 = vand.u32 %v8707, 4294901760
      %v9109 = vsub.f32 %v8707, %v9108
      %9110 = vmatpush.msra.mxu0 %v9109
      %v9111 = vand.u32 %v8705, 4294901760
      %v9112 = vsub.f32 %v8705, %v9111
      %9113 = vmatpush.msra.mxu0 %v9112
      %v9114 = vand.u32 %v8703, 4294901760
      %v9115 = vsub.f32 %v8703, %v9114
      %9116 = vmatpush.msra.mxu0 %v9115
      %v9117 = vand.u32 %v8701, 4294901760
      %v9118 = vsub.f32 %v8701, %v9117
      %9119 = vmatpush.msra.mxu0 %v9118
      %v9120 = vand.u32 %v8699, 4294901760
      %v9121 = vsub.f32 %v8699, %v9120
      %9122 = vmatpush.msra.mxu0 %v9121
      %v9123 = vand.u32 %v8697, 4294901760
      %v9124 = vsub.f32 %v8697, %v9123
      %9125 = vmatpush.msra.mxu0 %v9124
      %v9126 = vand.u32 %v8695, 4294901760
      %v9127 = vsub.f32 %v8695, %v9126
      %9128 = vmatpush.msra.mxu0 %v9127
      %v9129 = vand.u32 %v8718, 4294901760
      %v9130 = vsub.f32 %v8718, %v9129
      %9131 = vmatmul.f32.gmra.mxu0 %v9130
      %v9132 = vpop.f32.mrf.mxu0
      %v9133 = vadd.f32 %v9091, %v9132
      %v9134 = vand.u32 %v8721, 4294901760
      %v9135 = vsub.f32 %v8721, %v9134
      %9136 = vmatmul.f32.gmra.mxu0 %v9135
      %v9137 = vpop.f32.mrf.mxu0
      %v9138 = vadd.f32 %v9095, %v9137
      %9139 = vdwg.mxu0
      %9140 = vmatpush.msra.mxu0 0.0
      %9141 = vmatpush.msra.mxu0 0.0
      %9142 = vmatpush.msra.mxu0 0.0
      %9143 = vmatpush.msra.mxu0 0.0
      %9144 = vmatpush.msra.mxu0 0.0
      %9145 = vmatpush.msra.mxu0 0.0
      %9146 = vmatpush.msra.mxu0 0.0
      %9147 = vmatpush.msra.mxu0 0.0
      %v9148 = vand.u32 %v8709, 4294901760
      %9149 = vmatpush.msra.mxu0 %v9148
      %v9150 = vand.u32 %v8707, 4294901760
      %9151 = vmatpush.msra.mxu0 %v9150
      %v9152 = vand.u32 %v8705, 4294901760
      %9153 = vmatpush.msra.mxu0 %v9152
      %v9154 = vand.u32 %v8703, 4294901760
      %9155 = vmatpush.msra.mxu0 %v9154
      %v9156 = vand.u32 %v8701, 4294901760
      %9157 = vmatpush.msra.mxu0 %v9156
      %v9158 = vand.u32 %v8699, 4294901760
      %9159 = vmatpush.msra.mxu0 %v9158
      %v9160 = vand.u32 %v8697, 4294901760
      %9161 = vmatpush.msra.mxu0 %v9160
      %v9162 = vand.u32 %v8695, 4294901760
      %9163 = vmatpush.msra.mxu0 %v9162
      %v9164 = vand.u32 %v8718, 4294901760
      %v9165 = vsub.f32 %v8718, %v9164
      %v9166 = vand.u32 %v9165, 4294901760
      %9167 = vmatmul.f32.gmra.mxu0 %v9166
      %v9168 = vpop.f32.mrf.mxu0
      %v9169 = vadd.f32 %v9133, %v9168
      %v9170 = vand.u32 %v8721, 4294901760
      %v9171 = vsub.f32 %v8721, %v9170
      %v9172 = vand.u32 %v9171, 4294901760
      %9173 = vmatmul.f32.gmra.mxu0 %v9172
      %v9174 = vpop.f32.mrf.mxu0
      %v9175 = vadd.f32 %v9138, %v9174
      %9176 = vdwg.mxu0
      %9177 = vmatpush.msra.mxu0 0.0
      %9178 = vmatpush.msra.mxu0 0.0
      %9179 = vmatpush.msra.mxu0 0.0
      %9180 = vmatpush.msra.mxu0 0.0
      %9181 = vmatpush.msra.mxu0 0.0
      %9182 = vmatpush.msra.mxu0 0.0
      %9183 = vmatpush.msra.mxu0 0.0
      %9184 = vmatpush.msra.mxu0 0.0
      %v9185 = vand.u32 %v8709, 4294901760
      %v9186 = vsub.f32 %v8709, %v9185
      %v9187 = vand.u32 %v9186, 4294901760
      %9188 = vmatpush.msra.mxu0 %v9187
      %v9189 = vand.u32 %v8707, 4294901760
      %v9190 = vsub.f32 %v8707, %v9189
      %v9191 = vand.u32 %v9190, 4294901760
      %9192 = vmatpush.msra.mxu0 %v9191
      %v9193 = vand.u32 %v8705, 4294901760
      %v9194 = vsub.f32 %v8705, %v9193
      %v9195 = vand.u32 %v9194, 4294901760
      %9196 = vmatpush.msra.mxu0 %v9195
      %v9197 = vand.u32 %v8703, 4294901760
      %v9198 = vsub.f32 %v8703, %v9197
      %v9199 = vand.u32 %v9198, 4294901760
      %9200 = vmatpush.msra.mxu0 %v9199
      %v9201 = vand.u32 %v8701, 4294901760
      %v9202 = vsub.f32 %v8701, %v9201
      %v9203 = vand.u32 %v9202, 4294901760
      %9204 = vmatpush.msra.mxu0 %v9203
      %v9205 = vand.u32 %v8699, 4294901760
      %v9206 = vsub.f32 %v8699, %v9205
      %v9207 = vand.u32 %v9206, 4294901760
      %9208 = vmatpush.msra.mxu0 %v9207
      %v9209 = vand.u32 %v8697, 4294901760
      %v9210 = vsub.f32 %v8697, %v9209
      %v9211 = vand.u32 %v9210, 4294901760
      %9212 = vmatpush.msra.mxu0 %v9211
      %v9213 = vand.u32 %v8695, 4294901760
      %v9214 = vsub.f32 %v8695, %v9213
      %v9215 = vand.u32 %v9214, 4294901760
      %9216 = vmatpush.msra.mxu0 %v9215
      %v9217 = vand.u32 %v8718, 4294901760
      %9218 = vmatmul.f32.gmra.mxu0 %v9217
      %v9219 = vpop.f32.mrf.mxu0
      %v9220 = vadd.f32 %v9169, %v9219
      %v9221 = vand.u32 %v8721, 4294901760
      %9222 = vmatmul.f32.gmra.mxu0 %v9221
      %v9223 = vpop.f32.mrf.mxu0
      %v9224 = vadd.f32 %v9175, %v9223
      %9225 = vdwg.mxu0
      %9226 = vmatpush.msra.mxu0 0.0
      %9227 = vmatpush.msra.mxu0 0.0
      %9228 = vmatpush.msra.mxu0 0.0
      %9229 = vmatpush.msra.mxu0 0.0
      %9230 = vmatpush.msra.mxu0 0.0
      %9231 = vmatpush.msra.mxu0 0.0
      %9232 = vmatpush.msra.mxu0 0.0
      %9233 = vmatpush.msra.mxu0 0.0
      %v9234 = vand.u32 %v8709, 4294901760
      %9235 = vmatpush.msra.mxu0 %v9234
      %v9236 = vand.u32 %v8707, 4294901760
      %9237 = vmatpush.msra.mxu0 %v9236
      %v9238 = vand.u32 %v8705, 4294901760
      %9239 = vmatpush.msra.mxu0 %v9238
      %v9240 = vand.u32 %v8703, 4294901760
      %9241 = vmatpush.msra.mxu0 %v9240
      %v9242 = vand.u32 %v8701, 4294901760
      %9243 = vmatpush.msra.mxu0 %v9242
      %v9244 = vand.u32 %v8699, 4294901760
      %9245 = vmatpush.msra.mxu0 %v9244
      %v9246 = vand.u32 %v8697, 4294901760
      %9247 = vmatpush.msra.mxu0 %v9246
      %v9248 = vand.u32 %v8695, 4294901760
      %9249 = vmatpush.msra.mxu0 %v9248
      %v9250 = vand.u32 %v8718, 4294901760
      %9251 = vmatmul.f32.gmra.mxu0 %v9250
      %v9252 = vpop.f32.mrf.mxu0
      %v9253 = vadd.f32 %v9220, %v9252
      %v9254 = vand.u32 %v8721, 4294901760
      %9255 = vmatmul.f32.gmra.mxu0 %v9254
      %v9256 = vpop.f32.mrf.mxu0
      %v9257 = vadd.f32 %v9224, %v9256
      %9258 = vdwg.mxu0
      %vm9259 = vcmp.gt.f32.partialorder %v8985, 0.0
      %vm9260 = vcmp.gt.f32.partialorder %v9253, 0.0
      %vm9261 = vcmp.gt.f32.partialorder %v8989, 0.0
      %vm9262 = vcmp.gt.f32.partialorder %v9257, 0.0
      %v9263 = vmul.f32 %v8985, 0.3
      %v9264 = vmul.f32 %v9253, 0.3
      %v9265 = vmul.f32 %v8989, 0.3
      %v9266 = vmul.f32 %v9257, 0.3
      %v9267 = vsel %vm9259, %v8985, %v9263
      %v9268 = vsel %vm9260, %v9253, %v9264
      %v9269 = vsel %vm9261, %v8989, %v9265
      %v9270 = vsel %vm9262, %v9257, %v9266
      %s9271 = scalar_lea.vmem %s10, 256
      %v9272 = vld [vmem:[%s9271] sm:$0xff]
      %v9273 = vld [vmem:[%s9271 + $0x8] sm:$0xff]
      %v9274 = vld [vmem:[%s9271 + $0x10] sm:$0xff]
      %v9275 = vld [vmem:[%s9271 + $0x18] sm:$0xff]
      %v9276 = vld [vmem:[%s9271 + $0x20] sm:$0xff]
      %v9277 = vld [vmem:[%s9271 + $0x28] sm:$0xff]
      %v9278 = vld [vmem:[%s9271 + $0x30] sm:$0xff]
      %v9279 = vld [vmem:[%s9271 + $0x38] sm:$0xff]
      %v9280 = vld [vmem:[%s9271 + $0x40] sm:$0xff]
      %v9281 = vld [vmem:[%s9271 + $0x48] sm:$0xff]
      %v9282 = vld [vmem:[%s9271 + $0x50] sm:$0xff]
      %v9283 = vld [vmem:[%s9271 + $0x58] sm:$0xff]
      %v9284 = vld [vmem:[%s9271 + $0x60] sm:$0xff]
      %v9285 = vld [vmem:[%s9271 + $0x68] sm:$0xff]
      %v9286 = vld [vmem:[%s9271 + $0x70] sm:$0xff]
      %v9287 = vld [vmem:[%s9271 + $0x78] sm:$0xff]
      %v9288 = vld [vmem:[%s9271 + $0x80] sm:$0xff]
      %v9289 = vld [vmem:[%s9271 + $0x88] sm:$0xff]
      %v9290 = vld [vmem:[%s9271 + $0x90] sm:$0xff]
      %v9291 = vld [vmem:[%s9271 + $0x98] sm:$0xff]
      %v9292 = vld [vmem:[%s9271 + $0xa0] sm:$0xff]
      %v9293 = vld [vmem:[%s9271 + $0xa8] sm:$0xff]
      %v9294 = vld [vmem:[%s9271 + $0xb0] sm:$0xff]
      %v9295 = vld [vmem:[%s9271 + $0xb8] sm:$0xff]
      %v9296 = vld [vmem:[%s9271 + $0xc0] sm:$0xff]
      %v9297 = vld [vmem:[%s9271 + $0xc8] sm:$0xff]
      %v9298 = vld [vmem:[%s9271 + $0xd0] sm:$0xff]
      %v9299 = vld [vmem:[%s9271 + $0xd8] sm:$0xff]
      %v9300 = vld [vmem:[%s9271 + $0xe0] sm:$0xff]
      %v9301 = vld [vmem:[%s9271 + $0xe8] sm:$0xff]
      %v9302 = vld [vmem:[%s9271 + $0xf0] sm:$0xff]
      %v9303 = vld [vmem:[%s9271 + $0xf8] sm:$0xff]
      %v9304 = vperm.slane %v5478, 5
      %v9305 = vand.u32 %v9287, 4294901760
      %9306 = vmatpush.msra.mxu0 %v9305
      %v9307 = vand.u32 %v9286, 4294901760
      %9308 = vmatpush.msra.mxu0 %v9307
      %v9309 = vand.u32 %v9285, 4294901760
      %9310 = vmatpush.msra.mxu0 %v9309
      %v9311 = vand.u32 %v9284, 4294901760
      %9312 = vmatpush.msra.mxu0 %v9311
      %v9313 = vand.u32 %v9283, 4294901760
      %9314 = vmatpush.msra.mxu0 %v9313
      %v9315 = vand.u32 %v9282, 4294901760
      %9316 = vmatpush.msra.mxu0 %v9315
      %v9317 = vand.u32 %v9281, 4294901760
      %9318 = vmatpush.msra.mxu0 %v9317
      %v9319 = vand.u32 %v9280, 4294901760
      %9320 = vmatpush.msra.mxu0 %v9319
      %v9321 = vand.u32 %v9279, 4294901760
      %9322 = vmatpush.msra.mxu0 %v9321
      %v9323 = vand.u32 %v9278, 4294901760
      %9324 = vmatpush.msra.mxu0 %v9323
      %v9325 = vand.u32 %v9277, 4294901760
      %9326 = vmatpush.msra.mxu0 %v9325
      %v9327 = vand.u32 %v9276, 4294901760
      %9328 = vmatpush.msra.mxu0 %v9327
      %v9329 = vand.u32 %v9275, 4294901760
      %9330 = vmatpush.msra.mxu0 %v9329
      %v9331 = vand.u32 %v9274, 4294901760
      %9332 = vmatpush.msra.mxu0 %v9331
      %v9333 = vand.u32 %v9273, 4294901760
      %9334 = vmatpush.msra.mxu0 %v9333
      %v9335 = vand.u32 %v9272, 4294901760
      %9336 = vmatpush.msra.mxu0 %v9335
      %v9337 = vand.u32 %v9267, 4294901760
      %v9338 = vsub.f32 %v9267, %v9337
      %v9339 = vand.u32 %v9338, 4294901760
      %v9340 = vsub.f32 %v9338, %v9339
      %v9341 = vand.u32 %v9340, 4294901760
      %9342 = vmatmul.f32.gmra.mxu0 %v9341
      %v9343 = vpop.f32.mrf.mxu0
      %v9344 = vadd.f32 %v9304, %v9343
      %v9345 = vand.u32 %v9269, 4294901760
      %v9346 = vsub.f32 %v9269, %v9345
      %v9347 = vand.u32 %v9346, 4294901760
      %v9348 = vsub.f32 %v9346, %v9347
      %v9349 = vand.u32 %v9348, 4294901760
      %9350 = vmatmul.f32.gmra.mxu0 %v9349
      %v9351 = vpop.f32.mrf.mxu0
      %v9352 = vadd.f32 %v9304, %v9351
      %9353 = vdwg.mxu0
      %v9354 = vand.u32 %v9287, 4294901760
      %v9355 = vsub.f32 %v9287, %v9354
      %v9356 = vand.u32 %v9355, 4294901760
      %v9357 = vsub.f32 %v9355, %v9356
      %v9358 = vand.u32 %v9357, 4294901760
      %9359 = vmatpush.msra.mxu0 %v9358
      %v9360 = vand.u32 %v9286, 4294901760
      %v9361 = vsub.f32 %v9286, %v9360
      %v9362 = vand.u32 %v9361, 4294901760
      %v9363 = vsub.f32 %v9361, %v9362
      %v9364 = vand.u32 %v9363, 4294901760
      %9365 = vmatpush.msra.mxu0 %v9364
      %v9366 = vand.u32 %v9285, 4294901760
      %v9367 = vsub.f32 %v9285, %v9366
      %v9368 = vand.u32 %v9367, 4294901760
      %v9369 = vsub.f32 %v9367, %v9368
      %v9370 = vand.u32 %v9369, 4294901760
      %9371 = vmatpush.msra.mxu0 %v9370
      %v9372 = vand.u32 %v9284, 4294901760
      %v9373 = vsub.f32 %v9284, %v9372
      %v9374 = vand.u32 %v9373, 4294901760
      %v9375 = vsub.f32 %v9373, %v9374
      %v9376 = vand.u32 %v9375, 4294901760
      %9377 = vmatpush.msra.mxu0 %v9376
      %v9378 = vand.u32 %v9283, 4294901760
      %v9379 = vsub.f32 %v9283, %v9378
      %v9380 = vand.u32 %v9379, 4294901760
      %v9381 = vsub.f32 %v9379, %v9380
      %v9382 = vand.u32 %v9381, 4294901760
      %9383 = vmatpush.msra.mxu0 %v9382
      %v9384 = vand.u32 %v9282, 4294901760
      %v9385 = vsub.f32 %v9282, %v9384
      %v9386 = vand.u32 %v9385, 4294901760
      %v9387 = vsub.f32 %v9385, %v9386
      %v9388 = vand.u32 %v9387, 4294901760
      %9389 = vmatpush.msra.mxu0 %v9388
      %v9390 = vand.u32 %v9281, 4294901760
      %v9391 = vsub.f32 %v9281, %v9390
      %v9392 = vand.u32 %v9391, 4294901760
      %v9393 = vsub.f32 %v9391, %v9392
      %v9394 = vand.u32 %v9393, 4294901760
      %9395 = vmatpush.msra.mxu0 %v9394
      %v9396 = vand.u32 %v9280, 4294901760
      %v9397 = vsub.f32 %v9280, %v9396
      %v9398 = vand.u32 %v9397, 4294901760
      %v9399 = vsub.f32 %v9397, %v9398
      %v9400 = vand.u32 %v9399, 4294901760
      %9401 = vmatpush.msra.mxu0 %v9400
      %v9402 = vand.u32 %v9279, 4294901760
      %v9403 = vsub.f32 %v9279, %v9402
      %v9404 = vand.u32 %v9403, 4294901760
      %v9405 = vsub.f32 %v9403, %v9404
      %v9406 = vand.u32 %v9405, 4294901760
      %9407 = vmatpush.msra.mxu0 %v9406
      %v9408 = vand.u32 %v9278, 4294901760
      %v9409 = vsub.f32 %v9278, %v9408
      %v9410 = vand.u32 %v9409, 4294901760
      %v9411 = vsub.f32 %v9409, %v9410
      %v9412 = vand.u32 %v9411, 4294901760
      %9413 = vmatpush.msra.mxu0 %v9412
      %v9414 = vand.u32 %v9277, 4294901760
      %v9415 = vsub.f32 %v9277, %v9414
      %v9416 = vand.u32 %v9415, 4294901760
      %v9417 = vsub.f32 %v9415, %v9416
      %v9418 = vand.u32 %v9417, 4294901760
      %9419 = vmatpush.msra.mxu0 %v9418
      %v9420 = vand.u32 %v9276, 4294901760
      %v9421 = vsub.f32 %v9276, %v9420
      %v9422 = vand.u32 %v9421, 4294901760
      %v9423 = vsub.f32 %v9421, %v9422
      %v9424 = vand.u32 %v9423, 4294901760
      %9425 = vmatpush.msra.mxu0 %v9424
      %v9426 = vand.u32 %v9275, 4294901760
      %v9427 = vsub.f32 %v9275, %v9426
      %v9428 = vand.u32 %v9427, 4294901760
      %v9429 = vsub.f32 %v9427, %v9428
      %v9430 = vand.u32 %v9429, 4294901760
      %9431 = vmatpush.msra.mxu0 %v9430
      %v9432 = vand.u32 %v9274, 4294901760
      %v9433 = vsub.f32 %v9274, %v9432
      %v9434 = vand.u32 %v9433, 4294901760
      %v9435 = vsub.f32 %v9433, %v9434
      %v9436 = vand.u32 %v9435, 4294901760
      %9437 = vmatpush.msra.mxu0 %v9436
      %v9438 = vand.u32 %v9273, 4294901760
      %v9439 = vsub.f32 %v9273, %v9438
      %v9440 = vand.u32 %v9439, 4294901760
      %v9441 = vsub.f32 %v9439, %v9440
      %v9442 = vand.u32 %v9441, 4294901760
      %9443 = vmatpush.msra.mxu0 %v9442
      %v9444 = vand.u32 %v9272, 4294901760
      %v9445 = vsub.f32 %v9272, %v9444
      %v9446 = vand.u32 %v9445, 4294901760
      %v9447 = vsub.f32 %v9445, %v9446
      %v9448 = vand.u32 %v9447, 4294901760
      %9449 = vmatpush.msra.mxu0 %v9448
      %v9450 = vand.u32 %v9267, 4294901760
      %9451 = vmatmul.f32.gmra.mxu0 %v9450
      %v9452 = vpop.f32.mrf.mxu0
      %v9453 = vadd.f32 %v9344, %v9452
      %v9454 = vand.u32 %v9269, 4294901760
      %9455 = vmatmul.f32.gmra.mxu0 %v9454
      %v9456 = vpop.f32.mrf.mxu0
      %v9457 = vadd.f32 %v9352, %v9456
      %9458 = vdwg.mxu0
      %v9459 = vand.u32 %v9287, 4294901760
      %v9460 = vsub.f32 %v9287, %v9459
      %9461 = vmatpush.msra.mxu0 %v9460
      %v9462 = vand.u32 %v9286, 4294901760
      %v9463 = vsub.f32 %v9286, %v9462
      %9464 = vmatpush.msra.mxu0 %v9463
      %v9465 = vand.u32 %v9285, 4294901760
      %v9466 = vsub.f32 %v9285, %v9465
      %9467 = vmatpush.msra.mxu0 %v9466
      %v9468 = vand.u32 %v9284, 4294901760
      %v9469 = vsub.f32 %v9284, %v9468
      %9470 = vmatpush.msra.mxu0 %v9469
      %v9471 = vand.u32 %v9283, 4294901760
      %v9472 = vsub.f32 %v9283, %v9471
      %9473 = vmatpush.msra.mxu0 %v9472
      %v9474 = vand.u32 %v9282, 4294901760
      %v9475 = vsub.f32 %v9282, %v9474
      %9476 = vmatpush.msra.mxu0 %v9475
      %v9477 = vand.u32 %v9281, 4294901760
      %v9478 = vsub.f32 %v9281, %v9477
      %9479 = vmatpush.msra.mxu0 %v9478
      %v9480 = vand.u32 %v9280, 4294901760
      %v9481 = vsub.f32 %v9280, %v9480
      %9482 = vmatpush.msra.mxu0 %v9481
      %v9483 = vand.u32 %v9279, 4294901760
      %v9484 = vsub.f32 %v9279, %v9483
      %9485 = vmatpush.msra.mxu0 %v9484
      %v9486 = vand.u32 %v9278, 4294901760
      %v9487 = vsub.f32 %v9278, %v9486
      %9488 = vmatpush.msra.mxu0 %v9487
      %v9489 = vand.u32 %v9277, 4294901760
      %v9490 = vsub.f32 %v9277, %v9489
      %9491 = vmatpush.msra.mxu0 %v9490
      %v9492 = vand.u32 %v9276, 4294901760
      %v9493 = vsub.f32 %v9276, %v9492
      %9494 = vmatpush.msra.mxu0 %v9493
      %v9495 = vand.u32 %v9275, 4294901760
      %v9496 = vsub.f32 %v9275, %v9495
      %9497 = vmatpush.msra.mxu0 %v9496
      %v9498 = vand.u32 %v9274, 4294901760
      %v9499 = vsub.f32 %v9274, %v9498
      %9500 = vmatpush.msra.mxu0 %v9499
      %v9501 = vand.u32 %v9273, 4294901760
      %v9502 = vsub.f32 %v9273, %v9501
      %9503 = vmatpush.msra.mxu0 %v9502
      %v9504 = vand.u32 %v9272, 4294901760
      %v9505 = vsub.f32 %v9272, %v9504
      %9506 = vmatpush.msra.mxu0 %v9505
      %v9507 = vand.u32 %v9267, 4294901760
      %v9508 = vsub.f32 %v9267, %v9507
      %9509 = vmatmul.f32.gmra.mxu0 %v9508
      %v9510 = vpop.f32.mrf.mxu0
      %v9511 = vadd.f32 %v9453, %v9510
      %v9512 = vand.u32 %v9269, 4294901760
      %v9513 = vsub.f32 %v9269, %v9512
      %9514 = vmatmul.f32.gmra.mxu0 %v9513
      %v9515 = vpop.f32.mrf.mxu0
      %v9516 = vadd.f32 %v9457, %v9515
      %9517 = vdwg.mxu0
      %v9518 = vand.u32 %v9287, 4294901760
      %9519 = vmatpush.msra.mxu0 %v9518
      %v9520 = vand.u32 %v9286, 4294901760
      %9521 = vmatpush.msra.mxu0 %v9520
      %v9522 = vand.u32 %v9285, 4294901760
      %9523 = vmatpush.msra.mxu0 %v9522
      %v9524 = vand.u32 %v9284, 4294901760
      %9525 = vmatpush.msra.mxu0 %v9524
      %v9526 = vand.u32 %v9283, 4294901760
      %9527 = vmatpush.msra.mxu0 %v9526
      %v9528 = vand.u32 %v9282, 4294901760
      %9529 = vmatpush.msra.mxu0 %v9528
      %v9530 = vand.u32 %v9281, 4294901760
      %9531 = vmatpush.msra.mxu0 %v9530
      %v9532 = vand.u32 %v9280, 4294901760
      %9533 = vmatpush.msra.mxu0 %v9532
      %v9534 = vand.u32 %v9279, 4294901760
      %9535 = vmatpush.msra.mxu0 %v9534
      %v9536 = vand.u32 %v9278, 4294901760
      %9537 = vmatpush.msra.mxu0 %v9536
      %v9538 = vand.u32 %v9277, 4294901760
      %9539 = vmatpush.msra.mxu0 %v9538
      %v9540 = vand.u32 %v9276, 4294901760
      %9541 = vmatpush.msra.mxu0 %v9540
      %v9542 = vand.u32 %v9275, 4294901760
      %9543 = vmatpush.msra.mxu0 %v9542
      %v9544 = vand.u32 %v9274, 4294901760
      %9545 = vmatpush.msra.mxu0 %v9544
      %v9546 = vand.u32 %v9273, 4294901760
      %9547 = vmatpush.msra.mxu0 %v9546
      %v9548 = vand.u32 %v9272, 4294901760
      %9549 = vmatpush.msra.mxu0 %v9548
      %v9550 = vand.u32 %v9267, 4294901760
      %v9551 = vsub.f32 %v9267, %v9550
      %v9552 = vand.u32 %v9551, 4294901760
      %9553 = vmatmul.f32.gmra.mxu0 %v9552
      %v9554 = vpop.f32.mrf.mxu0
      %v9555 = vadd.f32 %v9511, %v9554
      %v9556 = vand.u32 %v9269, 4294901760
      %v9557 = vsub.f32 %v9269, %v9556
      %v9558 = vand.u32 %v9557, 4294901760
      %9559 = vmatmul.f32.gmra.mxu0 %v9558
      %v9560 = vpop.f32.mrf.mxu0
      %v9561 = vadd.f32 %v9516, %v9560
      %9562 = vdwg.mxu0
      %v9563 = vand.u32 %v9287, 4294901760
      %v9564 = vsub.f32 %v9287, %v9563
      %v9565 = vand.u32 %v9564, 4294901760
      %9566 = vmatpush.msra.mxu0 %v9565
      %v9567 = vand.u32 %v9286, 4294901760
      %v9568 = vsub.f32 %v9286, %v9567
      %v9569 = vand.u32 %v9568, 4294901760
      %9570 = vmatpush.msra.mxu0 %v9569
      %v9571 = vand.u32 %v9285, 4294901760
      %v9572 = vsub.f32 %v9285, %v9571
      %v9573 = vand.u32 %v9572, 4294901760
      %9574 = vmatpush.msra.mxu0 %v9573
      %v9575 = vand.u32 %v9284, 4294901760
      %v9576 = vsub.f32 %v9284, %v9575
      %v9577 = vand.u32 %v9576, 4294901760
      %9578 = vmatpush.msra.mxu0 %v9577
      %v9579 = vand.u32 %v9283, 4294901760
      %v9580 = vsub.f32 %v9283, %v9579
      %v9581 = vand.u32 %v9580, 4294901760
      %9582 = vmatpush.msra.mxu0 %v9581
      %v9583 = vand.u32 %v9282, 4294901760
      %v9584 = vsub.f32 %v9282, %v9583
      %v9585 = vand.u32 %v9584, 4294901760
      %9586 = vmatpush.msra.mxu0 %v9585
      %v9587 = vand.u32 %v9281, 4294901760
      %v9588 = vsub.f32 %v9281, %v9587
      %v9589 = vand.u32 %v9588, 4294901760
      %9590 = vmatpush.msra.mxu0 %v9589
      %v9591 = vand.u32 %v9280, 4294901760
      %v9592 = vsub.f32 %v9280, %v9591
      %v9593 = vand.u32 %v9592, 4294901760
      %9594 = vmatpush.msra.mxu0 %v9593
      %v9595 = vand.u32 %v9279, 4294901760
      %v9596 = vsub.f32 %v9279, %v9595
      %v9597 = vand.u32 %v9596, 4294901760
      %9598 = vmatpush.msra.mxu0 %v9597
      %v9599 = vand.u32 %v9278, 4294901760
      %v9600 = vsub.f32 %v9278, %v9599
      %v9601 = vand.u32 %v9600, 4294901760
      %9602 = vmatpush.msra.mxu0 %v9601
      %v9603 = vand.u32 %v9277, 4294901760
      %v9604 = vsub.f32 %v9277, %v9603
      %v9605 = vand.u32 %v9604, 4294901760
      %9606 = vmatpush.msra.mxu0 %v9605
      %v9607 = vand.u32 %v9276, 4294901760
      %v9608 = vsub.f32 %v9276, %v9607
      %v9609 = vand.u32 %v9608, 4294901760
      %9610 = vmatpush.msra.mxu0 %v9609
      %v9611 = vand.u32 %v9275, 4294901760
      %v9612 = vsub.f32 %v9275, %v9611
      %v9613 = vand.u32 %v9612, 4294901760
      %9614 = vmatpush.msra.mxu0 %v9613
      %v9615 = vand.u32 %v9274, 4294901760
      %v9616 = vsub.f32 %v9274, %v9615
      %v9617 = vand.u32 %v9616, 4294901760
      %9618 = vmatpush.msra.mxu0 %v9617
      %v9619 = vand.u32 %v9273, 4294901760
      %v9620 = vsub.f32 %v9273, %v9619
      %v9621 = vand.u32 %v9620, 4294901760
      %9622 = vmatpush.msra.mxu0 %v9621
      %v9623 = vand.u32 %v9272, 4294901760
      %v9624 = vsub.f32 %v9272, %v9623
      %v9625 = vand.u32 %v9624, 4294901760
      %9626 = vmatpush.msra.mxu0 %v9625
      %v9627 = vand.u32 %v9267, 4294901760
      %9628 = vmatmul.f32.gmra.mxu0 %v9627
      %v9629 = vpop.f32.mrf.mxu0
      %v9630 = vadd.f32 %v9555, %v9629
      %v9631 = vand.u32 %v9269, 4294901760
      %9632 = vmatmul.f32.gmra.mxu0 %v9631
      %v9633 = vpop.f32.mrf.mxu0
      %v9634 = vadd.f32 %v9561, %v9633
      %9635 = vdwg.mxu0
      %v9636 = vand.u32 %v9287, 4294901760
      %9637 = vmatpush.msra.mxu0 %v9636
      %v9638 = vand.u32 %v9286, 4294901760
      %9639 = vmatpush.msra.mxu0 %v9638
      %v9640 = vand.u32 %v9285, 4294901760
      %9641 = vmatpush.msra.mxu0 %v9640
      %v9642 = vand.u32 %v9284, 4294901760
      %9643 = vmatpush.msra.mxu0 %v9642
      %v9644 = vand.u32 %v9283, 4294901760
      %9645 = vmatpush.msra.mxu0 %v9644
      %v9646 = vand.u32 %v9282, 4294901760
      %9647 = vmatpush.msra.mxu0 %v9646
      %v9648 = vand.u32 %v9281, 4294901760
      %9649 = vmatpush.msra.mxu0 %v9648
      %v9650 = vand.u32 %v9280, 4294901760
      %9651 = vmatpush.msra.mxu0 %v9650
      %v9652 = vand.u32 %v9279, 4294901760
      %9653 = vmatpush.msra.mxu0 %v9652
      %v9654 = vand.u32 %v9278, 4294901760
      %9655 = vmatpush.msra.mxu0 %v9654
      %v9656 = vand.u32 %v9277, 4294901760
      %9657 = vmatpush.msra.mxu0 %v9656
      %v9658 = vand.u32 %v9276, 4294901760
      %9659 = vmatpush.msra.mxu0 %v9658
      %v9660 = vand.u32 %v9275, 4294901760
      %9661 = vmatpush.msra.mxu0 %v9660
      %v9662 = vand.u32 %v9274, 4294901760
      %9663 = vmatpush.msra.mxu0 %v9662
      %v9664 = vand.u32 %v9273, 4294901760
      %9665 = vmatpush.msra.mxu0 %v9664
      %v9666 = vand.u32 %v9272, 4294901760
      %9667 = vmatpush.msra.mxu0 %v9666
      %v9668 = vand.u32 %v9267, 4294901760
      %9669 = vmatmul.f32.gmra.mxu0 %v9668
      %v9670 = vpop.f32.mrf.mxu0
      %v9671 = vadd.f32 %v9630, %v9670
      %v9672 = vand.u32 %v9269, 4294901760
      %9673 = vmatmul.f32.gmra.mxu0 %v9672
      %v9674 = vpop.f32.mrf.mxu0
      %v9675 = vadd.f32 %v9634, %v9674
      %9676 = vdwg.mxu0
      %v9677 = vand.u32 %v9303, 4294901760
      %9678 = vmatpush.msra.mxu0 %v9677
      %v9679 = vand.u32 %v9302, 4294901760
      %9680 = vmatpush.msra.mxu0 %v9679
      %v9681 = vand.u32 %v9301, 4294901760
      %9682 = vmatpush.msra.mxu0 %v9681
      %v9683 = vand.u32 %v9300, 4294901760
      %9684 = vmatpush.msra.mxu0 %v9683
      %v9685 = vand.u32 %v9299, 4294901760
      %9686 = vmatpush.msra.mxu0 %v9685
      %v9687 = vand.u32 %v9298, 4294901760
      %9688 = vmatpush.msra.mxu0 %v9687
      %v9689 = vand.u32 %v9297, 4294901760
      %9690 = vmatpush.msra.mxu0 %v9689
      %v9691 = vand.u32 %v9296, 4294901760
      %9692 = vmatpush.msra.mxu0 %v9691
      %v9693 = vand.u32 %v9295, 4294901760
      %9694 = vmatpush.msra.mxu0 %v9693
      %v9695 = vand.u32 %v9294, 4294901760
      %9696 = vmatpush.msra.mxu0 %v9695
      %v9697 = vand.u32 %v9293, 4294901760
      %9698 = vmatpush.msra.mxu0 %v9697
      %v9699 = vand.u32 %v9292, 4294901760
      %9700 = vmatpush.msra.mxu0 %v9699
      %v9701 = vand.u32 %v9291, 4294901760
      %9702 = vmatpush.msra.mxu0 %v9701
      %v9703 = vand.u32 %v9290, 4294901760
      %9704 = vmatpush.msra.mxu0 %v9703
      %v9705 = vand.u32 %v9289, 4294901760
      %9706 = vmatpush.msra.mxu0 %v9705
      %v9707 = vand.u32 %v9288, 4294901760
      %9708 = vmatpush.msra.mxu0 %v9707
      %v9709 = vand.u32 %v9268, 4294901760
      %v9710 = vsub.f32 %v9268, %v9709
      %v9711 = vand.u32 %v9710, 4294901760
      %v9712 = vsub.f32 %v9710, %v9711
      %v9713 = vand.u32 %v9712, 4294901760
      %9714 = vmatmul.f32.gmra.mxu0 %v9713
      %v9715 = vpop.f32.mrf.mxu0
      %v9716 = vadd.f32 %v9671, %v9715
      %v9717 = vand.u32 %v9270, 4294901760
      %v9718 = vsub.f32 %v9270, %v9717
      %v9719 = vand.u32 %v9718, 4294901760
      %v9720 = vsub.f32 %v9718, %v9719
      %v9721 = vand.u32 %v9720, 4294901760
      %9722 = vmatmul.f32.gmra.mxu0 %v9721
      %v9723 = vpop.f32.mrf.mxu0
      %v9724 = vadd.f32 %v9675, %v9723
      %9725 = vdwg.mxu0
      %v9726 = vand.u32 %v9303, 4294901760
      %v9727 = vsub.f32 %v9303, %v9726
      %v9728 = vand.u32 %v9727, 4294901760
      %v9729 = vsub.f32 %v9727, %v9728
      %v9730 = vand.u32 %v9729, 4294901760
      %9731 = vmatpush.msra.mxu0 %v9730
      %v9732 = vand.u32 %v9302, 4294901760
      %v9733 = vsub.f32 %v9302, %v9732
      %v9734 = vand.u32 %v9733, 4294901760
      %v9735 = vsub.f32 %v9733, %v9734
      %v9736 = vand.u32 %v9735, 4294901760
      %9737 = vmatpush.msra.mxu0 %v9736
      %v9738 = vand.u32 %v9301, 4294901760
      %v9739 = vsub.f32 %v9301, %v9738
      %v9740 = vand.u32 %v9739, 4294901760
      %v9741 = vsub.f32 %v9739, %v9740
      %v9742 = vand.u32 %v9741, 4294901760
      %9743 = vmatpush.msra.mxu0 %v9742
      %v9744 = vand.u32 %v9300, 4294901760
      %v9745 = vsub.f32 %v9300, %v9744
      %v9746 = vand.u32 %v9745, 4294901760
      %v9747 = vsub.f32 %v9745, %v9746
      %v9748 = vand.u32 %v9747, 4294901760
      %9749 = vmatpush.msra.mxu0 %v9748
      %v9750 = vand.u32 %v9299, 4294901760
      %v9751 = vsub.f32 %v9299, %v9750
      %v9752 = vand.u32 %v9751, 4294901760
      %v9753 = vsub.f32 %v9751, %v9752
      %v9754 = vand.u32 %v9753, 4294901760
      %9755 = vmatpush.msra.mxu0 %v9754
      %v9756 = vand.u32 %v9298, 4294901760
      %v9757 = vsub.f32 %v9298, %v9756
      %v9758 = vand.u32 %v9757, 4294901760
      %v9759 = vsub.f32 %v9757, %v9758
      %v9760 = vand.u32 %v9759, 4294901760
      %9761 = vmatpush.msra.mxu0 %v9760
      %v9762 = vand.u32 %v9297, 4294901760
      %v9763 = vsub.f32 %v9297, %v9762
      %v9764 = vand.u32 %v9763, 4294901760
      %v9765 = vsub.f32 %v9763, %v9764
      %v9766 = vand.u32 %v9765, 4294901760
      %9767 = vmatpush.msra.mxu0 %v9766
      %v9768 = vand.u32 %v9296, 4294901760
      %v9769 = vsub.f32 %v9296, %v9768
      %v9770 = vand.u32 %v9769, 4294901760
      %v9771 = vsub.f32 %v9769, %v9770
      %v9772 = vand.u32 %v9771, 4294901760
      %9773 = vmatpush.msra.mxu0 %v9772
      %v9774 = vand.u32 %v9295, 4294901760
      %v9775 = vsub.f32 %v9295, %v9774
      %v9776 = vand.u32 %v9775, 4294901760
      %v9777 = vsub.f32 %v9775, %v9776
      %v9778 = vand.u32 %v9777, 4294901760
      %9779 = vmatpush.msra.mxu0 %v9778
      %v9780 = vand.u32 %v9294, 4294901760
      %v9781 = vsub.f32 %v9294, %v9780
      %v9782 = vand.u32 %v9781, 4294901760
      %v9783 = vsub.f32 %v9781, %v9782
      %v9784 = vand.u32 %v9783, 4294901760
      %9785 = vmatpush.msra.mxu0 %v9784
      %v9786 = vand.u32 %v9293, 4294901760
      %v9787 = vsub.f32 %v9293, %v9786
      %v9788 = vand.u32 %v9787, 4294901760
      %v9789 = vsub.f32 %v9787, %v9788
      %v9790 = vand.u32 %v9789, 4294901760
      %9791 = vmatpush.msra.mxu0 %v9790
      %v9792 = vand.u32 %v9292, 4294901760
      %v9793 = vsub.f32 %v9292, %v9792
      %v9794 = vand.u32 %v9793, 4294901760
      %v9795 = vsub.f32 %v9793, %v9794
      %v9796 = vand.u32 %v9795, 4294901760
      %9797 = vmatpush.msra.mxu0 %v9796
      %v9798 = vand.u32 %v9291, 4294901760
      %v9799 = vsub.f32 %v9291, %v9798
      %v9800 = vand.u32 %v9799, 4294901760
      %v9801 = vsub.f32 %v9799, %v9800
      %v9802 = vand.u32 %v9801, 4294901760
      %9803 = vmatpush.msra.mxu0 %v9802
      %v9804 = vand.u32 %v9290, 4294901760
      %v9805 = vsub.f32 %v9290, %v9804
      %v9806 = vand.u32 %v9805, 4294901760
      %v9807 = vsub.f32 %v9805, %v9806
      %v9808 = vand.u32 %v9807, 4294901760
      %9809 = vmatpush.msra.mxu0 %v9808
      %v9810 = vand.u32 %v9289, 4294901760
      %v9811 = vsub.f32 %v9289, %v9810
      %v9812 = vand.u32 %v9811, 4294901760
      %v9813 = vsub.f32 %v9811, %v9812
      %v9814 = vand.u32 %v9813, 4294901760
      %9815 = vmatpush.msra.mxu0 %v9814
      %v9816 = vand.u32 %v9288, 4294901760
      %v9817 = vsub.f32 %v9288, %v9816
      %v9818 = vand.u32 %v9817, 4294901760
      %v9819 = vsub.f32 %v9817, %v9818
      %v9820 = vand.u32 %v9819, 4294901760
      %9821 = vmatpush.msra.mxu0 %v9820
      %v9822 = vand.u32 %v9268, 4294901760
      %9823 = vmatmul.f32.gmra.mxu0 %v9822
      %v9824 = vpop.f32.mrf.mxu0
      %v9825 = vadd.f32 %v9716, %v9824
      %v9826 = vand.u32 %v9270, 4294901760
      %9827 = vmatmul.f32.gmra.mxu0 %v9826
      %v9828 = vpop.f32.mrf.mxu0
      %v9829 = vadd.f32 %v9724, %v9828
      %9830 = vdwg.mxu0
      %v9831 = vand.u32 %v9303, 4294901760
      %v9832 = vsub.f32 %v9303, %v9831
      %9833 = vmatpush.msra.mxu0 %v9832
      %v9834 = vand.u32 %v9302, 4294901760
      %v9835 = vsub.f32 %v9302, %v9834
      %9836 = vmatpush.msra.mxu0 %v9835
      %v9837 = vand.u32 %v9301, 4294901760
      %v9838 = vsub.f32 %v9301, %v9837
      %9839 = vmatpush.msra.mxu0 %v9838
      %v9840 = vand.u32 %v9300, 4294901760
      %v9841 = vsub.f32 %v9300, %v9840
      %9842 = vmatpush.msra.mxu0 %v9841
      %v9843 = vand.u32 %v9299, 4294901760
      %v9844 = vsub.f32 %v9299, %v9843
      %9845 = vmatpush.msra.mxu0 %v9844
      %v9846 = vand.u32 %v9298, 4294901760
      %v9847 = vsub.f32 %v9298, %v9846
      %9848 = vmatpush.msra.mxu0 %v9847
      %v9849 = vand.u32 %v9297, 4294901760
      %v9850 = vsub.f32 %v9297, %v9849
      %9851 = vmatpush.msra.mxu0 %v9850
      %v9852 = vand.u32 %v9296, 4294901760
      %v9853 = vsub.f32 %v9296, %v9852
      %9854 = vmatpush.msra.mxu0 %v9853
      %v9855 = vand.u32 %v9295, 4294901760
      %v9856 = vsub.f32 %v9295, %v9855
      %9857 = vmatpush.msra.mxu0 %v9856
      %v9858 = vand.u32 %v9294, 4294901760
      %v9859 = vsub.f32 %v9294, %v9858
      %9860 = vmatpush.msra.mxu0 %v9859
      %v9861 = vand.u32 %v9293, 4294901760
      %v9862 = vsub.f32 %v9293, %v9861
      %9863 = vmatpush.msra.mxu0 %v9862
      %v9864 = vand.u32 %v9292, 4294901760
      %v9865 = vsub.f32 %v9292, %v9864
      %9866 = vmatpush.msra.mxu0 %v9865
      %v9867 = vand.u32 %v9291, 4294901760
      %v9868 = vsub.f32 %v9291, %v9867
      %9869 = vmatpush.msra.mxu0 %v9868
      %v9870 = vand.u32 %v9290, 4294901760
      %v9871 = vsub.f32 %v9290, %v9870
      %9872 = vmatpush.msra.mxu0 %v9871
      %v9873 = vand.u32 %v9289, 4294901760
      %v9874 = vsub.f32 %v9289, %v9873
      %9875 = vmatpush.msra.mxu0 %v9874
      %v9876 = vand.u32 %v9288, 4294901760
      %v9877 = vsub.f32 %v9288, %v9876
      %9878 = vmatpush.msra.mxu0 %v9877
      %v9879 = vand.u32 %v9268, 4294901760
      %v9880 = vsub.f32 %v9268, %v9879
      %9881 = vmatmul.f32.gmra.mxu0 %v9880
      %v9882 = vpop.f32.mrf.mxu0
      %v9883 = vadd.f32 %v9825, %v9882
      %v9884 = vand.u32 %v9270, 4294901760
      %v9885 = vsub.f32 %v9270, %v9884
      %9886 = vmatmul.f32.gmra.mxu0 %v9885
      %v9887 = vpop.f32.mrf.mxu0
      %v9888 = vadd.f32 %v9829, %v9887
      %9889 = vdwg.mxu0
      %v9890 = vand.u32 %v9303, 4294901760
      %9891 = vmatpush.msra.mxu0 %v9890
      %v9892 = vand.u32 %v9302, 4294901760
      %9893 = vmatpush.msra.mxu0 %v9892
      %v9894 = vand.u32 %v9301, 4294901760
      %9895 = vmatpush.msra.mxu0 %v9894
      %v9896 = vand.u32 %v9300, 4294901760
      %9897 = vmatpush.msra.mxu0 %v9896
      %v9898 = vand.u32 %v9299, 4294901760
      %9899 = vmatpush.msra.mxu0 %v9898
      %v9900 = vand.u32 %v9298, 4294901760
      %9901 = vmatpush.msra.mxu0 %v9900
      %v9902 = vand.u32 %v9297, 4294901760
      %9903 = vmatpush.msra.mxu0 %v9902
      %v9904 = vand.u32 %v9296, 4294901760
      %9905 = vmatpush.msra.mxu0 %v9904
      %v9906 = vand.u32 %v9295, 4294901760
      %9907 = vmatpush.msra.mxu0 %v9906
      %v9908 = vand.u32 %v9294, 4294901760
      %9909 = vmatpush.msra.mxu0 %v9908
      %v9910 = vand.u32 %v9293, 4294901760
      %9911 = vmatpush.msra.mxu0 %v9910
      %v9912 = vand.u32 %v9292, 4294901760
      %9913 = vmatpush.msra.mxu0 %v9912
      %v9914 = vand.u32 %v9291, 4294901760
      %9915 = vmatpush.msra.mxu0 %v9914
      %v9916 = vand.u32 %v9290, 4294901760
      %9917 = vmatpush.msra.mxu0 %v9916
      %v9918 = vand.u32 %v9289, 4294901760
      %9919 = vmatpush.msra.mxu0 %v9918
      %v9920 = vand.u32 %v9288, 4294901760
      %9921 = vmatpush.msra.mxu0 %v9920
      %v9922 = vand.u32 %v9268, 4294901760
      %v9923 = vsub.f32 %v9268, %v9922
      %v9924 = vand.u32 %v9923, 4294901760
      %9925 = vmatmul.f32.gmra.mxu0 %v9924
      %v9926 = vpop.f32.mrf.mxu0
      %v9927 = vadd.f32 %v9883, %v9926
      %v9928 = vand.u32 %v9270, 4294901760
      %v9929 = vsub.f32 %v9270, %v9928
      %v9930 = vand.u32 %v9929, 4294901760
      %9931 = vmatmul.f32.gmra.mxu0 %v9930
      %v9932 = vpop.f32.mrf.mxu0
      %v9933 = vadd.f32 %v9888, %v9932
      %9934 = vdwg.mxu0
      %v9935 = vand.u32 %v9303, 4294901760
      %v9936 = vsub.f32 %v9303, %v9935
      %v9937 = vand.u32 %v9936, 4294901760
      %9938 = vmatpush.msra.mxu0 %v9937
      %v9939 = vand.u32 %v9302, 4294901760
      %v9940 = vsub.f32 %v9302, %v9939
      %v9941 = vand.u32 %v9940, 4294901760
      %9942 = vmatpush.msra.mxu0 %v9941
      %v9943 = vand.u32 %v9301, 4294901760
      %v9944 = vsub.f32 %v9301, %v9943
      %v9945 = vand.u32 %v9944, 4294901760
      %9946 = vmatpush.msra.mxu0 %v9945
      %v9947 = vand.u32 %v9300, 4294901760
      %v9948 = vsub.f32 %v9300, %v9947
      %v9949 = vand.u32 %v9948, 4294901760
      %9950 = vmatpush.msra.mxu0 %v9949
      %v9951 = vand.u32 %v9299, 4294901760
      %v9952 = vsub.f32 %v9299, %v9951
      %v9953 = vand.u32 %v9952, 4294901760
      %9954 = vmatpush.msra.mxu0 %v9953
      %v9955 = vand.u32 %v9298, 4294901760
      %v9956 = vsub.f32 %v9298, %v9955
      %v9957 = vand.u32 %v9956, 4294901760
      %9958 = vmatpush.msra.mxu0 %v9957
      %v9959 = vand.u32 %v9297, 4294901760
      %v9960 = vsub.f32 %v9297, %v9959
      %v9961 = vand.u32 %v9960, 4294901760
      %9962 = vmatpush.msra.mxu0 %v9961
      %v9963 = vand.u32 %v9296, 4294901760
      %v9964 = vsub.f32 %v9296, %v9963
      %v9965 = vand.u32 %v9964, 4294901760
      %9966 = vmatpush.msra.mxu0 %v9965
      %v9967 = vand.u32 %v9295, 4294901760
      %v9968 = vsub.f32 %v9295, %v9967
      %v9969 = vand.u32 %v9968, 4294901760
      %9970 = vmatpush.msra.mxu0 %v9969
      %v9971 = vand.u32 %v9294, 4294901760
      %v9972 = vsub.f32 %v9294, %v9971
      %v9973 = vand.u32 %v9972, 4294901760
      %9974 = vmatpush.msra.mxu0 %v9973
      %v9975 = vand.u32 %v9293, 4294901760
      %v9976 = vsub.f32 %v9293, %v9975
      %v9977 = vand.u32 %v9976, 4294901760
      %9978 = vmatpush.msra.mxu0 %v9977
      %v9979 = vand.u32 %v9292, 4294901760
      %v9980 = vsub.f32 %v9292, %v9979
      %v9981 = vand.u32 %v9980, 4294901760
      %9982 = vmatpush.msra.mxu0 %v9981
      %v9983 = vand.u32 %v9291, 4294901760
      %v9984 = vsub.f32 %v9291, %v9983
      %v9985 = vand.u32 %v9984, 4294901760
      %9986 = vmatpush.msra.mxu0 %v9985
      %v9987 = vand.u32 %v9290, 4294901760
      %v9988 = vsub.f32 %v9290, %v9987
      %v9989 = vand.u32 %v9988, 4294901760
      %9990 = vmatpush.msra.mxu0 %v9989
      %v9991 = vand.u32 %v9289, 4294901760
      %v9992 = vsub.f32 %v9289, %v9991
      %v9993 = vand.u32 %v9992, 4294901760
      %9994 = vmatpush.msra.mxu0 %v9993
      %v9995 = vand.u32 %v9288, 4294901760
      %v9996 = vsub.f32 %v9288, %v9995
      %v9997 = vand.u32 %v9996, 4294901760
      %9998 = vmatpush.msra.mxu0 %v9997
      %v9999 = vand.u32 %v9268, 4294901760
      %10000 = vmatmul.f32.gmra.mxu0 %v9999
      %v10001 = vpop.f32.mrf.mxu0
      %v10002 = vadd.f32 %v9927, %v10001
      %v10003 = vand.u32 %v9270, 4294901760
      %10004 = vmatmul.f32.gmra.mxu0 %v10003
      %v10005 = vpop.f32.mrf.mxu0
      %v10006 = vadd.f32 %v9933, %v10005
      %10007 = vdwg.mxu0
      %v10008 = vand.u32 %v9303, 4294901760
      %10009 = vmatpush.msra.mxu0 %v10008
      %v10010 = vand.u32 %v9302, 4294901760
      %10011 = vmatpush.msra.mxu0 %v10010
      %v10012 = vand.u32 %v9301, 4294901760
      %10013 = vmatpush.msra.mxu0 %v10012
      %v10014 = vand.u32 %v9300, 4294901760
      %10015 = vmatpush.msra.mxu0 %v10014
      %v10016 = vand.u32 %v9299, 4294901760
      %10017 = vmatpush.msra.mxu0 %v10016
      %v10018 = vand.u32 %v9298, 4294901760
      %10019 = vmatpush.msra.mxu0 %v10018
      %v10020 = vand.u32 %v9297, 4294901760
      %10021 = vmatpush.msra.mxu0 %v10020
      %v10022 = vand.u32 %v9296, 4294901760
      %10023 = vmatpush.msra.mxu0 %v10022
      %v10024 = vand.u32 %v9295, 4294901760
      %10025 = vmatpush.msra.mxu0 %v10024
      %v10026 = vand.u32 %v9294, 4294901760
      %10027 = vmatpush.msra.mxu0 %v10026
      %v10028 = vand.u32 %v9293, 4294901760
      %10029 = vmatpush.msra.mxu0 %v10028
      %v10030 = vand.u32 %v9292, 4294901760
      %10031 = vmatpush.msra.mxu0 %v10030
      %v10032 = vand.u32 %v9291, 4294901760
      %10033 = vmatpush.msra.mxu0 %v10032
      %v10034 = vand.u32 %v9290, 4294901760
      %10035 = vmatpush.msra.mxu0 %v10034
      %v10036 = vand.u32 %v9289, 4294901760
      %10037 = vmatpush.msra.mxu0 %v10036
      %v10038 = vand.u32 %v9288, 4294901760
      %10039 = vmatpush.msra.mxu0 %v10038
      %v10040 = vand.u32 %v9268, 4294901760
      %10041 = vmatmul.f32.gmra.mxu0 %v10040
      %v10042 = vpop.f32.mrf.mxu0
      %v10043 = vadd.f32 %v10002, %v10042
      %v10044 = vand.u32 %v9270, 4294901760
      %10045 = vmatmul.f32.gmra.mxu0 %v10044
      %v10046 = vpop.f32.mrf.mxu0
      %v10047 = vadd.f32 %v10006, %v10046
      %10048 = vdwg.mxu0
      %v10049 = vadd.f32 %v8641, %v10043
      %v10050 = vadd.f32 %v8642, %v10047
      %v10051 = vld [vmem:[%s11] sm:$0xff]
      %v10052 = vld [vmem:[%s11 + $0x8] sm:$0xff]
      %v10053 = vld [vmem:[%s11 + $0x10] sm:$0xff]
      %v10054 = vld [vmem:[%s11 + $0x18] sm:$0xff]
      %v10055 = vld [vmem:[%s11 + $0x20] sm:$0xff]
      %v10056 = vld [vmem:[%s11 + $0x28] sm:$0xff]
      %v10057 = vld [vmem:[%s11 + $0x30] sm:$0xff]
      %v10058 = vld [vmem:[%s11 + $0x38] sm:$0xff]
      %v10059 = vld [vmem:[%s11 + $0x40] sm:$0x1]
      %v10060 = vperm.slane %v10059, 0
      %v10062 = vsel %vm628, %v10049, 0
      %v10065 = vsel %vm628, %v10050, 0
      %10067 = vmatpush.msra.mxu0 0.0
      %10068 = vmatpush.msra.mxu0 0.0
      %10069 = vmatpush.msra.mxu0 0.0
      %10070 = vmatpush.msra.mxu0 0.0
      %10071 = vmatpush.msra.mxu0 0.0
      %10072 = vmatpush.msra.mxu0 0.0
      %10073 = vmatpush.msra.mxu0 0.0
      %10074 = vmatpush.msra.mxu0 0.0
      %v10075 = vand.u32 %v10058, 4294901760
      %10076 = vmatpush.msra.mxu0 %v10075
      %v10077 = vand.u32 %v10057, 4294901760
      %10078 = vmatpush.msra.mxu0 %v10077
      %v10079 = vand.u32 %v10056, 4294901760
      %10080 = vmatpush.msra.mxu0 %v10079
      %v10081 = vand.u32 %v10055, 4294901760
      %10082 = vmatpush.msra.mxu0 %v10081
      %v10083 = vand.u32 %v10054, 4294901760
      %10084 = vmatpush.msra.mxu0 %v10083
      %v10085 = vand.u32 %v10053, 4294901760
      %10086 = vmatpush.msra.mxu0 %v10085
      %v10087 = vand.u32 %v10052, 4294901760
      %10088 = vmatpush.msra.mxu0 %v10087
      %v10089 = vand.u32 %v10051, 4294901760
      %10090 = vmatpush.msra.mxu0 %v10089
      %v10091 = vand.u32 %v10062, 4294901760
      %v10092 = vsub.f32 %v10062, %v10091
      %v10093 = vand.u32 %v10092, 4294901760
      %v10094 = vsub.f32 %v10092, %v10093
      %v10095 = vand.u32 %v10094, 4294901760
      %10096 = vmatmul.f32.gmra.mxu0 %v10095
      %v10097 = vpop.f32.mrf.mxu0
      %v10098 = vadd.f32 %v10060, %v10097
      %v10099 = vand.u32 %v10065, 4294901760
      %v10100 = vsub.f32 %v10065, %v10099
      %v10101 = vand.u32 %v10100, 4294901760
      %v10102 = vsub.f32 %v10100, %v10101
      %v10103 = vand.u32 %v10102, 4294901760
      %10104 = vmatmul.f32.gmra.mxu0 %v10103
      %v10105 = vpop.f32.mrf.mxu0
      %v10106 = vadd.f32 %v10060, %v10105
      %10107 = vdwg.mxu0
      %10108 = vmatpush.msra.mxu0 0.0
      %10109 = vmatpush.msra.mxu0 0.0
      %10110 = vmatpush.msra.mxu0 0.0
      %10111 = vmatpush.msra.mxu0 0.0
      %10112 = vmatpush.msra.mxu0 0.0
      %10113 = vmatpush.msra.mxu0 0.0
      %10114 = vmatpush.msra.mxu0 0.0
      %10115 = vmatpush.msra.mxu0 0.0
      %v10116 = vand.u32 %v10058, 4294901760
      %v10117 = vsub.f32 %v10058, %v10116
      %v10118 = vand.u32 %v10117, 4294901760
      %v10119 = vsub.f32 %v10117, %v10118
      %v10120 = vand.u32 %v10119, 4294901760
      %10121 = vmatpush.msra.mxu0 %v10120
      %v10122 = vand.u32 %v10057, 4294901760
      %v10123 = vsub.f32 %v10057, %v10122
      %v10124 = vand.u32 %v10123, 4294901760
      %v10125 = vsub.f32 %v10123, %v10124
      %v10126 = vand.u32 %v10125, 4294901760
      %10127 = vmatpush.msra.mxu0 %v10126
      %v10128 = vand.u32 %v10056, 4294901760
      %v10129 = vsub.f32 %v10056, %v10128
      %v10130 = vand.u32 %v10129, 4294901760
      %v10131 = vsub.f32 %v10129, %v10130
      %v10132 = vand.u32 %v10131, 4294901760
      %10133 = vmatpush.msra.mxu0 %v10132
      %v10134 = vand.u32 %v10055, 4294901760
      %v10135 = vsub.f32 %v10055, %v10134
      %v10136 = vand.u32 %v10135, 4294901760
      %v10137 = vsub.f32 %v10135, %v10136
      %v10138 = vand.u32 %v10137, 4294901760
      %10139 = vmatpush.msra.mxu0 %v10138
      %v10140 = vand.u32 %v10054, 4294901760
      %v10141 = vsub.f32 %v10054, %v10140
      %v10142 = vand.u32 %v10141, 4294901760
      %v10143 = vsub.f32 %v10141, %v10142
      %v10144 = vand.u32 %v10143, 4294901760
      %10145 = vmatpush.msra.mxu0 %v10144
      %v10146 = vand.u32 %v10053, 4294901760
      %v10147 = vsub.f32 %v10053, %v10146
      %v10148 = vand.u32 %v10147, 4294901760
      %v10149 = vsub.f32 %v10147, %v10148
      %v10150 = vand.u32 %v10149, 4294901760
      %10151 = vmatpush.msra.mxu0 %v10150
      %v10152 = vand.u32 %v10052, 4294901760
      %v10153 = vsub.f32 %v10052, %v10152
      %v10154 = vand.u32 %v10153, 4294901760
      %v10155 = vsub.f32 %v10153, %v10154
      %v10156 = vand.u32 %v10155, 4294901760
      %10157 = vmatpush.msra.mxu0 %v10156
      %v10158 = vand.u32 %v10051, 4294901760
      %v10159 = vsub.f32 %v10051, %v10158
      %v10160 = vand.u32 %v10159, 4294901760
      %v10161 = vsub.f32 %v10159, %v10160
      %v10162 = vand.u32 %v10161, 4294901760
      %10163 = vmatpush.msra.mxu0 %v10162
      %v10164 = vand.u32 %v10062, 4294901760
      %10165 = vmatmul.f32.gmra.mxu0 %v10164
      %v10166 = vpop.f32.mrf.mxu0
      %v10167 = vadd.f32 %v10098, %v10166
      %v10168 = vand.u32 %v10065, 4294901760
      %10169 = vmatmul.f32.gmra.mxu0 %v10168
      %v10170 = vpop.f32.mrf.mxu0
      %v10171 = vadd.f32 %v10106, %v10170
      %10172 = vdwg.mxu0
      %10173 = vmatpush.msra.mxu0 0.0
      %10174 = vmatpush.msra.mxu0 0.0
      %10175 = vmatpush.msra.mxu0 0.0
      %10176 = vmatpush.msra.mxu0 0.0
      %10177 = vmatpush.msra.mxu0 0.0
      %10178 = vmatpush.msra.mxu0 0.0
      %10179 = vmatpush.msra.mxu0 0.0
      %10180 = vmatpush.msra.mxu0 0.0
      %v10181 = vand.u32 %v10058, 4294901760
      %v10182 = vsub.f32 %v10058, %v10181
      %10183 = vmatpush.msra.mxu0 %v10182
      %v10184 = vand.u32 %v10057, 4294901760
      %v10185 = vsub.f32 %v10057, %v10184
      %10186 = vmatpush.msra.mxu0 %v10185
      %v10187 = vand.u32 %v10056, 4294901760
      %v10188 = vsub.f32 %v10056, %v10187
      %10189 = vmatpush.msra.mxu0 %v10188
      %v10190 = vand.u32 %v10055, 4294901760
      %v10191 = vsub.f32 %v10055, %v10190
      %10192 = vmatpush.msra.mxu0 %v10191
      %v10193 = vand.u32 %v10054, 4294901760
      %v10194 = vsub.f32 %v10054, %v10193
      %10195 = vmatpush.msra.mxu0 %v10194
      %v10196 = vand.u32 %v10053, 4294901760
      %v10197 = vsub.f32 %v10053, %v10196
      %10198 = vmatpush.msra.mxu0 %v10197
      %v10199 = vand.u32 %v10052, 4294901760
      %v10200 = vsub.f32 %v10052, %v10199
      %10201 = vmatpush.msra.mxu0 %v10200
      %v10202 = vand.u32 %v10051, 4294901760
      %v10203 = vsub.f32 %v10051, %v10202
      %10204 = vmatpush.msra.mxu0 %v10203
      %v10205 = vand.u32 %v10062, 4294901760
      %v10206 = vsub.f32 %v10062, %v10205
      %10207 = vmatmul.f32.gmra.mxu0 %v10206
      %v10208 = vpop.f32.mrf.mxu0
      %v10209 = vadd.f32 %v10167, %v10208
      %v10210 = vand.u32 %v10065, 4294901760
      %v10211 = vsub.f32 %v10065, %v10210
      %10212 = vmatmul.f32.gmra.mxu0 %v10211
      %v10213 = vpop.f32.mrf.mxu0
      %v10214 = vadd.f32 %v10171, %v10213
      %10215 = vdwg.mxu0
      %10216 = vmatpush.msra.mxu0 0.0
      %10217 = vmatpush.msra.mxu0 0.0
      %10218 = vmatpush.msra.mxu0 0.0
      %10219 = vmatpush.msra.mxu0 0.0
      %10220 = vmatpush.msra.mxu0 0.0
      %10221 = vmatpush.msra.mxu0 0.0
      %10222 = vmatpush.msra.mxu0 0.0
      %10223 = vmatpush.msra.mxu0 0.0
      %v10224 = vand.u32 %v10058, 4294901760
      %10225 = vmatpush.msra.mxu0 %v10224
      %v10226 = vand.u32 %v10057, 4294901760
      %10227 = vmatpush.msra.mxu0 %v10226
      %v10228 = vand.u32 %v10056, 4294901760
      %10229 = vmatpush.msra.mxu0 %v10228
      %v10230 = vand.u32 %v10055, 4294901760
      %10231 = vmatpush.msra.mxu0 %v10230
      %v10232 = vand.u32 %v10054, 4294901760
      %10233 = vmatpush.msra.mxu0 %v10232
      %v10234 = vand.u32 %v10053, 4294901760
      %10235 = vmatpush.msra.mxu0 %v10234
      %v10236 = vand.u32 %v10052, 4294901760
      %10237 = vmatpush.msra.mxu0 %v10236
      %v10238 = vand.u32 %v10051, 4294901760
      %10239 = vmatpush.msra.mxu0 %v10238
      %v10240 = vand.u32 %v10062, 4294901760
      %v10241 = vsub.f32 %v10062, %v10240
      %v10242 = vand.u32 %v10241, 4294901760
      %10243 = vmatmul.f32.gmra.mxu0 %v10242
      %v10244 = vpop.f32.mrf.mxu0
      %v10245 = vadd.f32 %v10209, %v10244
      %v10246 = vand.u32 %v10065, 4294901760
      %v10247 = vsub.f32 %v10065, %v10246
      %v10248 = vand.u32 %v10247, 4294901760
      %10249 = vmatmul.f32.gmra.mxu0 %v10248
      %v10250 = vpop.f32.mrf.mxu0
      %v10251 = vadd.f32 %v10214, %v10250
      %10252 = vdwg.mxu0
      %10253 = vmatpush.msra.mxu0 0.0
      %10254 = vmatpush.msra.mxu0 0.0
      %10255 = vmatpush.msra.mxu0 0.0
      %10256 = vmatpush.msra.mxu0 0.0
      %10257 = vmatpush.msra.mxu0 0.0
      %10258 = vmatpush.msra.mxu0 0.0
      %10259 = vmatpush.msra.mxu0 0.0
      %10260 = vmatpush.msra.mxu0 0.0
      %v10261 = vand.u32 %v10058, 4294901760
      %v10262 = vsub.f32 %v10058, %v10261
      %v10263 = vand.u32 %v10262, 4294901760
      %10264 = vmatpush.msra.mxu0 %v10263
      %v10265 = vand.u32 %v10057, 4294901760
      %v10266 = vsub.f32 %v10057, %v10265
      %v10267 = vand.u32 %v10266, 4294901760
      %10268 = vmatpush.msra.mxu0 %v10267
      %v10269 = vand.u32 %v10056, 4294901760
      %v10270 = vsub.f32 %v10056, %v10269
      %v10271 = vand.u32 %v10270, 4294901760
      %10272 = vmatpush.msra.mxu0 %v10271
      %v10273 = vand.u32 %v10055, 4294901760
      %v10274 = vsub.f32 %v10055, %v10273
      %v10275 = vand.u32 %v10274, 4294901760
      %10276 = vmatpush.msra.mxu0 %v10275
      %v10277 = vand.u32 %v10054, 4294901760
      %v10278 = vsub.f32 %v10054, %v10277
      %v10279 = vand.u32 %v10278, 4294901760
      %10280 = vmatpush.msra.mxu0 %v10279
      %v10281 = vand.u32 %v10053, 4294901760
      %v10282 = vsub.f32 %v10053, %v10281
      %v10283 = vand.u32 %v10282, 4294901760
      %10284 = vmatpush.msra.mxu0 %v10283
      %v10285 = vand.u32 %v10052, 4294901760
      %v10286 = vsub.f32 %v10052, %v10285
      %v10287 = vand.u32 %v10286, 4294901760
      %10288 = vmatpush.msra.mxu0 %v10287
      %v10289 = vand.u32 %v10051, 4294901760
      %v10290 = vsub.f32 %v10051, %v10289
      %v10291 = vand.u32 %v10290, 4294901760
      %10292 = vmatpush.msra.mxu0 %v10291
      %v10293 = vand.u32 %v10062, 4294901760
      %10294 = vmatmul.f32.gmra.mxu0 %v10293
      %v10295 = vpop.f32.mrf.mxu0
      %v10296 = vadd.f32 %v10245, %v10295
      %v10297 = vand.u32 %v10065, 4294901760
      %10298 = vmatmul.f32.gmra.mxu0 %v10297
      %v10299 = vpop.f32.mrf.mxu0
      %v10300 = vadd.f32 %v10251, %v10299
      %10301 = vdwg.mxu0
      %10302 = vmatpush.msra.mxu0 0.0
      %10303 = vmatpush.msra.mxu0 0.0
      %10304 = vmatpush.msra.mxu0 0.0
      %10305 = vmatpush.msra.mxu0 0.0
      %10306 = vmatpush.msra.mxu0 0.0
      %10307 = vmatpush.msra.mxu0 0.0
      %10308 = vmatpush.msra.mxu0 0.0
      %10309 = vmatpush.msra.mxu0 0.0
      %v10310 = vand.u32 %v10058, 4294901760
      %10311 = vmatpush.msra.mxu0 %v10310
      %v10312 = vand.u32 %v10057, 4294901760
      %10313 = vmatpush.msra.mxu0 %v10312
      %v10314 = vand.u32 %v10056, 4294901760
      %10315 = vmatpush.msra.mxu0 %v10314
      %v10316 = vand.u32 %v10055, 4294901760
      %10317 = vmatpush.msra.mxu0 %v10316
      %v10318 = vand.u32 %v10054, 4294901760
      %10319 = vmatpush.msra.mxu0 %v10318
      %v10320 = vand.u32 %v10053, 4294901760
      %10321 = vmatpush.msra.mxu0 %v10320
      %v10322 = vand.u32 %v10052, 4294901760
      %10323 = vmatpush.msra.mxu0 %v10322
      %v10324 = vand.u32 %v10051, 4294901760
      %10325 = vmatpush.msra.mxu0 %v10324
      %v10326 = vand.u32 %v10062, 4294901760
      %10327 = vmatmul.f32.gmra.mxu0 %v10326
      %v10328 = vpop.f32.mrf.mxu0
      %v10329 = vadd.f32 %v10296, %v10328
      %v10330 = vand.u32 %v10065, 4294901760
      %10331 = vmatmul.f32.gmra.mxu0 %v10330
      %v10332 = vpop.f32.mrf.mxu0
      %v10333 = vadd.f32 %v10300, %v10332
      %10334 = vdwg.mxu0
      %vm10335 = vcmask 15360
      %10336 = vst.msk [vmem:[%s413] sm:$0xff] %vm10335, %v10329
      %10337 = vst.msk [vmem:[%s413 + $0x8] sm:$0xff] %vm10335, %v10333
      %p10338 = scmp.lt.s32.totalorder %s23, 1
      %s10339 = scalar_select %p10338, %s23, 1
      %s10340 = smul.addr %s10339, 2
      %s10341 = smul.addr %s10340, 8
      %s10342 = scalar_lea.vmem %s12, %s10341
      // Predicated region
      $region69: #{set_channel_estimation_forward.1} parent=67 // pred_check
        %p10343 = pneg %p298
      $region70: #{set_channel_estimation_forward.1} parent=67 // pred_check_branch
        %10345 = sbr.rel (%p10343) target = $region72
      $region71: #{set_channel_estimation_forward.1} parent=67 // pred_region
        _
      $region72: #{set_channel_estimation_forward.1} parent=67 // pred_fallthru
        _
    $region68: #{set_channel_estimation_forward.1} parent=5 // pred_fallthru
      _
    %p10346 = scmp.le.s32.totalorder 2, %s18
    // Predicated region
    $region73: #{set_channel_estimation_forward.1} parent=5 // pred_check
      %p10347 = pneg %p10346
    $region74: #{set_channel_estimation_forward.1} parent=5 // pred_check_branch
      %10349 = sbr.rel (%p10347) target = $region76
    $region75: #{set_channel_estimation_forward.1} parent=5 // pred_region
      %s10350 = ssub.s32 %s18, 2
      // Predicated region
      $region77: #{set_channel_estimation_forward.1} parent=75 // pred_check
        %p10351 = pneg %p304
      $region78: #{set_channel_estimation_forward.1} parent=75 // pred_check_branch
        %10353 = sbr.rel (%p10351) target = $region80
      $region79: #{set_channel_estimation_forward.1} parent=75 // pred_region
        %p10354 = scmp.lt.s32.totalorder %s24, 1
        %s10355 = scalar_select %p10354, %s24, 1
        %s10356 = smul.addr %s10355, 2
        %s10357 = smul.addr %s10356, 8
        %s10358 = scalar_lea.vmem %s12, %s10357
      $region80: #{set_channel_estimation_forward.1} parent=75 // pred_fallthru
        _
    $region76: #{set_channel_estimation_forward.1} parent=5 // pred_fallthru
      _
  $region6: #{set_channel_estimation_forward.1} parent=0 // loop_footer
    %s22 = sadd.s32 1, %s18
  $region7: #{set_channel_estimation_forward.1} parent=0 // loop_footer_branch
    %17 = sbr.rel target = $region3
  $region8: #{set_channel_estimation_forward.1} parent=0 // loop_exit
    _

</llo_original>
